<compile_context>
chip_gen: v7x
topology: tpu7x:2x2x1
jax: 0.10.0
libtpu: 0.0.40
codegen_flags: <defaults>
</compile_context>

<pallas_src>
import functools

import jax
import jax.numpy as jnp
from jax.experimental import pallas as pl
from jax.experimental.pallas import tpu as pltpu


def _round_up(n, m):
    return ((n + m - 1) // m) * m


def _pick_tile_rows(h0, u, w, target_m=512):
    """Largest divisor of h0 whose (row-upsampled) tile has <= target_m pixels."""
    best = 1
    for d in range(1, h0 + 1):
        if h0 % d == 0 and d * u * w <= target_m:
            best = d
    return best


def _repeat_rows(v, u):
    """Nearest-neighbor repeat along the leading (row) axis.

    broadcast + leading-dims-only reshape: the minor (sublane, lane) dims are
    untouched, so this lowers cheaply in Mosaic.
    """
    if u == 1:
        return v
    r = v.shape[0]
    rest = tuple(v.shape[1:])
    return jnp.broadcast_to(v[:, None], (r, u) + rest).reshape((r * u,) + rest)


def _im2col_matmul(pad_ref, w_ref, th, w, cin):
    """3x3 im2col from the (th+2, Wp8, cin) halo scratch -> one MXU matmul."""
    m = th * w
    cols = []
    for dh in range(3):
        for dw in range(3):
            cols.append(pad_ref[dh:dh + th, dw:dw + w, :].reshape(m, cin))
    col = jnp.concatenate(cols, axis=-1)                    # (m, 9*cin) bf16
    return jnp.dot(col, w_ref[...], preferred_element_type=jnp.float32)


def _vmem_limit_bytes(h0, h, w, wp8, th, cip, cop):
    """Rough per-call working set (double-buffered blocks + weights + scratch
    + im2col/accumulator temporaries), clamped to leave headroom on v7x."""
    bf16, f32 = 2, 4
    c = max(cip, cop)
    need = (
        2 * (h0 + 2) * wp8 * cip * bf16          # per-image xp block (A, C)
        + 2 * h * wp8 * cop * bf16               # per-image y1 block (B)
        + 6 * th * wp8 * cop * bf16              # tiled y1/y2/out blocks
        + (9 * cip + 9 * cop + cip + 8) * cop * f32   # weights + BN vectors
        + (th + 2) * wp8 * c * bf16              # halo scratch
        + 9 * th * w * c * bf16                  # im2col temporary
        + 4 * th * w * cop * f32                 # f32 accumulators / temps
    )
    return int(min(max(need + (4 << 20), 16 << 20), 40 << 20))


# ---------------------------------------------------------------------------
# Pass A: conv1 (+ in-kernel nearest row-upsample) + partial BN1 statistics.
# ---------------------------------------------------------------------------
def _conv1_kernel(xp_ref, w1_ref, y1_ref, st_ref, pad_ref, *,
                  TH0, u, W, Wp8, Cip, Cop):
    t = pl.program_id(1)
    TH = TH0 * u
    r0 = pl.multiple_of(t * TH0, TH0)
    # Source window: un-row-upsampled rows [t*TH0-1, (t+1)*TH0] of the input,
    # already shifted by the 1-row zero halo in HBM -> padded rows [r0, r0+TH0+2).
    win = xp_ref[0, pl.ds(r0, TH0 + 2), :, :]               # (TH0+2, Wp8, Cip)
    if u == 1:
        pad_ref[...] = win
    else:
        pad_ref[0:1, :, :] = win[0:1]                        # top halo row
        pad_ref[TH + 1:TH + 2, :, :] = win[TH0 + 1:TH0 + 2]  # bottom halo row
        pad_ref[1:TH + 1, :, :] = _repeat_rows(win[1:TH0 + 1], u)

    # conv1 (bias dropped: cancelled by train-mode batch-stat BN).
    acc = _im2col_matmul(pad_ref, w1_ref, TH, W, Cip)        # (TH*W, Cop) f32

    # Per-tile partial statistics for the two-pass BatchNorm.
    st_ref[0, 0, 0:1, :] = jnp.sum(acc, axis=0, keepdims=True)
    st_ref[0, 0, 1:2, :] = jnp.sum(acc * acc, axis=0, keepdims=True)

    # Pre-BN conv1 output, stored column-padded (zero halo) for conv2's reads.
    y1_ref[0, :, 0:1, :] = jnp.zeros((TH, 1, Cop), jnp.bfloat16)
    y1_ref[0, :, W + 1:Wp8, :] = jnp.zeros((TH, Wp8 - W - 1, Cop), jnp.bfloat16)
    y1_ref[0, :, 1:W + 1, :] = acc.reshape(TH, W, Cop).astype(jnp.bfloat16)


# ---------------------------------------------------------------------------
# Pass B: bn1 + relu + conv2 + partial BN2 statistics.
# ---------------------------------------------------------------------------
def _conv2_kernel(y1_ref, s1_ref, b1_ref, w2_ref, y2_ref, st_ref, pad_ref, *,
                  TH, W, Wp8, Cop, H):
    t = pl.program_id(1)
    r0 = pl.multiple_of(t * TH, TH)

    def bn1_relu(v):
        a = v.astype(jnp.float32) * s1_ref[...] + b1_ref[...]
        return jnp.maximum(a, 0.0).astype(jnp.bfloat16)

    # Assemble the row halo (neighbor rows) of the post-activation feature map.
    pad_ref[0:1, :, :] = bn1_relu(
        y1_ref[0, pl.ds(jnp.maximum(r0 - 1, 0), 1), :, :])
    pad_ref[1:TH + 1, :, :] = bn1_relu(y1_ref[0, pl.ds(r0, TH), :, :])
    pad_ref[TH + 1:TH + 2, :, :] = bn1_relu(
        y1_ref[0, pl.ds(jnp.minimum(r0 + TH, H - 1), 1), :, :])

    # conv2's zero padding happens AFTER bn1/relu in the reference module, so
    # zero the halo in the post-activation domain.
    pad_ref[:, 0:1, :] = jnp.zeros((TH + 2, 1, Cop), jnp.bfloat16)
    pad_ref[:, W + 1:Wp8, :] = jnp.zeros((TH + 2, Wp8 - W - 1, Cop),
                                         jnp.bfloat16)

    @pl.when(t == 0)
    def _():
        pad_ref[0:1, :, :] = jnp.zeros((1, Wp8, Cop), jnp.bfloat16)

    @pl.when(t == pl.num_programs(1) - 1)
    def _():
        pad_ref[TH + 1:TH + 2, :, :] = jnp.zeros((1, Wp8, Cop), jnp.bfloat16)

    # conv2 (bias dropped: cancelled by train-mode BN).
    acc = _im2col_matmul(pad_ref, w2_ref, TH, W, Cop)        # (TH*W, Cop) f32

    st_ref[0, 0, 0:1, :] = jnp.sum(acc, axis=0, keepdims=True)
    st_ref[0, 0, 1:2, :] = jnp.sum(acc * acc, axis=0, keepdims=True)
    y2_ref[0, :, :, :] = acc.reshape(TH, W, Cop).astype(jnp.bfloat16)


# ---------------------------------------------------------------------------
# Pass C: bn2 + relu + shortcut (1x1 conv or identity) + residual add.
# ---------------------------------------------------------------------------
def _final_kernel(y2_ref, s2_ref, b2_ref, xp_ref, *rest,
                  TH0, u, W, Cip, Cop, has_shortcut):
    if has_shortcut:
        ws_ref, bs_ref, out_ref = rest
    else:
        out_ref, = rest
    t = pl.program_id(1)
    TH = TH0 * u

    act = jnp.maximum(
        y2_ref[0].astype(jnp.float32) * s2_ref[...] + b2_ref[...], 0.0)

    # Shortcut on the un-row-upsampled input: a 1x1 conv commutes with nearest
    # upsampling, so matmul TH0 rows and replicate the result afterwards.
    r0 = pl.multiple_of(t * TH0, TH0)
    src = xp_ref[0, pl.ds(r0 + 1, TH0), :, :][:, 1:W + 1, :]   # (TH0, W, Cip)
    if has_shortcut:
        sc = jnp.dot(src.reshape(TH0 * W, Cip), ws_ref[...],
                     preferred_element_type=jnp.float32) + bs_ref[...]
        sc = sc.reshape(TH0, W, Cop)
    else:
        sc = src.astype(jnp.float32)        # identity: Cip == Cop and u == 1
    sc = _repeat_rows(sc, u)

    out_ref[0] = (act + sc).astype(out_ref.dtype)


# ---------------------------------------------------------------------------
# Wrapper (NCHW public API, like the PyTorch module).
# ---------------------------------------------------------------------------
def generator_residual_block_postact(x_nchw, params, upsampling):
    """x_nchw: (N, Cin, H0, W0) float32 -> (N, Cout, u*H0, u*W0) float32."""
    N, Cin, H0, W0 = x_nchw.shape
    Cout = params["w1"].shape[-1]
    u = int(upsampling)
    has_shortcut = params.get("ws") is not None
    if not has_shortcut:
        assert Cin == Cout and u == 1

    eps = 1e-5
    Cip = _round_up(Cin, 128)
    Cop = _round_up(Cout, 128)
    H, W = H0 * u, W0 * u
    Wp8 = _round_up(W + 2, 8)          # sublane-aligned padded width
    TH0 = _pick_tile_rows(H0, u, W)    # source rows per tile
    TH = TH0 * u                       # output rows per tile
    T = H0 // TH0
    M = N * H * W

    # NCHW -> NHWC, bf16.  Columns are nearest-upsampled here; rows in-kernel.
    x = jnp.transpose(x_nchw, (0, 2, 3, 1)).astype(jnp.bfloat16)
    if u > 1:
        x = jnp.repeat(x, u, axis=2)
    # 1-px zero halo (+ sublane alignment) on W, 1-row halo on H0, channel pad.
    xp = jnp.pad(x, ((0, 0), (1, 1), (1, Wp8 - W - 1), (0, Cip - Cin)))

    # Weights in im2col layout, bf16 for the MXU.
    w1 = jnp.pad(params["w1"],
                 ((0, 0), (0, 0), (0, Cip - Cin), (0, Cop - Cout))
                 ).reshape(9 * Cip, Cop).astype(jnp.bfloat16)
    w2 = jnp.pad(params["w2"],
                 ((0, 0), (0, 0), (0, Cop - Cout), (0, Cop - Cout))
                 ).reshape(9 * Cop, Cop).astype(jnp.bfloat16)

    def padc(v):
        return jnp.pad(v, (0, Cop - Cout)).astype(jnp.float32)

    def bn_affine(partial_stats, gamma, beta):
        s = jnp.sum(partial_stats, axis=(0, 1))              # (2, Cop)
        mean = s[0] / M
        var = jnp.maximum(s[1] / M - mean * mean, 0.0)       # clamped 1-pass var
        scale = gamma * jax.lax.rsqrt(var + eps)
        shift = beta - mean * scale
        return scale.reshape(1, Cop), shift.reshape(1, Cop)

    cparams = pltpu.CompilerParams(
        dimension_semantics=("parallel", "parallel"),
        vmem_limit_bytes=_vmem_limit_bytes(H0, H, W, Wp8, TH, Cip, Cop),
    )

    tile_spec = pl.BlockSpec((1, TH, W, Cop), lambda n, t: (n, t, 0, 0))
    vec_spec = pl.BlockSpec((1, Cop), lambda n, t: (0, 0))
    stat_spec = pl.BlockSpec((1, 1, 2, Cop), lambda n, t: (n, t, 0, 0))
    stat_shape = jax.ShapeDtypeStruct((N, T, 2, Cop), jnp.float32)
    xp_spec = pl.BlockSpec((1, H0 + 2, Wp8, Cip), lambda n, t: (n, 0, 0, 0))

    # ---- pass A: conv1 + partial BN1 stats --------------------------------
    y1, st1 = pl.pallas_call(
        functools.partial(_conv1_kernel, TH0=TH0, u=u, W=W, Wp8=Wp8,
                          Cip=Cip, Cop=Cop),
        grid=(N, T),
        in_specs=[xp_spec,
                  pl.BlockSpec((9 * Cip, Cop), lambda n, t: (0, 0))],
        out_specs=[pl.BlockSpec((1, TH, Wp8, Cop), lambda n, t: (n, t, 0, 0)),
                   stat_spec],
        out_shape=[jax.ShapeDtypeStruct((N, H, Wp8, Cop), jnp.bfloat16),
                   stat_shape],
        scratch_shapes=[pltpu.VMEM((TH + 2, Wp8, Cip), jnp.bfloat16)],
        compiler_params=cparams,
    )(xp, w1)
    s1, b1 = bn_affine(st1, padc(params["g1"]), padc(params["be1"]))

    # ---- pass B: bn1+relu + conv2 + partial BN2 stats ----------------------
    y2, st2 = pl.pallas_call(
        functools.partial(_conv2_kernel, TH=TH, W=W, Wp8=Wp8, Cop=Cop, H=H),
        grid=(N, T),
        in_specs=[pl.BlockSpec((1, H, Wp8, Cop), lambda n, t: (n, 0, 0, 0)),
                  vec_spec, vec_spec,
                  pl.BlockSpec((9 * Cop, Cop), lambda n, t: (0, 0))],
        out_specs=[tile_spec, stat_spec],
        out_shape=[jax.ShapeDtypeStruct((N, H, W, Cop), jnp.bfloat16),
                   stat_shape],
        scratch_shapes=[pltpu.VMEM((TH + 2, Wp8, Cop), jnp.bfloat16)],
        compiler_params=cparams,
    )(y1, s1, b1, w2)
    s2, b2 = bn_affine(st2, padc(params["g2"]), padc(params["be2"]))

    # ---- pass C: bn2+relu + shortcut + residual add ------------------------
    args = [y2, s2, b2, xp]
    in_specs = [tile_spec, vec_spec, vec_spec, xp_spec]
    if has_shortcut:
        ws = jnp.pad(params["ws"], ((0, Cip - Cin), (0, Cop - Cout))
                     ).astype(jnp.bfloat16)
        bs = padc(params["bs"]).reshape(1, Cop)
        args += [ws, bs]
        in_specs += [pl.BlockSpec((Cip, Cop), lambda n, t: (0, 0)), vec_spec]

    out = pl.pallas_call(
        functools.partial(_final_kernel, TH0=TH0, u=u, W=W, Cip=Cip, Cop=Cop,
                          has_shortcut=has_shortcut),
        grid=(N, T),
        in_specs=in_specs,
        out_specs=tile_spec,
        out_shape=jax.ShapeDtypeStruct((N, H, W, Cop), jnp.bfloat16),
        compiler_params=cparams,
    )(*args)

    # NHWC (channel-padded, bf16) -> NCHW float32 in a single XLA epilogue.
    return jnp.transpose(out[..., :Cout], (0, 3, 1, 2)).astype(jnp.float32)


# ---------------------------------------------------------------------------
# Parameter init + pure-JAX f32 reference (mirrors the PyTorch forward).
# ---------------------------------------------------------------------------
def init_params(key, in_ch, out_ch, upsampling):
    ks = jax.random.split(key, 6)

    def xavier(k, shape, fan_in, fan_out):
        bound = (6.0 / (fan_in + fan_out)) ** 0.5
        return jax.random.uniform(k, shape, jnp.float32, -bound, bound)

    w1 = xavier(ks[0], (3, 3, in_ch, out_ch), in_ch * 9, out_ch * 9)
    w2 = xavier(ks[1], (3, 3, out_ch, out_ch), out_ch * 9, out_ch * 9)
    b1 = jax.random.uniform(ks[2], (out_ch,), jnp.float32, -0.1, 0.1)
    b2 = jax.random.uniform(ks[3], (out_ch,), jnp.float32, -0.1, 0.1)

    if in_ch != out_ch or upsampling > 1:
        ws = xavier(ks[4], (in_ch, out_ch), in_ch, out_ch)
        bs = jax.random.uniform(ks[5], (out_ch,), jnp.float32, -0.1, 0.1)
    else:
        ws, bs = None, None

    return dict(
        w1=w1, b1=b1, g1=jnp.ones((out_ch,), jnp.float32),
        be1=jnp.zeros((out_ch,), jnp.float32),
        w2=w2, b2=b2, g2=jnp.ones((out_ch,), jnp.float32),
        be2=jnp.zeros((out_ch,), jnp.float32),
        ws=ws, bs=bs,
    )


def _ref_forward(x_nchw, params, upsampling):
    """Pure-JAX f32 reference in NCHW (keeps the conv biases -> validates the
    in-kernel bias cancellation under batch-stat BN)."""
    x = x_nchw.astype(jnp.float32)
    if upsampling > 1:
        x = jnp.repeat(jnp.repeat(x, upsampling, axis=2), upsampling, axis=3)

    def conv3(y, w, b):  # w: (3,3,Ci,Co)
        z = jax.lax.conv_general_dilated(
            y, jnp.transpose(w, (3, 2, 0, 1)), (1, 1), ((1, 1), (1, 1)),
            dimension_numbers=("NCHW", "OIHW", "NCHW"))
        return z + b.reshape(1, -1, 1, 1)

    def bn(y, g, be):
        m = y.mean(axis=(0, 2, 3), keepdims=True)
        v = ((y - m) ** 2).mean(axis=(0, 2, 3), keepdims=True)
        return (y - m) / jnp.sqrt(v + 1e-5) * g.reshape(1, -1, 1, 1) \
            + be.reshape(1, -1, 1, 1)

    h = jnp.maximum(bn(conv3(x, params["w1"], params["b1"]),
                       params["g1"], params["be1"]), 0.0)
    h = jnp.maximum(bn(conv3(h, params["w2"], params["b2"]),
                       params["g2"], params["be2"]), 0.0)
    if params.get("ws") is not None:
        sc = jnp.einsum("nchw,cd->ndhw", x, params["ws"]) \
            + params["bs"].reshape(1, -1, 1, 1)
    else:
        sc = x
    return h + sc


if __name__ == "__main__":
    key = jax.random.PRNGKey(0)
    k_x, k_p, k_x2, k_p2 = jax.random.split(key, 4)

    # ---- case 1: channel change + 2x nearest upsample (1x1 shortcut conv) ---
    N, in_ch, out_ch, H0, W0, upsampling = 2, 4, 8, 16, 16, 2
    x = jax.random.normal(k_x, (N, in_ch, H0, W0), jnp.float32)
    params = init_params(k_p, in_ch, out_ch, upsampling)

    out = jax.block_until_ready(
        generator_residual_block_postact(x, params, upsampling))
    ref = jax.block_until_ready(_ref_forward(x, params, upsampling))
    assert out.shape == (N, out_ch, H0 * upsampling, W0 * upsampling), out.shape
    err = jnp.abs(out - ref)
    tol = 7e-2 + 3e-2 * jnp.abs(ref)          # bf16-path tolerance
    assert bool(jnp.all(err <= tol)), f"max abs err {float(jnp.max(err))}"

    # ---- case 2: identity shortcut (in_ch == out_ch, no upsampling) ---------
    N2, ch, H2, W2 = 2, 8, 16, 16
    x2 = jax.random.normal(k_x2, (N2, ch, H2, W2), jnp.float32)
    params2 = init_params(k_p2, ch, ch, 1)
    out2 = jax.block_until_ready(
        generator_residual_block_postact(x2, params2, 1))
    ref2 = jax.block_until_ready(_ref_forward(x2, params2, 1))
    assert out2.shape == (N2, ch, H2, W2), out2.shape
    err2 = jnp.abs(out2 - ref2)
    tol2 = 7e-2 + 3e-2 * jnp.abs(ref2)
    assert bool(jnp.all(err2 <= tol2)), f"max abs err {float(jnp.max(err2))}"

    print("KERNEL_OK")
</pallas_src>

<mosaic_0001>
module attributes {stable_mosaic.version = 11 : i64} {
  func.func @_conv1_kernel(%arg0: i32, %arg1: i32, %arg2: memref<1x18x40x128xbf16, #tpu.memory_space<vmem>>, %arg3: memref<1152x128xbf16, #tpu.memory_space<vmem>>, %arg4: memref<1x16x40x128xbf16, #tpu.memory_space<vmem>>, %arg5: memref<1x1x2x128xf32, #tpu.memory_space<vmem>>, %arg6: memref<18x40x128xbf16, #tpu.memory_space<vmem>>) attributes {dimension_semantics = [#tpu.dimension_semantics<parallel>, #tpu.dimension_semantics<parallel>], iteration_bounds = array<i64: 2, 2>, scalar_prefetch = 0 : i64, scratch_operands = 1 : i64, tpu.core_type = #tpu.core_type<tc>, window_params = [{transform_indices = @transform_0, window_bounds = array<i64: 1, 18, 40, 128>}, {pipeline_mode = #tpu.pipeline_mode<synchronous>, transform_indices = @transform_1, window_bounds = array<i64: 1152, 128>}, {transform_indices = @transform_2, window_bounds = array<i64: 1, 16, 40, 128>}, {transform_indices = @transform_3, window_bounds = array<i64: 1, 1, 2, 128>}]} {
    %c8_i32 = arith.constant 8 : i32
    %0 = arith.muli %arg1, %c8_i32 : i32
    %1 = tpu.assume_multiple %0, 8 : i32
    %c0 = arith.constant 0 : index
    %2 = arith.index_cast %1 : i32 to index
    %c0_0 = arith.constant 0 : index
    %c0_1 = arith.constant 0 : index
    %3 = vector.load %arg2[%c0, %2, %c0_0, %c0_1] : memref<1x18x40x128xbf16, #tpu.memory_space<vmem>>, vector<1x10x40x128xbf16>
    %4 = vector.shape_cast %3 : vector<1x10x40x128xbf16> to vector<10x40x128xbf16>
    %5 = vector.extract_strided_slice %4 {offsets = [0, 0, 0], sizes = [1, 40, 128], strides = [1, 1, 1]} : vector<10x40x128xbf16> to vector<1x40x128xbf16>
    %c0_2 = arith.constant 0 : index
    %c0_3 = arith.constant 0 : index
    %c0_4 = arith.constant 0 : index
    %6 = vector.load %arg6[%c0_2, %c0_3, %c0_4] : memref<18x40x128xbf16, #tpu.memory_space<vmem>>, vector<1x40x128xbf16>
    tpu.vector_store %arg6[%c0_2, %c0_3, %c0_4], %5 {strides = array<i32>} : memref<18x40x128xbf16, #tpu.memory_space<vmem>>, vector<1x40x128xbf16>,
    %7 = vector.extract_strided_slice %4 {offsets = [9, 0, 0], sizes = [1, 40, 128], strides = [1, 1, 1]} : vector<10x40x128xbf16> to vector<1x40x128xbf16>
    %c17 = arith.constant 17 : index
    %c0_5 = arith.constant 0 : index
    %c0_6 = arith.constant 0 : index
    %8 = vector.load %arg6[%c17, %c0_5, %c0_6] : memref<18x40x128xbf16, #tpu.memory_space<vmem>>, vector<1x40x128xbf16>
    tpu.vector_store %arg6[%c17, %c0_5, %c0_6], %7 {strides = array<i32>} : memref<18x40x128xbf16, #tpu.memory_space<vmem>>, vector<1x40x128xbf16>,
    %9 = vector.extract_strided_slice %4 {offsets = [1, 0, 0], sizes = [8, 40, 128], strides = [1, 1, 1]} : vector<10x40x128xbf16> to vector<8x40x128xbf16>
    %10 = vector.shape_cast %9 : vector<8x40x128xbf16> to vector<8x1x40x128xbf16>
    %11 = vector.shape_cast %10 : vector<8x1x40x128xbf16> to vector<8x1x40x128xbf16>
    %12 = vector.broadcast %11 : vector<8x1x40x128xbf16> to vector<8x2x40x128xbf16>
    %13 = vector.shape_cast %12 : vector<8x2x40x128xbf16> to vector<16x40x128xbf16>
    %c1 = arith.constant 1 : index
    %c0_7 = arith.constant 0 : index
    %c0_8 = arith.constant 0 : index
    %14 = vector.load %arg6[%c1, %c0_7, %c0_8] : memref<18x40x128xbf16, #tpu.memory_space<vmem>>, vector<16x40x128xbf16>
    tpu.vector_store %arg6[%c1, %c0_7, %c0_8], %13 {strides = array<i32>} : memref<18x40x128xbf16, #tpu.memory_space<vmem>>, vector<16x40x128xbf16>,
    %c0_9 = arith.constant 0 : index
    %c0_10 = arith.constant 0 : index
    %c0_11 = arith.constant 0 : index
    %15 = vector.load %arg6[%c0_9, %c0_10, %c0_11] : memref<18x40x128xbf16, #tpu.memory_space<vmem>>, vector<16x32x128xbf16>
    %16 = vector.shape_cast %15 : vector<16x32x128xbf16> to vector<512x128xbf16>
    %c0_12 = arith.constant 0 : index
    %c1_13 = arith.constant 1 : index
    %c0_14 = arith.constant 0 : index
    %17 = vector.load %arg6[%c0_12, %c1_13, %c0_14] : memref<18x40x128xbf16, #tpu.memory_space<vmem>>, vector<16x32x128xbf16>
    %18 = vector.shape_cast %17 : vector<16x32x128xbf16> to vector<512x128xbf16>
    %c0_15 = arith.constant 0 : index
    %c2 = arith.constant 2 : index
    %c0_16 = arith.constant 0 : index
    %19 = vector.load %arg6[%c0_15, %c2, %c0_16] : memref<18x40x128xbf16, #tpu.memory_space<vmem>>, vector<16x32x128xbf16>
    %20 = vector.shape_cast %19 : vector<16x32x128xbf16> to vector<512x128xbf16>
    %c1_17 = arith.constant 1 : index
    %c0_18 = arith.constant 0 : index
    %c0_19 = arith.constant 0 : index
    %21 = vector.load %arg6[%c1_17, %c0_18, %c0_19] : memref<18x40x128xbf16, #tpu.memory_space<vmem>>, vector<16x32x128xbf16>
    %22 = vector.shape_cast %21 : vector<16x32x128xbf16> to vector<512x128xbf16>
    %c1_20 = arith.constant 1 : index
    %c1_21 = arith.constant 1 : index
    %c0_22 = arith.constant 0 : index
    %23 = vector.load %arg6[%c1_20, %c1_21, %c0_22] : memref<18x40x128xbf16, #tpu.memory_space<vmem>>, vector<16x32x128xbf16>
    %24 = vector.shape_cast %23 : vector<16x32x128xbf16> to vector<512x128xbf16>
    %c1_23 = arith.constant 1 : index
    %c2_24 = arith.constant 2 : index
    %c0_25 = arith.constant 0 : index
    %25 = vector.load %arg6[%c1_23, %c2_24, %c0_25] : memref<18x40x128xbf16, #tpu.memory_space<vmem>>, vector<16x32x128xbf16>
    %26 = vector.shape_cast %25 : vector<16x32x128xbf16> to vector<512x128xbf16>
    %c2_26 = arith.constant 2 : index
    %c0_27 = arith.constant 0 : index
    %c0_28 = arith.constant 0 : index
    %27 = vector.load %arg6[%c2_26, %c0_27, %c0_28] : memref<18x40x128xbf16, #tpu.memory_space<vmem>>, vector<16x32x128xbf16>
    %28 = vector.shape_cast %27 : vector<16x32x128xbf16> to vector<512x128xbf16>
    %c2_29 = arith.constant 2 : index
    %c1_30 = arith.constant 1 : index
    %c0_31 = arith.constant 0 : index
    %29 = vector.load %arg6[%c2_29, %c1_30, %c0_31] : memref<18x40x128xbf16, #tpu.memory_space<vmem>>, vector<16x32x128xbf16>
    %30 = vector.shape_cast %29 : vector<16x32x128xbf16> to vector<512x128xbf16>
    %c2_32 = arith.constant 2 : index
    %c2_33 = arith.constant 2 : index
    %c0_34 = arith.constant 0 : index
    %31 = vector.load %arg6[%c2_32, %c2_33, %c0_34] : memref<18x40x128xbf16, #tpu.memory_space<vmem>>, vector<16x32x128xbf16>
    %32 = vector.shape_cast %31 : vector<16x32x128xbf16> to vector<512x128xbf16>
    %33 = tpu.concatenate %16, %18, %20, %22, %24, %26, %28, %30, %32 in 1 : vector<512x128xbf16>, vector<512x128xbf16>, vector<512x128xbf16>, vector<512x128xbf16>, vector<512x128xbf16>, vector<512x128xbf16>, vector<512x128xbf16>, vector<512x128xbf16>, vector<512x128xbf16> -> vector<512x1152xbf16>
    %c0_35 = arith.constant 0 : index
    %c0_36 = arith.constant 0 : index
    %34 = vector.load %arg3[%c0_35, %c0_36] : memref<1152x128xbf16, #tpu.memory_space<vmem>>, vector<1152x128xbf16>
    %cst = arith.constant dense<0.000000e+00> : vector<512x128xf32>
    %35 = tpu.matmul %33, %34, %cst {dimension_numbers = #tpu.dot_dimension_numbers<[1], [0], [0], [1], [0, 0, 1, 1], [], []>} : vector<512x1152xbf16>, vector<1152x128xbf16>, vector<512x128xf32> -> vector<512x128xf32>
    %cst_37 = arith.constant dense<0.000000e+00> : vector<128xf32>
    %36 = vector.multi_reduction <add>, %35, %cst_37 [0] : vector<512x128xf32> to vector<128xf32>
    %37 = vector.shape_cast %36 : vector<128xf32> to vector<1x128xf32>
    %c0_38 = arith.constant 0 : index
    %c0_39 = arith.constant 0 : index
    %c0_40 = arith.constant 0 : index
    %c0_41 = arith.constant 0 : index
    %38 = vector.load %arg5[%c0_38, %c0_39, %c0_40, %c0_41] : memref<1x1x2x128xf32, #tpu.memory_space<vmem>>, vector<1x1x1x128xf32>
    %39 = vector.shape_cast %38 : vector<1x1x1x128xf32> to vector<1x128xf32>
    %40 = vector.shape_cast %37 : vector<1x128xf32> to vector<1x1x1x128xf32>
    tpu.vector_store %arg5[%c0_38, %c0_39, %c0_40, %c0_41], %40 {strides = array<i32>} : memref<1x1x2x128xf32, #tpu.memory_space<vmem>>, vector<1x1x1x128xf32>,
    %41 = arith.mulf %35, %35 : vector<512x128xf32>
    %cst_42 = arith.constant dense<0.000000e+00> : vector<128xf32>
    %42 = vector.multi_reduction <add>, %41, %cst_42 [0] : vector<512x128xf32> to vector<128xf32>
    %43 = vector.shape_cast %42 : vector<128xf32> to vector<1x128xf32>
    %c0_43 = arith.constant 0 : index
    %c0_44 = arith.constant 0 : index
    %c1_45 = arith.constant 1 : index
    %c0_46 = arith.constant 0 : index
    %44 = vector.load %arg5[%c0_43, %c0_44, %c1_45, %c0_46] : memref<1x1x2x128xf32, #tpu.memory_space<vmem>>, vector<1x1x1x128xf32>
    %45 = vector.shape_cast %44 : vector<1x1x1x128xf32> to vector<1x128xf32>
    %46 = vector.shape_cast %43 : vector<1x128xf32> to vector<1x1x1x128xf32>
    tpu.vector_store %arg5[%c0_43, %c0_44, %c1_45, %c0_46], %46 {strides = array<i32>} : memref<1x1x2x128xf32, #tpu.memory_space<vmem>>, vector<1x1x1x128xf32>,
    %cst_47 = arith.constant 0.000000e+00 : bf16
    %47 = vector.broadcast %cst_47 : bf16 to vector<16x1x128xbf16>
    %c0_48 = arith.constant 0 : index
    %c0_49 = arith.constant 0 : index
    %c0_50 = arith.constant 0 : index
    %c0_51 = arith.constant 0 : index
    %48 = vector.load %arg4[%c0_48, %c0_49, %c0_50, %c0_51] : memref<1x16x40x128xbf16, #tpu.memory_space<vmem>>, vector<1x16x1x128xbf16>
    %49 = vector.shape_cast %48 : vector<1x16x1x128xbf16> to vector<16x1x128xbf16>
    %50 = vector.shape_cast %47 : vector<16x1x128xbf16> to vector<1x16x1x128xbf16>
    tpu.vector_store %arg4[%c0_48, %c0_49, %c0_50, %c0_51], %50 {strides = array<i32>} : memref<1x16x40x128xbf16, #tpu.memory_space<vmem>>, vector<1x16x1x128xbf16>,
    %cst_52 = arith.constant 0.000000e+00 : bf16
    %51 = vector.broadcast %cst_52 : bf16 to vector<16x7x128xbf16>
    %c0_53 = arith.constant 0 : index
    %c0_54 = arith.constant 0 : index
    %c33 = arith.constant 33 : index
    %c0_55 = arith.constant 0 : index
    %52 = vector.load %arg4[%c0_53, %c0_54, %c33, %c0_55] : memref<1x16x40x128xbf16, #tpu.memory_space<vmem>>, vector<1x16x7x128xbf16>
    %53 = vector.shape_cast %52 : vector<1x16x7x128xbf16> to vector<16x7x128xbf16>
    %54 = vector.shape_cast %51 : vector<16x7x128xbf16> to vector<1x16x7x128xbf16>
    tpu.vector_store %arg4[%c0_53, %c0_54, %c33, %c0_55], %54 {strides = array<i32>} : memref<1x16x40x128xbf16, #tpu.memory_space<vmem>>, vector<1x16x7x128xbf16>,
    %55 = vector.shape_cast %35 : vector<512x128xf32> to vector<16x32x128xf32>
    %56 = arith.truncf %55 : vector<16x32x128xf32> to vector<16x32x128xbf16>
    %c0_56 = arith.constant 0 : index
    %c0_57 = arith.constant 0 : index
    %c1_58 = arith.constant 1 : index
    %c0_59 = arith.constant 0 : index
    %57 = vector.load %arg4[%c0_56, %c0_57, %c1_58, %c0_59] : memref<1x16x40x128xbf16, #tpu.memory_space<vmem>>, vector<1x16x32x128xbf16>
    %58 = vector.shape_cast %57 : vector<1x16x32x128xbf16> to vector<16x32x128xbf16>
    %59 = vector.shape_cast %56 : vector<16x32x128xbf16> to vector<1x16x32x128xbf16>
    tpu.vector_store %arg4[%c0_56, %c0_57, %c1_58, %c0_59], %59 {strides = array<i32>} : memref<1x16x40x128xbf16, #tpu.memory_space<vmem>>, vector<1x16x32x128xbf16>,
    return
  }
  func.func @transform_0(%arg0: i32, %arg1: i32) -> (i32, i32, i32, i32) {
    %c0_i32 = arith.constant 0 : i32
    %c0_i32_0 = arith.constant 0 : i32
    %c0_i32_1 = arith.constant 0 : i32
    %c0_i32_2 = arith.constant 0 : i32
    return %arg0, %c0_i32, %c0_i32_0, %c0_i32_1 : i32, i32, i32, i32
  }
  func.func @transform_1(%arg0: i32, %arg1: i32) -> (i32, i32) {
    %c0_i32 = arith.constant 0 : i32
    %c0_i32_0 = arith.constant 0 : i32
    %c0_i32_1 = arith.constant 0 : i32
    return %c0_i32, %c0_i32_0 : i32, i32
  }
  func.func @transform_2(%arg0: i32, %arg1: i32) -> (i32, i32, i32, i32) {
    %c0_i32 = arith.constant 0 : i32
    %c0_i32_0 = arith.constant 0 : i32
    %c0_i32_1 = arith.constant 0 : i32
    return %arg0, %arg1, %c0_i32, %c0_i32_0 : i32, i32, i32, i32
  }
  func.func @transform_3(%arg0: i32, %arg1: i32) -> (i32, i32, i32, i32) {
    %c0_i32 = arith.constant 0 : i32
    %c0_i32_0 = arith.constant 0 : i32
    %c0_i32_1 = arith.constant 0 : i32
    return %arg0, %arg1, %c0_i32, %c0_i32_0 : i32, i32, i32, i32
  }
}

</mosaic_0001>

<llo_original>
// kernel: tpu_custom_call.1
$region0: #{tpu_custom_call.1}
  #allocation0 [shape = 'u32[]', space=smem, size = 0x4, offset = 0x4, fixed_abs, tag = 'smem constant byte address 0x4 - core index']
  #allocation1 [shape = 'u32[144,128]{1,0:T(1,128)}', space=vmem, size = 0x12000, scoped, tag = 'internal scratch']
  #allocation2 [shape = 'bf16[18,40,128]{2,1,0:T(8,128)(2,1)}', space=vmem, size = 0x2d000, scoped, tag = 'scratch operand']
  %s0 = inlined_call_operand.hbm [shape: bf16[2,18,40,128], index: 0, kind: input, shape index: {}]
  %s1 = inlined_call_operand.hbm [shape: bf16[1152,128], index: 1, kind: input, shape index: {}]
  %s2 = inlined_call_operand.hbm [shape: bf16[2,32,40,128], index: 2, kind: output, shape index: {0}]
  %s3 = inlined_call_operand.hbm [shape: f32[2,2,2,128], index: 3, kind: output, shape index: {1}]
  %4 = xla_tuple %s2, %s3
  %s5 = sld [smem:[#allocation0]]
  $region57: #{tpu_custom_call.1} parent=0
    _
  %s7 = ssub.s32 1, %s5
  %s8 = scalar_select 0, %s7, %s5
  $region1: #{tpu_custom_call.1} parent=0
    #allocation3 [shape = 'u8[368640]{0}', space=vmem, size = 0x5a000, scoped, tag = 'input window, operand 0']
    #allocation4 [shape = 's32[2]{0}', space=sflag, size = 0x8, scoped, tag = 'scoped memory for tpu_custom_call.1']
    #allocation5 [shape = 's32[2]{0}', space=sflag, size = 0x8, scoped, tag = 'scoped memory for tpu_custom_call.1']
    #allocation6 [shape = 'u8[294912]{0}', space=vmem, size = 0x48000, scoped, tag = 'input window, operand 1, single buffered']
    #allocation7 [shape = 's32[1]{0}', space=sflag, size = 0x4, scoped, tag = 'scoped memory for tpu_custom_call.1']
    #allocation8 [shape = 'u8[327680]{0}', space=vmem, size = 0x50000, scoped, tag = 'output window, operand 0']
    #allocation9 [shape = 'u8[2048]{0}', space=vmem, size = 0x800, scoped, tag = 'output window, operand 1']
    #allocation10 [shape = 's32[2]{0}', space=sflag, size = 0x8, scoped, tag = 'scoped memory for tpu_custom_call.1']
    %9 = vsyncpa [#allocation4], 0
    %s10 = scalar_lea.sflag [#allocation4], 1
    %11 = vsyncpa %s10, 0
    %12 = vsyncpa [#allocation7], 0
    %13 = vsyncpa [#allocation5], 0
    %s14 = scalar_lea.sflag [#allocation5], 1
    %15 = vsyncpa %s14, 0
    %16 = vsyncpa [#allocation10], 0
    %s17 = scalar_lea.sflag [#allocation10], 1
    %18 = vsyncpa %s17, 0
    loop: start=0, step=1, limit=6
    $region2: #{tpu_custom_call.1} parent=1 // loop_pre_header
      _
    $region3: #{tpu_custom_call.1} parent=1 // loop_header
      %s20 = sphi 0, %s24
      %p21 = scmp.ge.s32.totalorder %s20, 6
      %s27 = sphi 0, %s39
      %s28 = sphi 0, %s35
      %s29 = sphi 0, %s27
      %s30 = sphi 0, %s28
      %s31 = sphi 0, %s29
      %s32 = sphi 0, %s30
      %s42 = sphi 0, %s44
      %s45 = sphi 0, %s42
      %s46 = sphi 0, %s45
      %s62 = sphi 0, %s46
      %s66 = sphi 0, %s66
      %s68 = sphi 0, %s66
      %s69 = sphi 0, %s68
      %s83 = sphi 0, %s69
      %s91 = sphi 0, %s93
      %s94 = sphi 0, %s91
      %s95 = sphi 0, %s94
      %s111 = sphi 0, %s95
      %s119 = sphi 0, %s121
      %s122 = sphi 0, %s119
      %s123 = sphi 0, %s122
      %s139 = sphi 0, %s123
    $region4: #{tpu_custom_call.1} parent=1 // loop_header_branch
      %23 = sbr.rel (%p21) target = $region8
    $region5: #{tpu_custom_call.1} parent=1 // loop_body
      %s25 = ssub.s32 %s20, 1
      %s26 = ssub.s32 %s20, 2
      %s33 = sadd.s32 1, %s28
      %p34 = scmp.ge.s32.totalorder %s33, 2
      %s35 = scalar_select %p34, 0, %s33
      %s36 = sadd.s32 1, %s27
      %s37 = scalar_select %p34, %s36, %s27
      %p38 = scmp.ge.s32.totalorder %s37, 2
      %s39 = scalar_select %p38, 0, %s37
      %s40 = ssub.s32 %s27, %s39
      %p41 = scmp.eq.s32.totalorder %s40, 0
      %s43 = sadd.s32 %s42, 1
      %s44 = scalar_select %p41, %s42, %s43
      %p47 = pneg %p41
      %p48 = scmp.eq.s32.totalorder %s20, 3
      %p49 = por %p47, %p48
      %p50 = scmp.ne.s32.totalorder %s42, %s45
      %p51 = scmp.eq.s32.totalorder %s20, 0
      %p52 = por %p50, %p51
      %p53 = scmp.ne.s32.totalorder %s42, %s45
      %p54 = scmp.eq.s32.totalorder %s25, 3
      %p55 = por %p53, %p54
      %p56 = scmp.ne.s32.totalorder %s45, %s46
      %p57 = scmp.eq.s32.totalorder %s25, 0
      %p58 = por %p56, %p57
      %p59 = scmp.ne.s32.totalorder %s45, %s46
      %p60 = scmp.eq.s32.totalorder %s26, 3
      %p61 = por %p59, %p60
      %p63 = scmp.ne.s32.totalorder %s46, %s62
      %p64 = scmp.eq.s32.totalorder %s26, 0
      %p65 = por %p63, %p64
      %s67 = sadd.s32 %s66, 1
      %p70 = scmp.eq.s32.totalorder %s20, 3
      %p71 = scmp.ne.s32.totalorder %s66, %s68
      %p72 = scmp.eq.s32.totalorder %s20, 0
      %p73 = por %p71, %p72
      %p74 = scmp.ne.s32.totalorder %s66, %s68
      %p75 = scmp.eq.s32.totalorder %s25, 3
      %p76 = por %p74, %p75
      %p77 = scmp.ne.s32.totalorder %s68, %s69
      %p78 = scmp.eq.s32.totalorder %s25, 0
      %p79 = por %p77, %p78
      %p80 = scmp.ne.s32.totalorder %s68, %s69
      %p81 = scmp.eq.s32.totalorder %s26, 3
      %p82 = por %p80, %p81
      %p84 = scmp.ne.s32.totalorder %s69, %s83
      %p85 = scmp.eq.s32.totalorder %s26, 0
      %p86 = por %p84, %p85
      %s87 = ssub.s32 %s27, %s39
      %s88 = ssub.s32 %s28, %s35
      %s89 = sor.u32 %s87, %s88
      %p90 = scmp.eq.s32.totalorder %s89, 0
      %s92 = sadd.s32 %s91, 1
      %s93 = scalar_select %p90, %s91, %s92
      %p96 = pneg %p90
      %p97 = scmp.eq.s32.totalorder %s20, 3
      %p98 = por %p96, %p97
      %p99 = scmp.ne.s32.totalorder %s91, %s94
      %p100 = scmp.eq.s32.totalorder %s20, 0
      %p101 = por %p99, %p100
      %p102 = scmp.ne.s32.totalorder %s91, %s94
      %p103 = scmp.eq.s32.totalorder %s25, 3
      %p104 = por %p102, %p103
      %p105 = scmp.ne.s32.totalorder %s94, %s95
      %p106 = scmp.eq.s32.totalorder %s25, 0
      %p107 = por %p105, %p106
      %p108 = scmp.ne.s32.totalorder %s94, %s95
      %p109 = scmp.eq.s32.totalorder %s26, 3
      %p110 = por %p108, %p109
      %p112 = scmp.ne.s32.totalorder %s95, %s111
      %p113 = scmp.eq.s32.totalorder %s26, 0
      %p114 = por %p112, %p113
      %s115 = ssub.s32 %s27, %s39
      %s116 = ssub.s32 %s28, %s35
      %s117 = sor.u32 %s115, %s116
      %p118 = scmp.eq.s32.totalorder %s117, 0
      %s120 = sadd.s32 %s119, 1
      %s121 = scalar_select %p118, %s119, %s120
      %p124 = pneg %p118
      %p125 = scmp.eq.s32.totalorder %s20, 3
      %p126 = por %p124, %p125
      %p127 = scmp.ne.s32.totalorder %s119, %s122
      %p128 = scmp.eq.s32.totalorder %s20, 0
      %p129 = por %p127, %p128
      %p130 = scmp.ne.s32.totalorder %s119, %s122
      %p131 = scmp.eq.s32.totalorder %s25, 3
      %p132 = por %p130, %p131
      %p133 = scmp.ne.s32.totalorder %s122, %s123
      %p134 = scmp.eq.s32.totalorder %s25, 0
      %p135 = por %p133, %p134
      %p136 = scmp.ne.s32.totalorder %s122, %s123
      %p137 = scmp.eq.s32.totalorder %s26, 3
      %p138 = por %p136, %p137
      %p140 = scmp.ne.s32.totalorder %s123, %s139
      %p141 = scmp.eq.s32.totalorder %s26, 0
      %p142 = por %p140, %p141
      %p143 = scmp.le.s32.totalorder 1, %s20
      %p144 = scmp.lt.s32.totalorder %s20, 5
      %p145 = pnand %p143, %p144
      %p146 = pneg %p145
      // Predicated region
      $region9: #{tpu_custom_call.1} parent=5 // pred_check
        _
      $region10: #{tpu_custom_call.1} parent=5 // pred_check_branch
        %148 = sbr.rel (%p145) target = $region12
      $region11: #{tpu_custom_call.1} parent=5 // pred_region
        %s149 = ssub.s32 %s20, 1
        // Predicated region
        $region13: #{tpu_custom_call.1} parent=11 // pred_check
          %p150 = pneg %p79
        $region14: #{tpu_custom_call.1} parent=11 // pred_check_branch
          %152 = sbr.rel (%p150) target = $region16
        $region15: #{tpu_custom_call.1} parent=11 // pred_region
          %s154 = ssub.s32 9216, 9216
          %155 = vsyncadd [#allocation7], %s154
          %s156 = sshll.u32 [#allocation6], 4
          %s157 = int_to_ptr.vmem [resolvable:$true] %s156
          %162 = dma.hbm_to_vmem [thread:$0]  %s1, 9216, %s157, [#allocation7], 64, 64, 4
        $region16: #{tpu_custom_call.1} parent=11 // pred_fallthru
          _
      $region12: #{tpu_custom_call.1} parent=5 // pred_fallthru
        _
      %p163 = scmp.lt.s32.totalorder %s20, 4
      // Predicated region
      $region17: #{tpu_custom_call.1} parent=5 // pred_check
        %p164 = pneg %p163
      $region18: #{tpu_custom_call.1} parent=5 // pred_check_branch
        %166 = sbr.rel (%p164) target = $region20
      $region19: #{tpu_custom_call.1} parent=5 // pred_region
        // Predicated region
        $region21: #{tpu_custom_call.1} parent=19 // pred_check
          %p167 = pneg %p52
        $region22: #{tpu_custom_call.1} parent=19 // pred_check_branch
          %169 = sbr.rel (%p167) target = $region24
        $region23: #{tpu_custom_call.1} parent=19 // pred_region
          %s170 = sand.u32 %s42, 1
          %s171 = scalar_lea.sflag [#allocation4], %s170
          %s172 = sand.u32 %s42, 1
          %s173 = smul.addr %s172, 360
          %s174 = scalar_lea.vmem [#allocation3], %s173
          %s176 = ssub.s32 5760, 5760
          %177 = vsyncadd %s171, %s176
          %s178 = smul.addr %s27, 90
          %s179 = smul.addr %s178, 64
          %s180 = scalar_lea.hbm %s0, %s179
          %s181 = sshll.u32 %s174, 4
          %s182 = int_to_ptr.vmem [resolvable:$true] %s181
          %187 = dma.hbm_to_vmem [thread:$0]  %s180, 5760, %s182, %s171, 64, 64, 4
        $region24: #{tpu_custom_call.1} parent=19 // pred_fallthru
          _
      $region20: #{tpu_custom_call.1} parent=5 // pred_fallthru
        _
      %p188 = scmp.le.s32.totalorder 1, %s20
      %p189 = scmp.lt.s32.totalorder %s20, 5
      %p190 = pnand %p188, %p189
      %p191 = pneg %p190
      // Predicated region
      $region25: #{tpu_custom_call.1} parent=5 // pred_check
        _
      $region26: #{tpu_custom_call.1} parent=5 // pred_check_branch
        %193 = sbr.rel (%p190) target = $region28
      $region27: #{tpu_custom_call.1} parent=5 // pred_region
        %s194 = ssub.s32 %s20, 1
        %s195 = sand.u32 %s45, 1
        %s196 = scalar_lea.sflag [#allocation4], %s195
        %s197 = sand.u32 %s45, 1
        %s198 = smul.addr %s197, 360
        %s199 = scalar_lea.vmem [#allocation3], %s198
        // Predicated region
        $region29: #{tpu_custom_call.1} parent=27 // pred_check
          %p200 = pneg %p58
        $region30: #{tpu_custom_call.1} parent=27 // pred_check_branch
          %202 = sbr.rel (%p200) target = $region32
        $region31: #{tpu_custom_call.1} parent=27 // pred_region
          %203 = dma.done %s196, 5760
        $region32: #{tpu_custom_call.1} parent=27 // pred_fallthru
          _
        // Predicated region
        $region33: #{tpu_custom_call.1} parent=27 // pred_check
          %p204 = pneg %p79
        $region34: #{tpu_custom_call.1} parent=27 // pred_check_branch
          %206 = sbr.rel (%p204) target = $region36
        $region35: #{tpu_custom_call.1} parent=27 // pred_region
          %207 = dma.done [#allocation7], 9216
        $region36: #{tpu_custom_call.1} parent=27 // pred_fallthru
          _
        %s208 = sand.u32 %s45, 1
        %s209 = scalar_lea.sflag [#allocation4], %s208
        %s210 = sand.u32 %s45, 1
        %s211 = smul.addr %s210, 360
        %s212 = scalar_lea.vmem [#allocation3], %s211
        %p213 = pneg %p58
        %p214 = pneg %p55
        %p215 = pneg %p79
        %p216 = pneg %p76
        %p217 = pneg %p107
        %p218 = pneg %p104
        %s219 = sand.u32 %s94, 1
        %s220 = scalar_lea.sflag [#allocation5], %s219
        %s221 = sand.u32 %s94, 1
        %s222 = smul.addr %s221, 320
        %s223 = scalar_lea.vmem [#allocation8], %s222
        %p224 = pneg %p135
        %p225 = pneg %p132
        %s226 = sand.u32 %s122, 1
        %s227 = scalar_lea.sflag [#allocation10], %s226
        %s228 = sand.u32 %s122, 1
        %s229 = smul.addr %s228, 2
        %s230 = scalar_lea.vmem [#allocation9], %s229
        %s231 = smul.u32 16, %s30
        %s233 = smul.u32 %s30, 8
        %s234 = smul.u32 %s233, 5
        %s235 = smul.addr %s234, 4
        %s236 = scalar_lea.vmem %s199, %s235 [#allocation3]
        %v237 = vld [vmem:[%s236] sm:$0xf]
        %v238 = vld [vmem:[%s236 + $0x4] sm:$0xf]
        %v239 = vld [vmem:[%s236 + $0x8] sm:$0xf]
        %v240 = vld [vmem:[%s236 + $0xc] sm:$0xf]
        %v241 = vld [vmem:[%s236 + $0x10] sm:$0xf]
        %v242 = vld [vmem:[%s236 + $0x14] sm:$0xf]
        %v243 = vld [vmem:[%s236 + $0x18] sm:$0xf]
        %v244 = vld [vmem:[%s236 + $0x1c] sm:$0xf]
        %v245 = vld [vmem:[%s236 + $0x20] sm:$0xf]
        %v246 = vld [vmem:[%s236 + $0x24] sm:$0xf]
        %v247 = vld [vmem:[%s236 + $0x28] sm:$0xf]
        %v248 = vld [vmem:[%s236 + $0x2c] sm:$0xf]
        %v249 = vld [vmem:[%s236 + $0x30] sm:$0xf]
        %v250 = vld [vmem:[%s236 + $0x34] sm:$0xf]
        %v251 = vld [vmem:[%s236 + $0x38] sm:$0xf]
        %v252 = vld [vmem:[%s236 + $0x3c] sm:$0xf]
        %v253 = vld [vmem:[%s236 + $0x40] sm:$0xf]
        %v254 = vld [vmem:[%s236 + $0x44] sm:$0xf]
        %v255 = vld [vmem:[%s236 + $0x48] sm:$0xf]
        %v256 = vld [vmem:[%s236 + $0x4c] sm:$0xf]
        %v257 = vld [vmem:[%s236 + $0x50] sm:$0xf]
        %v258 = vld [vmem:[%s236 + $0x54] sm:$0xf]
        %v259 = vld [vmem:[%s236 + $0x58] sm:$0xf]
        %v260 = vld [vmem:[%s236 + $0x5c] sm:$0xf]
        %v261 = vld [vmem:[%s236 + $0x60] sm:$0xf]
        %v262 = vld [vmem:[%s236 + $0x64] sm:$0xf]
        %v263 = vld [vmem:[%s236 + $0x68] sm:$0xf]
        %v264 = vld [vmem:[%s236 + $0x6c] sm:$0xf]
        %v265 = vld [vmem:[%s236 + $0x70] sm:$0xf]
        %v266 = vld [vmem:[%s236 + $0x74] sm:$0xf]
        %v267 = vld [vmem:[%s236 + $0x78] sm:$0xf]
        %v268 = vld [vmem:[%s236 + $0x7c] sm:$0xf]
        %v269 = vld [vmem:[%s236 + $0x80] sm:$0xf]
        %v270 = vld [vmem:[%s236 + $0x84] sm:$0xf]
        %v271 = vld [vmem:[%s236 + $0x88] sm:$0xf]
        %v272 = vld [vmem:[%s236 + $0x8c] sm:$0xf]
        %v273 = vld [vmem:[%s236 + $0x90] sm:$0xf]
        %v274 = vld [vmem:[%s236 + $0x94] sm:$0xf]
        %v275 = vld [vmem:[%s236 + $0x98] sm:$0xf]
        %v276 = vld [vmem:[%s236 + $0x9c] sm:$0xf]
        %v277 = vld [vmem:[%s236 + $0xa0] sm:$0xf]
        %v278 = vld [vmem:[%s236 + $0xa4] sm:$0xf]
        %v279 = vld [vmem:[%s236 + $0xa8] sm:$0xf]
        %v280 = vld [vmem:[%s236 + $0xac] sm:$0xf]
        %v281 = vld [vmem:[%s236 + $0xb0] sm:$0xf]
        %v282 = vld [vmem:[%s236 + $0xb4] sm:$0xf]
        %v283 = vld [vmem:[%s236 + $0xb8] sm:$0xf]
        %v284 = vld [vmem:[%s236 + $0xbc] sm:$0xf]
        %v285 = vld [vmem:[%s236 + $0xc0] sm:$0xf]
        %v286 = vld [vmem:[%s236 + $0xc4] sm:$0xf]
        %287 = vst [vmem:[#allocation2] sm:$0xf] %v237
        %288 = vst [vmem:[#allocation2 + $0x4] sm:$0xf] %v238
        %289 = vst [vmem:[#allocation2 + $0x8] sm:$0xf] %v239
        %290 = vst [vmem:[#allocation2 + $0xc] sm:$0xf] %v240
        %291 = vst [vmem:[#allocation2 + $0x10] sm:$0xf] %v241
        %s292 = scalar_lea.vmem [#allocation2], 340
        %293 = vst [vmem:[%s292] sm:$0xf] %v282
        %294 = vst [vmem:[%s292 + $0x4] sm:$0xf] %v283
        %295 = vst [vmem:[%s292 + $0x8] sm:$0xf] %v284
        %296 = vst [vmem:[%s292 + $0xc] sm:$0xf] %v285
        %297 = vst [vmem:[%s292 + $0x10] sm:$0xf] %v286
        %s298 = scalar_lea.vmem [#allocation2], 20
        %299 = vst [vmem:[%s298] sm:$0xf] %v242
        %300 = vst [vmem:[%s298 + $0x4] sm:$0xf] %v243
        %301 = vst [vmem:[%s298 + $0x8] sm:$0xf] %v244
        %302 = vst [vmem:[%s298 + $0xc] sm:$0xf] %v245
        %303 = vst [vmem:[%s298 + $0x10] sm:$0xf] %v246
        %304 = vst [vmem:[%s298 + $0x14] sm:$0xf] %v242
        %305 = vst [vmem:[%s298 + $0x18] sm:$0xf] %v243
        %306 = vst [vmem:[%s298 + $0x1c] sm:$0xf] %v244
        %307 = vst [vmem:[%s298 + $0x20] sm:$0xf] %v245
        %308 = vst [vmem:[%s298 + $0x24] sm:$0xf] %v246
        %309 = vst [vmem:[%s298 + $0x28] sm:$0xf] %v247
        %310 = vst [vmem:[%s298 + $0x2c] sm:$0xf] %v248
        %311 = vst [vmem:[%s298 + $0x30] sm:$0xf] %v249
        %312 = vst [vmem:[%s298 + $0x34] sm:$0xf] %v250
        %313 = vst [vmem:[%s298 + $0x38] sm:$0xf] %v251
        %314 = vst [vmem:[%s298 + $0x3c] sm:$0xf] %v247
        %315 = vst [vmem:[%s298 + $0x40] sm:$0xf] %v248
        %316 = vst [vmem:[%s298 + $0x44] sm:$0xf] %v249
        %317 = vst [vmem:[%s298 + $0x48] sm:$0xf] %v250
        %318 = vst [vmem:[%s298 + $0x4c] sm:$0xf] %v251
        %319 = vst [vmem:[%s298 + $0x50] sm:$0xf] %v252
        %320 = vst [vmem:[%s298 + $0x54] sm:$0xf] %v253
        %321 = vst [vmem:[%s298 + $0x58] sm:$0xf] %v254
        %322 = vst [vmem:[%s298 + $0x5c] sm:$0xf] %v255
        %323 = vst [vmem:[%s298 + $0x60] sm:$0xf] %v256
        %324 = vst [vmem:[%s298 + $0x64] sm:$0xf] %v252
        %325 = vst [vmem:[%s298 + $0x68] sm:$0xf] %v253
        %326 = vst [vmem:[%s298 + $0x6c] sm:$0xf] %v254
        %327 = vst [vmem:[%s298 + $0x70] sm:$0xf] %v255
        %328 = vst [vmem:[%s298 + $0x74] sm:$0xf] %v256
        %329 = vst [vmem:[%s298 + $0x78] sm:$0xf] %v257
        %330 = vst [vmem:[%s298 + $0x7c] sm:$0xf] %v258
        %331 = vst [vmem:[%s298 + $0x80] sm:$0xf] %v259
        %332 = vst [vmem:[%s298 + $0x84] sm:$0xf] %v260
        %333 = vst [vmem:[%s298 + $0x88] sm:$0xf] %v261
        %334 = vst [vmem:[%s298 + $0x8c] sm:$0xf] %v257
        %335 = vst [vmem:[%s298 + $0x90] sm:$0xf] %v258
        %336 = vst [vmem:[%s298 + $0x94] sm:$0xf] %v259
        %337 = vst [vmem:[%s298 + $0x98] sm:$0xf] %v260
        %338 = vst [vmem:[%s298 + $0x9c] sm:$0xf] %v261
        %339 = vst [vmem:[%s298 + $0xa0] sm:$0xf] %v262
        %340 = vst [vmem:[%s298 + $0xa4] sm:$0xf] %v263
        %341 = vst [vmem:[%s298 + $0xa8] sm:$0xf] %v264
        %342 = vst [vmem:[%s298 + $0xac] sm:$0xf] %v265
        %343 = vst [vmem:[%s298 + $0xb0] sm:$0xf] %v266
        %344 = vst [vmem:[%s298 + $0xb4] sm:$0xf] %v262
        %345 = vst [vmem:[%s298 + $0xb8] sm:$0xf] %v263
        %346 = vst [vmem:[%s298 + $0xbc] sm:$0xf] %v264
        %347 = vst [vmem:[%s298 + $0xc0] sm:$0xf] %v265
        %348 = vst [vmem:[%s298 + $0xc4] sm:$0xf] %v266
        %349 = vst [vmem:[%s298 + $0xc8] sm:$0xf] %v267
        %350 = vst [vmem:[%s298 + $0xcc] sm:$0xf] %v268
        %351 = vst [vmem:[%s298 + $0xd0] sm:$0xf] %v269
        %352 = vst [vmem:[%s298 + $0xd4] sm:$0xf] %v270
        %353 = vst [vmem:[%s298 + $0xd8] sm:$0xf] %v271
        %354 = vst [vmem:[%s298 + $0xdc] sm:$0xf] %v267
        %355 = vst [vmem:[%s298 + $0xe0] sm:$0xf] %v268
        %356 = vst [vmem:[%s298 + $0xe4] sm:$0xf] %v269
        %357 = vst [vmem:[%s298 + $0xe8] sm:$0xf] %v270
        %358 = vst [vmem:[%s298 + $0xec] sm:$0xf] %v271
        %359 = vst [vmem:[%s298 + $0xf0] sm:$0xf] %v272
        %360 = vst [vmem:[%s298 + $0xf4] sm:$0xf] %v273
        %361 = vst [vmem:[%s298 + $0xf8] sm:$0xf] %v274
        %362 = vst [vmem:[%s298 + $0xfc] sm:$0xf] %v275
        %363 = vst [vmem:[%s298 + $0x100] sm:$0xf] %v276
        %364 = vst [vmem:[%s298 + $0x104] sm:$0xf] %v272
        %365 = vst [vmem:[%s298 + $0x108] sm:$0xf] %v273
        %366 = vst [vmem:[%s298 + $0x10c] sm:$0xf] %v274
        %367 = vst [vmem:[%s298 + $0x110] sm:$0xf] %v275
        %368 = vst [vmem:[%s298 + $0x114] sm:$0xf] %v276
        %369 = vst [vmem:[%s298 + $0x118] sm:$0xf] %v277
        %370 = vst [vmem:[%s298 + $0x11c] sm:$0xf] %v278
        %371 = vst [vmem:[%s298 + $0x120] sm:$0xf] %v279
        %372 = vst [vmem:[%s298 + $0x124] sm:$0xf] %v280
        %373 = vst [vmem:[%s298 + $0x128] sm:$0xf] %v281
        %374 = vst [vmem:[%s298 + $0x12c] sm:$0xf] %v277
        %375 = vst [vmem:[%s298 + $0x130] sm:$0xf] %v278
        %376 = vst [vmem:[%s298 + $0x134] sm:$0xf] %v279
        %377 = vst [vmem:[%s298 + $0x138] sm:$0xf] %v280
        %378 = vst [vmem:[%s298 + $0x13c] sm:$0xf] %v281
        %v379 = vld [vmem:[#allocation2] sm:$0xf]
        %v380 = vld [vmem:[#allocation2 + $0x4] sm:$0xf]
        %v381 = vld [vmem:[#allocation2 + $0x8] sm:$0xf]
        %v382 = vld [vmem:[#allocation2 + $0xc] sm:$0xf]
        %v383 = vld [vmem:[#allocation2 + $0x14] sm:$0xf]
        %v384 = vld [vmem:[#allocation2 + $0x18] sm:$0xf]
        %v385 = vld [vmem:[#allocation2 + $0x1c] sm:$0xf]
        %v386 = vld [vmem:[#allocation2 + $0x20] sm:$0xf]
        %v387 = vld [vmem:[#allocation2 + $0x28] sm:$0xf]
        %v388 = vld [vmem:[#allocation2 + $0x2c] sm:$0xf]
        %v389 = vld [vmem:[#allocation2 + $0x30] sm:$0xf]
        %v390 = vld [vmem:[#allocation2 + $0x34] sm:$0xf]
        %v391 = vld [vmem:[#allocation2 + $0x3c] sm:$0xf]
        %v392 = vld [vmem:[#allocation2 + $0x40] sm:$0xf]
        %v393 = vld [vmem:[#allocation2 + $0x44] sm:$0xf]
        %v394 = vld [vmem:[#allocation2 + $0x48] sm:$0xf]
        %v395 = vld [vmem:[#allocation2 + $0x50] sm:$0xf]
        %v396 = vld [vmem:[#allocation2 + $0x54] sm:$0xf]
        %v397 = vld [vmem:[#allocation2 + $0x58] sm:$0xf]
        %v398 = vld [vmem:[#allocation2 + $0x5c] sm:$0xf]
        %v399 = vld [vmem:[#allocation2 + $0x64] sm:$0xf]
        %v400 = vld [vmem:[#allocation2 + $0x68] sm:$0xf]
        %v401 = vld [vmem:[#allocation2 + $0x6c] sm:$0xf]
        %v402 = vld [vmem:[#allocation2 + $0x70] sm:$0xf]
        %v403 = vld [vmem:[#allocation2 + $0x78] sm:$0xf]
        %v404 = vld [vmem:[#allocation2 + $0x7c] sm:$0xf]
        %v405 = vld [vmem:[#allocation2 + $0x80] sm:$0xf]
        %v406 = vld [vmem:[#allocation2 + $0x84] sm:$0xf]
        %v407 = vld [vmem:[#allocation2 + $0x8c] sm:$0xf]
        %v408 = vld [vmem:[#allocation2 + $0x90] sm:$0xf]
        %v409 = vld [vmem:[#allocation2 + $0x94] sm:$0xf]
        %v410 = vld [vmem:[#allocation2 + $0x98] sm:$0xf]
        %v411 = vld [vmem:[#allocation2 + $0xa0] sm:$0xf]
        %v412 = vld [vmem:[#allocation2 + $0xa4] sm:$0xf]
        %v413 = vld [vmem:[#allocation2 + $0xa8] sm:$0xf]
        %v414 = vld [vmem:[#allocation2 + $0xac] sm:$0xf]
        %v415 = vld [vmem:[#allocation2 + $0xb4] sm:$0xf]
        %v416 = vld [vmem:[#allocation2 + $0xb8] sm:$0xf]
        %v417 = vld [vmem:[#allocation2 + $0xbc] sm:$0xf]
        %v418 = vld [vmem:[#allocation2 + $0xc0] sm:$0xf]
        %v419 = vld [vmem:[#allocation2 + $0xc8] sm:$0xf]
        %v420 = vld [vmem:[#allocation2 + $0xcc] sm:$0xf]
        %v421 = vld [vmem:[#allocation2 + $0xd0] sm:$0xf]
        %v422 = vld [vmem:[#allocation2 + $0xd4] sm:$0xf]
        %v423 = vld [vmem:[#allocation2 + $0xdc] sm:$0xf]
        %v424 = vld [vmem:[#allocation2 + $0xe0] sm:$0xf]
        %v425 = vld [vmem:[#allocation2 + $0xe4] sm:$0xf]
        %v426 = vld [vmem:[#allocation2 + $0xe8] sm:$0xf]
        %v427 = vld [vmem:[#allocation2 + $0xf0] sm:$0xf]
        %v428 = vld [vmem:[#allocation2 + $0xf4] sm:$0xf]
        %v429 = vld [vmem:[#allocation2 + $0xf8] sm:$0xf]
        %v430 = vld [vmem:[#allocation2 + $0xfc] sm:$0xf]
        %v431 = vld [vmem:[#allocation2 + $0x104] sm:$0xf]
        %v432 = vld [vmem:[#allocation2 + $0x108] sm:$0xf]
        %v433 = vld [vmem:[#allocation2 + $0x10c] sm:$0xf]
        %v434 = vld [vmem:[#allocation2 + $0x110] sm:$0xf]
        %v435 = vld [vmem:[#allocation2 + $0x118] sm:$0xf]
        %v436 = vld [vmem:[#allocation2 + $0x11c] sm:$0xf]
        %v437 = vld [vmem:[#allocation2 + $0x120] sm:$0xf]
        %v438 = vld [vmem:[#allocation2 + $0x124] sm:$0xf]
        %v439 = vld [vmem:[#allocation2 + $0x12c] sm:$0xf]
        %v440 = vld [vmem:[#allocation2 + $0x130] sm:$0xf]
        %v441 = vld [vmem:[#allocation2 + $0x134] sm:$0xf]
        %v442 = vld [vmem:[#allocation2 + $0x138] sm:$0xf]
        %v443 = vld [vmem:[#allocation2 + $0x10] sm:$0x1]
        %v444 = vld [vmem:[#allocation2 + $0x24] sm:$0x1]
        %v445 = vld [vmem:[#allocation2 + $0x38] sm:$0x1]
        %v446 = vld [vmem:[#allocation2 + $0x4c] sm:$0x1]
        %v447 = vld [vmem:[#allocation2 + $0x60] sm:$0x1]
        %v448 = vld [vmem:[#allocation2 + $0x74] sm:$0x1]
        %v449 = vld [vmem:[#allocation2 + $0x88] sm:$0x1]
        %v450 = vld [vmem:[#allocation2 + $0x9c] sm:$0x1]
        %v451 = vld [vmem:[#allocation2 + $0xb0] sm:$0x1]
        %v452 = vld [vmem:[#allocation2 + $0xc4] sm:$0x1]
        %v453 = vld [vmem:[#allocation2 + $0xd8] sm:$0x1]
        %v454 = vld [vmem:[#allocation2 + $0xec] sm:$0x1]
        %v455 = vld [vmem:[#allocation2 + $0x100] sm:$0x1]
        %v456 = vld [vmem:[#allocation2 + $0x114] sm:$0x1]
        %v457 = vld [vmem:[#allocation2 + $0x128] sm:$0x1]
        %v458 = vld [vmem:[#allocation2 + $0x13c] sm:$0x1]
        %vm459 = vsmask.f32 3328
        %vm460 = vsmask.f32 7440
        %vm461 = vmor %vm459, %vm460
        %v463 = vshrl.u32 %v379, 16
        %v465 = vrot.slane %v463, 4
        %v466 = vshll.u32 %v379, 16
        %v468 = vrot.slane %v466, 5
        %v469 = vor.u32 %v465, %v468
        %v470 = vrot.slane %v469, 4
        %v472 = vshll.u32 %v380, 16
        %v474 = vrot.slane %v472, 5
        %v475 = vsel %vm461, %v470, %v474
        %v476 = vshrl.u32 %v380, 16
        %v478 = vrot.slane %v476, 4
        %v479 = vor.u32 %v478, %v474
        %v480 = vrot.slane %v479, 4
        %v482 = vshll.u32 %v381, 16
        %v484 = vrot.slane %v482, 5
        %v485 = vsel %vm461, %v480, %v484
        %v486 = vshrl.u32 %v381, 16
        %v488 = vrot.slane %v486, 4
        %v489 = vor.u32 %v488, %v484
        %v490 = vrot.slane %v489, 4
        %v492 = vshll.u32 %v382, 16
        %v494 = vrot.slane %v492, 5
        %v495 = vsel %vm461, %v490, %v494
        %v496 = vshrl.u32 %v382, 16
        %v498 = vrot.slane %v496, 4
        %v499 = vor.u32 %v498, %v494
        %v500 = vrot.slane %v499, 4
        %v502 = vshll.u32 %v443, 16
        %v504 = vrot.slane %v502, 5
        %v505 = vsel %vm461, %v500, %v504
        %v507 = vshrl.u32 %v383, 16
        %v509 = vrot.slane %v507, 4
        %v510 = vshll.u32 %v383, 16
        %v512 = vrot.slane %v510, 5
        %v513 = vor.u32 %v509, %v512
        %v514 = vrot.slane %v513, 4
        %v516 = vshll.u32 %v384, 16
        %v518 = vrot.slane %v516, 5
        %v519 = vsel %vm461, %v514, %v518
        %v520 = vshrl.u32 %v384, 16
        %v522 = vrot.slane %v520, 4
        %v523 = vor.u32 %v522, %v518
        %v524 = vrot.slane %v523, 4
        %v526 = vshll.u32 %v385, 16
        %v528 = vrot.slane %v526, 5
        %v529 = vsel %vm461, %v524, %v528
        %v530 = vshrl.u32 %v385, 16
        %v532 = vrot.slane %v530, 4
        %v533 = vor.u32 %v532, %v528
        %v534 = vrot.slane %v533, 4
        %v536 = vshll.u32 %v386, 16
        %v538 = vrot.slane %v536, 5
        %v539 = vsel %vm461, %v534, %v538
        %v540 = vshrl.u32 %v386, 16
        %v542 = vrot.slane %v540, 4
        %v543 = vor.u32 %v542, %v538
        %v544 = vrot.slane %v543, 4
        %v546 = vshll.u32 %v444, 16
        %v548 = vrot.slane %v546, 5
        %v549 = vsel %vm461, %v544, %v548
        %v551 = vshrl.u32 %v387, 16
        %v553 = vrot.slane %v551, 4
        %v554 = vshll.u32 %v387, 16
        %v556 = vrot.slane %v554, 5
        %v557 = vor.u32 %v553, %v556
        %v558 = vrot.slane %v557, 4
        %v560 = vshll.u32 %v388, 16
        %v562 = vrot.slane %v560, 5
        %v563 = vsel %vm461, %v558, %v562
        %v564 = vshrl.u32 %v388, 16
        %v566 = vrot.slane %v564, 4
        %v567 = vor.u32 %v566, %v562
        %v568 = vrot.slane %v567, 4
        %v570 = vshll.u32 %v389, 16
        %v572 = vrot.slane %v570, 5
        %v573 = vsel %vm461, %v568, %v572
        %v574 = vshrl.u32 %v389, 16
        %v576 = vrot.slane %v574, 4
        %v577 = vor.u32 %v576, %v572
        %v578 = vrot.slane %v577, 4
        %v580 = vshll.u32 %v390, 16
        %v582 = vrot.slane %v580, 5
        %v583 = vsel %vm461, %v578, %v582
        %v584 = vshrl.u32 %v390, 16
        %v586 = vrot.slane %v584, 4
        %v587 = vor.u32 %v586, %v582
        %v588 = vrot.slane %v587, 4
        %v590 = vshll.u32 %v445, 16
        %v592 = vrot.slane %v590, 5
        %v593 = vsel %vm461, %v588, %v592
        %v595 = vshrl.u32 %v391, 16
        %v597 = vrot.slane %v595, 4
        %v598 = vshll.u32 %v391, 16
        %v600 = vrot.slane %v598, 5
        %v601 = vor.u32 %v597, %v600
        %v602 = vrot.slane %v601, 4
        %v604 = vshll.u32 %v392, 16
        %v606 = vrot.slane %v604, 5
        %v607 = vsel %vm461, %v602, %v606
        %v608 = vshrl.u32 %v392, 16
        %v610 = vrot.slane %v608, 4
        %v611 = vor.u32 %v610, %v606
        %v612 = vrot.slane %v611, 4
        %v614 = vshll.u32 %v393, 16
        %v616 = vrot.slane %v614, 5
        %v617 = vsel %vm461, %v612, %v616
        %v618 = vshrl.u32 %v393, 16
        %v620 = vrot.slane %v618, 4
        %v621 = vor.u32 %v620, %v616
        %v622 = vrot.slane %v621, 4
        %v624 = vshll.u32 %v394, 16
        %v626 = vrot.slane %v624, 5
        %v627 = vsel %vm461, %v622, %v626
        %v628 = vshrl.u32 %v394, 16
        %v630 = vrot.slane %v628, 4
        %v631 = vor.u32 %v630, %v626
        %v632 = vrot.slane %v631, 4
        %v634 = vshll.u32 %v446, 16
        %v636 = vrot.slane %v634, 5
        %v637 = vsel %vm461, %v632, %v636
        %v639 = vshrl.u32 %v395, 16
        %v641 = vrot.slane %v639, 4
        %v642 = vshll.u32 %v395, 16
        %v644 = vrot.slane %v642, 5
        %v645 = vor.u32 %v641, %v644
        %v646 = vrot.slane %v645, 4
        %v648 = vshll.u32 %v396, 16
        %v650 = vrot.slane %v648, 5
        %v651 = vsel %vm461, %v646, %v650
        %v652 = vshrl.u32 %v396, 16
        %v654 = vrot.slane %v652, 4
        %v655 = vor.u32 %v654, %v650
        %v656 = vrot.slane %v655, 4
        %v658 = vshll.u32 %v397, 16
        %v660 = vrot.slane %v658, 5
        %v661 = vsel %vm461, %v656, %v660
        %v662 = vshrl.u32 %v397, 16
        %v664 = vrot.slane %v662, 4
        %v665 = vor.u32 %v664, %v660
        %v666 = vrot.slane %v665, 4
        %v668 = vshll.u32 %v398, 16
        %v670 = vrot.slane %v668, 5
        %v671 = vsel %vm461, %v666, %v670
        %v672 = vshrl.u32 %v398, 16
        %v674 = vrot.slane %v672, 4
        %v675 = vor.u32 %v674, %v670
        %v676 = vrot.slane %v675, 4
        %v678 = vshll.u32 %v447, 16
        %v680 = vrot.slane %v678, 5
        %v681 = vsel %vm461, %v676, %v680
        %v683 = vshrl.u32 %v399, 16
        %v685 = vrot.slane %v683, 4
        %v686 = vshll.u32 %v399, 16
        %v688 = vrot.slane %v686, 5
        %v689 = vor.u32 %v685, %v688
        %v690 = vrot.slane %v689, 4
        %v692 = vshll.u32 %v400, 16
        %v694 = vrot.slane %v692, 5
        %v695 = vsel %vm461, %v690, %v694
        %v696 = vshrl.u32 %v400, 16
        %v698 = vrot.slane %v696, 4
        %v699 = vor.u32 %v698, %v694
        %v700 = vrot.slane %v699, 4
        %v702 = vshll.u32 %v401, 16
        %v704 = vrot.slane %v702, 5
        %v705 = vsel %vm461, %v700, %v704
        %v706 = vshrl.u32 %v401, 16
        %v708 = vrot.slane %v706, 4
        %v709 = vor.u32 %v708, %v704
        %v710 = vrot.slane %v709, 4
        %v712 = vshll.u32 %v402, 16
        %v714 = vrot.slane %v712, 5
        %v715 = vsel %vm461, %v710, %v714
        %v716 = vshrl.u32 %v402, 16
        %v718 = vrot.slane %v716, 4
        %v719 = vor.u32 %v718, %v714
        %v720 = vrot.slane %v719, 4
        %v722 = vshll.u32 %v448, 16
        %v724 = vrot.slane %v722, 5
        %v725 = vsel %vm461, %v720, %v724
        %v727 = vshrl.u32 %v403, 16
        %v729 = vrot.slane %v727, 4
        %v730 = vshll.u32 %v403, 16
        %v732 = vrot.slane %v730, 5
        %v733 = vor.u32 %v729, %v732
        %v734 = vrot.slane %v733, 4
        %v736 = vshll.u32 %v404, 16
        %v738 = vrot.slane %v736, 5
        %v739 = vsel %vm461, %v734, %v738
        %v740 = vshrl.u32 %v404, 16
        %v742 = vrot.slane %v740, 4
        %v743 = vor.u32 %v742, %v738
        %v744 = vrot.slane %v743, 4
        %v746 = vshll.u32 %v405, 16
        %v748 = vrot.slane %v746, 5
        %v749 = vsel %vm461, %v744, %v748
        %v750 = vshrl.u32 %v405, 16
        %v752 = vrot.slane %v750, 4
        %v753 = vor.u32 %v752, %v748
        %v754 = vrot.slane %v753, 4
        %v756 = vshll.u32 %v406, 16
        %v758 = vrot.slane %v756, 5
        %v759 = vsel %vm461, %v754, %v758
        %v760 = vshrl.u32 %v406, 16
        %v762 = vrot.slane %v760, 4
        %v763 = vor.u32 %v762, %v758
        %v764 = vrot.slane %v763, 4
        %v766 = vshll.u32 %v449, 16
        %v768 = vrot.slane %v766, 5
        %v769 = vsel %vm461, %v764, %v768
        %v771 = vshrl.u32 %v407, 16
        %v773 = vrot.slane %v771, 4
        %v774 = vshll.u32 %v407, 16
        %v776 = vrot.slane %v774, 5
        %v777 = vor.u32 %v773, %v776
        %v778 = vrot.slane %v777, 4
        %v780 = vshll.u32 %v408, 16
        %v782 = vrot.slane %v780, 5
        %v783 = vsel %vm461, %v778, %v782
        %v784 = vshrl.u32 %v408, 16
        %v786 = vrot.slane %v784, 4
        %v787 = vor.u32 %v786, %v782
        %v788 = vrot.slane %v787, 4
        %v790 = vshll.u32 %v409, 16
        %v792 = vrot.slane %v790, 5
        %v793 = vsel %vm461, %v788, %v792
        %v794 = vshrl.u32 %v409, 16
        %v796 = vrot.slane %v794, 4
        %v797 = vor.u32 %v796, %v792
        %v798 = vrot.slane %v797, 4
        %v800 = vshll.u32 %v410, 16
        %v802 = vrot.slane %v800, 5
        %v803 = vsel %vm461, %v798, %v802
        %v804 = vshrl.u32 %v410, 16
        %v806 = vrot.slane %v804, 4
        %v807 = vor.u32 %v806, %v802
        %v808 = vrot.slane %v807, 4
        %v810 = vshll.u32 %v450, 16
        %v812 = vrot.slane %v810, 5
        %v813 = vsel %vm461, %v808, %v812
        %v815 = vshrl.u32 %v411, 16
        %v817 = vrot.slane %v815, 4
        %v818 = vshll.u32 %v411, 16
        %v820 = vrot.slane %v818, 5
        %v821 = vor.u32 %v817, %v820
        %v822 = vrot.slane %v821, 4
        %v824 = vshll.u32 %v412, 16
        %v826 = vrot.slane %v824, 5
        %v827 = vsel %vm461, %v822, %v826
        %v828 = vshrl.u32 %v412, 16
        %v830 = vrot.slane %v828, 4
        %v831 = vor.u32 %v830, %v826
        %v832 = vrot.slane %v831, 4
        %v834 = vshll.u32 %v413, 16
        %v836 = vrot.slane %v834, 5
        %v837 = vsel %vm461, %v832, %v836
        %v838 = vshrl.u32 %v413, 16
        %v840 = vrot.slane %v838, 4
        %v841 = vor.u32 %v840, %v836
        %v842 = vrot.slane %v841, 4
        %v844 = vshll.u32 %v414, 16
        %v846 = vrot.slane %v844, 5
        %v847 = vsel %vm461, %v842, %v846
        %v848 = vshrl.u32 %v414, 16
        %v850 = vrot.slane %v848, 4
        %v851 = vor.u32 %v850, %v846
        %v852 = vrot.slane %v851, 4
        %v854 = vshll.u32 %v451, 16
        %v856 = vrot.slane %v854, 5
        %v857 = vsel %vm461, %v852, %v856
        %v859 = vshrl.u32 %v415, 16
        %v861 = vrot.slane %v859, 4
        %v862 = vshll.u32 %v415, 16
        %v864 = vrot.slane %v862, 5
        %v865 = vor.u32 %v861, %v864
        %v866 = vrot.slane %v865, 4
        %v868 = vshll.u32 %v416, 16
        %v870 = vrot.slane %v868, 5
        %v871 = vsel %vm461, %v866, %v870
        %v872 = vshrl.u32 %v416, 16
        %v874 = vrot.slane %v872, 4
        %v875 = vor.u32 %v874, %v870
        %v876 = vrot.slane %v875, 4
        %v878 = vshll.u32 %v417, 16
        %v880 = vrot.slane %v878, 5
        %v881 = vsel %vm461, %v876, %v880
        %v882 = vshrl.u32 %v417, 16
        %v884 = vrot.slane %v882, 4
        %v885 = vor.u32 %v884, %v880
        %v886 = vrot.slane %v885, 4
        %v888 = vshll.u32 %v418, 16
        %v890 = vrot.slane %v888, 5
        %v891 = vsel %vm461, %v886, %v890
        %v892 = vshrl.u32 %v418, 16
        %v894 = vrot.slane %v892, 4
        %v895 = vor.u32 %v894, %v890
        %v896 = vrot.slane %v895, 4
        %v898 = vshll.u32 %v452, 16
        %v900 = vrot.slane %v898, 5
        %v901 = vsel %vm461, %v896, %v900
        %v903 = vshrl.u32 %v419, 16
        %v905 = vrot.slane %v903, 4
        %v906 = vshll.u32 %v419, 16
        %v908 = vrot.slane %v906, 5
        %v909 = vor.u32 %v905, %v908
        %v910 = vrot.slane %v909, 4
        %v912 = vshll.u32 %v420, 16
        %v914 = vrot.slane %v912, 5
        %v915 = vsel %vm461, %v910, %v914
        %v916 = vshrl.u32 %v420, 16
        %v918 = vrot.slane %v916, 4
        %v919 = vor.u32 %v918, %v914
        %v920 = vrot.slane %v919, 4
        %v922 = vshll.u32 %v421, 16
        %v924 = vrot.slane %v922, 5
        %v925 = vsel %vm461, %v920, %v924
        %v926 = vshrl.u32 %v421, 16
        %v928 = vrot.slane %v926, 4
        %v929 = vor.u32 %v928, %v924
        %v930 = vrot.slane %v929, 4
        %v932 = vshll.u32 %v422, 16
        %v934 = vrot.slane %v932, 5
        %v935 = vsel %vm461, %v930, %v934
        %v936 = vshrl.u32 %v422, 16
        %v938 = vrot.slane %v936, 4
        %v939 = vor.u32 %v938, %v934
        %v940 = vrot.slane %v939, 4
        %v942 = vshll.u32 %v453, 16
        %v944 = vrot.slane %v942, 5
        %v945 = vsel %vm461, %v940, %v944
        %v947 = vshrl.u32 %v423, 16
        %v949 = vrot.slane %v947, 4
        %v950 = vshll.u32 %v423, 16
        %v952 = vrot.slane %v950, 5
        %v953 = vor.u32 %v949, %v952
        %v954 = vrot.slane %v953, 4
        %v956 = vshll.u32 %v424, 16
        %v958 = vrot.slane %v956, 5
        %v959 = vsel %vm461, %v954, %v958
        %v960 = vshrl.u32 %v424, 16
        %v962 = vrot.slane %v960, 4
        %v963 = vor.u32 %v962, %v958
        %v964 = vrot.slane %v963, 4
        %v966 = vshll.u32 %v425, 16
        %v968 = vrot.slane %v966, 5
        %v969 = vsel %vm461, %v964, %v968
        %v970 = vshrl.u32 %v425, 16
        %v972 = vrot.slane %v970, 4
        %v973 = vor.u32 %v972, %v968
        %v974 = vrot.slane %v973, 4
        %v976 = vshll.u32 %v426, 16
        %v978 = vrot.slane %v976, 5
        %v979 = vsel %vm461, %v974, %v978
        %v980 = vshrl.u32 %v426, 16
        %v982 = vrot.slane %v980, 4
        %v983 = vor.u32 %v982, %v978
        %v984 = vrot.slane %v983, 4
        %v986 = vshll.u32 %v454, 16
        %v988 = vrot.slane %v986, 5
        %v989 = vsel %vm461, %v984, %v988
        %v991 = vshrl.u32 %v427, 16
        %v993 = vrot.slane %v991, 4
        %v994 = vshll.u32 %v427, 16
        %v996 = vrot.slane %v994, 5
        %v997 = vor.u32 %v993, %v996
        %v998 = vrot.slane %v997, 4
        %v1000 = vshll.u32 %v428, 16
        %v1002 = vrot.slane %v1000, 5
        %v1003 = vsel %vm461, %v998, %v1002
        %v1004 = vshrl.u32 %v428, 16
        %v1006 = vrot.slane %v1004, 4
        %v1007 = vor.u32 %v1006, %v1002
        %v1008 = vrot.slane %v1007, 4
        %v1010 = vshll.u32 %v429, 16
        %v1012 = vrot.slane %v1010, 5
        %v1013 = vsel %vm461, %v1008, %v1012
        %v1014 = vshrl.u32 %v429, 16
        %v1016 = vrot.slane %v1014, 4
        %v1017 = vor.u32 %v1016, %v1012
        %v1018 = vrot.slane %v1017, 4
        %v1020 = vshll.u32 %v430, 16
        %v1022 = vrot.slane %v1020, 5
        %v1023 = vsel %vm461, %v1018, %v1022
        %v1024 = vshrl.u32 %v430, 16
        %v1026 = vrot.slane %v1024, 4
        %v1027 = vor.u32 %v1026, %v1022
        %v1028 = vrot.slane %v1027, 4
        %v1030 = vshll.u32 %v455, 16
        %v1032 = vrot.slane %v1030, 5
        %v1033 = vsel %vm461, %v1028, %v1032
        %v1035 = vshrl.u32 %v431, 16
        %v1037 = vrot.slane %v1035, 4
        %v1038 = vshll.u32 %v431, 16
        %v1040 = vrot.slane %v1038, 5
        %v1041 = vor.u32 %v1037, %v1040
        %v1042 = vrot.slane %v1041, 4
        %v1044 = vshll.u32 %v432, 16
        %v1046 = vrot.slane %v1044, 5
        %v1047 = vsel %vm461, %v1042, %v1046
        %v1048 = vshrl.u32 %v432, 16
        %v1050 = vrot.slane %v1048, 4
        %v1051 = vor.u32 %v1050, %v1046
        %v1052 = vrot.slane %v1051, 4
        %v1054 = vshll.u32 %v433, 16
        %v1056 = vrot.slane %v1054, 5
        %v1057 = vsel %vm461, %v1052, %v1056
        %v1058 = vshrl.u32 %v433, 16
        %v1060 = vrot.slane %v1058, 4
        %v1061 = vor.u32 %v1060, %v1056
        %v1062 = vrot.slane %v1061, 4
        %v1064 = vshll.u32 %v434, 16
        %v1066 = vrot.slane %v1064, 5
        %v1067 = vsel %vm461, %v1062, %v1066
        %v1068 = vshrl.u32 %v434, 16
        %v1070 = vrot.slane %v1068, 4
        %v1071 = vor.u32 %v1070, %v1066
        %v1072 = vrot.slane %v1071, 4
        %v1074 = vshll.u32 %v456, 16
        %v1076 = vrot.slane %v1074, 5
        %v1077 = vsel %vm461, %v1072, %v1076
        %v1079 = vshrl.u32 %v435, 16
        %v1081 = vrot.slane %v1079, 4
        %v1082 = vshll.u32 %v435, 16
        %v1084 = vrot.slane %v1082, 5
        %v1085 = vor.u32 %v1081, %v1084
        %v1086 = vrot.slane %v1085, 4
        %v1088 = vshll.u32 %v436, 16
        %v1090 = vrot.slane %v1088, 5
        %v1091 = vsel %vm461, %v1086, %v1090
        %v1092 = vshrl.u32 %v436, 16
        %v1094 = vrot.slane %v1092, 4
        %v1095 = vor.u32 %v1094, %v1090
        %v1096 = vrot.slane %v1095, 4
        %v1098 = vshll.u32 %v437, 16
        %v1100 = vrot.slane %v1098, 5
        %v1101 = vsel %vm461, %v1096, %v1100
        %v1102 = vshrl.u32 %v437, 16
        %v1104 = vrot.slane %v1102, 4
        %v1105 = vor.u32 %v1104, %v1100
        %v1106 = vrot.slane %v1105, 4
        %v1108 = vshll.u32 %v438, 16
        %v1110 = vrot.slane %v1108, 5
        %v1111 = vsel %vm461, %v1106, %v1110
        %v1112 = vshrl.u32 %v438, 16
        %v1114 = vrot.slane %v1112, 4
        %v1115 = vor.u32 %v1114, %v1110
        %v1116 = vrot.slane %v1115, 4
        %v1118 = vshll.u32 %v457, 16
        %v1120 = vrot.slane %v1118, 5
        %v1121 = vsel %vm461, %v1116, %v1120
        %v1123 = vshrl.u32 %v439, 16
        %v1125 = vrot.slane %v1123, 4
        %v1126 = vshll.u32 %v439, 16
        %v1128 = vrot.slane %v1126, 5
        %v1129 = vor.u32 %v1125, %v1128
        %v1130 = vrot.slane %v1129, 4
        %v1132 = vshll.u32 %v440, 16
        %v1134 = vrot.slane %v1132, 5
        %v1135 = vsel %vm461, %v1130, %v1134
        %v1136 = vshrl.u32 %v440, 16
        %v1138 = vrot.slane %v1136, 4
        %v1139 = vor.u32 %v1138, %v1134
        %v1140 = vrot.slane %v1139, 4
        %v1142 = vshll.u32 %v441, 16
        %v1144 = vrot.slane %v1142, 5
        %v1145 = vsel %vm461, %v1140, %v1144
        %v1146 = vshrl.u32 %v441, 16
        %v1148 = vrot.slane %v1146, 4
        %v1149 = vor.u32 %v1148, %v1144
        %v1150 = vrot.slane %v1149, 4
        %v1152 = vshll.u32 %v442, 16
        %v1154 = vrot.slane %v1152, 5
        %v1155 = vsel %vm461, %v1150, %v1154
        %v1156 = vshrl.u32 %v442, 16
        %v1158 = vrot.slane %v1156, 4
        %v1159 = vor.u32 %v1158, %v1154
        %v1160 = vrot.slane %v1159, 4
        %v1162 = vshll.u32 %v458, 16
        %v1164 = vrot.slane %v1162, 5
        %v1165 = vsel %vm461, %v1160, %v1164
        %v1166 = vld [vmem:[#allocation2] sm:$0xe]
        %v1167 = vld [vmem:[#allocation2 + $0x14] sm:$0xe]
        %v1168 = vld [vmem:[#allocation2 + $0x28] sm:$0xe]
        %v1169 = vld [vmem:[#allocation2 + $0x3c] sm:$0xe]
        %v1170 = vld [vmem:[#allocation2 + $0x50] sm:$0xe]
        %v1171 = vld [vmem:[#allocation2 + $0x64] sm:$0xe]
        %v1172 = vld [vmem:[#allocation2 + $0x78] sm:$0xe]
        %v1173 = vld [vmem:[#allocation2 + $0x8c] sm:$0xe]
        %v1174 = vld [vmem:[#allocation2 + $0xa0] sm:$0xe]
        %v1175 = vld [vmem:[#allocation2 + $0xb4] sm:$0xe]
        %v1176 = vld [vmem:[#allocation2 + $0xc8] sm:$0xe]
        %v1177 = vld [vmem:[#allocation2 + $0xdc] sm:$0xe]
        %v1178 = vld [vmem:[#allocation2 + $0xf0] sm:$0xe]
        %v1179 = vld [vmem:[#allocation2 + $0x104] sm:$0xe]
        %v1180 = vld [vmem:[#allocation2 + $0x118] sm:$0xe]
        %v1181 = vld [vmem:[#allocation2 + $0x12c] sm:$0xe]
        %vm1262 = vcmask 1042432
        %vm1263 = vcmask 1046532
        %vm1264 = vmor %vm1262, %vm1263
        %v1265 = vrot.slane %v1166, 5
        %v1266 = vrot.slane %v1265, 4
        %v1267 = vrot.slane %v380, 5
        %v1268 = vsel %vm1264, %v1266, %v1267
        %v1269 = vrot.slane %v1267, 4
        %v1270 = vrot.slane %v381, 5
        %v1271 = vsel %vm1264, %v1269, %v1270
        %v1272 = vrot.slane %v1270, 4
        %v1273 = vrot.slane %v382, 5
        %v1274 = vsel %vm1264, %v1272, %v1273
        %v1275 = vrot.slane %v1273, 4
        %v1276 = vrot.slane %v443, 5
        %v1277 = vsel %vm1264, %v1275, %v1276
        %v1278 = vrot.slane %v1167, 5
        %v1279 = vrot.slane %v1278, 4
        %v1280 = vrot.slane %v384, 5
        %v1281 = vsel %vm1264, %v1279, %v1280
        %v1282 = vrot.slane %v1280, 4
        %v1283 = vrot.slane %v385, 5
        %v1284 = vsel %vm1264, %v1282, %v1283
        %v1285 = vrot.slane %v1283, 4
        %v1286 = vrot.slane %v386, 5
        %v1287 = vsel %vm1264, %v1285, %v1286
        %v1288 = vrot.slane %v1286, 4
        %v1289 = vrot.slane %v444, 5
        %v1290 = vsel %vm1264, %v1288, %v1289
        %v1291 = vrot.slane %v1168, 5
        %v1292 = vrot.slane %v1291, 4
        %v1293 = vrot.slane %v388, 5
        %v1294 = vsel %vm1264, %v1292, %v1293
        %v1295 = vrot.slane %v1293, 4
        %v1296 = vrot.slane %v389, 5
        %v1297 = vsel %vm1264, %v1295, %v1296
        %v1298 = vrot.slane %v1296, 4
        %v1299 = vrot.slane %v390, 5
        %v1300 = vsel %vm1264, %v1298, %v1299
        %v1301 = vrot.slane %v1299, 4
        %v1302 = vrot.slane %v445, 5
        %v1303 = vsel %vm1264, %v1301, %v1302
        %v1304 = vrot.slane %v1169, 5
        %v1305 = vrot.slane %v1304, 4
        %v1306 = vrot.slane %v392, 5
        %v1307 = vsel %vm1264, %v1305, %v1306
        %v1308 = vrot.slane %v1306, 4
        %v1309 = vrot.slane %v393, 5
        %v1310 = vsel %vm1264, %v1308, %v1309
        %v1311 = vrot.slane %v1309, 4
        %v1312 = vrot.slane %v394, 5
        %v1313 = vsel %vm1264, %v1311, %v1312
        %v1314 = vrot.slane %v1312, 4
        %v1315 = vrot.slane %v446, 5
        %v1316 = vsel %vm1264, %v1314, %v1315
        %v1317 = vrot.slane %v1170, 5
        %v1318 = vrot.slane %v1317, 4
        %v1319 = vrot.slane %v396, 5
        %v1320 = vsel %vm1264, %v1318, %v1319
        %v1321 = vrot.slane %v1319, 4
        %v1322 = vrot.slane %v397, 5
        %v1323 = vsel %vm1264, %v1321, %v1322
        %v1324 = vrot.slane %v1322, 4
        %v1325 = vrot.slane %v398, 5
        %v1326 = vsel %vm1264, %v1324, %v1325
        %v1327 = vrot.slane %v1325, 4
        %v1328 = vrot.slane %v447, 5
        %v1329 = vsel %vm1264, %v1327, %v1328
        %v1330 = vrot.slane %v1171, 5
        %v1331 = vrot.slane %v1330, 4
        %v1332 = vrot.slane %v400, 5
        %v1333 = vsel %vm1264, %v1331, %v1332
        %v1334 = vrot.slane %v1332, 4
        %v1335 = vrot.slane %v401, 5
        %v1336 = vsel %vm1264, %v1334, %v1335
        %v1337 = vrot.slane %v1335, 4
        %v1338 = vrot.slane %v402, 5
        %v1339 = vsel %vm1264, %v1337, %v1338
        %v1340 = vrot.slane %v1338, 4
        %v1341 = vrot.slane %v448, 5
        %v1342 = vsel %vm1264, %v1340, %v1341
        %v1343 = vrot.slane %v1172, 5
        %v1344 = vrot.slane %v1343, 4
        %v1345 = vrot.slane %v404, 5
        %v1346 = vsel %vm1264, %v1344, %v1345
        %v1347 = vrot.slane %v1345, 4
        %v1348 = vrot.slane %v405, 5
        %v1349 = vsel %vm1264, %v1347, %v1348
        %v1350 = vrot.slane %v1348, 4
        %v1351 = vrot.slane %v406, 5
        %v1352 = vsel %vm1264, %v1350, %v1351
        %v1353 = vrot.slane %v1351, 4
        %v1354 = vrot.slane %v449, 5
        %v1355 = vsel %vm1264, %v1353, %v1354
        %v1356 = vrot.slane %v1173, 5
        %v1357 = vrot.slane %v1356, 4
        %v1358 = vrot.slane %v408, 5
        %v1359 = vsel %vm1264, %v1357, %v1358
        %v1360 = vrot.slane %v1358, 4
        %v1361 = vrot.slane %v409, 5
        %v1362 = vsel %vm1264, %v1360, %v1361
        %v1363 = vrot.slane %v1361, 4
        %v1364 = vrot.slane %v410, 5
        %v1365 = vsel %vm1264, %v1363, %v1364
        %v1366 = vrot.slane %v1364, 4
        %v1367 = vrot.slane %v450, 5
        %v1368 = vsel %vm1264, %v1366, %v1367
        %v1369 = vrot.slane %v1174, 5
        %v1370 = vrot.slane %v1369, 4
        %v1371 = vrot.slane %v412, 5
        %v1372 = vsel %vm1264, %v1370, %v1371
        %v1373 = vrot.slane %v1371, 4
        %v1374 = vrot.slane %v413, 5
        %v1375 = vsel %vm1264, %v1373, %v1374
        %v1376 = vrot.slane %v1374, 4
        %v1377 = vrot.slane %v414, 5
        %v1378 = vsel %vm1264, %v1376, %v1377
        %v1379 = vrot.slane %v1377, 4
        %v1380 = vrot.slane %v451, 5
        %v1381 = vsel %vm1264, %v1379, %v1380
        %v1382 = vrot.slane %v1175, 5
        %v1383 = vrot.slane %v1382, 4
        %v1384 = vrot.slane %v416, 5
        %v1385 = vsel %vm1264, %v1383, %v1384
        %v1386 = vrot.slane %v1384, 4
        %v1387 = vrot.slane %v417, 5
        %v1388 = vsel %vm1264, %v1386, %v1387
        %v1389 = vrot.slane %v1387, 4
        %v1390 = vrot.slane %v418, 5
        %v1391 = vsel %vm1264, %v1389, %v1390
        %v1392 = vrot.slane %v1390, 4
        %v1393 = vrot.slane %v452, 5
        %v1394 = vsel %vm1264, %v1392, %v1393
        %v1395 = vrot.slane %v1176, 5
        %v1396 = vrot.slane %v1395, 4
        %v1397 = vrot.slane %v420, 5
        %v1398 = vsel %vm1264, %v1396, %v1397
        %v1399 = vrot.slane %v1397, 4
        %v1400 = vrot.slane %v421, 5
        %v1401 = vsel %vm1264, %v1399, %v1400
        %v1402 = vrot.slane %v1400, 4
        %v1403 = vrot.slane %v422, 5
        %v1404 = vsel %vm1264, %v1402, %v1403
        %v1405 = vrot.slane %v1403, 4
        %v1406 = vrot.slane %v453, 5
        %v1407 = vsel %vm1264, %v1405, %v1406
        %v1408 = vrot.slane %v1177, 5
        %v1409 = vrot.slane %v1408, 4
        %v1410 = vrot.slane %v424, 5
        %v1411 = vsel %vm1264, %v1409, %v1410
        %v1412 = vrot.slane %v1410, 4
        %v1413 = vrot.slane %v425, 5
        %v1414 = vsel %vm1264, %v1412, %v1413
        %v1415 = vrot.slane %v1413, 4
        %v1416 = vrot.slane %v426, 5
        %v1417 = vsel %vm1264, %v1415, %v1416
        %v1418 = vrot.slane %v1416, 4
        %v1419 = vrot.slane %v454, 5
        %v1420 = vsel %vm1264, %v1418, %v1419
        %v1421 = vrot.slane %v1178, 5
        %v1422 = vrot.slane %v1421, 4
        %v1423 = vrot.slane %v428, 5
        %v1424 = vsel %vm1264, %v1422, %v1423
        %v1425 = vrot.slane %v1423, 4
        %v1426 = vrot.slane %v429, 5
        %v1427 = vsel %vm1264, %v1425, %v1426
        %v1428 = vrot.slane %v1426, 4
        %v1429 = vrot.slane %v430, 5
        %v1430 = vsel %vm1264, %v1428, %v1429
        %v1431 = vrot.slane %v1429, 4
        %v1432 = vrot.slane %v455, 5
        %v1433 = vsel %vm1264, %v1431, %v1432
        %v1434 = vrot.slane %v1179, 5
        %v1435 = vrot.slane %v1434, 4
        %v1436 = vrot.slane %v432, 5
        %v1437 = vsel %vm1264, %v1435, %v1436
        %v1438 = vrot.slane %v1436, 4
        %v1439 = vrot.slane %v433, 5
        %v1440 = vsel %vm1264, %v1438, %v1439
        %v1441 = vrot.slane %v1439, 4
        %v1442 = vrot.slane %v434, 5
        %v1443 = vsel %vm1264, %v1441, %v1442
        %v1444 = vrot.slane %v1442, 4
        %v1445 = vrot.slane %v456, 5
        %v1446 = vsel %vm1264, %v1444, %v1445
        %v1447 = vrot.slane %v1180, 5
        %v1448 = vrot.slane %v1447, 4
        %v1449 = vrot.slane %v436, 5
        %v1450 = vsel %vm1264, %v1448, %v1449
        %v1451 = vrot.slane %v1449, 4
        %v1452 = vrot.slane %v437, 5
        %v1453 = vsel %vm1264, %v1451, %v1452
        %v1454 = vrot.slane %v1452, 4
        %v1455 = vrot.slane %v438, 5
        %v1456 = vsel %vm1264, %v1454, %v1455
        %v1457 = vrot.slane %v1455, 4
        %v1458 = vrot.slane %v457, 5
        %v1459 = vsel %vm1264, %v1457, %v1458
        %v1460 = vrot.slane %v1181, 5
        %v1461 = vrot.slane %v1460, 4
        %v1462 = vrot.slane %v440, 5
        %v1463 = vsel %vm1264, %v1461, %v1462
        %v1464 = vrot.slane %v1462, 4
        %v1465 = vrot.slane %v441, 5
        %v1466 = vsel %vm1264, %v1464, %v1465
        %v1467 = vrot.slane %v1465, 4
        %v1468 = vrot.slane %v442, 5
        %v1469 = vsel %vm1264, %v1467, %v1468
        %v1470 = vrot.slane %v1468, 4
        %v1471 = vrot.slane %v458, 5
        %v1472 = vsel %vm1264, %v1470, %v1471
        %v1473 = vld [vmem:[%s298] sm:$0xf]
        %v1474 = vld [vmem:[%s298 + $0x4] sm:$0xf]
        %v1475 = vld [vmem:[%s298 + $0x8] sm:$0xf]
        %v1476 = vld [vmem:[%s298 + $0xc] sm:$0xf]
        %v1477 = vld [vmem:[%s298 + $0x14] sm:$0xf]
        %v1478 = vld [vmem:[%s298 + $0x18] sm:$0xf]
        %v1479 = vld [vmem:[%s298 + $0x1c] sm:$0xf]
        %v1480 = vld [vmem:[%s298 + $0x20] sm:$0xf]
        %v1481 = vld [vmem:[%s298 + $0x28] sm:$0xf]
        %v1482 = vld [vmem:[%s298 + $0x2c] sm:$0xf]
        %v1483 = vld [vmem:[%s298 + $0x30] sm:$0xf]
        %v1484 = vld [vmem:[%s298 + $0x34] sm:$0xf]
        %v1485 = vld [vmem:[%s298 + $0x3c] sm:$0xf]
        %v1486 = vld [vmem:[%s298 + $0x40] sm:$0xf]
        %v1487 = vld [vmem:[%s298 + $0x44] sm:$0xf]
        %v1488 = vld [vmem:[%s298 + $0x48] sm:$0xf]
        %v1489 = vld [vmem:[%s298 + $0x50] sm:$0xf]
        %v1490 = vld [vmem:[%s298 + $0x54] sm:$0xf]
        %v1491 = vld [vmem:[%s298 + $0x58] sm:$0xf]
        %v1492 = vld [vmem:[%s298 + $0x5c] sm:$0xf]
        %v1493 = vld [vmem:[%s298 + $0x64] sm:$0xf]
        %v1494 = vld [vmem:[%s298 + $0x68] sm:$0xf]
        %v1495 = vld [vmem:[%s298 + $0x6c] sm:$0xf]
        %v1496 = vld [vmem:[%s298 + $0x70] sm:$0xf]
        %v1497 = vld [vmem:[%s298 + $0x78] sm:$0xf]
        %v1498 = vld [vmem:[%s298 + $0x7c] sm:$0xf]
        %v1499 = vld [vmem:[%s298 + $0x80] sm:$0xf]
        %v1500 = vld [vmem:[%s298 + $0x84] sm:$0xf]
        %v1501 = vld [vmem:[%s298 + $0x8c] sm:$0xf]
        %v1502 = vld [vmem:[%s298 + $0x90] sm:$0xf]
        %v1503 = vld [vmem:[%s298 + $0x94] sm:$0xf]
        %v1504 = vld [vmem:[%s298 + $0x98] sm:$0xf]
        %v1505 = vld [vmem:[%s298 + $0xa0] sm:$0xf]
        %v1506 = vld [vmem:[%s298 + $0xa4] sm:$0xf]
        %v1507 = vld [vmem:[%s298 + $0xa8] sm:$0xf]
        %v1508 = vld [vmem:[%s298 + $0xac] sm:$0xf]
        %v1509 = vld [vmem:[%s298 + $0xb4] sm:$0xf]
        %v1510 = vld [vmem:[%s298 + $0xb8] sm:$0xf]
        %v1511 = vld [vmem:[%s298 + $0xbc] sm:$0xf]
        %v1512 = vld [vmem:[%s298 + $0xc0] sm:$0xf]
        %v1513 = vld [vmem:[%s298 + $0xc8] sm:$0xf]
        %v1514 = vld [vmem:[%s298 + $0xcc] sm:$0xf]
        %v1515 = vld [vmem:[%s298 + $0xd0] sm:$0xf]
        %v1516 = vld [vmem:[%s298 + $0xd4] sm:$0xf]
        %v1517 = vld [vmem:[%s298 + $0xdc] sm:$0xf]
        %v1518 = vld [vmem:[%s298 + $0xe0] sm:$0xf]
        %v1519 = vld [vmem:[%s298 + $0xe4] sm:$0xf]
        %v1520 = vld [vmem:[%s298 + $0xe8] sm:$0xf]
        %v1521 = vld [vmem:[%s298 + $0xf0] sm:$0xf]
        %v1522 = vld [vmem:[%s298 + $0xf4] sm:$0xf]
        %v1523 = vld [vmem:[%s298 + $0xf8] sm:$0xf]
        %v1524 = vld [vmem:[%s298 + $0xfc] sm:$0xf]
        %v1525 = vld [vmem:[%s298 + $0x104] sm:$0xf]
        %v1526 = vld [vmem:[%s298 + $0x108] sm:$0xf]
        %v1527 = vld [vmem:[%s298 + $0x10c] sm:$0xf]
        %v1528 = vld [vmem:[%s298 + $0x110] sm:$0xf]
        %v1529 = vld [vmem:[%s298 + $0x118] sm:$0xf]
        %v1530 = vld [vmem:[%s298 + $0x11c] sm:$0xf]
        %v1531 = vld [vmem:[%s298 + $0x120] sm:$0xf]
        %v1532 = vld [vmem:[%s298 + $0x124] sm:$0xf]
        %v1533 = vld [vmem:[%s298 + $0x12c] sm:$0xf]
        %v1534 = vld [vmem:[%s298 + $0x130] sm:$0xf]
        %v1535 = vld [vmem:[%s298 + $0x134] sm:$0xf]
        %v1536 = vld [vmem:[%s298 + $0x138] sm:$0xf]
        %v1537 = vld [vmem:[%s298 + $0x10] sm:$0x1]
        %v1538 = vld [vmem:[%s298 + $0x24] sm:$0x1]
        %v1539 = vld [vmem:[%s298 + $0x38] sm:$0x1]
        %v1540 = vld [vmem:[%s298 + $0x4c] sm:$0x1]
        %v1541 = vld [vmem:[%s298 + $0x60] sm:$0x1]
        %v1542 = vld [vmem:[%s298 + $0x74] sm:$0x1]
        %v1543 = vld [vmem:[%s298 + $0x88] sm:$0x1]
        %v1544 = vld [vmem:[%s298 + $0x9c] sm:$0x1]
        %v1545 = vld [vmem:[%s298 + $0xb0] sm:$0x1]
        %v1546 = vld [vmem:[%s298 + $0xc4] sm:$0x1]
        %v1547 = vld [vmem:[%s298 + $0xd8] sm:$0x1]
        %v1548 = vld [vmem:[%s298 + $0xec] sm:$0x1]
        %v1549 = vld [vmem:[%s298 + $0x100] sm:$0x1]
        %v1550 = vld [vmem:[%s298 + $0x114] sm:$0x1]
        %v1551 = vld [vmem:[%s298 + $0x128] sm:$0x1]
        %v1552 = vld [vmem:[%s298 + $0x13c] sm:$0x1]
        %v1554 = vshrl.u32 %v1473, 16
        %v1556 = vrot.slane %v1554, 4
        %v1557 = vshll.u32 %v1473, 16
        %v1559 = vrot.slane %v1557, 5
        %v1560 = vor.u32 %v1556, %v1559
        %v1561 = vrot.slane %v1560, 4
        %v1563 = vshll.u32 %v1474, 16
        %v1565 = vrot.slane %v1563, 5
        %v1566 = vsel %vm461, %v1561, %v1565
        %v1567 = vshrl.u32 %v1474, 16
        %v1569 = vrot.slane %v1567, 4
        %v1570 = vor.u32 %v1569, %v1565
        %v1571 = vrot.slane %v1570, 4
        %v1573 = vshll.u32 %v1475, 16
        %v1575 = vrot.slane %v1573, 5
        %v1576 = vsel %vm461, %v1571, %v1575
        %v1577 = vshrl.u32 %v1475, 16
        %v1579 = vrot.slane %v1577, 4
        %v1580 = vor.u32 %v1579, %v1575
        %v1581 = vrot.slane %v1580, 4
        %v1583 = vshll.u32 %v1476, 16
        %v1585 = vrot.slane %v1583, 5
        %v1586 = vsel %vm461, %v1581, %v1585
        %v1587 = vshrl.u32 %v1476, 16
        %v1589 = vrot.slane %v1587, 4
        %v1590 = vor.u32 %v1589, %v1585
        %v1591 = vrot.slane %v1590, 4
        %v1593 = vshll.u32 %v1537, 16
        %v1595 = vrot.slane %v1593, 5
        %v1596 = vsel %vm461, %v1591, %v1595
        %v1598 = vshrl.u32 %v1477, 16
        %v1600 = vrot.slane %v1598, 4
        %v1601 = vshll.u32 %v1477, 16
        %v1603 = vrot.slane %v1601, 5
        %v1604 = vor.u32 %v1600, %v1603
        %v1605 = vrot.slane %v1604, 4
        %v1607 = vshll.u32 %v1478, 16
        %v1609 = vrot.slane %v1607, 5
        %v1610 = vsel %vm461, %v1605, %v1609
        %v1611 = vshrl.u32 %v1478, 16
        %v1613 = vrot.slane %v1611, 4
        %v1614 = vor.u32 %v1613, %v1609
        %v1615 = vrot.slane %v1614, 4
        %v1617 = vshll.u32 %v1479, 16
        %v1619 = vrot.slane %v1617, 5
        %v1620 = vsel %vm461, %v1615, %v1619
        %v1621 = vshrl.u32 %v1479, 16
        %v1623 = vrot.slane %v1621, 4
        %v1624 = vor.u32 %v1623, %v1619
        %v1625 = vrot.slane %v1624, 4
        %v1627 = vshll.u32 %v1480, 16
        %v1629 = vrot.slane %v1627, 5
        %v1630 = vsel %vm461, %v1625, %v1629
        %v1631 = vshrl.u32 %v1480, 16
        %v1633 = vrot.slane %v1631, 4
        %v1634 = vor.u32 %v1633, %v1629
        %v1635 = vrot.slane %v1634, 4
        %v1637 = vshll.u32 %v1538, 16
        %v1639 = vrot.slane %v1637, 5
        %v1640 = vsel %vm461, %v1635, %v1639
        %v1642 = vshrl.u32 %v1481, 16
        %v1644 = vrot.slane %v1642, 4
        %v1645 = vshll.u32 %v1481, 16
        %v1647 = vrot.slane %v1645, 5
        %v1648 = vor.u32 %v1644, %v1647
        %v1649 = vrot.slane %v1648, 4
        %v1651 = vshll.u32 %v1482, 16
        %v1653 = vrot.slane %v1651, 5
        %v1654 = vsel %vm461, %v1649, %v1653
        %v1655 = vshrl.u32 %v1482, 16
        %v1657 = vrot.slane %v1655, 4
        %v1658 = vor.u32 %v1657, %v1653
        %v1659 = vrot.slane %v1658, 4
        %v1661 = vshll.u32 %v1483, 16
        %v1663 = vrot.slane %v1661, 5
        %v1664 = vsel %vm461, %v1659, %v1663
        %v1665 = vshrl.u32 %v1483, 16
        %v1667 = vrot.slane %v1665, 4
        %v1668 = vor.u32 %v1667, %v1663
        %v1669 = vrot.slane %v1668, 4
        %v1671 = vshll.u32 %v1484, 16
        %v1673 = vrot.slane %v1671, 5
        %v1674 = vsel %vm461, %v1669, %v1673
        %v1675 = vshrl.u32 %v1484, 16
        %v1677 = vrot.slane %v1675, 4
        %v1678 = vor.u32 %v1677, %v1673
        %v1679 = vrot.slane %v1678, 4
        %v1681 = vshll.u32 %v1539, 16
        %v1683 = vrot.slane %v1681, 5
        %v1684 = vsel %vm461, %v1679, %v1683
        %v1686 = vshrl.u32 %v1485, 16
        %v1688 = vrot.slane %v1686, 4
        %v1689 = vshll.u32 %v1485, 16
        %v1691 = vrot.slane %v1689, 5
        %v1692 = vor.u32 %v1688, %v1691
        %v1693 = vrot.slane %v1692, 4
        %v1695 = vshll.u32 %v1486, 16
        %v1697 = vrot.slane %v1695, 5
        %v1698 = vsel %vm461, %v1693, %v1697
        %v1699 = vshrl.u32 %v1486, 16
        %v1701 = vrot.slane %v1699, 4
        %v1702 = vor.u32 %v1701, %v1697
        %v1703 = vrot.slane %v1702, 4
        %v1705 = vshll.u32 %v1487, 16
        %v1707 = vrot.slane %v1705, 5
        %v1708 = vsel %vm461, %v1703, %v1707
        %v1709 = vshrl.u32 %v1487, 16
        %v1711 = vrot.slane %v1709, 4
        %v1712 = vor.u32 %v1711, %v1707
        %v1713 = vrot.slane %v1712, 4
        %v1715 = vshll.u32 %v1488, 16
        %v1717 = vrot.slane %v1715, 5
        %v1718 = vsel %vm461, %v1713, %v1717
        %v1719 = vshrl.u32 %v1488, 16
        %v1721 = vrot.slane %v1719, 4
        %v1722 = vor.u32 %v1721, %v1717
        %v1723 = vrot.slane %v1722, 4
        %v1725 = vshll.u32 %v1540, 16
        %v1727 = vrot.slane %v1725, 5
        %v1728 = vsel %vm461, %v1723, %v1727
        %v1730 = vshrl.u32 %v1489, 16
        %v1732 = vrot.slane %v1730, 4
        %v1733 = vshll.u32 %v1489, 16
        %v1735 = vrot.slane %v1733, 5
        %v1736 = vor.u32 %v1732, %v1735
        %v1737 = vrot.slane %v1736, 4
        %v1739 = vshll.u32 %v1490, 16
        %v1741 = vrot.slane %v1739, 5
        %v1742 = vsel %vm461, %v1737, %v1741
        %v1743 = vshrl.u32 %v1490, 16
        %v1745 = vrot.slane %v1743, 4
        %v1746 = vor.u32 %v1745, %v1741
        %v1747 = vrot.slane %v1746, 4
        %v1749 = vshll.u32 %v1491, 16
        %v1751 = vrot.slane %v1749, 5
        %v1752 = vsel %vm461, %v1747, %v1751
        %v1753 = vshrl.u32 %v1491, 16
        %v1755 = vrot.slane %v1753, 4
        %v1756 = vor.u32 %v1755, %v1751
        %v1757 = vrot.slane %v1756, 4
        %v1759 = vshll.u32 %v1492, 16
        %v1761 = vrot.slane %v1759, 5
        %v1762 = vsel %vm461, %v1757, %v1761
        %v1763 = vshrl.u32 %v1492, 16
        %v1765 = vrot.slane %v1763, 4
        %v1766 = vor.u32 %v1765, %v1761
        %v1767 = vrot.slane %v1766, 4
        %v1769 = vshll.u32 %v1541, 16
        %v1771 = vrot.slane %v1769, 5
        %v1772 = vsel %vm461, %v1767, %v1771
        %v1774 = vshrl.u32 %v1493, 16
        %v1776 = vrot.slane %v1774, 4
        %v1777 = vshll.u32 %v1493, 16
        %v1779 = vrot.slane %v1777, 5
        %v1780 = vor.u32 %v1776, %v1779
        %v1781 = vrot.slane %v1780, 4
        %v1783 = vshll.u32 %v1494, 16
        %v1785 = vrot.slane %v1783, 5
        %v1786 = vsel %vm461, %v1781, %v1785
        %v1787 = vshrl.u32 %v1494, 16
        %v1789 = vrot.slane %v1787, 4
        %v1790 = vor.u32 %v1789, %v1785
        %v1791 = vrot.slane %v1790, 4
        %v1793 = vshll.u32 %v1495, 16
        %v1795 = vrot.slane %v1793, 5
        %v1796 = vsel %vm461, %v1791, %v1795
        %v1797 = vshrl.u32 %v1495, 16
        %v1799 = vrot.slane %v1797, 4
        %v1800 = vor.u32 %v1799, %v1795
        %v1801 = vrot.slane %v1800, 4
        %v1803 = vshll.u32 %v1496, 16
        %v1805 = vrot.slane %v1803, 5
        %v1806 = vsel %vm461, %v1801, %v1805
        %v1807 = vshrl.u32 %v1496, 16
        %v1809 = vrot.slane %v1807, 4
        %v1810 = vor.u32 %v1809, %v1805
        %v1811 = vrot.slane %v1810, 4
        %v1813 = vshll.u32 %v1542, 16
        %v1815 = vrot.slane %v1813, 5
        %v1816 = vsel %vm461, %v1811, %v1815
        %v1818 = vshrl.u32 %v1497, 16
        %v1820 = vrot.slane %v1818, 4
        %v1821 = vshll.u32 %v1497, 16
        %v1823 = vrot.slane %v1821, 5
        %v1824 = vor.u32 %v1820, %v1823
        %v1825 = vrot.slane %v1824, 4
        %v1827 = vshll.u32 %v1498, 16
        %v1829 = vrot.slane %v1827, 5
        %v1830 = vsel %vm461, %v1825, %v1829
        %v1831 = vshrl.u32 %v1498, 16
        %v1833 = vrot.slane %v1831, 4
        %v1834 = vor.u32 %v1833, %v1829
        %v1835 = vrot.slane %v1834, 4
        %v1837 = vshll.u32 %v1499, 16
        %v1839 = vrot.slane %v1837, 5
        %v1840 = vsel %vm461, %v1835, %v1839
        %v1841 = vshrl.u32 %v1499, 16
        %v1843 = vrot.slane %v1841, 4
        %v1844 = vor.u32 %v1843, %v1839
        %v1845 = vrot.slane %v1844, 4
        %v1847 = vshll.u32 %v1500, 16
        %v1849 = vrot.slane %v1847, 5
        %v1850 = vsel %vm461, %v1845, %v1849
        %v1851 = vshrl.u32 %v1500, 16
        %v1853 = vrot.slane %v1851, 4
        %v1854 = vor.u32 %v1853, %v1849
        %v1855 = vrot.slane %v1854, 4
        %v1857 = vshll.u32 %v1543, 16
        %v1859 = vrot.slane %v1857, 5
        %v1860 = vsel %vm461, %v1855, %v1859
        %v1862 = vshrl.u32 %v1501, 16
        %v1864 = vrot.slane %v1862, 4
        %v1865 = vshll.u32 %v1501, 16
        %v1867 = vrot.slane %v1865, 5
        %v1868 = vor.u32 %v1864, %v1867
        %v1869 = vrot.slane %v1868, 4
        %v1871 = vshll.u32 %v1502, 16
        %v1873 = vrot.slane %v1871, 5
        %v1874 = vsel %vm461, %v1869, %v1873
        %v1875 = vshrl.u32 %v1502, 16
        %v1877 = vrot.slane %v1875, 4
        %v1878 = vor.u32 %v1877, %v1873
        %v1879 = vrot.slane %v1878, 4
        %v1881 = vshll.u32 %v1503, 16
        %v1883 = vrot.slane %v1881, 5
        %v1884 = vsel %vm461, %v1879, %v1883
        %v1885 = vshrl.u32 %v1503, 16
        %v1887 = vrot.slane %v1885, 4
        %v1888 = vor.u32 %v1887, %v1883
        %v1889 = vrot.slane %v1888, 4
        %v1891 = vshll.u32 %v1504, 16
        %v1893 = vrot.slane %v1891, 5
        %v1894 = vsel %vm461, %v1889, %v1893
        %v1895 = vshrl.u32 %v1504, 16
        %v1897 = vrot.slane %v1895, 4
        %v1898 = vor.u32 %v1897, %v1893
        %v1899 = vrot.slane %v1898, 4
        %v1901 = vshll.u32 %v1544, 16
        %v1903 = vrot.slane %v1901, 5
        %v1904 = vsel %vm461, %v1899, %v1903
        %v1906 = vshrl.u32 %v1505, 16
        %v1908 = vrot.slane %v1906, 4
        %v1909 = vshll.u32 %v1505, 16
        %v1911 = vrot.slane %v1909, 5
        %v1912 = vor.u32 %v1908, %v1911
        %v1913 = vrot.slane %v1912, 4
        %v1915 = vshll.u32 %v1506, 16
        %v1917 = vrot.slane %v1915, 5
        %v1918 = vsel %vm461, %v1913, %v1917
        %v1919 = vshrl.u32 %v1506, 16
        %v1921 = vrot.slane %v1919, 4
        %v1922 = vor.u32 %v1921, %v1917
        %v1923 = vrot.slane %v1922, 4
        %v1925 = vshll.u32 %v1507, 16
        %v1927 = vrot.slane %v1925, 5
        %v1928 = vsel %vm461, %v1923, %v1927
        %v1929 = vshrl.u32 %v1507, 16
        %v1931 = vrot.slane %v1929, 4
        %v1932 = vor.u32 %v1931, %v1927
        %v1933 = vrot.slane %v1932, 4
        %v1935 = vshll.u32 %v1508, 16
        %v1937 = vrot.slane %v1935, 5
        %v1938 = vsel %vm461, %v1933, %v1937
        %v1939 = vshrl.u32 %v1508, 16
        %v1941 = vrot.slane %v1939, 4
        %v1942 = vor.u32 %v1941, %v1937
        %v1943 = vrot.slane %v1942, 4
        %v1945 = vshll.u32 %v1545, 16
        %v1947 = vrot.slane %v1945, 5
        %v1948 = vsel %vm461, %v1943, %v1947
        %v1950 = vshrl.u32 %v1509, 16
        %v1952 = vrot.slane %v1950, 4
        %v1953 = vshll.u32 %v1509, 16
        %v1955 = vrot.slane %v1953, 5
        %v1956 = vor.u32 %v1952, %v1955
        %v1957 = vrot.slane %v1956, 4
        %v1959 = vshll.u32 %v1510, 16
        %v1961 = vrot.slane %v1959, 5
        %v1962 = vsel %vm461, %v1957, %v1961
        %v1963 = vshrl.u32 %v1510, 16
        %v1965 = vrot.slane %v1963, 4
        %v1966 = vor.u32 %v1965, %v1961
        %v1967 = vrot.slane %v1966, 4
        %v1969 = vshll.u32 %v1511, 16
        %v1971 = vrot.slane %v1969, 5
        %v1972 = vsel %vm461, %v1967, %v1971
        %v1973 = vshrl.u32 %v1511, 16
        %v1975 = vrot.slane %v1973, 4
        %v1976 = vor.u32 %v1975, %v1971
        %v1977 = vrot.slane %v1976, 4
        %v1979 = vshll.u32 %v1512, 16
        %v1981 = vrot.slane %v1979, 5
        %v1982 = vsel %vm461, %v1977, %v1981
        %v1983 = vshrl.u32 %v1512, 16
        %v1985 = vrot.slane %v1983, 4
        %v1986 = vor.u32 %v1985, %v1981
        %v1987 = vrot.slane %v1986, 4
        %v1989 = vshll.u32 %v1546, 16
        %v1991 = vrot.slane %v1989, 5
        %v1992 = vsel %vm461, %v1987, %v1991
        %v1994 = vshrl.u32 %v1513, 16
        %v1996 = vrot.slane %v1994, 4
        %v1997 = vshll.u32 %v1513, 16
        %v1999 = vrot.slane %v1997, 5
        %v2000 = vor.u32 %v1996, %v1999
        %v2001 = vrot.slane %v2000, 4
        %v2003 = vshll.u32 %v1514, 16
        %v2005 = vrot.slane %v2003, 5
        %v2006 = vsel %vm461, %v2001, %v2005
        %v2007 = vshrl.u32 %v1514, 16
        %v2009 = vrot.slane %v2007, 4
        %v2010 = vor.u32 %v2009, %v2005
        %v2011 = vrot.slane %v2010, 4
        %v2013 = vshll.u32 %v1515, 16
        %v2015 = vrot.slane %v2013, 5
        %v2016 = vsel %vm461, %v2011, %v2015
        %v2017 = vshrl.u32 %v1515, 16
        %v2019 = vrot.slane %v2017, 4
        %v2020 = vor.u32 %v2019, %v2015
        %v2021 = vrot.slane %v2020, 4
        %v2023 = vshll.u32 %v1516, 16
        %v2025 = vrot.slane %v2023, 5
        %v2026 = vsel %vm461, %v2021, %v2025
        %v2027 = vshrl.u32 %v1516, 16
        %v2029 = vrot.slane %v2027, 4
        %v2030 = vor.u32 %v2029, %v2025
        %v2031 = vrot.slane %v2030, 4
        %v2033 = vshll.u32 %v1547, 16
        %v2035 = vrot.slane %v2033, 5
        %v2036 = vsel %vm461, %v2031, %v2035
        %v2038 = vshrl.u32 %v1517, 16
        %v2040 = vrot.slane %v2038, 4
        %v2041 = vshll.u32 %v1517, 16
        %v2043 = vrot.slane %v2041, 5
        %v2044 = vor.u32 %v2040, %v2043
        %v2045 = vrot.slane %v2044, 4
        %v2047 = vshll.u32 %v1518, 16
        %v2049 = vrot.slane %v2047, 5
        %v2050 = vsel %vm461, %v2045, %v2049
        %v2051 = vshrl.u32 %v1518, 16
        %v2053 = vrot.slane %v2051, 4
        %v2054 = vor.u32 %v2053, %v2049
        %v2055 = vrot.slane %v2054, 4
        %v2057 = vshll.u32 %v1519, 16
        %v2059 = vrot.slane %v2057, 5
        %v2060 = vsel %vm461, %v2055, %v2059
        %v2061 = vshrl.u32 %v1519, 16
        %v2063 = vrot.slane %v2061, 4
        %v2064 = vor.u32 %v2063, %v2059
        %v2065 = vrot.slane %v2064, 4
        %v2067 = vshll.u32 %v1520, 16
        %v2069 = vrot.slane %v2067, 5
        %v2070 = vsel %vm461, %v2065, %v2069
        %v2071 = vshrl.u32 %v1520, 16
        %v2073 = vrot.slane %v2071, 4
        %v2074 = vor.u32 %v2073, %v2069
        %v2075 = vrot.slane %v2074, 4
        %v2077 = vshll.u32 %v1548, 16
        %v2079 = vrot.slane %v2077, 5
        %v2080 = vsel %vm461, %v2075, %v2079
        %v2082 = vshrl.u32 %v1521, 16
        %v2084 = vrot.slane %v2082, 4
        %v2085 = vshll.u32 %v1521, 16
        %v2087 = vrot.slane %v2085, 5
        %v2088 = vor.u32 %v2084, %v2087
        %v2089 = vrot.slane %v2088, 4
        %v2091 = vshll.u32 %v1522, 16
        %v2093 = vrot.slane %v2091, 5
        %v2094 = vsel %vm461, %v2089, %v2093
        %v2095 = vshrl.u32 %v1522, 16
        %v2097 = vrot.slane %v2095, 4
        %v2098 = vor.u32 %v2097, %v2093
        %v2099 = vrot.slane %v2098, 4
        %v2101 = vshll.u32 %v1523, 16
        %v2103 = vrot.slane %v2101, 5
        %v2104 = vsel %vm461, %v2099, %v2103
        %v2105 = vshrl.u32 %v1523, 16
        %v2107 = vrot.slane %v2105, 4
        %v2108 = vor.u32 %v2107, %v2103
        %v2109 = vrot.slane %v2108, 4
        %v2111 = vshll.u32 %v1524, 16
        %v2113 = vrot.slane %v2111, 5
        %v2114 = vsel %vm461, %v2109, %v2113
        %v2115 = vshrl.u32 %v1524, 16
        %v2117 = vrot.slane %v2115, 4
        %v2118 = vor.u32 %v2117, %v2113
        %v2119 = vrot.slane %v2118, 4
        %v2121 = vshll.u32 %v1549, 16
        %v2123 = vrot.slane %v2121, 5
        %v2124 = vsel %vm461, %v2119, %v2123
        %v2126 = vshrl.u32 %v1525, 16
        %v2128 = vrot.slane %v2126, 4
        %v2129 = vshll.u32 %v1525, 16
        %v2131 = vrot.slane %v2129, 5
        %v2132 = vor.u32 %v2128, %v2131
        %v2133 = vrot.slane %v2132, 4
        %v2135 = vshll.u32 %v1526, 16
        %v2137 = vrot.slane %v2135, 5
        %v2138 = vsel %vm461, %v2133, %v2137
        %v2139 = vshrl.u32 %v1526, 16
        %v2141 = vrot.slane %v2139, 4
        %v2142 = vor.u32 %v2141, %v2137
        %v2143 = vrot.slane %v2142, 4
        %v2145 = vshll.u32 %v1527, 16
        %v2147 = vrot.slane %v2145, 5
        %v2148 = vsel %vm461, %v2143, %v2147
        %v2149 = vshrl.u32 %v1527, 16
        %v2151 = vrot.slane %v2149, 4
        %v2152 = vor.u32 %v2151, %v2147
        %v2153 = vrot.slane %v2152, 4
        %v2155 = vshll.u32 %v1528, 16
        %v2157 = vrot.slane %v2155, 5
        %v2158 = vsel %vm461, %v2153, %v2157
        %v2159 = vshrl.u32 %v1528, 16
        %v2161 = vrot.slane %v2159, 4
        %v2162 = vor.u32 %v2161, %v2157
        %v2163 = vrot.slane %v2162, 4
        %v2165 = vshll.u32 %v1550, 16
        %v2167 = vrot.slane %v2165, 5
        %v2168 = vsel %vm461, %v2163, %v2167
        %v2170 = vshrl.u32 %v1529, 16
        %v2172 = vrot.slane %v2170, 4
        %v2173 = vshll.u32 %v1529, 16
        %v2175 = vrot.slane %v2173, 5
        %v2176 = vor.u32 %v2172, %v2175
        %v2177 = vrot.slane %v2176, 4
        %v2179 = vshll.u32 %v1530, 16
        %v2181 = vrot.slane %v2179, 5
        %v2182 = vsel %vm461, %v2177, %v2181
        %v2183 = vshrl.u32 %v1530, 16
        %v2185 = vrot.slane %v2183, 4
        %v2186 = vor.u32 %v2185, %v2181
        %v2187 = vrot.slane %v2186, 4
        %v2189 = vshll.u32 %v1531, 16
        %v2191 = vrot.slane %v2189, 5
        %v2192 = vsel %vm461, %v2187, %v2191
        %v2193 = vshrl.u32 %v1531, 16
        %v2195 = vrot.slane %v2193, 4
        %v2196 = vor.u32 %v2195, %v2191
        %v2197 = vrot.slane %v2196, 4
        %v2199 = vshll.u32 %v1532, 16
        %v2201 = vrot.slane %v2199, 5
        %v2202 = vsel %vm461, %v2197, %v2201
        %v2203 = vshrl.u32 %v1532, 16
        %v2205 = vrot.slane %v2203, 4
        %v2206 = vor.u32 %v2205, %v2201
        %v2207 = vrot.slane %v2206, 4
        %v2209 = vshll.u32 %v1551, 16
        %v2211 = vrot.slane %v2209, 5
        %v2212 = vsel %vm461, %v2207, %v2211
        %v2214 = vshrl.u32 %v1533, 16
        %v2216 = vrot.slane %v2214, 4
        %v2217 = vshll.u32 %v1533, 16
        %v2219 = vrot.slane %v2217, 5
        %v2220 = vor.u32 %v2216, %v2219
        %v2221 = vrot.slane %v2220, 4
        %v2223 = vshll.u32 %v1534, 16
        %v2225 = vrot.slane %v2223, 5
        %v2226 = vsel %vm461, %v2221, %v2225
        %v2227 = vshrl.u32 %v1534, 16
        %v2229 = vrot.slane %v2227, 4
        %v2230 = vor.u32 %v2229, %v2225
        %v2231 = vrot.slane %v2230, 4
        %v2233 = vshll.u32 %v1535, 16
        %v2235 = vrot.slane %v2233, 5
        %v2236 = vsel %vm461, %v2231, %v2235
        %v2237 = vshrl.u32 %v1535, 16
        %v2239 = vrot.slane %v2237, 4
        %v2240 = vor.u32 %v2239, %v2235
        %v2241 = vrot.slane %v2240, 4
        %v2243 = vshll.u32 %v1536, 16
        %v2245 = vrot.slane %v2243, 5
        %v2246 = vsel %vm461, %v2241, %v2245
        %v2247 = vshrl.u32 %v1536, 16
        %v2249 = vrot.slane %v2247, 4
        %v2250 = vor.u32 %v2249, %v2245
        %v2251 = vrot.slane %v2250, 4
        %v2253 = vshll.u32 %v1552, 16
        %v2255 = vrot.slane %v2253, 5
        %v2256 = vsel %vm461, %v2251, %v2255
        %v2257 = vld [vmem:[%s298] sm:$0xe]
        %v2258 = vld [vmem:[%s298 + $0x14] sm:$0xe]
        %v2259 = vld [vmem:[%s298 + $0x28] sm:$0xe]
        %v2260 = vld [vmem:[%s298 + $0x3c] sm:$0xe]
        %v2261 = vld [vmem:[%s298 + $0x50] sm:$0xe]
        %v2262 = vld [vmem:[%s298 + $0x64] sm:$0xe]
        %v2263 = vld [vmem:[%s298 + $0x78] sm:$0xe]
        %v2264 = vld [vmem:[%s298 + $0x8c] sm:$0xe]
        %v2265 = vld [vmem:[%s298 + $0xa0] sm:$0xe]
        %v2266 = vld [vmem:[%s298 + $0xb4] sm:$0xe]
        %v2267 = vld [vmem:[%s298 + $0xc8] sm:$0xe]
        %v2268 = vld [vmem:[%s298 + $0xdc] sm:$0xe]
        %v2269 = vld [vmem:[%s298 + $0xf0] sm:$0xe]
        %v2270 = vld [vmem:[%s298 + $0x104] sm:$0xe]
        %v2271 = vld [vmem:[%s298 + $0x118] sm:$0xe]
        %v2272 = vld [vmem:[%s298 + $0x12c] sm:$0xe]
        %v2353 = vrot.slane %v2257, 5
        %v2354 = vrot.slane %v2353, 4
        %v2355 = vrot.slane %v1474, 5
        %v2356 = vsel %vm1264, %v2354, %v2355
        %v2357 = vrot.slane %v2355, 4
        %v2358 = vrot.slane %v1475, 5
        %v2359 = vsel %vm1264, %v2357, %v2358
        %v2360 = vrot.slane %v2358, 4
        %v2361 = vrot.slane %v1476, 5
        %v2362 = vsel %vm1264, %v2360, %v2361
        %v2363 = vrot.slane %v2361, 4
        %v2364 = vrot.slane %v1537, 5
        %v2365 = vsel %vm1264, %v2363, %v2364
        %v2366 = vrot.slane %v2258, 5
        %v2367 = vrot.slane %v2366, 4
        %v2368 = vrot.slane %v1478, 5
        %v2369 = vsel %vm1264, %v2367, %v2368
        %v2370 = vrot.slane %v2368, 4
        %v2371 = vrot.slane %v1479, 5
        %v2372 = vsel %vm1264, %v2370, %v2371
        %v2373 = vrot.slane %v2371, 4
        %v2374 = vrot.slane %v1480, 5
        %v2375 = vsel %vm1264, %v2373, %v2374
        %v2376 = vrot.slane %v2374, 4
        %v2377 = vrot.slane %v1538, 5
        %v2378 = vsel %vm1264, %v2376, %v2377
        %v2379 = vrot.slane %v2259, 5
        %v2380 = vrot.slane %v2379, 4
        %v2381 = vrot.slane %v1482, 5
        %v2382 = vsel %vm1264, %v2380, %v2381
        %v2383 = vrot.slane %v2381, 4
        %v2384 = vrot.slane %v1483, 5
        %v2385 = vsel %vm1264, %v2383, %v2384
        %v2386 = vrot.slane %v2384, 4
        %v2387 = vrot.slane %v1484, 5
        %v2388 = vsel %vm1264, %v2386, %v2387
        %v2389 = vrot.slane %v2387, 4
        %v2390 = vrot.slane %v1539, 5
        %v2391 = vsel %vm1264, %v2389, %v2390
        %v2392 = vrot.slane %v2260, 5
        %v2393 = vrot.slane %v2392, 4
        %v2394 = vrot.slane %v1486, 5
        %v2395 = vsel %vm1264, %v2393, %v2394
        %v2396 = vrot.slane %v2394, 4
        %v2397 = vrot.slane %v1487, 5
        %v2398 = vsel %vm1264, %v2396, %v2397
        %v2399 = vrot.slane %v2397, 4
        %v2400 = vrot.slane %v1488, 5
        %v2401 = vsel %vm1264, %v2399, %v2400
        %v2402 = vrot.slane %v2400, 4
        %v2403 = vrot.slane %v1540, 5
        %v2404 = vsel %vm1264, %v2402, %v2403
        %v2405 = vrot.slane %v2261, 5
        %v2406 = vrot.slane %v2405, 4
        %v2407 = vrot.slane %v1490, 5
        %v2408 = vsel %vm1264, %v2406, %v2407
        %v2409 = vrot.slane %v2407, 4
        %v2410 = vrot.slane %v1491, 5
        %v2411 = vsel %vm1264, %v2409, %v2410
        %v2412 = vrot.slane %v2410, 4
        %v2413 = vrot.slane %v1492, 5
        %v2414 = vsel %vm1264, %v2412, %v2413
        %v2415 = vrot.slane %v2413, 4
        %v2416 = vrot.slane %v1541, 5
        %v2417 = vsel %vm1264, %v2415, %v2416
        %v2418 = vrot.slane %v2262, 5
        %v2419 = vrot.slane %v2418, 4
        %v2420 = vrot.slane %v1494, 5
        %v2421 = vsel %vm1264, %v2419, %v2420
        %v2422 = vrot.slane %v2420, 4
        %v2423 = vrot.slane %v1495, 5
        %v2424 = vsel %vm1264, %v2422, %v2423
        %v2425 = vrot.slane %v2423, 4
        %v2426 = vrot.slane %v1496, 5
        %v2427 = vsel %vm1264, %v2425, %v2426
        %v2428 = vrot.slane %v2426, 4
        %v2429 = vrot.slane %v1542, 5
        %v2430 = vsel %vm1264, %v2428, %v2429
        %v2431 = vrot.slane %v2263, 5
        %v2432 = vrot.slane %v2431, 4
        %v2433 = vrot.slane %v1498, 5
        %v2434 = vsel %vm1264, %v2432, %v2433
        %v2435 = vrot.slane %v2433, 4
        %v2436 = vrot.slane %v1499, 5
        %v2437 = vsel %vm1264, %v2435, %v2436
        %v2438 = vrot.slane %v2436, 4
        %v2439 = vrot.slane %v1500, 5
        %v2440 = vsel %vm1264, %v2438, %v2439
        %v2441 = vrot.slane %v2439, 4
        %v2442 = vrot.slane %v1543, 5
        %v2443 = vsel %vm1264, %v2441, %v2442
        %v2444 = vrot.slane %v2264, 5
        %v2445 = vrot.slane %v2444, 4
        %v2446 = vrot.slane %v1502, 5
        %v2447 = vsel %vm1264, %v2445, %v2446
        %v2448 = vrot.slane %v2446, 4
        %v2449 = vrot.slane %v1503, 5
        %v2450 = vsel %vm1264, %v2448, %v2449
        %v2451 = vrot.slane %v2449, 4
        %v2452 = vrot.slane %v1504, 5
        %v2453 = vsel %vm1264, %v2451, %v2452
        %v2454 = vrot.slane %v2452, 4
        %v2455 = vrot.slane %v1544, 5
        %v2456 = vsel %vm1264, %v2454, %v2455
        %v2457 = vrot.slane %v2265, 5
        %v2458 = vrot.slane %v2457, 4
        %v2459 = vrot.slane %v1506, 5
        %v2460 = vsel %vm1264, %v2458, %v2459
        %v2461 = vrot.slane %v2459, 4
        %v2462 = vrot.slane %v1507, 5
        %v2463 = vsel %vm1264, %v2461, %v2462
        %v2464 = vrot.slane %v2462, 4
        %v2465 = vrot.slane %v1508, 5
        %v2466 = vsel %vm1264, %v2464, %v2465
        %v2467 = vrot.slane %v2465, 4
        %v2468 = vrot.slane %v1545, 5
        %v2469 = vsel %vm1264, %v2467, %v2468
        %v2470 = vrot.slane %v2266, 5
        %v2471 = vrot.slane %v2470, 4
        %v2472 = vrot.slane %v1510, 5
        %v2473 = vsel %vm1264, %v2471, %v2472
        %v2474 = vrot.slane %v2472, 4
        %v2475 = vrot.slane %v1511, 5
        %v2476 = vsel %vm1264, %v2474, %v2475
        %v2477 = vrot.slane %v2475, 4
        %v2478 = vrot.slane %v1512, 5
        %v2479 = vsel %vm1264, %v2477, %v2478
        %v2480 = vrot.slane %v2478, 4
        %v2481 = vrot.slane %v1546, 5
        %v2482 = vsel %vm1264, %v2480, %v2481
        %v2483 = vrot.slane %v2267, 5
        %v2484 = vrot.slane %v2483, 4
        %v2485 = vrot.slane %v1514, 5
        %v2486 = vsel %vm1264, %v2484, %v2485
        %v2487 = vrot.slane %v2485, 4
        %v2488 = vrot.slane %v1515, 5
        %v2489 = vsel %vm1264, %v2487, %v2488
        %v2490 = vrot.slane %v2488, 4
        %v2491 = vrot.slane %v1516, 5
        %v2492 = vsel %vm1264, %v2490, %v2491
        %v2493 = vrot.slane %v2491, 4
        %v2494 = vrot.slane %v1547, 5
        %v2495 = vsel %vm1264, %v2493, %v2494
        %v2496 = vrot.slane %v2268, 5
        %v2497 = vrot.slane %v2496, 4
        %v2498 = vrot.slane %v1518, 5
        %v2499 = vsel %vm1264, %v2497, %v2498
        %v2500 = vrot.slane %v2498, 4
        %v2501 = vrot.slane %v1519, 5
        %v2502 = vsel %vm1264, %v2500, %v2501
        %v2503 = vrot.slane %v2501, 4
        %v2504 = vrot.slane %v1520, 5
        %v2505 = vsel %vm1264, %v2503, %v2504
        %v2506 = vrot.slane %v2504, 4
        %v2507 = vrot.slane %v1548, 5
        %v2508 = vsel %vm1264, %v2506, %v2507
        %v2509 = vrot.slane %v2269, 5
        %v2510 = vrot.slane %v2509, 4
        %v2511 = vrot.slane %v1522, 5
        %v2512 = vsel %vm1264, %v2510, %v2511
        %v2513 = vrot.slane %v2511, 4
        %v2514 = vrot.slane %v1523, 5
        %v2515 = vsel %vm1264, %v2513, %v2514
        %v2516 = vrot.slane %v2514, 4
        %v2517 = vrot.slane %v1524, 5
        %v2518 = vsel %vm1264, %v2516, %v2517
        %v2519 = vrot.slane %v2517, 4
        %v2520 = vrot.slane %v1549, 5
        %v2521 = vsel %vm1264, %v2519, %v2520
        %v2522 = vrot.slane %v2270, 5
        %v2523 = vrot.slane %v2522, 4
        %v2524 = vrot.slane %v1526, 5
        %v2525 = vsel %vm1264, %v2523, %v2524
        %v2526 = vrot.slane %v2524, 4
        %v2527 = vrot.slane %v1527, 5
        %v2528 = vsel %vm1264, %v2526, %v2527
        %v2529 = vrot.slane %v2527, 4
        %v2530 = vrot.slane %v1528, 5
        %v2531 = vsel %vm1264, %v2529, %v2530
        %v2532 = vrot.slane %v2530, 4
        %v2533 = vrot.slane %v1550, 5
        %v2534 = vsel %vm1264, %v2532, %v2533
        %v2535 = vrot.slane %v2271, 5
        %v2536 = vrot.slane %v2535, 4
        %v2537 = vrot.slane %v1530, 5
        %v2538 = vsel %vm1264, %v2536, %v2537
        %v2539 = vrot.slane %v2537, 4
        %v2540 = vrot.slane %v1531, 5
        %v2541 = vsel %vm1264, %v2539, %v2540
        %v2542 = vrot.slane %v2540, 4
        %v2543 = vrot.slane %v1532, 5
        %v2544 = vsel %vm1264, %v2542, %v2543
        %v2545 = vrot.slane %v2543, 4
        %v2546 = vrot.slane %v1551, 5
        %v2547 = vsel %vm1264, %v2545, %v2546
        %v2548 = vrot.slane %v2272, 5
        %v2549 = vrot.slane %v2548, 4
        %v2550 = vrot.slane %v1534, 5
        %v2551 = vsel %vm1264, %v2549, %v2550
        %v2552 = vrot.slane %v2550, 4
        %v2553 = vrot.slane %v1535, 5
        %v2554 = vsel %vm1264, %v2552, %v2553
        %v2555 = vrot.slane %v2553, 4
        %v2556 = vrot.slane %v1536, 5
        %v2557 = vsel %vm1264, %v2555, %v2556
        %v2558 = vrot.slane %v2556, 4
        %v2559 = vrot.slane %v1552, 5
        %v2560 = vsel %vm1264, %v2558, %v2559
        %s2561 = scalar_lea.vmem [#allocation2], 40
        %v2562 = vld [vmem:[%s2561] sm:$0xf]
        %v2563 = vld [vmem:[%s2561 + $0x4] sm:$0xf]
        %v2564 = vld [vmem:[%s2561 + $0x8] sm:$0xf]
        %v2565 = vld [vmem:[%s2561 + $0xc] sm:$0xf]
        %v2566 = vld [vmem:[%s2561 + $0x14] sm:$0xf]
        %v2567 = vld [vmem:[%s2561 + $0x18] sm:$0xf]
        %v2568 = vld [vmem:[%s2561 + $0x1c] sm:$0xf]
        %v2569 = vld [vmem:[%s2561 + $0x20] sm:$0xf]
        %v2570 = vld [vmem:[%s2561 + $0x28] sm:$0xf]
        %v2571 = vld [vmem:[%s2561 + $0x2c] sm:$0xf]
        %v2572 = vld [vmem:[%s2561 + $0x30] sm:$0xf]
        %v2573 = vld [vmem:[%s2561 + $0x34] sm:$0xf]
        %v2574 = vld [vmem:[%s2561 + $0x3c] sm:$0xf]
        %v2575 = vld [vmem:[%s2561 + $0x40] sm:$0xf]
        %v2576 = vld [vmem:[%s2561 + $0x44] sm:$0xf]
        %v2577 = vld [vmem:[%s2561 + $0x48] sm:$0xf]
        %v2578 = vld [vmem:[%s2561 + $0x50] sm:$0xf]
        %v2579 = vld [vmem:[%s2561 + $0x54] sm:$0xf]
        %v2580 = vld [vmem:[%s2561 + $0x58] sm:$0xf]
        %v2581 = vld [vmem:[%s2561 + $0x5c] sm:$0xf]
        %v2582 = vld [vmem:[%s2561 + $0x64] sm:$0xf]
        %v2583 = vld [vmem:[%s2561 + $0x68] sm:$0xf]
        %v2584 = vld [vmem:[%s2561 + $0x6c] sm:$0xf]
        %v2585 = vld [vmem:[%s2561 + $0x70] sm:$0xf]
        %v2586 = vld [vmem:[%s2561 + $0x78] sm:$0xf]
        %v2587 = vld [vmem:[%s2561 + $0x7c] sm:$0xf]
        %v2588 = vld [vmem:[%s2561 + $0x80] sm:$0xf]
        %v2589 = vld [vmem:[%s2561 + $0x84] sm:$0xf]
        %v2590 = vld [vmem:[%s2561 + $0x8c] sm:$0xf]
        %v2591 = vld [vmem:[%s2561 + $0x90] sm:$0xf]
        %v2592 = vld [vmem:[%s2561 + $0x94] sm:$0xf]
        %v2593 = vld [vmem:[%s2561 + $0x98] sm:$0xf]
        %v2594 = vld [vmem:[%s2561 + $0xa0] sm:$0xf]
        %v2595 = vld [vmem:[%s2561 + $0xa4] sm:$0xf]
        %v2596 = vld [vmem:[%s2561 + $0xa8] sm:$0xf]
        %v2597 = vld [vmem:[%s2561 + $0xac] sm:$0xf]
        %v2598 = vld [vmem:[%s2561 + $0xb4] sm:$0xf]
        %v2599 = vld [vmem:[%s2561 + $0xb8] sm:$0xf]
        %v2600 = vld [vmem:[%s2561 + $0xbc] sm:$0xf]
        %v2601 = vld [vmem:[%s2561 + $0xc0] sm:$0xf]
        %v2602 = vld [vmem:[%s2561 + $0xc8] sm:$0xf]
        %v2603 = vld [vmem:[%s2561 + $0xcc] sm:$0xf]
        %v2604 = vld [vmem:[%s2561 + $0xd0] sm:$0xf]
        %v2605 = vld [vmem:[%s2561 + $0xd4] sm:$0xf]
        %v2606 = vld [vmem:[%s2561 + $0xdc] sm:$0xf]
        %v2607 = vld [vmem:[%s2561 + $0xe0] sm:$0xf]
        %v2608 = vld [vmem:[%s2561 + $0xe4] sm:$0xf]
        %v2609 = vld [vmem:[%s2561 + $0xe8] sm:$0xf]
        %v2610 = vld [vmem:[%s2561 + $0xf0] sm:$0xf]
        %v2611 = vld [vmem:[%s2561 + $0xf4] sm:$0xf]
        %v2612 = vld [vmem:[%s2561 + $0xf8] sm:$0xf]
        %v2613 = vld [vmem:[%s2561 + $0xfc] sm:$0xf]
        %v2614 = vld [vmem:[%s2561 + $0x104] sm:$0xf]
        %v2615 = vld [vmem:[%s2561 + $0x108] sm:$0xf]
        %v2616 = vld [vmem:[%s2561 + $0x10c] sm:$0xf]
        %v2617 = vld [vmem:[%s2561 + $0x110] sm:$0xf]
        %v2618 = vld [vmem:[%s2561 + $0x118] sm:$0xf]
        %v2619 = vld [vmem:[%s2561 + $0x11c] sm:$0xf]
        %v2620 = vld [vmem:[%s2561 + $0x120] sm:$0xf]
        %v2621 = vld [vmem:[%s2561 + $0x124] sm:$0xf]
        %v2622 = vld [vmem:[%s2561 + $0x12c] sm:$0xf]
        %v2623 = vld [vmem:[%s2561 + $0x130] sm:$0xf]
        %v2624 = vld [vmem:[%s2561 + $0x134] sm:$0xf]
        %v2625 = vld [vmem:[%s2561 + $0x138] sm:$0xf]
        %v2626 = vld [vmem:[%s2561 + $0x10] sm:$0x1]
        %v2627 = vld [vmem:[%s2561 + $0x24] sm:$0x1]
        %v2628 = vld [vmem:[%s2561 + $0x38] sm:$0x1]
        %v2629 = vld [vmem:[%s2561 + $0x4c] sm:$0x1]
        %v2630 = vld [vmem:[%s2561 + $0x60] sm:$0x1]
        %v2631 = vld [vmem:[%s2561 + $0x74] sm:$0x1]
        %v2632 = vld [vmem:[%s2561 + $0x88] sm:$0x1]
        %v2633 = vld [vmem:[%s2561 + $0x9c] sm:$0x1]
        %v2634 = vld [vmem:[%s2561 + $0xb0] sm:$0x1]
        %v2635 = vld [vmem:[%s2561 + $0xc4] sm:$0x1]
        %v2636 = vld [vmem:[%s2561 + $0xd8] sm:$0x1]
        %v2637 = vld [vmem:[%s2561 + $0xec] sm:$0x1]
        %v2638 = vld [vmem:[%s2561 + $0x100] sm:$0x1]
        %v2639 = vld [vmem:[%s2561 + $0x114] sm:$0x1]
        %v2640 = vld [vmem:[%s2561 + $0x128] sm:$0x1]
        %v2641 = vld [vmem:[%s2561 + $0x13c] sm:$0x1]
        %v2643 = vshrl.u32 %v2562, 16
        %v2645 = vrot.slane %v2643, 4
        %v2646 = vshll.u32 %v2562, 16
        %v2648 = vrot.slane %v2646, 5
        %v2649 = vor.u32 %v2645, %v2648
        %v2650 = vrot.slane %v2649, 4
        %v2652 = vshll.u32 %v2563, 16
        %v2654 = vrot.slane %v2652, 5
        %v2655 = vsel %vm461, %v2650, %v2654
        %v2656 = vshrl.u32 %v2563, 16
        %v2658 = vrot.slane %v2656, 4
        %v2659 = vor.u32 %v2658, %v2654
        %v2660 = vrot.slane %v2659, 4
        %v2662 = vshll.u32 %v2564, 16
        %v2664 = vrot.slane %v2662, 5
        %v2665 = vsel %vm461, %v2660, %v2664
        %v2666 = vshrl.u32 %v2564, 16
        %v2668 = vrot.slane %v2666, 4
        %v2669 = vor.u32 %v2668, %v2664
        %v2670 = vrot.slane %v2669, 4
        %v2672 = vshll.u32 %v2565, 16
        %v2674 = vrot.slane %v2672, 5
        %v2675 = vsel %vm461, %v2670, %v2674
        %v2676 = vshrl.u32 %v2565, 16
        %v2678 = vrot.slane %v2676, 4
        %v2679 = vor.u32 %v2678, %v2674
        %v2680 = vrot.slane %v2679, 4
        %v2682 = vshll.u32 %v2626, 16
        %v2684 = vrot.slane %v2682, 5
        %v2685 = vsel %vm461, %v2680, %v2684
        %v2687 = vshrl.u32 %v2566, 16
        %v2689 = vrot.slane %v2687, 4
        %v2690 = vshll.u32 %v2566, 16
        %v2692 = vrot.slane %v2690, 5
        %v2693 = vor.u32 %v2689, %v2692
        %v2694 = vrot.slane %v2693, 4
        %v2696 = vshll.u32 %v2567, 16
        %v2698 = vrot.slane %v2696, 5
        %v2699 = vsel %vm461, %v2694, %v2698
        %v2700 = vshrl.u32 %v2567, 16
        %v2702 = vrot.slane %v2700, 4
        %v2703 = vor.u32 %v2702, %v2698
        %v2704 = vrot.slane %v2703, 4
        %v2706 = vshll.u32 %v2568, 16
        %v2708 = vrot.slane %v2706, 5
        %v2709 = vsel %vm461, %v2704, %v2708
        %v2710 = vshrl.u32 %v2568, 16
        %v2712 = vrot.slane %v2710, 4
        %v2713 = vor.u32 %v2712, %v2708
        %v2714 = vrot.slane %v2713, 4
        %v2716 = vshll.u32 %v2569, 16
        %v2718 = vrot.slane %v2716, 5
        %v2719 = vsel %vm461, %v2714, %v2718
        %v2720 = vshrl.u32 %v2569, 16
        %v2722 = vrot.slane %v2720, 4
        %v2723 = vor.u32 %v2722, %v2718
        %v2724 = vrot.slane %v2723, 4
        %v2726 = vshll.u32 %v2627, 16
        %v2728 = vrot.slane %v2726, 5
        %v2729 = vsel %vm461, %v2724, %v2728
        %v2731 = vshrl.u32 %v2570, 16
        %v2733 = vrot.slane %v2731, 4
        %v2734 = vshll.u32 %v2570, 16
        %v2736 = vrot.slane %v2734, 5
        %v2737 = vor.u32 %v2733, %v2736
        %v2738 = vrot.slane %v2737, 4
        %v2740 = vshll.u32 %v2571, 16
        %v2742 = vrot.slane %v2740, 5
        %v2743 = vsel %vm461, %v2738, %v2742
        %v2744 = vshrl.u32 %v2571, 16
        %v2746 = vrot.slane %v2744, 4
        %v2747 = vor.u32 %v2746, %v2742
        %v2748 = vrot.slane %v2747, 4
        %v2750 = vshll.u32 %v2572, 16
        %v2752 = vrot.slane %v2750, 5
        %v2753 = vsel %vm461, %v2748, %v2752
        %v2754 = vshrl.u32 %v2572, 16
        %v2756 = vrot.slane %v2754, 4
        %v2757 = vor.u32 %v2756, %v2752
        %v2758 = vrot.slane %v2757, 4
        %v2760 = vshll.u32 %v2573, 16
        %v2762 = vrot.slane %v2760, 5
        %v2763 = vsel %vm461, %v2758, %v2762
        %v2764 = vshrl.u32 %v2573, 16
        %v2766 = vrot.slane %v2764, 4
        %v2767 = vor.u32 %v2766, %v2762
        %v2768 = vrot.slane %v2767, 4
        %v2770 = vshll.u32 %v2628, 16
        %v2772 = vrot.slane %v2770, 5
        %v2773 = vsel %vm461, %v2768, %v2772
        %v2775 = vshrl.u32 %v2574, 16
        %v2777 = vrot.slane %v2775, 4
        %v2778 = vshll.u32 %v2574, 16
        %v2780 = vrot.slane %v2778, 5
        %v2781 = vor.u32 %v2777, %v2780
        %v2782 = vrot.slane %v2781, 4
        %v2784 = vshll.u32 %v2575, 16
        %v2786 = vrot.slane %v2784, 5
        %v2787 = vsel %vm461, %v2782, %v2786
        %v2788 = vshrl.u32 %v2575, 16
        %v2790 = vrot.slane %v2788, 4
        %v2791 = vor.u32 %v2790, %v2786
        %v2792 = vrot.slane %v2791, 4
        %v2794 = vshll.u32 %v2576, 16
        %v2796 = vrot.slane %v2794, 5
        %v2797 = vsel %vm461, %v2792, %v2796
        %v2798 = vshrl.u32 %v2576, 16
        %v2800 = vrot.slane %v2798, 4
        %v2801 = vor.u32 %v2800, %v2796
        %v2802 = vrot.slane %v2801, 4
        %v2804 = vshll.u32 %v2577, 16
        %v2806 = vrot.slane %v2804, 5
        %v2807 = vsel %vm461, %v2802, %v2806
        %v2808 = vshrl.u32 %v2577, 16
        %v2810 = vrot.slane %v2808, 4
        %v2811 = vor.u32 %v2810, %v2806
        %v2812 = vrot.slane %v2811, 4
        %v2814 = vshll.u32 %v2629, 16
        %v2816 = vrot.slane %v2814, 5
        %v2817 = vsel %vm461, %v2812, %v2816
        %v2819 = vshrl.u32 %v2578, 16
        %v2821 = vrot.slane %v2819, 4
        %v2822 = vshll.u32 %v2578, 16
        %v2824 = vrot.slane %v2822, 5
        %v2825 = vor.u32 %v2821, %v2824
        %v2826 = vrot.slane %v2825, 4
        %v2828 = vshll.u32 %v2579, 16
        %v2830 = vrot.slane %v2828, 5
        %v2831 = vsel %vm461, %v2826, %v2830
        %v2832 = vshrl.u32 %v2579, 16
        %v2834 = vrot.slane %v2832, 4
        %v2835 = vor.u32 %v2834, %v2830
        %v2836 = vrot.slane %v2835, 4
        %v2838 = vshll.u32 %v2580, 16
        %v2840 = vrot.slane %v2838, 5
        %v2841 = vsel %vm461, %v2836, %v2840
        %v2842 = vshrl.u32 %v2580, 16
        %v2844 = vrot.slane %v2842, 4
        %v2845 = vor.u32 %v2844, %v2840
        %v2846 = vrot.slane %v2845, 4
        %v2848 = vshll.u32 %v2581, 16
        %v2850 = vrot.slane %v2848, 5
        %v2851 = vsel %vm461, %v2846, %v2850
        %v2852 = vshrl.u32 %v2581, 16
        %v2854 = vrot.slane %v2852, 4
        %v2855 = vor.u32 %v2854, %v2850
        %v2856 = vrot.slane %v2855, 4
        %v2858 = vshll.u32 %v2630, 16
        %v2860 = vrot.slane %v2858, 5
        %v2861 = vsel %vm461, %v2856, %v2860
        %v2863 = vshrl.u32 %v2582, 16
        %v2865 = vrot.slane %v2863, 4
        %v2866 = vshll.u32 %v2582, 16
        %v2868 = vrot.slane %v2866, 5
        %v2869 = vor.u32 %v2865, %v2868
        %v2870 = vrot.slane %v2869, 4
        %v2872 = vshll.u32 %v2583, 16
        %v2874 = vrot.slane %v2872, 5
        %v2875 = vsel %vm461, %v2870, %v2874
        %v2876 = vshrl.u32 %v2583, 16
        %v2878 = vrot.slane %v2876, 4
        %v2879 = vor.u32 %v2878, %v2874
        %v2880 = vrot.slane %v2879, 4
        %v2882 = vshll.u32 %v2584, 16
        %v2884 = vrot.slane %v2882, 5
        %v2885 = vsel %vm461, %v2880, %v2884
        %v2886 = vshrl.u32 %v2584, 16
        %v2888 = vrot.slane %v2886, 4
        %v2889 = vor.u32 %v2888, %v2884
        %v2890 = vrot.slane %v2889, 4
        %v2892 = vshll.u32 %v2585, 16
        %v2894 = vrot.slane %v2892, 5
        %v2895 = vsel %vm461, %v2890, %v2894
        %v2896 = vshrl.u32 %v2585, 16
        %v2898 = vrot.slane %v2896, 4
        %v2899 = vor.u32 %v2898, %v2894
        %v2900 = vrot.slane %v2899, 4
        %v2902 = vshll.u32 %v2631, 16
        %v2904 = vrot.slane %v2902, 5
        %v2905 = vsel %vm461, %v2900, %v2904
        %v2907 = vshrl.u32 %v2586, 16
        %v2909 = vrot.slane %v2907, 4
        %v2910 = vshll.u32 %v2586, 16
        %v2912 = vrot.slane %v2910, 5
        %v2913 = vor.u32 %v2909, %v2912
        %v2914 = vrot.slane %v2913, 4
        %v2916 = vshll.u32 %v2587, 16
        %v2918 = vrot.slane %v2916, 5
        %v2919 = vsel %vm461, %v2914, %v2918
        %v2920 = vshrl.u32 %v2587, 16
        %v2922 = vrot.slane %v2920, 4
        %v2923 = vor.u32 %v2922, %v2918
        %v2924 = vrot.slane %v2923, 4
        %v2926 = vshll.u32 %v2588, 16
        %v2928 = vrot.slane %v2926, 5
        %v2929 = vsel %vm461, %v2924, %v2928
        %v2930 = vshrl.u32 %v2588, 16
        %v2932 = vrot.slane %v2930, 4
        %v2933 = vor.u32 %v2932, %v2928
        %v2934 = vrot.slane %v2933, 4
        %v2936 = vshll.u32 %v2589, 16
        %v2938 = vrot.slane %v2936, 5
        %v2939 = vsel %vm461, %v2934, %v2938
        %v2940 = vshrl.u32 %v2589, 16
        %v2942 = vrot.slane %v2940, 4
        %v2943 = vor.u32 %v2942, %v2938
        %v2944 = vrot.slane %v2943, 4
        %v2946 = vshll.u32 %v2632, 16
        %v2948 = vrot.slane %v2946, 5
        %v2949 = vsel %vm461, %v2944, %v2948
        %v2951 = vshrl.u32 %v2590, 16
        %v2953 = vrot.slane %v2951, 4
        %v2954 = vshll.u32 %v2590, 16
        %v2956 = vrot.slane %v2954, 5
        %v2957 = vor.u32 %v2953, %v2956
        %v2958 = vrot.slane %v2957, 4
        %v2960 = vshll.u32 %v2591, 16
        %v2962 = vrot.slane %v2960, 5
        %v2963 = vsel %vm461, %v2958, %v2962
        %v2964 = vshrl.u32 %v2591, 16
        %v2966 = vrot.slane %v2964, 4
        %v2967 = vor.u32 %v2966, %v2962
        %v2968 = vrot.slane %v2967, 4
        %v2970 = vshll.u32 %v2592, 16
        %v2972 = vrot.slane %v2970, 5
        %v2973 = vsel %vm461, %v2968, %v2972
        %v2974 = vshrl.u32 %v2592, 16
        %v2976 = vrot.slane %v2974, 4
        %v2977 = vor.u32 %v2976, %v2972
        %v2978 = vrot.slane %v2977, 4
        %v2980 = vshll.u32 %v2593, 16
        %v2982 = vrot.slane %v2980, 5
        %v2983 = vsel %vm461, %v2978, %v2982
        %v2984 = vshrl.u32 %v2593, 16
        %v2986 = vrot.slane %v2984, 4
        %v2987 = vor.u32 %v2986, %v2982
        %v2988 = vrot.slane %v2987, 4
        %v2990 = vshll.u32 %v2633, 16
        %v2992 = vrot.slane %v2990, 5
        %v2993 = vsel %vm461, %v2988, %v2992
        %v2995 = vshrl.u32 %v2594, 16
        %v2997 = vrot.slane %v2995, 4
        %v2998 = vshll.u32 %v2594, 16
        %v3000 = vrot.slane %v2998, 5
        %v3001 = vor.u32 %v2997, %v3000
        %v3002 = vrot.slane %v3001, 4
        %v3004 = vshll.u32 %v2595, 16
        %v3006 = vrot.slane %v3004, 5
        %v3007 = vsel %vm461, %v3002, %v3006
        %v3008 = vshrl.u32 %v2595, 16
        %v3010 = vrot.slane %v3008, 4
        %v3011 = vor.u32 %v3010, %v3006
        %v3012 = vrot.slane %v3011, 4
        %v3014 = vshll.u32 %v2596, 16
        %v3016 = vrot.slane %v3014, 5
        %v3017 = vsel %vm461, %v3012, %v3016
        %v3018 = vshrl.u32 %v2596, 16
        %v3020 = vrot.slane %v3018, 4
        %v3021 = vor.u32 %v3020, %v3016
        %v3022 = vrot.slane %v3021, 4
        %v3024 = vshll.u32 %v2597, 16
        %v3026 = vrot.slane %v3024, 5
        %v3027 = vsel %vm461, %v3022, %v3026
        %v3028 = vshrl.u32 %v2597, 16
        %v3030 = vrot.slane %v3028, 4
        %v3031 = vor.u32 %v3030, %v3026
        %v3032 = vrot.slane %v3031, 4
        %v3034 = vshll.u32 %v2634, 16
        %v3036 = vrot.slane %v3034, 5
        %v3037 = vsel %vm461, %v3032, %v3036
        %v3039 = vshrl.u32 %v2598, 16
        %v3041 = vrot.slane %v3039, 4
        %v3042 = vshll.u32 %v2598, 16
        %v3044 = vrot.slane %v3042, 5
        %v3045 = vor.u32 %v3041, %v3044
        %v3046 = vrot.slane %v3045, 4
        %v3048 = vshll.u32 %v2599, 16
        %v3050 = vrot.slane %v3048, 5
        %v3051 = vsel %vm461, %v3046, %v3050
        %v3052 = vshrl.u32 %v2599, 16
        %v3054 = vrot.slane %v3052, 4
        %v3055 = vor.u32 %v3054, %v3050
        %v3056 = vrot.slane %v3055, 4
        %v3058 = vshll.u32 %v2600, 16
        %v3060 = vrot.slane %v3058, 5
        %v3061 = vsel %vm461, %v3056, %v3060
        %v3062 = vshrl.u32 %v2600, 16
        %v3064 = vrot.slane %v3062, 4
        %v3065 = vor.u32 %v3064, %v3060
        %v3066 = vrot.slane %v3065, 4
        %v3068 = vshll.u32 %v2601, 16
        %v3070 = vrot.slane %v3068, 5
        %v3071 = vsel %vm461, %v3066, %v3070
        %v3072 = vshrl.u32 %v2601, 16
        %v3074 = vrot.slane %v3072, 4
        %v3075 = vor.u32 %v3074, %v3070
        %v3076 = vrot.slane %v3075, 4
        %v3078 = vshll.u32 %v2635, 16
        %v3080 = vrot.slane %v3078, 5
        %v3081 = vsel %vm461, %v3076, %v3080
        %v3083 = vshrl.u32 %v2602, 16
        %v3085 = vrot.slane %v3083, 4
        %v3086 = vshll.u32 %v2602, 16
        %v3088 = vrot.slane %v3086, 5
        %v3089 = vor.u32 %v3085, %v3088
        %v3090 = vrot.slane %v3089, 4
        %v3092 = vshll.u32 %v2603, 16
        %v3094 = vrot.slane %v3092, 5
        %v3095 = vsel %vm461, %v3090, %v3094
        %v3096 = vshrl.u32 %v2603, 16
        %v3098 = vrot.slane %v3096, 4
        %v3099 = vor.u32 %v3098, %v3094
        %v3100 = vrot.slane %v3099, 4
        %v3102 = vshll.u32 %v2604, 16
        %v3104 = vrot.slane %v3102, 5
        %v3105 = vsel %vm461, %v3100, %v3104
        %v3106 = vshrl.u32 %v2604, 16
        %v3108 = vrot.slane %v3106, 4
        %v3109 = vor.u32 %v3108, %v3104
        %v3110 = vrot.slane %v3109, 4
        %v3112 = vshll.u32 %v2605, 16
        %v3114 = vrot.slane %v3112, 5
        %v3115 = vsel %vm461, %v3110, %v3114
        %v3116 = vshrl.u32 %v2605, 16
        %v3118 = vrot.slane %v3116, 4
        %v3119 = vor.u32 %v3118, %v3114
        %v3120 = vrot.slane %v3119, 4
        %v3122 = vshll.u32 %v2636, 16
        %v3124 = vrot.slane %v3122, 5
        %v3125 = vsel %vm461, %v3120, %v3124
        %v3127 = vshrl.u32 %v2606, 16
        %v3129 = vrot.slane %v3127, 4
        %v3130 = vshll.u32 %v2606, 16
        %v3132 = vrot.slane %v3130, 5
        %v3133 = vor.u32 %v3129, %v3132
        %v3134 = vrot.slane %v3133, 4
        %v3136 = vshll.u32 %v2607, 16
        %v3138 = vrot.slane %v3136, 5
        %v3139 = vsel %vm461, %v3134, %v3138
        %v3140 = vshrl.u32 %v2607, 16
        %v3142 = vrot.slane %v3140, 4
        %v3143 = vor.u32 %v3142, %v3138
        %v3144 = vrot.slane %v3143, 4
        %v3146 = vshll.u32 %v2608, 16
        %v3148 = vrot.slane %v3146, 5
        %v3149 = vsel %vm461, %v3144, %v3148
        %v3150 = vshrl.u32 %v2608, 16
        %v3152 = vrot.slane %v3150, 4
        %v3153 = vor.u32 %v3152, %v3148
        %v3154 = vrot.slane %v3153, 4
        %v3156 = vshll.u32 %v2609, 16
        %v3158 = vrot.slane %v3156, 5
        %v3159 = vsel %vm461, %v3154, %v3158
        %v3160 = vshrl.u32 %v2609, 16
        %v3162 = vrot.slane %v3160, 4
        %v3163 = vor.u32 %v3162, %v3158
        %v3164 = vrot.slane %v3163, 4
        %v3166 = vshll.u32 %v2637, 16
        %v3168 = vrot.slane %v3166, 5
        %v3169 = vsel %vm461, %v3164, %v3168
        %v3171 = vshrl.u32 %v2610, 16
        %v3173 = vrot.slane %v3171, 4
        %v3174 = vshll.u32 %v2610, 16
        %v3176 = vrot.slane %v3174, 5
        %v3177 = vor.u32 %v3173, %v3176
        %v3178 = vrot.slane %v3177, 4
        %v3180 = vshll.u32 %v2611, 16
        %v3182 = vrot.slane %v3180, 5
        %v3183 = vsel %vm461, %v3178, %v3182
        %v3184 = vshrl.u32 %v2611, 16
        %v3186 = vrot.slane %v3184, 4
        %v3187 = vor.u32 %v3186, %v3182
        %v3188 = vrot.slane %v3187, 4
        %v3190 = vshll.u32 %v2612, 16
        %v3192 = vrot.slane %v3190, 5
        %v3193 = vsel %vm461, %v3188, %v3192
        %v3194 = vshrl.u32 %v2612, 16
        %v3196 = vrot.slane %v3194, 4
        %v3197 = vor.u32 %v3196, %v3192
        %v3198 = vrot.slane %v3197, 4
        %v3200 = vshll.u32 %v2613, 16
        %v3202 = vrot.slane %v3200, 5
        %v3203 = vsel %vm461, %v3198, %v3202
        %v3204 = vshrl.u32 %v2613, 16
        %v3206 = vrot.slane %v3204, 4
        %v3207 = vor.u32 %v3206, %v3202
        %v3208 = vrot.slane %v3207, 4
        %v3210 = vshll.u32 %v2638, 16
        %v3212 = vrot.slane %v3210, 5
        %v3213 = vsel %vm461, %v3208, %v3212
        %v3215 = vshrl.u32 %v2614, 16
        %v3217 = vrot.slane %v3215, 4
        %v3218 = vshll.u32 %v2614, 16
        %v3220 = vrot.slane %v3218, 5
        %v3221 = vor.u32 %v3217, %v3220
        %v3222 = vrot.slane %v3221, 4
        %v3224 = vshll.u32 %v2615, 16
        %v3226 = vrot.slane %v3224, 5
        %v3227 = vsel %vm461, %v3222, %v3226
        %v3228 = vshrl.u32 %v2615, 16
        %v3230 = vrot.slane %v3228, 4
        %v3231 = vor.u32 %v3230, %v3226
        %v3232 = vrot.slane %v3231, 4
        %v3234 = vshll.u32 %v2616, 16
        %v3236 = vrot.slane %v3234, 5
        %v3237 = vsel %vm461, %v3232, %v3236
        %v3238 = vshrl.u32 %v2616, 16
        %v3240 = vrot.slane %v3238, 4
        %v3241 = vor.u32 %v3240, %v3236
        %v3242 = vrot.slane %v3241, 4
        %v3244 = vshll.u32 %v2617, 16
        %v3246 = vrot.slane %v3244, 5
        %v3247 = vsel %vm461, %v3242, %v3246
        %v3248 = vshrl.u32 %v2617, 16
        %v3250 = vrot.slane %v3248, 4
        %v3251 = vor.u32 %v3250, %v3246
        %v3252 = vrot.slane %v3251, 4
        %v3254 = vshll.u32 %v2639, 16
        %v3256 = vrot.slane %v3254, 5
        %v3257 = vsel %vm461, %v3252, %v3256
        %v3259 = vshrl.u32 %v2618, 16
        %v3261 = vrot.slane %v3259, 4
        %v3262 = vshll.u32 %v2618, 16
        %v3264 = vrot.slane %v3262, 5
        %v3265 = vor.u32 %v3261, %v3264
        %v3266 = vrot.slane %v3265, 4
        %v3268 = vshll.u32 %v2619, 16
        %v3270 = vrot.slane %v3268, 5
        %v3271 = vsel %vm461, %v3266, %v3270
        %v3272 = vshrl.u32 %v2619, 16
        %v3274 = vrot.slane %v3272, 4
        %v3275 = vor.u32 %v3274, %v3270
        %v3276 = vrot.slane %v3275, 4
        %v3278 = vshll.u32 %v2620, 16
        %v3280 = vrot.slane %v3278, 5
        %v3281 = vsel %vm461, %v3276, %v3280
        %v3282 = vshrl.u32 %v2620, 16
        %v3284 = vrot.slane %v3282, 4
        %v3285 = vor.u32 %v3284, %v3280
        %v3286 = vrot.slane %v3285, 4
        %v3288 = vshll.u32 %v2621, 16
        %v3290 = vrot.slane %v3288, 5
        %v3291 = vsel %vm461, %v3286, %v3290
        %v3292 = vshrl.u32 %v2621, 16
        %v3294 = vrot.slane %v3292, 4
        %v3295 = vor.u32 %v3294, %v3290
        %v3296 = vrot.slane %v3295, 4
        %v3298 = vshll.u32 %v2640, 16
        %v3300 = vrot.slane %v3298, 5
        %v3301 = vsel %vm461, %v3296, %v3300
        %v3303 = vshrl.u32 %v2622, 16
        %v3305 = vrot.slane %v3303, 4
        %v3306 = vshll.u32 %v2622, 16
        %v3308 = vrot.slane %v3306, 5
        %v3309 = vor.u32 %v3305, %v3308
        %v3310 = vrot.slane %v3309, 4
        %v3312 = vshll.u32 %v2623, 16
        %v3314 = vrot.slane %v3312, 5
        %v3315 = vsel %vm461, %v3310, %v3314
        %v3316 = vshrl.u32 %v2623, 16
        %v3318 = vrot.slane %v3316, 4
        %v3319 = vor.u32 %v3318, %v3314
        %v3320 = vrot.slane %v3319, 4
        %v3322 = vshll.u32 %v2624, 16
        %v3324 = vrot.slane %v3322, 5
        %v3325 = vsel %vm461, %v3320, %v3324
        %v3326 = vshrl.u32 %v2624, 16
        %v3328 = vrot.slane %v3326, 4
        %v3329 = vor.u32 %v3328, %v3324
        %v3330 = vrot.slane %v3329, 4
        %v3332 = vshll.u32 %v2625, 16
        %v3334 = vrot.slane %v3332, 5
        %v3335 = vsel %vm461, %v3330, %v3334
        %v3336 = vshrl.u32 %v2625, 16
        %v3338 = vrot.slane %v3336, 4
        %v3339 = vor.u32 %v3338, %v3334
        %v3340 = vrot.slane %v3339, 4
        %v3342 = vshll.u32 %v2641, 16
        %v3344 = vrot.slane %v3342, 5
        %v3345 = vsel %vm461, %v3340, %v3344
        %v3346 = vld [vmem:[%s2561] sm:$0xe]
        %v3347 = vld [vmem:[%s2561 + $0x14] sm:$0xe]
        %v3348 = vld [vmem:[%s2561 + $0x28] sm:$0xe]
        %v3349 = vld [vmem:[%s2561 + $0x3c] sm:$0xe]
        %v3350 = vld [vmem:[%s2561 + $0x50] sm:$0xe]
        %v3351 = vld [vmem:[%s2561 + $0x64] sm:$0xe]
        %v3352 = vld [vmem:[%s2561 + $0x78] sm:$0xe]
        %v3353 = vld [vmem:[%s2561 + $0x8c] sm:$0xe]
        %v3354 = vld [vmem:[%s2561 + $0xa0] sm:$0xe]
        %v3355 = vld [vmem:[%s2561 + $0xb4] sm:$0xe]
        %v3356 = vld [vmem:[%s2561 + $0xc8] sm:$0xe]
        %v3357 = vld [vmem:[%s2561 + $0xdc] sm:$0xe]
        %v3358 = vld [vmem:[%s2561 + $0xf0] sm:$0xe]
        %v3359 = vld [vmem:[%s2561 + $0x104] sm:$0xe]
        %v3360 = vld [vmem:[%s2561 + $0x118] sm:$0xe]
        %v3361 = vld [vmem:[%s2561 + $0x12c] sm:$0xe]
        %v3442 = vrot.slane %v3346, 5
        %v3443 = vrot.slane %v3442, 4
        %v3444 = vrot.slane %v2563, 5
        %v3445 = vsel %vm1264, %v3443, %v3444
        %v3446 = vrot.slane %v3444, 4
        %v3447 = vrot.slane %v2564, 5
        %v3448 = vsel %vm1264, %v3446, %v3447
        %v3449 = vrot.slane %v3447, 4
        %v3450 = vrot.slane %v2565, 5
        %v3451 = vsel %vm1264, %v3449, %v3450
        %v3452 = vrot.slane %v3450, 4
        %v3453 = vrot.slane %v2626, 5
        %v3454 = vsel %vm1264, %v3452, %v3453
        %v3455 = vrot.slane %v3347, 5
        %v3456 = vrot.slane %v3455, 4
        %v3457 = vrot.slane %v2567, 5
        %v3458 = vsel %vm1264, %v3456, %v3457
        %v3459 = vrot.slane %v3457, 4
        %v3460 = vrot.slane %v2568, 5
        %v3461 = vsel %vm1264, %v3459, %v3460
        %v3462 = vrot.slane %v3460, 4
        %v3463 = vrot.slane %v2569, 5
        %v3464 = vsel %vm1264, %v3462, %v3463
        %v3465 = vrot.slane %v3463, 4
        %v3466 = vrot.slane %v2627, 5
        %v3467 = vsel %vm1264, %v3465, %v3466
        %v3468 = vrot.slane %v3348, 5
        %v3469 = vrot.slane %v3468, 4
        %v3470 = vrot.slane %v2571, 5
        %v3471 = vsel %vm1264, %v3469, %v3470
        %v3472 = vrot.slane %v3470, 4
        %v3473 = vrot.slane %v2572, 5
        %v3474 = vsel %vm1264, %v3472, %v3473
        %v3475 = vrot.slane %v3473, 4
        %v3476 = vrot.slane %v2573, 5
        %v3477 = vsel %vm1264, %v3475, %v3476
        %v3478 = vrot.slane %v3476, 4
        %v3479 = vrot.slane %v2628, 5
        %v3480 = vsel %vm1264, %v3478, %v3479
        %v3481 = vrot.slane %v3349, 5
        %v3482 = vrot.slane %v3481, 4
        %v3483 = vrot.slane %v2575, 5
        %v3484 = vsel %vm1264, %v3482, %v3483
        %v3485 = vrot.slane %v3483, 4
        %v3486 = vrot.slane %v2576, 5
        %v3487 = vsel %vm1264, %v3485, %v3486
        %v3488 = vrot.slane %v3486, 4
        %v3489 = vrot.slane %v2577, 5
        %v3490 = vsel %vm1264, %v3488, %v3489
        %v3491 = vrot.slane %v3489, 4
        %v3492 = vrot.slane %v2629, 5
        %v3493 = vsel %vm1264, %v3491, %v3492
        %v3494 = vrot.slane %v3350, 5
        %v3495 = vrot.slane %v3494, 4
        %v3496 = vrot.slane %v2579, 5
        %v3497 = vsel %vm1264, %v3495, %v3496
        %v3498 = vrot.slane %v3496, 4
        %v3499 = vrot.slane %v2580, 5
        %v3500 = vsel %vm1264, %v3498, %v3499
        %v3501 = vrot.slane %v3499, 4
        %v3502 = vrot.slane %v2581, 5
        %v3503 = vsel %vm1264, %v3501, %v3502
        %v3504 = vrot.slane %v3502, 4
        %v3505 = vrot.slane %v2630, 5
        %v3506 = vsel %vm1264, %v3504, %v3505
        %v3507 = vrot.slane %v3351, 5
        %v3508 = vrot.slane %v3507, 4
        %v3509 = vrot.slane %v2583, 5
        %v3510 = vsel %vm1264, %v3508, %v3509
        %v3511 = vrot.slane %v3509, 4
        %v3512 = vrot.slane %v2584, 5
        %v3513 = vsel %vm1264, %v3511, %v3512
        %v3514 = vrot.slane %v3512, 4
        %v3515 = vrot.slane %v2585, 5
        %v3516 = vsel %vm1264, %v3514, %v3515
        %v3517 = vrot.slane %v3515, 4
        %v3518 = vrot.slane %v2631, 5
        %v3519 = vsel %vm1264, %v3517, %v3518
        %v3520 = vrot.slane %v3352, 5
        %v3521 = vrot.slane %v3520, 4
        %v3522 = vrot.slane %v2587, 5
        %v3523 = vsel %vm1264, %v3521, %v3522
        %v3524 = vrot.slane %v3522, 4
        %v3525 = vrot.slane %v2588, 5
        %v3526 = vsel %vm1264, %v3524, %v3525
        %v3527 = vrot.slane %v3525, 4
        %v3528 = vrot.slane %v2589, 5
        %v3529 = vsel %vm1264, %v3527, %v3528
        %v3530 = vrot.slane %v3528, 4
        %v3531 = vrot.slane %v2632, 5
        %v3532 = vsel %vm1264, %v3530, %v3531
        %v3533 = vrot.slane %v3353, 5
        %v3534 = vrot.slane %v3533, 4
        %v3535 = vrot.slane %v2591, 5
        %v3536 = vsel %vm1264, %v3534, %v3535
        %v3537 = vrot.slane %v3535, 4
        %v3538 = vrot.slane %v2592, 5
        %v3539 = vsel %vm1264, %v3537, %v3538
        %v3540 = vrot.slane %v3538, 4
        %v3541 = vrot.slane %v2593, 5
        %v3542 = vsel %vm1264, %v3540, %v3541
        %v3543 = vrot.slane %v3541, 4
        %v3544 = vrot.slane %v2633, 5
        %v3545 = vsel %vm1264, %v3543, %v3544
        %v3546 = vrot.slane %v3354, 5
        %v3547 = vrot.slane %v3546, 4
        %v3548 = vrot.slane %v2595, 5
        %v3549 = vsel %vm1264, %v3547, %v3548
        %v3550 = vrot.slane %v3548, 4
        %v3551 = vrot.slane %v2596, 5
        %v3552 = vsel %vm1264, %v3550, %v3551
        %v3553 = vrot.slane %v3551, 4
        %v3554 = vrot.slane %v2597, 5
        %v3555 = vsel %vm1264, %v3553, %v3554
        %v3556 = vrot.slane %v3554, 4
        %v3557 = vrot.slane %v2634, 5
        %v3558 = vsel %vm1264, %v3556, %v3557
        %v3559 = vrot.slane %v3355, 5
        %v3560 = vrot.slane %v3559, 4
        %v3561 = vrot.slane %v2599, 5
        %v3562 = vsel %vm1264, %v3560, %v3561
        %v3563 = vrot.slane %v3561, 4
        %v3564 = vrot.slane %v2600, 5
        %v3565 = vsel %vm1264, %v3563, %v3564
        %v3566 = vrot.slane %v3564, 4
        %v3567 = vrot.slane %v2601, 5
        %v3568 = vsel %vm1264, %v3566, %v3567
        %v3569 = vrot.slane %v3567, 4
        %v3570 = vrot.slane %v2635, 5
        %v3571 = vsel %vm1264, %v3569, %v3570
        %v3572 = vrot.slane %v3356, 5
        %v3573 = vrot.slane %v3572, 4
        %v3574 = vrot.slane %v2603, 5
        %v3575 = vsel %vm1264, %v3573, %v3574
        %v3576 = vrot.slane %v3574, 4
        %v3577 = vrot.slane %v2604, 5
        %v3578 = vsel %vm1264, %v3576, %v3577
        %v3579 = vrot.slane %v3577, 4
        %v3580 = vrot.slane %v2605, 5
        %v3581 = vsel %vm1264, %v3579, %v3580
        %v3582 = vrot.slane %v3580, 4
        %v3583 = vrot.slane %v2636, 5
        %v3584 = vsel %vm1264, %v3582, %v3583
        %v3585 = vrot.slane %v3357, 5
        %v3586 = vrot.slane %v3585, 4
        %v3587 = vrot.slane %v2607, 5
        %v3588 = vsel %vm1264, %v3586, %v3587
        %v3589 = vrot.slane %v3587, 4
        %v3590 = vrot.slane %v2608, 5
        %v3591 = vsel %vm1264, %v3589, %v3590
        %v3592 = vrot.slane %v3590, 4
        %v3593 = vrot.slane %v2609, 5
        %v3594 = vsel %vm1264, %v3592, %v3593
        %v3595 = vrot.slane %v3593, 4
        %v3596 = vrot.slane %v2637, 5
        %v3597 = vsel %vm1264, %v3595, %v3596
        %v3598 = vrot.slane %v3358, 5
        %v3599 = vrot.slane %v3598, 4
        %v3600 = vrot.slane %v2611, 5
        %v3601 = vsel %vm1264, %v3599, %v3600
        %v3602 = vrot.slane %v3600, 4
        %v3603 = vrot.slane %v2612, 5
        %v3604 = vsel %vm1264, %v3602, %v3603
        %v3605 = vrot.slane %v3603, 4
        %v3606 = vrot.slane %v2613, 5
        %v3607 = vsel %vm1264, %v3605, %v3606
        %v3608 = vrot.slane %v3606, 4
        %v3609 = vrot.slane %v2638, 5
        %v3610 = vsel %vm1264, %v3608, %v3609
        %v3611 = vrot.slane %v3359, 5
        %v3612 = vrot.slane %v3611, 4
        %v3613 = vrot.slane %v2615, 5
        %v3614 = vsel %vm1264, %v3612, %v3613
        %v3615 = vrot.slane %v3613, 4
        %v3616 = vrot.slane %v2616, 5
        %v3617 = vsel %vm1264, %v3615, %v3616
        %v3618 = vrot.slane %v3616, 4
        %v3619 = vrot.slane %v2617, 5
        %v3620 = vsel %vm1264, %v3618, %v3619
        %v3621 = vrot.slane %v3619, 4
        %v3622 = vrot.slane %v2639, 5
        %v3623 = vsel %vm1264, %v3621, %v3622
        %v3624 = vrot.slane %v3360, 5
        %v3625 = vrot.slane %v3624, 4
        %v3626 = vrot.slane %v2619, 5
        %v3627 = vsel %vm1264, %v3625, %v3626
        %v3628 = vrot.slane %v3626, 4
        %v3629 = vrot.slane %v2620, 5
        %v3630 = vsel %vm1264, %v3628, %v3629
        %v3631 = vrot.slane %v3629, 4
        %v3632 = vrot.slane %v2621, 5
        %v3633 = vsel %vm1264, %v3631, %v3632
        %v3634 = vrot.slane %v3632, 4
        %v3635 = vrot.slane %v2640, 5
        %v3636 = vsel %vm1264, %v3634, %v3635
        %v3637 = vrot.slane %v3361, 5
        %v3638 = vrot.slane %v3637, 4
        %v3639 = vrot.slane %v2623, 5
        %v3640 = vsel %vm1264, %v3638, %v3639
        %v3641 = vrot.slane %v3639, 4
        %v3642 = vrot.slane %v2624, 5
        %v3643 = vsel %vm1264, %v3641, %v3642
        %v3644 = vrot.slane %v3642, 4
        %v3645 = vrot.slane %v2625, 5
        %v3646 = vsel %vm1264, %v3644, %v3645
        %v3647 = vrot.slane %v3645, 4
        %v3648 = vrot.slane %v2641, 5
        %v3649 = vsel %vm1264, %v3647, %v3648
        %v3666 = vunpack.c.l.b16 %v379
        %v3667 = vunpack.c.l.b16 %v380
        %v3668 = vunpack.c.l.b16 %v381
        %v3669 = vunpack.c.l.b16 %v382
        %v3670 = vunpack.c.l.b16 %v383
        %v3671 = vunpack.c.l.b16 %v384
        %v3672 = vunpack.c.l.b16 %v385
        %v3673 = vunpack.c.l.b16 %v386
        %v3674 = vunpack.c.l.b16 %v387
        %v3675 = vunpack.c.l.b16 %v388
        %v3676 = vunpack.c.l.b16 %v389
        %v3677 = vunpack.c.l.b16 %v390
        %v3678 = vunpack.c.l.b16 %v391
        %v3679 = vunpack.c.l.b16 %v392
        %v3680 = vunpack.c.l.b16 %v393
        %v3681 = vunpack.c.l.b16 %v394
        %v3682 = vunpack.c.l.b16 %v395
        %v3683 = vunpack.c.l.b16 %v396
        %v3684 = vunpack.c.l.b16 %v397
        %v3685 = vunpack.c.l.b16 %v398
        %v3686 = vunpack.c.l.b16 %v399
        %v3687 = vunpack.c.l.b16 %v400
        %v3688 = vunpack.c.l.b16 %v401
        %v3689 = vunpack.c.l.b16 %v402
        %v3690 = vunpack.c.l.b16 %v403
        %v3691 = vunpack.c.l.b16 %v404
        %v3692 = vunpack.c.l.b16 %v405
        %v3693 = vunpack.c.l.b16 %v406
        %v3694 = vunpack.c.l.b16 %v407
        %v3695 = vunpack.c.l.b16 %v408
        %v3696 = vunpack.c.l.b16 %v409
        %v3697 = vunpack.c.l.b16 %v410
        %v3698 = vunpack.c.l.b16 %v411
        %v3699 = vunpack.c.l.b16 %v412
        %v3700 = vunpack.c.l.b16 %v413
        %v3701 = vunpack.c.l.b16 %v414
        %v3702 = vunpack.c.l.b16 %v415
        %v3703 = vunpack.c.l.b16 %v416
        %v3704 = vunpack.c.l.b16 %v417
        %v3705 = vunpack.c.l.b16 %v418
        %v3706 = vunpack.c.l.b16 %v419
        %v3707 = vunpack.c.l.b16 %v420
        %v3708 = vunpack.c.l.b16 %v421
        %v3709 = vunpack.c.l.b16 %v422
        %v3710 = vunpack.c.l.b16 %v423
        %v3711 = vunpack.c.l.b16 %v424
        %v3712 = vunpack.c.l.b16 %v425
        %v3713 = vunpack.c.l.b16 %v426
        %v3714 = vunpack.c.l.b16 %v427
        %v3715 = vunpack.c.l.b16 %v428
        %v3716 = vunpack.c.l.b16 %v429
        %v3717 = vunpack.c.l.b16 %v430
        %v3718 = vunpack.c.l.b16 %v431
        %v3719 = vunpack.c.l.b16 %v432
        %v3720 = vunpack.c.l.b16 %v433
        %v3721 = vunpack.c.l.b16 %v434
        %v3722 = vunpack.c.l.b16 %v435
        %v3723 = vunpack.c.l.b16 %v436
        %v3724 = vunpack.c.l.b16 %v437
        %v3725 = vunpack.c.l.b16 %v438
        %v3726 = vunpack.c.l.b16 %v439
        %v3727 = vunpack.c.l.b16 %v440
        %v3728 = vunpack.c.l.b16 %v441
        %v3729 = vunpack.c.l.b16 %v442
        %v3730 = vpack.c.b16 %v3667, %v3666
        %v3731 = vpack.c.b16 %v3669, %v3668
        %v3732 = vpack.c.b16 %v3671, %v3670
        %v3733 = vpack.c.b16 %v3673, %v3672
        %v3734 = vpack.c.b16 %v3675, %v3674
        %v3735 = vpack.c.b16 %v3677, %v3676
        %v3736 = vpack.c.b16 %v3679, %v3678
        %v3737 = vpack.c.b16 %v3681, %v3680
        %v3738 = vpack.c.b16 %v3683, %v3682
        %v3739 = vpack.c.b16 %v3685, %v3684
        %v3740 = vpack.c.b16 %v3687, %v3686
        %v3741 = vpack.c.b16 %v3689, %v3688
        %v3742 = vpack.c.b16 %v3691, %v3690
        %v3743 = vpack.c.b16 %v3693, %v3692
        %v3744 = vpack.c.b16 %v3695, %v3694
        %v3745 = vpack.c.b16 %v3697, %v3696
        %v3746 = vpack.c.b16 %v3699, %v3698
        %v3747 = vpack.c.b16 %v3701, %v3700
        %v3748 = vpack.c.b16 %v3703, %v3702
        %v3749 = vpack.c.b16 %v3705, %v3704
        %v3750 = vpack.c.b16 %v3707, %v3706
        %v3751 = vpack.c.b16 %v3709, %v3708
        %v3752 = vpack.c.b16 %v3711, %v3710
        %v3753 = vpack.c.b16 %v3713, %v3712
        %v3754 = vpack.c.b16 %v3715, %v3714
        %v3755 = vpack.c.b16 %v3717, %v3716
        %v3756 = vpack.c.b16 %v3719, %v3718
        %v3757 = vpack.c.b16 %v3721, %v3720
        %v3758 = vpack.c.b16 %v3723, %v3722
        %v3759 = vpack.c.b16 %v3725, %v3724
        %v3760 = vpack.c.b16 %v3727, %v3726
        %v3761 = vpack.c.b16 %v3729, %v3728
        %v3794 = vunpack.c.l.b16 %v475
        %v3795 = vunpack.c.l.b16 %v485
        %v3796 = vunpack.c.l.b16 %v495
        %v3797 = vunpack.c.l.b16 %v505
        %v3798 = vunpack.c.l.b16 %v519
        %v3799 = vunpack.c.l.b16 %v529
        %v3800 = vunpack.c.l.b16 %v539
        %v3801 = vunpack.c.l.b16 %v549
        %v3802 = vunpack.c.l.b16 %v563
        %v3803 = vunpack.c.l.b16 %v573
        %v3804 = vunpack.c.l.b16 %v583
        %v3805 = vunpack.c.l.b16 %v593
        %v3806 = vunpack.c.l.b16 %v607
        %v3807 = vunpack.c.l.b16 %v617
        %v3808 = vunpack.c.l.b16 %v627
        %v3809 = vunpack.c.l.b16 %v637
        %v3810 = vunpack.c.l.b16 %v651
        %v3811 = vunpack.c.l.b16 %v661
        %v3812 = vunpack.c.l.b16 %v671
        %v3813 = vunpack.c.l.b16 %v681
        %v3814 = vunpack.c.l.b16 %v695
        %v3815 = vunpack.c.l.b16 %v705
        %v3816 = vunpack.c.l.b16 %v715
        %v3817 = vunpack.c.l.b16 %v725
        %v3818 = vunpack.c.l.b16 %v739
        %v3819 = vunpack.c.l.b16 %v749
        %v3820 = vunpack.c.l.b16 %v759
        %v3821 = vunpack.c.l.b16 %v769
        %v3822 = vunpack.c.l.b16 %v783
        %v3823 = vunpack.c.l.b16 %v793
        %v3824 = vunpack.c.l.b16 %v803
        %v3825 = vunpack.c.l.b16 %v813
        %v3826 = vunpack.c.l.b16 %v827
        %v3827 = vunpack.c.l.b16 %v837
        %v3828 = vunpack.c.l.b16 %v847
        %v3829 = vunpack.c.l.b16 %v857
        %v3830 = vunpack.c.l.b16 %v871
        %v3831 = vunpack.c.l.b16 %v881
        %v3832 = vunpack.c.l.b16 %v891
        %v3833 = vunpack.c.l.b16 %v901
        %v3834 = vunpack.c.l.b16 %v915
        %v3835 = vunpack.c.l.b16 %v925
        %v3836 = vunpack.c.l.b16 %v935
        %v3837 = vunpack.c.l.b16 %v945
        %v3838 = vunpack.c.l.b16 %v959
        %v3839 = vunpack.c.l.b16 %v969
        %v3840 = vunpack.c.l.b16 %v979
        %v3841 = vunpack.c.l.b16 %v989
        %v3842 = vunpack.c.l.b16 %v1003
        %v3843 = vunpack.c.l.b16 %v1013
        %v3844 = vunpack.c.l.b16 %v1023
        %v3845 = vunpack.c.l.b16 %v1033
        %v3846 = vunpack.c.l.b16 %v1047
        %v3847 = vunpack.c.l.b16 %v1057
        %v3848 = vunpack.c.l.b16 %v1067
        %v3849 = vunpack.c.l.b16 %v1077
        %v3850 = vunpack.c.l.b16 %v1091
        %v3851 = vunpack.c.l.b16 %v1101
        %v3852 = vunpack.c.l.b16 %v1111
        %v3853 = vunpack.c.l.b16 %v1121
        %v3854 = vunpack.c.l.b16 %v1135
        %v3855 = vunpack.c.l.b16 %v1145
        %v3856 = vunpack.c.l.b16 %v1155
        %v3857 = vunpack.c.l.b16 %v1165
        %v3858 = vpack.c.b16 %v3795, %v3794
        %v3859 = vpack.c.b16 %v3797, %v3796
        %v3860 = vpack.c.b16 %v3799, %v3798
        %v3861 = vpack.c.b16 %v3801, %v3800
        %v3862 = vpack.c.b16 %v3803, %v3802
        %v3863 = vpack.c.b16 %v3805, %v3804
        %v3864 = vpack.c.b16 %v3807, %v3806
        %v3865 = vpack.c.b16 %v3809, %v3808
        %v3866 = vpack.c.b16 %v3811, %v3810
        %v3867 = vpack.c.b16 %v3813, %v3812
        %v3868 = vpack.c.b16 %v3815, %v3814
        %v3869 = vpack.c.b16 %v3817, %v3816
        %v3870 = vpack.c.b16 %v3819, %v3818
        %v3871 = vpack.c.b16 %v3821, %v3820
        %v3872 = vpack.c.b16 %v3823, %v3822
        %v3873 = vpack.c.b16 %v3825, %v3824
        %v3874 = vpack.c.b16 %v3827, %v3826
        %v3875 = vpack.c.b16 %v3829, %v3828
        %v3876 = vpack.c.b16 %v3831, %v3830
        %v3877 = vpack.c.b16 %v3833, %v3832
        %v3878 = vpack.c.b16 %v3835, %v3834
        %v3879 = vpack.c.b16 %v3837, %v3836
        %v3880 = vpack.c.b16 %v3839, %v3838
        %v3881 = vpack.c.b16 %v3841, %v3840
        %v3882 = vpack.c.b16 %v3843, %v3842
        %v3883 = vpack.c.b16 %v3845, %v3844
        %v3884 = vpack.c.b16 %v3847, %v3846
        %v3885 = vpack.c.b16 %v3849, %v3848
        %v3886 = vpack.c.b16 %v3851, %v3850
        %v3887 = vpack.c.b16 %v3853, %v3852
        %v3888 = vpack.c.b16 %v3855, %v3854
        %v3889 = vpack.c.b16 %v3857, %v3856
        %v3922 = vunpack.c.l.b16 %v1268
        %v3923 = vunpack.c.l.b16 %v1271
        %v3924 = vunpack.c.l.b16 %v1274
        %v3925 = vunpack.c.l.b16 %v1277
        %v3926 = vunpack.c.l.b16 %v1281
        %v3927 = vunpack.c.l.b16 %v1284
        %v3928 = vunpack.c.l.b16 %v1287
        %v3929 = vunpack.c.l.b16 %v1290
        %v3930 = vunpack.c.l.b16 %v1294
        %v3931 = vunpack.c.l.b16 %v1297
        %v3932 = vunpack.c.l.b16 %v1300
        %v3933 = vunpack.c.l.b16 %v1303
        %v3934 = vunpack.c.l.b16 %v1307
        %v3935 = vunpack.c.l.b16 %v1310
        %v3936 = vunpack.c.l.b16 %v1313
        %v3937 = vunpack.c.l.b16 %v1316
        %v3938 = vunpack.c.l.b16 %v1320
        %v3939 = vunpack.c.l.b16 %v1323
        %v3940 = vunpack.c.l.b16 %v1326
        %v3941 = vunpack.c.l.b16 %v1329
        %v3942 = vunpack.c.l.b16 %v1333
        %v3943 = vunpack.c.l.b16 %v1336
        %v3944 = vunpack.c.l.b16 %v1339
        %v3945 = vunpack.c.l.b16 %v1342
        %v3946 = vunpack.c.l.b16 %v1346
        %v3947 = vunpack.c.l.b16 %v1349
        %v3948 = vunpack.c.l.b16 %v1352
        %v3949 = vunpack.c.l.b16 %v1355
        %v3950 = vunpack.c.l.b16 %v1359
        %v3951 = vunpack.c.l.b16 %v1362
        %v3952 = vunpack.c.l.b16 %v1365
        %v3953 = vunpack.c.l.b16 %v1368
        %v3954 = vunpack.c.l.b16 %v1372
        %v3955 = vunpack.c.l.b16 %v1375
        %v3956 = vunpack.c.l.b16 %v1378
        %v3957 = vunpack.c.l.b16 %v1381
        %v3958 = vunpack.c.l.b16 %v1385
        %v3959 = vunpack.c.l.b16 %v1388
        %v3960 = vunpack.c.l.b16 %v1391
        %v3961 = vunpack.c.l.b16 %v1394
        %v3962 = vunpack.c.l.b16 %v1398
        %v3963 = vunpack.c.l.b16 %v1401
        %v3964 = vunpack.c.l.b16 %v1404
        %v3965 = vunpack.c.l.b16 %v1407
        %v3966 = vunpack.c.l.b16 %v1411
        %v3967 = vunpack.c.l.b16 %v1414
        %v3968 = vunpack.c.l.b16 %v1417
        %v3969 = vunpack.c.l.b16 %v1420
        %v3970 = vunpack.c.l.b16 %v1424
        %v3971 = vunpack.c.l.b16 %v1427
        %v3972 = vunpack.c.l.b16 %v1430
        %v3973 = vunpack.c.l.b16 %v1433
        %v3974 = vunpack.c.l.b16 %v1437
        %v3975 = vunpack.c.l.b16 %v1440
        %v3976 = vunpack.c.l.b16 %v1443
        %v3977 = vunpack.c.l.b16 %v1446
        %v3978 = vunpack.c.l.b16 %v1450
        %v3979 = vunpack.c.l.b16 %v1453
        %v3980 = vunpack.c.l.b16 %v1456
        %v3981 = vunpack.c.l.b16 %v1459
        %v3982 = vunpack.c.l.b16 %v1463
        %v3983 = vunpack.c.l.b16 %v1466
        %v3984 = vunpack.c.l.b16 %v1469
        %v3985 = vunpack.c.l.b16 %v1472
        %v3986 = vpack.c.b16 %v3923, %v3922
        %v3987 = vpack.c.b16 %v3925, %v3924
        %v3988 = vpack.c.b16 %v3927, %v3926
        %v3989 = vpack.c.b16 %v3929, %v3928
        %v3990 = vpack.c.b16 %v3931, %v3930
        %v3991 = vpack.c.b16 %v3933, %v3932
        %v3992 = vpack.c.b16 %v3935, %v3934
        %v3993 = vpack.c.b16 %v3937, %v3936
        %v3994 = vpack.c.b16 %v3939, %v3938
        %v3995 = vpack.c.b16 %v3941, %v3940
        %v3996 = vpack.c.b16 %v3943, %v3942
        %v3997 = vpack.c.b16 %v3945, %v3944
        %v3998 = vpack.c.b16 %v3947, %v3946
        %v3999 = vpack.c.b16 %v3949, %v3948
        %v4000 = vpack.c.b16 %v3951, %v3950
        %v4001 = vpack.c.b16 %v3953, %v3952
        %v4002 = vpack.c.b16 %v3955, %v3954
        %v4003 = vpack.c.b16 %v3957, %v3956
        %v4004 = vpack.c.b16 %v3959, %v3958
        %v4005 = vpack.c.b16 %v3961, %v3960
        %v4006 = vpack.c.b16 %v3963, %v3962
        %v4007 = vpack.c.b16 %v3965, %v3964
        %v4008 = vpack.c.b16 %v3967, %v3966
        %v4009 = vpack.c.b16 %v3969, %v3968
        %v4010 = vpack.c.b16 %v3971, %v3970
        %v4011 = vpack.c.b16 %v3973, %v3972
        %v4012 = vpack.c.b16 %v3975, %v3974
        %v4013 = vpack.c.b16 %v3977, %v3976
        %v4014 = vpack.c.b16 %v3979, %v3978
        %v4015 = vpack.c.b16 %v3981, %v3980
        %v4016 = vpack.c.b16 %v3983, %v3982
        %v4017 = vpack.c.b16 %v3985, %v3984
        %v4066 = vunpack.c.l.b16 %v1473
        %v4067 = vunpack.c.l.b16 %v1474
        %v4068 = vunpack.c.l.b16 %v1475
        %v4069 = vunpack.c.l.b16 %v1476
        %v4070 = vunpack.c.l.b16 %v1477
        %v4071 = vunpack.c.l.b16 %v1478
        %v4072 = vunpack.c.l.b16 %v1479
        %v4073 = vunpack.c.l.b16 %v1480
        %v4074 = vunpack.c.l.b16 %v1481
        %v4075 = vunpack.c.l.b16 %v1482
        %v4076 = vunpack.c.l.b16 %v1483
        %v4077 = vunpack.c.l.b16 %v1484
        %v4078 = vunpack.c.l.b16 %v1485
        %v4079 = vunpack.c.l.b16 %v1486
        %v4080 = vunpack.c.l.b16 %v1487
        %v4081 = vunpack.c.l.b16 %v1488
        %v4082 = vunpack.c.l.b16 %v1489
        %v4083 = vunpack.c.l.b16 %v1490
        %v4084 = vunpack.c.l.b16 %v1491
        %v4085 = vunpack.c.l.b16 %v1492
        %v4086 = vunpack.c.l.b16 %v1493
        %v4087 = vunpack.c.l.b16 %v1494
        %v4088 = vunpack.c.l.b16 %v1495
        %v4089 = vunpack.c.l.b16 %v1496
        %v4090 = vunpack.c.l.b16 %v1497
        %v4091 = vunpack.c.l.b16 %v1498
        %v4092 = vunpack.c.l.b16 %v1499
        %v4093 = vunpack.c.l.b16 %v1500
        %v4094 = vunpack.c.l.b16 %v1501
        %v4095 = vunpack.c.l.b16 %v1502
        %v4096 = vunpack.c.l.b16 %v1503
        %v4097 = vunpack.c.l.b16 %v1504
        %v4098 = vunpack.c.l.b16 %v1505
        %v4099 = vunpack.c.l.b16 %v1506
        %v4100 = vunpack.c.l.b16 %v1507
        %v4101 = vunpack.c.l.b16 %v1508
        %v4102 = vunpack.c.l.b16 %v1509
        %v4103 = vunpack.c.l.b16 %v1510
        %v4104 = vunpack.c.l.b16 %v1511
        %v4105 = vunpack.c.l.b16 %v1512
        %v4106 = vunpack.c.l.b16 %v1513
        %v4107 = vunpack.c.l.b16 %v1514
        %v4108 = vunpack.c.l.b16 %v1515
        %v4109 = vunpack.c.l.b16 %v1516
        %v4110 = vunpack.c.l.b16 %v1517
        %v4111 = vunpack.c.l.b16 %v1518
        %v4112 = vunpack.c.l.b16 %v1519
        %v4113 = vunpack.c.l.b16 %v1520
        %v4114 = vunpack.c.l.b16 %v1521
        %v4115 = vunpack.c.l.b16 %v1522
        %v4116 = vunpack.c.l.b16 %v1523
        %v4117 = vunpack.c.l.b16 %v1524
        %v4118 = vunpack.c.l.b16 %v1525
        %v4119 = vunpack.c.l.b16 %v1526
        %v4120 = vunpack.c.l.b16 %v1527
        %v4121 = vunpack.c.l.b16 %v1528
        %v4122 = vunpack.c.l.b16 %v1529
        %v4123 = vunpack.c.l.b16 %v1530
        %v4124 = vunpack.c.l.b16 %v1531
        %v4125 = vunpack.c.l.b16 %v1532
        %v4126 = vunpack.c.l.b16 %v1533
        %v4127 = vunpack.c.l.b16 %v1534
        %v4128 = vunpack.c.l.b16 %v1535
        %v4129 = vunpack.c.l.b16 %v1536
        %v4130 = vpack.c.b16 %v4067, %v4066
        %v4131 = vpack.c.b16 %v4069, %v4068
        %v4132 = vpack.c.b16 %v4071, %v4070
        %v4133 = vpack.c.b16 %v4073, %v4072
        %v4134 = vpack.c.b16 %v4075, %v4074
        %v4135 = vpack.c.b16 %v4077, %v4076
        %v4136 = vpack.c.b16 %v4079, %v4078
        %v4137 = vpack.c.b16 %v4081, %v4080
        %v4138 = vpack.c.b16 %v4083, %v4082
        %v4139 = vpack.c.b16 %v4085, %v4084
        %v4140 = vpack.c.b16 %v4087, %v4086
        %v4141 = vpack.c.b16 %v4089, %v4088
        %v4142 = vpack.c.b16 %v4091, %v4090
        %v4143 = vpack.c.b16 %v4093, %v4092
        %v4144 = vpack.c.b16 %v4095, %v4094
        %v4145 = vpack.c.b16 %v4097, %v4096
        %v4146 = vpack.c.b16 %v4099, %v4098
        %v4147 = vpack.c.b16 %v4101, %v4100
        %v4148 = vpack.c.b16 %v4103, %v4102
        %v4149 = vpack.c.b16 %v4105, %v4104
        %v4150 = vpack.c.b16 %v4107, %v4106
        %v4151 = vpack.c.b16 %v4109, %v4108
        %v4152 = vpack.c.b16 %v4111, %v4110
        %v4153 = vpack.c.b16 %v4113, %v4112
        %v4154 = vpack.c.b16 %v4115, %v4114
        %v4155 = vpack.c.b16 %v4117, %v4116
        %v4156 = vpack.c.b16 %v4119, %v4118
        %v4157 = vpack.c.b16 %v4121, %v4120
        %v4158 = vpack.c.b16 %v4123, %v4122
        %v4159 = vpack.c.b16 %v4125, %v4124
        %v4160 = vpack.c.b16 %v4127, %v4126
        %v4161 = vpack.c.b16 %v4129, %v4128
        %v4194 = vunpack.c.l.b16 %v1566
        %v4195 = vunpack.c.l.b16 %v1576
        %v4196 = vunpack.c.l.b16 %v1586
        %v4197 = vunpack.c.l.b16 %v1596
        %v4198 = vunpack.c.l.b16 %v1610
        %v4199 = vunpack.c.l.b16 %v1620
        %v4200 = vunpack.c.l.b16 %v1630
        %v4201 = vunpack.c.l.b16 %v1640
        %v4202 = vunpack.c.l.b16 %v1654
        %v4203 = vunpack.c.l.b16 %v1664
        %v4204 = vunpack.c.l.b16 %v1674
        %v4205 = vunpack.c.l.b16 %v1684
        %v4206 = vunpack.c.l.b16 %v1698
        %v4207 = vunpack.c.l.b16 %v1708
        %v4208 = vunpack.c.l.b16 %v1718
        %v4209 = vunpack.c.l.b16 %v1728
        %v4210 = vunpack.c.l.b16 %v1742
        %v4211 = vunpack.c.l.b16 %v1752
        %v4212 = vunpack.c.l.b16 %v1762
        %v4213 = vunpack.c.l.b16 %v1772
        %v4214 = vunpack.c.l.b16 %v1786
        %v4215 = vunpack.c.l.b16 %v1796
        %v4216 = vunpack.c.l.b16 %v1806
        %v4217 = vunpack.c.l.b16 %v1816
        %v4218 = vunpack.c.l.b16 %v1830
        %v4219 = vunpack.c.l.b16 %v1840
        %v4220 = vunpack.c.l.b16 %v1850
        %v4221 = vunpack.c.l.b16 %v1860
        %v4222 = vunpack.c.l.b16 %v1874
        %v4223 = vunpack.c.l.b16 %v1884
        %v4224 = vunpack.c.l.b16 %v1894
        %v4225 = vunpack.c.l.b16 %v1904
        %v4226 = vunpack.c.l.b16 %v1918
        %v4227 = vunpack.c.l.b16 %v1928
        %v4228 = vunpack.c.l.b16 %v1938
        %v4229 = vunpack.c.l.b16 %v1948
        %v4230 = vunpack.c.l.b16 %v1962
        %v4231 = vunpack.c.l.b16 %v1972
        %v4232 = vunpack.c.l.b16 %v1982
        %v4233 = vunpack.c.l.b16 %v1992
        %v4234 = vunpack.c.l.b16 %v2006
        %v4235 = vunpack.c.l.b16 %v2016
        %v4236 = vunpack.c.l.b16 %v2026
        %v4237 = vunpack.c.l.b16 %v2036
        %v4238 = vunpack.c.l.b16 %v2050
        %v4239 = vunpack.c.l.b16 %v2060
        %v4240 = vunpack.c.l.b16 %v2070
        %v4241 = vunpack.c.l.b16 %v2080
        %v4242 = vunpack.c.l.b16 %v2094
        %v4243 = vunpack.c.l.b16 %v2104
        %v4244 = vunpack.c.l.b16 %v2114
        %v4245 = vunpack.c.l.b16 %v2124
        %v4246 = vunpack.c.l.b16 %v2138
        %v4247 = vunpack.c.l.b16 %v2148
        %v4248 = vunpack.c.l.b16 %v2158
        %v4249 = vunpack.c.l.b16 %v2168
        %v4250 = vunpack.c.l.b16 %v2182
        %v4251 = vunpack.c.l.b16 %v2192
        %v4252 = vunpack.c.l.b16 %v2202
        %v4253 = vunpack.c.l.b16 %v2212
        %v4254 = vunpack.c.l.b16 %v2226
        %v4255 = vunpack.c.l.b16 %v2236
        %v4256 = vunpack.c.l.b16 %v2246
        %v4257 = vunpack.c.l.b16 %v2256
        %v4258 = vpack.c.b16 %v4195, %v4194
        %v4259 = vpack.c.b16 %v4197, %v4196
        %v4260 = vpack.c.b16 %v4199, %v4198
        %v4261 = vpack.c.b16 %v4201, %v4200
        %v4262 = vpack.c.b16 %v4203, %v4202
        %v4263 = vpack.c.b16 %v4205, %v4204
        %v4264 = vpack.c.b16 %v4207, %v4206
        %v4265 = vpack.c.b16 %v4209, %v4208
        %v4266 = vpack.c.b16 %v4211, %v4210
        %v4267 = vpack.c.b16 %v4213, %v4212
        %v4268 = vpack.c.b16 %v4215, %v4214
        %v4269 = vpack.c.b16 %v4217, %v4216
        %v4270 = vpack.c.b16 %v4219, %v4218
        %v4271 = vpack.c.b16 %v4221, %v4220
        %v4272 = vpack.c.b16 %v4223, %v4222
        %v4273 = vpack.c.b16 %v4225, %v4224
        %v4274 = vpack.c.b16 %v4227, %v4226
        %v4275 = vpack.c.b16 %v4229, %v4228
        %v4276 = vpack.c.b16 %v4231, %v4230
        %v4277 = vpack.c.b16 %v4233, %v4232
        %v4278 = vpack.c.b16 %v4235, %v4234
        %v4279 = vpack.c.b16 %v4237, %v4236
        %v4280 = vpack.c.b16 %v4239, %v4238
        %v4281 = vpack.c.b16 %v4241, %v4240
        %v4282 = vpack.c.b16 %v4243, %v4242
        %v4283 = vpack.c.b16 %v4245, %v4244
        %v4284 = vpack.c.b16 %v4247, %v4246
        %v4285 = vpack.c.b16 %v4249, %v4248
        %v4286 = vpack.c.b16 %v4251, %v4250
        %v4287 = vpack.c.b16 %v4253, %v4252
        %v4288 = vpack.c.b16 %v4255, %v4254
        %v4289 = vpack.c.b16 %v4257, %v4256
        %v4322 = vunpack.c.l.b16 %v2356
        %v4323 = vunpack.c.l.b16 %v2359
        %v4324 = vunpack.c.l.b16 %v2362
        %v4325 = vunpack.c.l.b16 %v2365
        %v4326 = vunpack.c.l.b16 %v2369
        %v4327 = vunpack.c.l.b16 %v2372
        %v4328 = vunpack.c.l.b16 %v2375
        %v4329 = vunpack.c.l.b16 %v2378
        %v4330 = vunpack.c.l.b16 %v2382
        %v4331 = vunpack.c.l.b16 %v2385
        %v4332 = vunpack.c.l.b16 %v2388
        %v4333 = vunpack.c.l.b16 %v2391
        %v4334 = vunpack.c.l.b16 %v2395
        %v4335 = vunpack.c.l.b16 %v2398
        %v4336 = vunpack.c.l.b16 %v2401
        %v4337 = vunpack.c.l.b16 %v2404
        %v4338 = vunpack.c.l.b16 %v2408
        %v4339 = vunpack.c.l.b16 %v2411
        %v4340 = vunpack.c.l.b16 %v2414
        %v4341 = vunpack.c.l.b16 %v2417
        %v4342 = vunpack.c.l.b16 %v2421
        %v4343 = vunpack.c.l.b16 %v2424
        %v4344 = vunpack.c.l.b16 %v2427
        %v4345 = vunpack.c.l.b16 %v2430
        %v4346 = vunpack.c.l.b16 %v2434
        %v4347 = vunpack.c.l.b16 %v2437
        %v4348 = vunpack.c.l.b16 %v2440
        %v4349 = vunpack.c.l.b16 %v2443
        %v4350 = vunpack.c.l.b16 %v2447
        %v4351 = vunpack.c.l.b16 %v2450
        %v4352 = vunpack.c.l.b16 %v2453
        %v4353 = vunpack.c.l.b16 %v2456
        %v4354 = vunpack.c.l.b16 %v2460
        %v4355 = vunpack.c.l.b16 %v2463
        %v4356 = vunpack.c.l.b16 %v2466
        %v4357 = vunpack.c.l.b16 %v2469
        %v4358 = vunpack.c.l.b16 %v2473
        %v4359 = vunpack.c.l.b16 %v2476
        %v4360 = vunpack.c.l.b16 %v2479
        %v4361 = vunpack.c.l.b16 %v2482
        %v4362 = vunpack.c.l.b16 %v2486
        %v4363 = vunpack.c.l.b16 %v2489
        %v4364 = vunpack.c.l.b16 %v2492
        %v4365 = vunpack.c.l.b16 %v2495
        %v4366 = vunpack.c.l.b16 %v2499
        %v4367 = vunpack.c.l.b16 %v2502
        %v4368 = vunpack.c.l.b16 %v2505
        %v4369 = vunpack.c.l.b16 %v2508
        %v4370 = vunpack.c.l.b16 %v2512
        %v4371 = vunpack.c.l.b16 %v2515
        %v4372 = vunpack.c.l.b16 %v2518
        %v4373 = vunpack.c.l.b16 %v2521
        %v4374 = vunpack.c.l.b16 %v2525
        %v4375 = vunpack.c.l.b16 %v2528
        %v4376 = vunpack.c.l.b16 %v2531
        %v4377 = vunpack.c.l.b16 %v2534
        %v4378 = vunpack.c.l.b16 %v2538
        %v4379 = vunpack.c.l.b16 %v2541
        %v4380 = vunpack.c.l.b16 %v2544
        %v4381 = vunpack.c.l.b16 %v2547
        %v4382 = vunpack.c.l.b16 %v2551
        %v4383 = vunpack.c.l.b16 %v2554
        %v4384 = vunpack.c.l.b16 %v2557
        %v4385 = vunpack.c.l.b16 %v2560
        %v4386 = vpack.c.b16 %v4323, %v4322
        %v4387 = vpack.c.b16 %v4325, %v4324
        %v4388 = vpack.c.b16 %v4327, %v4326
        %v4389 = vpack.c.b16 %v4329, %v4328
        %v4390 = vpack.c.b16 %v4331, %v4330
        %v4391 = vpack.c.b16 %v4333, %v4332
        %v4392 = vpack.c.b16 %v4335, %v4334
        %v4393 = vpack.c.b16 %v4337, %v4336
        %v4394 = vpack.c.b16 %v4339, %v4338
        %v4395 = vpack.c.b16 %v4341, %v4340
        %v4396 = vpack.c.b16 %v4343, %v4342
        %v4397 = vpack.c.b16 %v4345, %v4344
        %v4398 = vpack.c.b16 %v4347, %v4346
        %v4399 = vpack.c.b16 %v4349, %v4348
        %v4400 = vpack.c.b16 %v4351, %v4350
        %v4401 = vpack.c.b16 %v4353, %v4352
        %v4402 = vpack.c.b16 %v4355, %v4354
        %v4403 = vpack.c.b16 %v4357, %v4356
        %v4404 = vpack.c.b16 %v4359, %v4358
        %v4405 = vpack.c.b16 %v4361, %v4360
        %v4406 = vpack.c.b16 %v4363, %v4362
        %v4407 = vpack.c.b16 %v4365, %v4364
        %v4408 = vpack.c.b16 %v4367, %v4366
        %v4409 = vpack.c.b16 %v4369, %v4368
        %v4410 = vpack.c.b16 %v4371, %v4370
        %v4411 = vpack.c.b16 %v4373, %v4372
        %v4412 = vpack.c.b16 %v4375, %v4374
        %v4413 = vpack.c.b16 %v4377, %v4376
        %v4414 = vpack.c.b16 %v4379, %v4378
        %v4415 = vpack.c.b16 %v4381, %v4380
        %v4416 = vpack.c.b16 %v4383, %v4382
        %v4417 = vpack.c.b16 %v4385, %v4384
        %v4466 = vunpack.c.l.b16 %v2562
        %v4467 = vunpack.c.l.b16 %v2563
        %v4468 = vunpack.c.l.b16 %v2564
        %v4469 = vunpack.c.l.b16 %v2565
        %v4470 = vunpack.c.l.b16 %v2566
        %v4471 = vunpack.c.l.b16 %v2567
        %v4472 = vunpack.c.l.b16 %v2568
        %v4473 = vunpack.c.l.b16 %v2569
        %v4474 = vunpack.c.l.b16 %v2570
        %v4475 = vunpack.c.l.b16 %v2571
        %v4476 = vunpack.c.l.b16 %v2572
        %v4477 = vunpack.c.l.b16 %v2573
        %v4478 = vunpack.c.l.b16 %v2574
        %v4479 = vunpack.c.l.b16 %v2575
        %v4480 = vunpack.c.l.b16 %v2576
        %v4481 = vunpack.c.l.b16 %v2577
        %v4482 = vunpack.c.l.b16 %v2578
        %v4483 = vunpack.c.l.b16 %v2579
        %v4484 = vunpack.c.l.b16 %v2580
        %v4485 = vunpack.c.l.b16 %v2581
        %v4486 = vunpack.c.l.b16 %v2582
        %v4487 = vunpack.c.l.b16 %v2583
        %v4488 = vunpack.c.l.b16 %v2584
        %v4489 = vunpack.c.l.b16 %v2585
        %v4490 = vunpack.c.l.b16 %v2586
        %v4491 = vunpack.c.l.b16 %v2587
        %v4492 = vunpack.c.l.b16 %v2588
        %v4493 = vunpack.c.l.b16 %v2589
        %v4494 = vunpack.c.l.b16 %v2590
        %v4495 = vunpack.c.l.b16 %v2591
        %v4496 = vunpack.c.l.b16 %v2592
        %v4497 = vunpack.c.l.b16 %v2593
        %v4498 = vunpack.c.l.b16 %v2594
        %v4499 = vunpack.c.l.b16 %v2595
        %v4500 = vunpack.c.l.b16 %v2596
        %v4501 = vunpack.c.l.b16 %v2597
        %v4502 = vunpack.c.l.b16 %v2598
        %v4503 = vunpack.c.l.b16 %v2599
        %v4504 = vunpack.c.l.b16 %v2600
        %v4505 = vunpack.c.l.b16 %v2601
        %v4506 = vunpack.c.l.b16 %v2602
        %v4507 = vunpack.c.l.b16 %v2603
        %v4508 = vunpack.c.l.b16 %v2604
        %v4509 = vunpack.c.l.b16 %v2605
        %v4510 = vunpack.c.l.b16 %v2606
        %v4511 = vunpack.c.l.b16 %v2607
        %v4512 = vunpack.c.l.b16 %v2608
        %v4513 = vunpack.c.l.b16 %v2609
        %v4514 = vunpack.c.l.b16 %v2610
        %v4515 = vunpack.c.l.b16 %v2611
        %v4516 = vunpack.c.l.b16 %v2612
        %v4517 = vunpack.c.l.b16 %v2613
        %v4518 = vunpack.c.l.b16 %v2614
        %v4519 = vunpack.c.l.b16 %v2615
        %v4520 = vunpack.c.l.b16 %v2616
        %v4521 = vunpack.c.l.b16 %v2617
        %v4522 = vunpack.c.l.b16 %v2618
        %v4523 = vunpack.c.l.b16 %v2619
        %v4524 = vunpack.c.l.b16 %v2620
        %v4525 = vunpack.c.l.b16 %v2621
        %v4526 = vunpack.c.l.b16 %v2622
        %v4527 = vunpack.c.l.b16 %v2623
        %v4528 = vunpack.c.l.b16 %v2624
        %v4529 = vunpack.c.l.b16 %v2625
        %v4530 = vpack.c.b16 %v4467, %v4466
        %v4531 = vpack.c.b16 %v4469, %v4468
        %v4532 = vpack.c.b16 %v4471, %v4470
        %v4533 = vpack.c.b16 %v4473, %v4472
        %v4534 = vpack.c.b16 %v4475, %v4474
        %v4535 = vpack.c.b16 %v4477, %v4476
        %v4536 = vpack.c.b16 %v4479, %v4478
        %v4537 = vpack.c.b16 %v4481, %v4480
        %v4538 = vpack.c.b16 %v4483, %v4482
        %v4539 = vpack.c.b16 %v4485, %v4484
        %v4540 = vpack.c.b16 %v4487, %v4486
        %v4541 = vpack.c.b16 %v4489, %v4488
        %v4542 = vpack.c.b16 %v4491, %v4490
        %v4543 = vpack.c.b16 %v4493, %v4492
        %v4544 = vpack.c.b16 %v4495, %v4494
        %v4545 = vpack.c.b16 %v4497, %v4496
        %v4546 = vpack.c.b16 %v4499, %v4498
        %v4547 = vpack.c.b16 %v4501, %v4500
        %v4548 = vpack.c.b16 %v4503, %v4502
        %v4549 = vpack.c.b16 %v4505, %v4504
        %v4550 = vpack.c.b16 %v4507, %v4506
        %v4551 = vpack.c.b16 %v4509, %v4508
        %v4552 = vpack.c.b16 %v4511, %v4510
        %v4553 = vpack.c.b16 %v4513, %v4512
        %v4554 = vpack.c.b16 %v4515, %v4514
        %v4555 = vpack.c.b16 %v4517, %v4516
        %v4556 = vpack.c.b16 %v4519, %v4518
        %v4557 = vpack.c.b16 %v4521, %v4520
        %v4558 = vpack.c.b16 %v4523, %v4522
        %v4559 = vpack.c.b16 %v4525, %v4524
        %v4560 = vpack.c.b16 %v4527, %v4526
        %v4561 = vpack.c.b16 %v4529, %v4528
        %v4594 = vunpack.c.l.b16 %v2655
        %v4595 = vunpack.c.l.b16 %v2665
        %v4596 = vunpack.c.l.b16 %v2675
        %v4597 = vunpack.c.l.b16 %v2685
        %v4598 = vunpack.c.l.b16 %v2699
        %v4599 = vunpack.c.l.b16 %v2709
        %v4600 = vunpack.c.l.b16 %v2719
        %v4601 = vunpack.c.l.b16 %v2729
        %v4602 = vunpack.c.l.b16 %v2743
        %v4603 = vunpack.c.l.b16 %v2753
        %v4604 = vunpack.c.l.b16 %v2763
        %v4605 = vunpack.c.l.b16 %v2773
        %v4606 = vunpack.c.l.b16 %v2787
        %v4607 = vunpack.c.l.b16 %v2797
        %v4608 = vunpack.c.l.b16 %v2807
        %v4609 = vunpack.c.l.b16 %v2817
        %v4610 = vunpack.c.l.b16 %v2831
        %v4611 = vunpack.c.l.b16 %v2841
        %v4612 = vunpack.c.l.b16 %v2851
        %v4613 = vunpack.c.l.b16 %v2861
        %v4614 = vunpack.c.l.b16 %v2875
        %v4615 = vunpack.c.l.b16 %v2885
        %v4616 = vunpack.c.l.b16 %v2895
        %v4617 = vunpack.c.l.b16 %v2905
        %v4618 = vunpack.c.l.b16 %v2919
        %v4619 = vunpack.c.l.b16 %v2929
        %v4620 = vunpack.c.l.b16 %v2939
        %v4621 = vunpack.c.l.b16 %v2949
        %v4622 = vunpack.c.l.b16 %v2963
        %v4623 = vunpack.c.l.b16 %v2973
        %v4624 = vunpack.c.l.b16 %v2983
        %v4625 = vunpack.c.l.b16 %v2993
        %v4626 = vunpack.c.l.b16 %v3007
        %v4627 = vunpack.c.l.b16 %v3017
        %v4628 = vunpack.c.l.b16 %v3027
        %v4629 = vunpack.c.l.b16 %v3037
        %v4630 = vunpack.c.l.b16 %v3051
        %v4631 = vunpack.c.l.b16 %v3061
        %v4632 = vunpack.c.l.b16 %v3071
        %v4633 = vunpack.c.l.b16 %v3081
        %v4634 = vunpack.c.l.b16 %v3095
        %v4635 = vunpack.c.l.b16 %v3105
        %v4636 = vunpack.c.l.b16 %v3115
        %v4637 = vunpack.c.l.b16 %v3125
        %v4638 = vunpack.c.l.b16 %v3139
        %v4639 = vunpack.c.l.b16 %v3149
        %v4640 = vunpack.c.l.b16 %v3159
        %v4641 = vunpack.c.l.b16 %v3169
        %v4642 = vunpack.c.l.b16 %v3183
        %v4643 = vunpack.c.l.b16 %v3193
        %v4644 = vunpack.c.l.b16 %v3203
        %v4645 = vunpack.c.l.b16 %v3213
        %v4646 = vunpack.c.l.b16 %v3227
        %v4647 = vunpack.c.l.b16 %v3237
        %v4648 = vunpack.c.l.b16 %v3247
        %v4649 = vunpack.c.l.b16 %v3257
        %v4650 = vunpack.c.l.b16 %v3271
        %v4651 = vunpack.c.l.b16 %v3281
        %v4652 = vunpack.c.l.b16 %v3291
        %v4653 = vunpack.c.l.b16 %v3301
        %v4654 = vunpack.c.l.b16 %v3315
        %v4655 = vunpack.c.l.b16 %v3325
        %v4656 = vunpack.c.l.b16 %v3335
        %v4657 = vunpack.c.l.b16 %v3345
        %v4658 = vpack.c.b16 %v4595, %v4594
        %v4659 = vpack.c.b16 %v4597, %v4596
        %v4660 = vpack.c.b16 %v4599, %v4598
        %v4661 = vpack.c.b16 %v4601, %v4600
        %v4662 = vpack.c.b16 %v4603, %v4602
        %v4663 = vpack.c.b16 %v4605, %v4604
        %v4664 = vpack.c.b16 %v4607, %v4606
        %v4665 = vpack.c.b16 %v4609, %v4608
        %v4666 = vpack.c.b16 %v4611, %v4610
        %v4667 = vpack.c.b16 %v4613, %v4612
        %v4668 = vpack.c.b16 %v4615, %v4614
        %v4669 = vpack.c.b16 %v4617, %v4616
        %v4670 = vpack.c.b16 %v4619, %v4618
        %v4671 = vpack.c.b16 %v4621, %v4620
        %v4672 = vpack.c.b16 %v4623, %v4622
        %v4673 = vpack.c.b16 %v4625, %v4624
        %v4674 = vpack.c.b16 %v4627, %v4626
        %v4675 = vpack.c.b16 %v4629, %v4628
        %v4676 = vpack.c.b16 %v4631, %v4630
        %v4677 = vpack.c.b16 %v4633, %v4632
        %v4678 = vpack.c.b16 %v4635, %v4634
        %v4679 = vpack.c.b16 %v4637, %v4636
        %v4680 = vpack.c.b16 %v4639, %v4638
        %v4681 = vpack.c.b16 %v4641, %v4640
        %v4682 = vpack.c.b16 %v4643, %v4642
        %v4683 = vpack.c.b16 %v4645, %v4644
        %v4684 = vpack.c.b16 %v4647, %v4646
        %v4685 = vpack.c.b16 %v4649, %v4648
        %v4686 = vpack.c.b16 %v4651, %v4650
        %v4687 = vpack.c.b16 %v4653, %v4652
        %v4688 = vpack.c.b16 %v4655, %v4654
        %v4689 = vpack.c.b16 %v4657, %v4656
        %v4722 = vunpack.c.l.b16 %v3445
        %v4723 = vunpack.c.l.b16 %v3448
        %v4724 = vunpack.c.l.b16 %v3451
        %v4725 = vunpack.c.l.b16 %v3454
        %v4726 = vunpack.c.l.b16 %v3458
        %v4727 = vunpack.c.l.b16 %v3461
        %v4728 = vunpack.c.l.b16 %v3464
        %v4729 = vunpack.c.l.b16 %v3467
        %v4730 = vunpack.c.l.b16 %v3471
        %v4731 = vunpack.c.l.b16 %v3474
        %v4732 = vunpack.c.l.b16 %v3477
        %v4733 = vunpack.c.l.b16 %v3480
        %v4734 = vunpack.c.l.b16 %v3484
        %v4735 = vunpack.c.l.b16 %v3487
        %v4736 = vunpack.c.l.b16 %v3490
        %v4737 = vunpack.c.l.b16 %v3493
        %v4738 = vunpack.c.l.b16 %v3497
        %v4739 = vunpack.c.l.b16 %v3500
        %v4740 = vunpack.c.l.b16 %v3503
        %v4741 = vunpack.c.l.b16 %v3506
        %v4742 = vunpack.c.l.b16 %v3510
        %v4743 = vunpack.c.l.b16 %v3513
        %v4744 = vunpack.c.l.b16 %v3516
        %v4745 = vunpack.c.l.b16 %v3519
        %v4746 = vunpack.c.l.b16 %v3523
        %v4747 = vunpack.c.l.b16 %v3526
        %v4748 = vunpack.c.l.b16 %v3529
        %v4749 = vunpack.c.l.b16 %v3532
        %v4750 = vunpack.c.l.b16 %v3536
        %v4751 = vunpack.c.l.b16 %v3539
        %v4752 = vunpack.c.l.b16 %v3542
        %v4753 = vunpack.c.l.b16 %v3545
        %v4754 = vunpack.c.l.b16 %v3549
        %v4755 = vunpack.c.l.b16 %v3552
        %v4756 = vunpack.c.l.b16 %v3555
        %v4757 = vunpack.c.l.b16 %v3558
        %v4758 = vunpack.c.l.b16 %v3562
        %v4759 = vunpack.c.l.b16 %v3565
        %v4760 = vunpack.c.l.b16 %v3568
        %v4761 = vunpack.c.l.b16 %v3571
        %v4762 = vunpack.c.l.b16 %v3575
        %v4763 = vunpack.c.l.b16 %v3578
        %v4764 = vunpack.c.l.b16 %v3581
        %v4765 = vunpack.c.l.b16 %v3584
        %v4766 = vunpack.c.l.b16 %v3588
        %v4767 = vunpack.c.l.b16 %v3591
        %v4768 = vunpack.c.l.b16 %v3594
        %v4769 = vunpack.c.l.b16 %v3597
        %v4770 = vunpack.c.l.b16 %v3601
        %v4771 = vunpack.c.l.b16 %v3604
        %v4772 = vunpack.c.l.b16 %v3607
        %v4773 = vunpack.c.l.b16 %v3610
        %v4774 = vunpack.c.l.b16 %v3614
        %v4775 = vunpack.c.l.b16 %v3617
        %v4776 = vunpack.c.l.b16 %v3620
        %v4777 = vunpack.c.l.b16 %v3623
        %v4778 = vunpack.c.l.b16 %v3627
        %v4779 = vunpack.c.l.b16 %v3630
        %v4780 = vunpack.c.l.b16 %v3633
        %v4781 = vunpack.c.l.b16 %v3636
        %v4782 = vunpack.c.l.b16 %v3640
        %v4783 = vunpack.c.l.b16 %v3643
        %v4784 = vunpack.c.l.b16 %v3646
        %v4785 = vunpack.c.l.b16 %v3649
        %v4786 = vpack.c.b16 %v4723, %v4722
        %v4787 = vpack.c.b16 %v4725, %v4724
        %v4788 = vpack.c.b16 %v4727, %v4726
        %v4789 = vpack.c.b16 %v4729, %v4728
        %v4790 = vpack.c.b16 %v4731, %v4730
        %v4791 = vpack.c.b16 %v4733, %v4732
        %v4792 = vpack.c.b16 %v4735, %v4734
        %v4793 = vpack.c.b16 %v4737, %v4736
        %v4794 = vpack.c.b16 %v4739, %v4738
        %v4795 = vpack.c.b16 %v4741, %v4740
        %v4796 = vpack.c.b16 %v4743, %v4742
        %v4797 = vpack.c.b16 %v4745, %v4744
        %v4798 = vpack.c.b16 %v4747, %v4746
        %v4799 = vpack.c.b16 %v4749, %v4748
        %v4800 = vpack.c.b16 %v4751, %v4750
        %v4801 = vpack.c.b16 %v4753, %v4752
        %v4802 = vpack.c.b16 %v4755, %v4754
        %v4803 = vpack.c.b16 %v4757, %v4756
        %v4804 = vpack.c.b16 %v4759, %v4758
        %v4805 = vpack.c.b16 %v4761, %v4760
        %v4806 = vpack.c.b16 %v4763, %v4762
        %v4807 = vpack.c.b16 %v4765, %v4764
        %v4808 = vpack.c.b16 %v4767, %v4766
        %v4809 = vpack.c.b16 %v4769, %v4768
        %v4810 = vpack.c.b16 %v4771, %v4770
        %v4811 = vpack.c.b16 %v4773, %v4772
        %v4812 = vpack.c.b16 %v4775, %v4774
        %v4813 = vpack.c.b16 %v4777, %v4776
        %v4814 = vpack.c.b16 %v4779, %v4778
        %v4815 = vpack.c.b16 %v4781, %v4780
        %v4816 = vpack.c.b16 %v4783, %v4782
        %v4817 = vpack.c.b16 %v4785, %v4784
        %v4850 = vld [vmem:[#allocation6] sm:$0xf]
        %v4851 = vld [vmem:[#allocation6 + $0x4] sm:$0xf]
        %v4852 = vld [vmem:[#allocation6 + $0x8] sm:$0xf]
        %v4853 = vld [vmem:[#allocation6 + $0xc] sm:$0xf]
        %v4854 = vld [vmem:[#allocation6 + $0x10] sm:$0xf]
        %v4855 = vld [vmem:[#allocation6 + $0x14] sm:$0xf]
        %v4856 = vld [vmem:[#allocation6 + $0x18] sm:$0xf]
        %v4857 = vld [vmem:[#allocation6 + $0x1c] sm:$0xf]
        %v4858 = vld [vmem:[#allocation6 + $0x20] sm:$0xf]
        %v4859 = vld [vmem:[#allocation6 + $0x24] sm:$0xf]
        %v4860 = vld [vmem:[#allocation6 + $0x28] sm:$0xf]
        %v4861 = vld [vmem:[#allocation6 + $0x2c] sm:$0xf]
        %v4862 = vld [vmem:[#allocation6 + $0x30] sm:$0xf]
        %v4863 = vld [vmem:[#allocation6 + $0x34] sm:$0xf]
        %v4864 = vld [vmem:[#allocation6 + $0x38] sm:$0xf]
        %v4865 = vld [vmem:[#allocation6 + $0x3c] sm:$0xf]
        %v4866 = vld [vmem:[#allocation6 + $0x40] sm:$0xf]
        %v4867 = vld [vmem:[#allocation6 + $0x44] sm:$0xf]
        %v4868 = vld [vmem:[#allocation6 + $0x48] sm:$0xf]
        %v4869 = vld [vmem:[#allocation6 + $0x4c] sm:$0xf]
        %v4870 = vld [vmem:[#allocation6 + $0x50] sm:$0xf]
        %v4871 = vld [vmem:[#allocation6 + $0x54] sm:$0xf]
        %v4872 = vld [vmem:[#allocation6 + $0x58] sm:$0xf]
        %v4873 = vld [vmem:[#allocation6 + $0x5c] sm:$0xf]
        %v4874 = vld [vmem:[#allocation6 + $0x60] sm:$0xf]
        %v4875 = vld [vmem:[#allocation6 + $0x64] sm:$0xf]
        %v4876 = vld [vmem:[#allocation6 + $0x68] sm:$0xf]
        %v4877 = vld [vmem:[#allocation6 + $0x6c] sm:$0xf]
        %v4878 = vld [vmem:[#allocation6 + $0x70] sm:$0xf]
        %v4879 = vld [vmem:[#allocation6 + $0x74] sm:$0xf]
        %v4880 = vld [vmem:[#allocation6 + $0x78] sm:$0xf]
        %v4881 = vld [vmem:[#allocation6 + $0x7c] sm:$0xf]
        %v4882 = vld [vmem:[#allocation6 + $0x80] sm:$0xf]
        %v4883 = vld [vmem:[#allocation6 + $0x84] sm:$0xf]
        %v4884 = vld [vmem:[#allocation6 + $0x88] sm:$0xf]
        %v4885 = vld [vmem:[#allocation6 + $0x8c] sm:$0xf]
        %v4886 = vld [vmem:[#allocation6 + $0x90] sm:$0xf]
        %v4887 = vld [vmem:[#allocation6 + $0x94] sm:$0xf]
        %v4888 = vld [vmem:[#allocation6 + $0x98] sm:$0xf]
        %v4889 = vld [vmem:[#allocation6 + $0x9c] sm:$0xf]
        %v4890 = vld [vmem:[#allocation6 + $0xa0] sm:$0xf]
        %v4891 = vld [vmem:[#allocation6 + $0xa4] sm:$0xf]
        %v4892 = vld [vmem:[#allocation6 + $0xa8] sm:$0xf]
        %v4893 = vld [vmem:[#allocation6 + $0xac] sm:$0xf]
        %v4894 = vld [vmem:[#allocation6 + $0xb0] sm:$0xf]
        %v4895 = vld [vmem:[#allocation6 + $0xb4] sm:$0xf]
        %v4896 = vld [vmem:[#allocation6 + $0xb8] sm:$0xf]
        %v4897 = vld [vmem:[#allocation6 + $0xbc] sm:$0xf]
        %v4898 = vld [vmem:[#allocation6 + $0xc0] sm:$0xf]
        %v4899 = vld [vmem:[#allocation6 + $0xc4] sm:$0xf]
        %v4900 = vld [vmem:[#allocation6 + $0xc8] sm:$0xf]
        %v4901 = vld [vmem:[#allocation6 + $0xcc] sm:$0xf]
        %v4902 = vld [vmem:[#allocation6 + $0xd0] sm:$0xf]
        %v4903 = vld [vmem:[#allocation6 + $0xd4] sm:$0xf]
        %v4904 = vld [vmem:[#allocation6 + $0xd8] sm:$0xf]
        %v4905 = vld [vmem:[#allocation6 + $0xdc] sm:$0xf]
        %v4906 = vld [vmem:[#allocation6 + $0xe0] sm:$0xf]
        %v4907 = vld [vmem:[#allocation6 + $0xe4] sm:$0xf]
        %v4908 = vld [vmem:[#allocation6 + $0xe8] sm:$0xf]
        %v4909 = vld [vmem:[#allocation6 + $0xec] sm:$0xf]
        %v4910 = vld [vmem:[#allocation6 + $0xf0] sm:$0xf]
        %v4911 = vld [vmem:[#allocation6 + $0xf4] sm:$0xf]
        %v4912 = vld [vmem:[#allocation6 + $0xf8] sm:$0xf]
        %v4913 = vld [vmem:[#allocation6 + $0xfc] sm:$0xf]
        %v4914 = vld [vmem:[#allocation6 + $0x100] sm:$0xf]
        %v4915 = vld [vmem:[#allocation6 + $0x104] sm:$0xf]
        %v4916 = vld [vmem:[#allocation6 + $0x108] sm:$0xf]
        %v4917 = vld [vmem:[#allocation6 + $0x10c] sm:$0xf]
        %v4918 = vld [vmem:[#allocation6 + $0x110] sm:$0xf]
        %v4919 = vld [vmem:[#allocation6 + $0x114] sm:$0xf]
        %v4920 = vld [vmem:[#allocation6 + $0x118] sm:$0xf]
        %v4921 = vld [vmem:[#allocation6 + $0x11c] sm:$0xf]
        %v4922 = vld [vmem:[#allocation6 + $0x120] sm:$0xf]
        %v4923 = vld [vmem:[#allocation6 + $0x124] sm:$0xf]
        %v4924 = vld [vmem:[#allocation6 + $0x128] sm:$0xf]
        %v4925 = vld [vmem:[#allocation6 + $0x12c] sm:$0xf]
        %v4926 = vld [vmem:[#allocation6 + $0x130] sm:$0xf]
        %v4927 = vld [vmem:[#allocation6 + $0x134] sm:$0xf]
        %v4928 = vld [vmem:[#allocation6 + $0x138] sm:$0xf]
        %v4929 = vld [vmem:[#allocation6 + $0x13c] sm:$0xf]
        %v4930 = vld [vmem:[#allocation6 + $0x140] sm:$0xf]
        %v4931 = vld [vmem:[#allocation6 + $0x144] sm:$0xf]
        %v4932 = vld [vmem:[#allocation6 + $0x148] sm:$0xf]
        %v4933 = vld [vmem:[#allocation6 + $0x14c] sm:$0xf]
        %v4934 = vld [vmem:[#allocation6 + $0x150] sm:$0xf]
        %v4935 = vld [vmem:[#allocation6 + $0x154] sm:$0xf]
        %v4936 = vld [vmem:[#allocation6 + $0x158] sm:$0xf]
        %v4937 = vld [vmem:[#allocation6 + $0x15c] sm:$0xf]
        %v4938 = vld [vmem:[#allocation6 + $0x160] sm:$0xf]
        %v4939 = vld [vmem:[#allocation6 + $0x164] sm:$0xf]
        %v4940 = vld [vmem:[#allocation6 + $0x168] sm:$0xf]
        %v4941 = vld [vmem:[#allocation6 + $0x16c] sm:$0xf]
        %v4942 = vld [vmem:[#allocation6 + $0x170] sm:$0xf]
        %v4943 = vld [vmem:[#allocation6 + $0x174] sm:$0xf]
        %v4944 = vld [vmem:[#allocation6 + $0x178] sm:$0xf]
        %v4945 = vld [vmem:[#allocation6 + $0x17c] sm:$0xf]
        %v4946 = vld [vmem:[#allocation6 + $0x180] sm:$0xf]
        %v4947 = vld [vmem:[#allocation6 + $0x184] sm:$0xf]
        %v4948 = vld [vmem:[#allocation6 + $0x188] sm:$0xf]
        %v4949 = vld [vmem:[#allocation6 + $0x18c] sm:$0xf]
        %v4950 = vld [vmem:[#allocation6 + $0x190] sm:$0xf]
        %v4951 = vld [vmem:[#allocation6 + $0x194] sm:$0xf]
        %v4952 = vld [vmem:[#allocation6 + $0x198] sm:$0xf]
        %v4953 = vld [vmem:[#allocation6 + $0x19c] sm:$0xf]
        %v4954 = vld [vmem:[#allocation6 + $0x1a0] sm:$0xf]
        %v4955 = vld [vmem:[#allocation6 + $0x1a4] sm:$0xf]
        %v4956 = vld [vmem:[#allocation6 + $0x1a8] sm:$0xf]
        %v4957 = vld [vmem:[#allocation6 + $0x1ac] sm:$0xf]
        %v4958 = vld [vmem:[#allocation6 + $0x1b0] sm:$0xf]
        %v4959 = vld [vmem:[#allocation6 + $0x1b4] sm:$0xf]
        %v4960 = vld [vmem:[#allocation6 + $0x1b8] sm:$0xf]
        %v4961 = vld [vmem:[#allocation6 + $0x1bc] sm:$0xf]
        %v4962 = vld [vmem:[#allocation6 + $0x1c0] sm:$0xf]
        %v4963 = vld [vmem:[#allocation6 + $0x1c4] sm:$0xf]
        %v4964 = vld [vmem:[#allocation6 + $0x1c8] sm:$0xf]
        %v4965 = vld [vmem:[#allocation6 + $0x1cc] sm:$0xf]
        %v4966 = vld [vmem:[#allocation6 + $0x1d0] sm:$0xf]
        %v4967 = vld [vmem:[#allocation6 + $0x1d4] sm:$0xf]
        %v4968 = vld [vmem:[#allocation6 + $0x1d8] sm:$0xf]
        %v4969 = vld [vmem:[#allocation6 + $0x1dc] sm:$0xf]
        %v4970 = vld [vmem:[#allocation6 + $0x1e0] sm:$0xf]
        %v4971 = vld [vmem:[#allocation6 + $0x1e4] sm:$0xf]
        %v4972 = vld [vmem:[#allocation6 + $0x1e8] sm:$0xf]
        %v4973 = vld [vmem:[#allocation6 + $0x1ec] sm:$0xf]
        %v4974 = vld [vmem:[#allocation6 + $0x1f0] sm:$0xf]
        %v4975 = vld [vmem:[#allocation6 + $0x1f4] sm:$0xf]
        %v4976 = vld [vmem:[#allocation6 + $0x1f8] sm:$0xf]
        %v4977 = vld [vmem:[#allocation6 + $0x1fc] sm:$0xf]
        %v4978 = vld [vmem:[#allocation6 + $0x200] sm:$0xf]
        %v4979 = vld [vmem:[#allocation6 + $0x204] sm:$0xf]
        %v4980 = vld [vmem:[#allocation6 + $0x208] sm:$0xf]
        %v4981 = vld [vmem:[#allocation6 + $0x20c] sm:$0xf]
        %v4982 = vld [vmem:[#allocation6 + $0x210] sm:$0xf]
        %v4983 = vld [vmem:[#allocation6 + $0x214] sm:$0xf]
        %v4984 = vld [vmem:[#allocation6 + $0x218] sm:$0xf]
        %v4985 = vld [vmem:[#allocation6 + $0x21c] sm:$0xf]
        %v4986 = vld [vmem:[#allocation6 + $0x220] sm:$0xf]
        %v4987 = vld [vmem:[#allocation6 + $0x224] sm:$0xf]
        %v4988 = vld [vmem:[#allocation6 + $0x228] sm:$0xf]
        %v4989 = vld [vmem:[#allocation6 + $0x22c] sm:$0xf]
        %v4990 = vld [vmem:[#allocation6 + $0x230] sm:$0xf]
        %v4991 = vld [vmem:[#allocation6 + $0x234] sm:$0xf]
        %v4992 = vld [vmem:[#allocation6 + $0x238] sm:$0xf]
        %v4993 = vld [vmem:[#allocation6 + $0x23c] sm:$0xf]
        %v5138 = vunpack.c.l.b16 %v4850
        %v5139 = vunpack.c.l.b16 %v4851
        %v5140 = vunpack.c.l.b16 %v4852
        %v5141 = vunpack.c.l.b16 %v4853
        %v5142 = vunpack.c.l.b16 %v4854
        %v5143 = vunpack.c.l.b16 %v4855
        %v5144 = vunpack.c.l.b16 %v4856
        %v5145 = vunpack.c.l.b16 %v4857
        %v5146 = vunpack.c.l.b16 %v4858
        %v5147 = vunpack.c.l.b16 %v4859
        %v5148 = vunpack.c.l.b16 %v4860
        %v5149 = vunpack.c.l.b16 %v4861
        %v5150 = vunpack.c.l.b16 %v4862
        %v5151 = vunpack.c.l.b16 %v4863
        %v5152 = vunpack.c.l.b16 %v4864
        %v5153 = vunpack.c.l.b16 %v4865
        %v5154 = vunpack.c.l.b16 %v4866
        %v5155 = vunpack.c.l.b16 %v4867
        %v5156 = vunpack.c.l.b16 %v4868
        %v5157 = vunpack.c.l.b16 %v4869
        %v5158 = vunpack.c.l.b16 %v4870
        %v5159 = vunpack.c.l.b16 %v4871
        %v5160 = vunpack.c.l.b16 %v4872
        %v5161 = vunpack.c.l.b16 %v4873
        %v5162 = vunpack.c.l.b16 %v4874
        %v5163 = vunpack.c.l.b16 %v4875
        %v5164 = vunpack.c.l.b16 %v4876
        %v5165 = vunpack.c.l.b16 %v4877
        %v5166 = vunpack.c.l.b16 %v4878
        %v5167 = vunpack.c.l.b16 %v4879
        %v5168 = vunpack.c.l.b16 %v4880
        %v5169 = vunpack.c.l.b16 %v4881
        %v5170 = vunpack.c.l.b16 %v4882
        %v5171 = vunpack.c.l.b16 %v4883
        %v5172 = vunpack.c.l.b16 %v4884
        %v5173 = vunpack.c.l.b16 %v4885
        %v5174 = vunpack.c.l.b16 %v4886
        %v5175 = vunpack.c.l.b16 %v4887
        %v5176 = vunpack.c.l.b16 %v4888
        %v5177 = vunpack.c.l.b16 %v4889
        %v5178 = vunpack.c.l.b16 %v4890
        %v5179 = vunpack.c.l.b16 %v4891
        %v5180 = vunpack.c.l.b16 %v4892
        %v5181 = vunpack.c.l.b16 %v4893
        %v5182 = vunpack.c.l.b16 %v4894
        %v5183 = vunpack.c.l.b16 %v4895
        %v5184 = vunpack.c.l.b16 %v4896
        %v5185 = vunpack.c.l.b16 %v4897
        %v5186 = vunpack.c.l.b16 %v4898
        %v5187 = vunpack.c.l.b16 %v4899
        %v5188 = vunpack.c.l.b16 %v4900
        %v5189 = vunpack.c.l.b16 %v4901
        %v5190 = vunpack.c.l.b16 %v4902
        %v5191 = vunpack.c.l.b16 %v4903
        %v5192 = vunpack.c.l.b16 %v4904
        %v5193 = vunpack.c.l.b16 %v4905
        %v5194 = vunpack.c.l.b16 %v4906
        %v5195 = vunpack.c.l.b16 %v4907
        %v5196 = vunpack.c.l.b16 %v4908
        %v5197 = vunpack.c.l.b16 %v4909
        %v5198 = vunpack.c.l.b16 %v4910
        %v5199 = vunpack.c.l.b16 %v4911
        %v5200 = vunpack.c.l.b16 %v4912
        %v5201 = vunpack.c.l.b16 %v4913
        %v5202 = vunpack.c.l.b16 %v4914
        %v5203 = vunpack.c.l.b16 %v4915
        %v5204 = vunpack.c.l.b16 %v4916
        %v5205 = vunpack.c.l.b16 %v4917
        %v5206 = vunpack.c.l.b16 %v4918
        %v5207 = vunpack.c.l.b16 %v4919
        %v5208 = vunpack.c.l.b16 %v4920
        %v5209 = vunpack.c.l.b16 %v4921
        %v5210 = vunpack.c.l.b16 %v4922
        %v5211 = vunpack.c.l.b16 %v4923
        %v5212 = vunpack.c.l.b16 %v4924
        %v5213 = vunpack.c.l.b16 %v4925
        %v5214 = vunpack.c.l.b16 %v4926
        %v5215 = vunpack.c.l.b16 %v4927
        %v5216 = vunpack.c.l.b16 %v4928
        %v5217 = vunpack.c.l.b16 %v4929
        %v5218 = vunpack.c.l.b16 %v4930
        %v5219 = vunpack.c.l.b16 %v4931
        %v5220 = vunpack.c.l.b16 %v4932
        %v5221 = vunpack.c.l.b16 %v4933
        %v5222 = vunpack.c.l.b16 %v4934
        %v5223 = vunpack.c.l.b16 %v4935
        %v5224 = vunpack.c.l.b16 %v4936
        %v5225 = vunpack.c.l.b16 %v4937
        %v5226 = vunpack.c.l.b16 %v4938
        %v5227 = vunpack.c.l.b16 %v4939
        %v5228 = vunpack.c.l.b16 %v4940
        %v5229 = vunpack.c.l.b16 %v4941
        %v5230 = vunpack.c.l.b16 %v4942
        %v5231 = vunpack.c.l.b16 %v4943
        %v5232 = vunpack.c.l.b16 %v4944
        %v5233 = vunpack.c.l.b16 %v4945
        %v5234 = vunpack.c.l.b16 %v4946
        %v5235 = vunpack.c.l.b16 %v4947
        %v5236 = vunpack.c.l.b16 %v4948
        %v5237 = vunpack.c.l.b16 %v4949
        %v5238 = vunpack.c.l.b16 %v4950
        %v5239 = vunpack.c.l.b16 %v4951
        %v5240 = vunpack.c.l.b16 %v4952
        %v5241 = vunpack.c.l.b16 %v4953
        %v5242 = vunpack.c.l.b16 %v4954
        %v5243 = vunpack.c.l.b16 %v4955
        %v5244 = vunpack.c.l.b16 %v4956
        %v5245 = vunpack.c.l.b16 %v4957
        %v5246 = vunpack.c.l.b16 %v4958
        %v5247 = vunpack.c.l.b16 %v4959
        %v5248 = vunpack.c.l.b16 %v4960
        %v5249 = vunpack.c.l.b16 %v4961
        %v5250 = vunpack.c.l.b16 %v4962
        %v5251 = vunpack.c.l.b16 %v4963
        %v5252 = vunpack.c.l.b16 %v4964
        %v5253 = vunpack.c.l.b16 %v4965
        %v5254 = vunpack.c.l.b16 %v4966
        %v5255 = vunpack.c.l.b16 %v4967
        %v5256 = vunpack.c.l.b16 %v4968
        %v5257 = vunpack.c.l.b16 %v4969
        %v5258 = vunpack.c.l.b16 %v4970
        %v5259 = vunpack.c.l.b16 %v4971
        %v5260 = vunpack.c.l.b16 %v4972
        %v5261 = vunpack.c.l.b16 %v4973
        %v5262 = vunpack.c.l.b16 %v4974
        %v5263 = vunpack.c.l.b16 %v4975
        %v5264 = vunpack.c.l.b16 %v4976
        %v5265 = vunpack.c.l.b16 %v4977
        %v5266 = vunpack.c.l.b16 %v4978
        %v5267 = vunpack.c.l.b16 %v4979
        %v5268 = vunpack.c.l.b16 %v4980
        %v5269 = vunpack.c.l.b16 %v4981
        %v5270 = vunpack.c.l.b16 %v4982
        %v5271 = vunpack.c.l.b16 %v4983
        %v5272 = vunpack.c.l.b16 %v4984
        %v5273 = vunpack.c.l.b16 %v4985
        %v5274 = vunpack.c.l.b16 %v4986
        %v5275 = vunpack.c.l.b16 %v4987
        %v5276 = vunpack.c.l.b16 %v4988
        %v5277 = vunpack.c.l.b16 %v4989
        %v5278 = vunpack.c.l.b16 %v4990
        %v5279 = vunpack.c.l.b16 %v4991
        %v5280 = vunpack.c.l.b16 %v4992
        %v5281 = vunpack.c.l.b16 %v4993
        %v5282 = vpack.c.b16 %v5139, %v5138
        %v5283 = vpack.c.b16 %v5141, %v5140
        %v5284 = vpack.c.b16 %v5143, %v5142
        %v5285 = vpack.c.b16 %v5145, %v5144
        %v5286 = vpack.c.b16 %v5147, %v5146
        %v5287 = vpack.c.b16 %v5149, %v5148
        %v5288 = vpack.c.b16 %v5151, %v5150
        %v5289 = vpack.c.b16 %v5153, %v5152
        %v5290 = vpack.c.b16 %v5155, %v5154
        %v5291 = vpack.c.b16 %v5157, %v5156
        %v5292 = vpack.c.b16 %v5159, %v5158
        %v5293 = vpack.c.b16 %v5161, %v5160
        %v5294 = vpack.c.b16 %v5163, %v5162
        %v5295 = vpack.c.b16 %v5165, %v5164
        %v5296 = vpack.c.b16 %v5167, %v5166
        %v5297 = vpack.c.b16 %v5169, %v5168
        %v5298 = vpack.c.b16 %v5171, %v5170
        %v5299 = vpack.c.b16 %v5173, %v5172
        %v5300 = vpack.c.b16 %v5175, %v5174
        %v5301 = vpack.c.b16 %v5177, %v5176
        %v5302 = vpack.c.b16 %v5179, %v5178
        %v5303 = vpack.c.b16 %v5181, %v5180
        %v5304 = vpack.c.b16 %v5183, %v5182
        %v5305 = vpack.c.b16 %v5185, %v5184
        %v5306 = vpack.c.b16 %v5187, %v5186
        %v5307 = vpack.c.b16 %v5189, %v5188
        %v5308 = vpack.c.b16 %v5191, %v5190
        %v5309 = vpack.c.b16 %v5193, %v5192
        %v5310 = vpack.c.b16 %v5195, %v5194
        %v5311 = vpack.c.b16 %v5197, %v5196
        %v5312 = vpack.c.b16 %v5199, %v5198
        %v5313 = vpack.c.b16 %v5201, %v5200
        %v5314 = vpack.c.b16 %v5203, %v5202
        %v5315 = vpack.c.b16 %v5205, %v5204
        %v5316 = vpack.c.b16 %v5207, %v5206
        %v5317 = vpack.c.b16 %v5209, %v5208
        %v5318 = vpack.c.b16 %v5211, %v5210
        %v5319 = vpack.c.b16 %v5213, %v5212
        %v5320 = vpack.c.b16 %v5215, %v5214
        %v5321 = vpack.c.b16 %v5217, %v5216
        %v5322 = vpack.c.b16 %v5219, %v5218
        %v5323 = vpack.c.b16 %v5221, %v5220
        %v5324 = vpack.c.b16 %v5223, %v5222
        %v5325 = vpack.c.b16 %v5225, %v5224
        %v5326 = vpack.c.b16 %v5227, %v5226
        %v5327 = vpack.c.b16 %v5229, %v5228
        %v5328 = vpack.c.b16 %v5231, %v5230
        %v5329 = vpack.c.b16 %v5233, %v5232
        %v5330 = vpack.c.b16 %v5235, %v5234
        %v5331 = vpack.c.b16 %v5237, %v5236
        %v5332 = vpack.c.b16 %v5239, %v5238
        %v5333 = vpack.c.b16 %v5241, %v5240
        %v5334 = vpack.c.b16 %v5243, %v5242
        %v5335 = vpack.c.b16 %v5245, %v5244
        %v5336 = vpack.c.b16 %v5247, %v5246
        %v5337 = vpack.c.b16 %v5249, %v5248
        %v5338 = vpack.c.b16 %v5251, %v5250
        %v5339 = vpack.c.b16 %v5253, %v5252
        %v5340 = vpack.c.b16 %v5255, %v5254
        %v5341 = vpack.c.b16 %v5257, %v5256
        %v5342 = vpack.c.b16 %v5259, %v5258
        %v5343 = vpack.c.b16 %v5261, %v5260
        %v5344 = vpack.c.b16 %v5263, %v5262
        %v5345 = vpack.c.b16 %v5265, %v5264
        %v5346 = vpack.c.b16 %v5267, %v5266
        %v5347 = vpack.c.b16 %v5269, %v5268
        %v5348 = vpack.c.b16 %v5271, %v5270
        %v5349 = vpack.c.b16 %v5273, %v5272
        %v5350 = vpack.c.b16 %v5275, %v5274
        %v5351 = vpack.c.b16 %v5277, %v5276
        %v5352 = vpack.c.b16 %v5279, %v5278
        %v5353 = vpack.c.b16 %v5281, %v5280
        %5426 = vmatprep.subr.bf16.mxu0 0
        %5427 = vmatpush1.bf16.msra.mxu0 %v5282
        %5428 = vmatprep.subr.bf16.mxu0 0
        %5429 = vmatpush1.bf16.msra.mxu0 %v5283
        %5430 = vmatprep.subr.bf16.mxu0 0
        %5431 = vmatpush1.bf16.msra.mxu0 %v5284
        %5432 = vmatprep.subr.bf16.mxu0 0
        %5433 = vmatpush1.bf16.msra.mxu0 %v5285
        %5434 = vmatprep.subr.bf16.mxu0 0
        %5435 = vmatpush1.bf16.msra.mxu0 %v5286
        %5436 = vmatprep.subr.bf16.mxu0 0
        %5437 = vmatpush1.bf16.msra.mxu0 %v5287
        %5438 = vmatprep.subr.bf16.mxu0 0
        %5439 = vmatpush1.bf16.msra.mxu0 %v5288
        %5440 = vmatprep.subr.bf16.mxu0 0
        %5441 = vmatpush1.bf16.msra.mxu0 %v5289
        %5442 = vmatprep.subr.bf16.mxu0 0
        %5443 = vmatpush1.bf16.msra.mxu0 %v5290
        %5444 = vmatprep.subr.bf16.mxu0 0
        %5445 = vmatpush1.bf16.msra.mxu0 %v5291
        %5446 = vmatprep.subr.bf16.mxu0 0
        %5447 = vmatpush1.bf16.msra.mxu0 %v5292
        %5448 = vmatprep.subr.bf16.mxu0 0
        %5449 = vmatpush1.bf16.msra.mxu0 %v5293
        %5450 = vmatprep.subr.bf16.mxu0 0
        %5451 = vmatpush1.bf16.msra.mxu0 %v5294
        %5452 = vmatprep.subr.bf16.mxu0 0
        %5453 = vmatpush1.bf16.msra.mxu0 %v5295
        %5454 = vmatprep.subr.bf16.mxu0 0
        %5455 = vmatpush1.bf16.msra.mxu0 %v5296
        %5456 = vmatprep.subr.bf16.mxu0 0
        %5457 = vmatpush1.bf16.msra.mxu0 %v5297
        %5458 = vmatprep.mubr.bf16.mxu0 %v3858
        %5459 = vmatmul.mubr.bf16.gmra.mrb[0].mxu0 %v3730
        %v5460 = vpop.f32.mrb[0].mxu0
        %v5461 = vadd.f32 0.0, %v5460
        %v5462 = vpop.f32.mrb[0].mxu0
        %v5463 = vpop.f32.mrb[0].mxu0
        %v5464 = vadd.f32 0.0, %v5463
        %v5465 = vpop.f32.mrb[0].mxu0
        %5466 = vmatprep.mubr.bf16.mxu0 %v3859
        %5467 = vmatmul.mubr.bf16.gmra.mrb[0].mxu0 %v3731
        %v5468 = vpop.f32.mrb[0].mxu0
        %v5469 = vadd.f32 0.0, %v5468
        %v5470 = vpop.f32.mrb[0].mxu0
        %v5471 = vpop.f32.mrb[0].mxu0
        %v5472 = vadd.f32 0.0, %v5471
        %v5473 = vpop.f32.mrb[0].mxu0
        %5474 = vmatprep.mubr.bf16.mxu0 %v3860
        %5475 = vmatmul.mubr.bf16.gmra.mrb[0].mxu0 %v3732
        %v5476 = vpop.f32.mrb[0].mxu0
        %v5477 = vadd.f32 0.0, %v5476
        %v5478 = vpop.f32.mrb[0].mxu0
        %v5479 = vpop.f32.mrb[0].mxu0
        %v5480 = vadd.f32 0.0, %v5479
        %v5481 = vpop.f32.mrb[0].mxu0
        %5482 = vmatprep.mubr.bf16.mxu0 %v3861
        %5483 = vmatmul.mubr.bf16.gmra.mrb[0].mxu0 %v3733
        %v5484 = vpop.f32.mrb[0].mxu0
        %v5485 = vadd.f32 0.0, %v5484
        %v5486 = vpop.f32.mrb[0].mxu0
        %v5487 = vpop.f32.mrb[0].mxu0
        %v5488 = vadd.f32 0.0, %v5487
        %v5489 = vpop.f32.mrb[0].mxu0
        %5490 = vmatprep.mubr.bf16.mxu0 %v3862
        %5491 = vmatmul.mubr.bf16.gmra.mrb[0].mxu0 %v3734
        %v5492 = vpop.f32.mrb[0].mxu0
        %v5493 = vadd.f32 0.0, %v5492
        %v5494 = vpop.f32.mrb[0].mxu0
        %v5495 = vpop.f32.mrb[0].mxu0
        %v5496 = vadd.f32 0.0, %v5495
        %v5497 = vpop.f32.mrb[0].mxu0
        %5498 = vmatprep.mubr.bf16.mxu0 %v3863
        %5499 = vmatmul.mubr.bf16.gmra.mrb[0].mxu0 %v3735
        %v5500 = vpop.f32.mrb[0].mxu0
        %v5501 = vadd.f32 0.0, %v5500
        %v5502 = vpop.f32.mrb[0].mxu0
        %v5503 = vpop.f32.mrb[0].mxu0
        %v5504 = vadd.f32 0.0, %v5503
        %v5505 = vpop.f32.mrb[0].mxu0
        %5506 = vmatprep.mubr.bf16.mxu0 %v3864
        %5507 = vmatmul.mubr.bf16.gmra.mrb[0].mxu0 %v3736
        %v5508 = vpop.f32.mrb[0].mxu0
        %v5509 = vadd.f32 0.0, %v5508
        %v5510 = vpop.f32.mrb[0].mxu0
        %v5511 = vpop.f32.mrb[0].mxu0
        %v5512 = vadd.f32 0.0, %v5511
        %v5513 = vpop.f32.mrb[0].mxu0
        %5514 = vmatprep.mubr.bf16.mxu0 %v3865
        %5515 = vmatmul.mubr.bf16.gmra.mrb[0].mxu0 %v3737
        %v5516 = vpop.f32.mrb[0].mxu0
        %v5517 = vadd.f32 0.0, %v5516
        %v5518 = vpop.f32.mrb[0].mxu0
        %v5519 = vpop.f32.mrb[0].mxu0
        %v5520 = vadd.f32 0.0, %v5519
        %v5521 = vpop.f32.mrb[0].mxu0
        %5522 = vmatprep.mubr.bf16.mxu0 %v3866
        %5523 = vmatmul.mubr.bf16.gmra.mrb[0].mxu0 %v3738
        %v5524 = vpop.f32.mrb[0].mxu0
        %v5525 = vadd.f32 0.0, %v5524
        %v5526 = vpop.f32.mrb[0].mxu0
        %v5527 = vpop.f32.mrb[0].mxu0
        %v5528 = vadd.f32 0.0, %v5527
        %v5529 = vpop.f32.mrb[0].mxu0
        %5530 = vmatprep.mubr.bf16.mxu0 %v3867
        %5531 = vmatmul.mubr.bf16.gmra.mrb[0].mxu0 %v3739
        %v5532 = vpop.f32.mrb[0].mxu0
        %v5533 = vadd.f32 0.0, %v5532
        %v5534 = vpop.f32.mrb[0].mxu0
        %v5535 = vpop.f32.mrb[0].mxu0
        %v5536 = vadd.f32 0.0, %v5535
        %v5537 = vpop.f32.mrb[0].mxu0
        %5538 = vmatprep.mubr.bf16.mxu0 %v3868
        %5539 = vmatmul.mubr.bf16.gmra.mrb[0].mxu0 %v3740
        %v5540 = vpop.f32.mrb[0].mxu0
        %v5541 = vadd.f32 0.0, %v5540
        %v5542 = vpop.f32.mrb[0].mxu0
        %v5543 = vpop.f32.mrb[0].mxu0
        %v5544 = vadd.f32 0.0, %v5543
        %v5545 = vpop.f32.mrb[0].mxu0
        %5546 = vmatprep.mubr.bf16.mxu0 %v3869
        %5547 = vmatmul.mubr.bf16.gmra.mrb[0].mxu0 %v3741
        %v5548 = vpop.f32.mrb[0].mxu0
        %v5549 = vadd.f32 0.0, %v5548
        %v5550 = vpop.f32.mrb[0].mxu0
        %v5551 = vpop.f32.mrb[0].mxu0
        %v5552 = vadd.f32 0.0, %v5551
        %v5553 = vpop.f32.mrb[0].mxu0
        %5554 = vmatprep.mubr.bf16.mxu0 %v3870
        %5555 = vmatmul.mubr.bf16.gmra.mrb[0].mxu0 %v3742
        %v5556 = vpop.f32.mrb[0].mxu0
        %v5557 = vadd.f32 0.0, %v5556
        %v5558 = vpop.f32.mrb[0].mxu0
        %v5559 = vpop.f32.mrb[0].mxu0
        %v5560 = vadd.f32 0.0, %v5559
        %v5561 = vpop.f32.mrb[0].mxu0
        %5562 = vmatprep.mubr.bf16.mxu0 %v3871
        %5563 = vmatmul.mubr.bf16.gmra.mrb[0].mxu0 %v3743
        %v5564 = vpop.f32.mrb[0].mxu0
        %v5565 = vadd.f32 0.0, %v5564
        %v5566 = vpop.f32.mrb[0].mxu0
        %v5567 = vpop.f32.mrb[0].mxu0
        %v5568 = vadd.f32 0.0, %v5567
        %v5569 = vpop.f32.mrb[0].mxu0
        %5570 = vmatprep.mubr.bf16.mxu0 %v3872
        %5571 = vmatmul.mubr.bf16.gmra.mrb[0].mxu0 %v3744
        %v5572 = vpop.f32.mrb[0].mxu0
        %v5573 = vadd.f32 0.0, %v5572
        %v5574 = vpop.f32.mrb[0].mxu0
        %v5575 = vpop.f32.mrb[0].mxu0
        %v5576 = vadd.f32 0.0, %v5575
        %v5577 = vpop.f32.mrb[0].mxu0
        %5578 = vmatprep.mubr.bf16.mxu0 %v3873
        %5579 = vmatmul.mubr.bf16.gmra.mrb[0].mxu0 %v3745
        %v5580 = vpop.f32.mrb[0].mxu0
        %v5581 = vadd.f32 0.0, %v5580
        %v5582 = vpop.f32.mrb[0].mxu0
        %v5583 = vpop.f32.mrb[0].mxu0
        %v5584 = vadd.f32 0.0, %v5583
        %v5585 = vpop.f32.mrb[0].mxu0
        %5586 = vmatprep.mubr.bf16.mxu0 %v3874
        %5587 = vmatmul.mubr.bf16.gmra.mrb[0].mxu0 %v3746
        %v5588 = vpop.f32.mrb[0].mxu0
        %v5589 = vadd.f32 0.0, %v5588
        %v5590 = vpop.f32.mrb[0].mxu0
        %v5591 = vpop.f32.mrb[0].mxu0
        %v5592 = vadd.f32 0.0, %v5591
        %v5593 = vpop.f32.mrb[0].mxu0
        %5594 = vmatprep.mubr.bf16.mxu0 %v3875
        %5595 = vmatmul.mubr.bf16.gmra.mrb[0].mxu0 %v3747
        %v5596 = vpop.f32.mrb[0].mxu0
        %v5597 = vadd.f32 0.0, %v5596
        %v5598 = vpop.f32.mrb[0].mxu0
        %v5599 = vpop.f32.mrb[0].mxu0
        %v5600 = vadd.f32 0.0, %v5599
        %v5601 = vpop.f32.mrb[0].mxu0
        %5602 = vmatprep.mubr.bf16.mxu0 %v3876
        %5603 = vmatmul.mubr.bf16.gmra.mrb[0].mxu0 %v3748
        %v5604 = vpop.f32.mrb[0].mxu0
        %v5605 = vadd.f32 0.0, %v5604
        %v5606 = vpop.f32.mrb[0].mxu0
        %v5607 = vpop.f32.mrb[0].mxu0
        %v5608 = vadd.f32 0.0, %v5607
        %v5609 = vpop.f32.mrb[0].mxu0
        %5610 = vmatprep.mubr.bf16.mxu0 %v3877
        %5611 = vmatmul.mubr.bf16.gmra.mrb[0].mxu0 %v3749
        %v5612 = vpop.f32.mrb[0].mxu0
        %v5613 = vadd.f32 0.0, %v5612
        %v5614 = vpop.f32.mrb[0].mxu0
        %v5615 = vpop.f32.mrb[0].mxu0
        %v5616 = vadd.f32 0.0, %v5615
        %v5617 = vpop.f32.mrb[0].mxu0
        %5618 = vmatprep.mubr.bf16.mxu0 %v3878
        %5619 = vmatmul.mubr.bf16.gmra.mrb[0].mxu0 %v3750
        %v5620 = vpop.f32.mrb[0].mxu0
        %v5621 = vadd.f32 0.0, %v5620
        %v5622 = vpop.f32.mrb[0].mxu0
        %v5623 = vpop.f32.mrb[0].mxu0
        %v5624 = vadd.f32 0.0, %v5623
        %v5625 = vpop.f32.mrb[0].mxu0
        %5626 = vmatprep.mubr.bf16.mxu0 %v3879
        %5627 = vmatmul.mubr.bf16.gmra.mrb[0].mxu0 %v3751
        %v5628 = vpop.f32.mrb[0].mxu0
        %v5629 = vadd.f32 0.0, %v5628
        %v5630 = vpop.f32.mrb[0].mxu0
        %v5631 = vpop.f32.mrb[0].mxu0
        %v5632 = vadd.f32 0.0, %v5631
        %v5633 = vpop.f32.mrb[0].mxu0
        %5634 = vmatprep.mubr.bf16.mxu0 %v3880
        %5635 = vmatmul.mubr.bf16.gmra.mrb[0].mxu0 %v3752
        %v5636 = vpop.f32.mrb[0].mxu0
        %v5637 = vadd.f32 0.0, %v5636
        %v5638 = vpop.f32.mrb[0].mxu0
        %v5639 = vpop.f32.mrb[0].mxu0
        %v5640 = vadd.f32 0.0, %v5639
        %v5641 = vpop.f32.mrb[0].mxu0
        %5642 = vmatprep.mubr.bf16.mxu0 %v3881
        %5643 = vmatmul.mubr.bf16.gmra.mrb[0].mxu0 %v3753
        %v5644 = vpop.f32.mrb[0].mxu0
        %v5645 = vadd.f32 0.0, %v5644
        %v5646 = vpop.f32.mrb[0].mxu0
        %v5647 = vpop.f32.mrb[0].mxu0
        %v5648 = vadd.f32 0.0, %v5647
        %v5649 = vpop.f32.mrb[0].mxu0
        %5650 = vmatprep.mubr.bf16.mxu0 %v3882
        %5651 = vmatmul.mubr.bf16.gmra.mrb[0].mxu0 %v3754
        %v5652 = vpop.f32.mrb[0].mxu0
        %v5653 = vadd.f32 0.0, %v5652
        %v5654 = vpop.f32.mrb[0].mxu0
        %v5655 = vpop.f32.mrb[0].mxu0
        %v5656 = vadd.f32 0.0, %v5655
        %v5657 = vpop.f32.mrb[0].mxu0
        %5658 = vmatprep.mubr.bf16.mxu0 %v3883
        %5659 = vmatmul.mubr.bf16.gmra.mrb[0].mxu0 %v3755
        %v5660 = vpop.f32.mrb[0].mxu0
        %v5661 = vadd.f32 0.0, %v5660
        %v5662 = vpop.f32.mrb[0].mxu0
        %v5663 = vpop.f32.mrb[0].mxu0
        %v5664 = vadd.f32 0.0, %v5663
        %v5665 = vpop.f32.mrb[0].mxu0
        %5666 = vmatprep.mubr.bf16.mxu0 %v3884
        %5667 = vmatmul.mubr.bf16.gmra.mrb[0].mxu0 %v3756
        %v5668 = vpop.f32.mrb[0].mxu0
        %v5669 = vadd.f32 0.0, %v5668
        %v5670 = vpop.f32.mrb[0].mxu0
        %v5671 = vpop.f32.mrb[0].mxu0
        %v5672 = vadd.f32 0.0, %v5671
        %v5673 = vpop.f32.mrb[0].mxu0
        %5674 = vmatprep.mubr.bf16.mxu0 %v3885
        %5675 = vmatmul.mubr.bf16.gmra.mrb[0].mxu0 %v3757
        %v5676 = vpop.f32.mrb[0].mxu0
        %v5677 = vadd.f32 0.0, %v5676
        %v5678 = vpop.f32.mrb[0].mxu0
        %v5679 = vpop.f32.mrb[0].mxu0
        %v5680 = vadd.f32 0.0, %v5679
        %v5681 = vpop.f32.mrb[0].mxu0
        %5682 = vmatprep.mubr.bf16.mxu0 %v3886
        %5683 = vmatmul.mubr.bf16.gmra.mrb[0].mxu0 %v3758
        %v5684 = vpop.f32.mrb[0].mxu0
        %v5685 = vadd.f32 0.0, %v5684
        %v5686 = vpop.f32.mrb[0].mxu0
        %v5687 = vpop.f32.mrb[0].mxu0
        %v5688 = vadd.f32 0.0, %v5687
        %v5689 = vpop.f32.mrb[0].mxu0
        %5690 = vmatprep.mubr.bf16.mxu0 %v3887
        %5691 = vmatmul.mubr.bf16.gmra.mrb[0].mxu0 %v3759
        %v5692 = vpop.f32.mrb[0].mxu0
        %v5693 = vadd.f32 0.0, %v5692
        %v5694 = vpop.f32.mrb[0].mxu0
        %v5695 = vpop.f32.mrb[0].mxu0
        %v5696 = vadd.f32 0.0, %v5695
        %v5697 = vpop.f32.mrb[0].mxu0
        %5698 = vmatprep.mubr.bf16.mxu0 %v3888
        %5699 = vmatmul.mubr.bf16.gmra.mrb[0].mxu0 %v3760
        %v5700 = vpop.f32.mrb[0].mxu0
        %v5701 = vadd.f32 0.0, %v5700
        %v5702 = vpop.f32.mrb[0].mxu0
        %v5703 = vpop.f32.mrb[0].mxu0
        %v5704 = vadd.f32 0.0, %v5703
        %v5705 = vpop.f32.mrb[0].mxu0
        %5706 = vmatprep.mubr.bf16.mxu0 %v3889
        %5707 = vmatmul.mubr.bf16.gmra.mrb[0].mxu0 %v3761
        %v5708 = vpop.f32.mrb[0].mxu0
        %v5709 = vadd.f32 0.0, %v5708
        %v5710 = vpop.f32.mrb[0].mxu0
        %v5711 = vpop.f32.mrb[0].mxu0
        %v5712 = vadd.f32 0.0, %v5711
        %v5713 = vpop.f32.mrb[0].mxu0
        %5714 = vdwg.mxu0
        %5715 = vmatprep.subr.bf16.mxu0 0
        %5716 = vmatpush1.bf16.msra.mxu0 %v5298
        %5717 = vmatprep.subr.bf16.mxu0 0
        %5718 = vmatpush1.bf16.msra.mxu0 %v5299
        %5719 = vmatprep.subr.bf16.mxu0 0
        %5720 = vmatpush1.bf16.msra.mxu0 %v5300
        %5721 = vmatprep.subr.bf16.mxu0 0
        %5722 = vmatpush1.bf16.msra.mxu0 %v5301
        %5723 = vmatprep.subr.bf16.mxu0 0
        %5724 = vmatpush1.bf16.msra.mxu0 %v5302
        %5725 = vmatprep.subr.bf16.mxu0 0
        %5726 = vmatpush1.bf16.msra.mxu0 %v5303
        %5727 = vmatprep.subr.bf16.mxu0 0
        %5728 = vmatpush1.bf16.msra.mxu0 %v5304
        %5729 = vmatprep.subr.bf16.mxu0 0
        %5730 = vmatpush1.bf16.msra.mxu0 %v5305
        %5731 = vmatprep.subr.bf16.mxu0 0
        %5732 = vmatpush1.bf16.msra.mxu0 %v5306
        %5733 = vmatprep.subr.bf16.mxu0 0
        %5734 = vmatpush1.bf16.msra.mxu0 %v5307
        %5735 = vmatprep.subr.bf16.mxu0 0
        %5736 = vmatpush1.bf16.msra.mxu0 %v5308
        %5737 = vmatprep.subr.bf16.mxu0 0
        %5738 = vmatpush1.bf16.msra.mxu0 %v5309
        %5739 = vmatprep.subr.bf16.mxu0 0
        %5740 = vmatpush1.bf16.msra.mxu0 %v5310
        %5741 = vmatprep.subr.bf16.mxu0 0
        %5742 = vmatpush1.bf16.msra.mxu0 %v5311
        %5743 = vmatprep.subr.bf16.mxu0 0
        %5744 = vmatpush1.bf16.msra.mxu0 %v5312
        %5745 = vmatprep.subr.bf16.mxu0 0
        %5746 = vmatpush1.bf16.msra.mxu0 %v5313
        %5747 = vmatprep.mubr.bf16.mxu0 %v4130
        %5748 = vmatmul.mubr.bf16.gmra.mrb[0].mxu0 %v3986
        %v5749 = vpop.f32.mrb[0].mxu0
        %v5750 = vadd.f32 %v5461, %v5749
        %v5751 = vpop.f32.mrb[0].mxu0
        %v5752 = vpop.f32.mrb[0].mxu0
        %v5753 = vadd.f32 %v5464, %v5752
        %v5754 = vpop.f32.mrb[0].mxu0
        %5755 = vmatprep.mubr.bf16.mxu0 %v4131
        %5756 = vmatmul.mubr.bf16.gmra.mrb[0].mxu0 %v3987
        %v5757 = vpop.f32.mrb[0].mxu0
        %v5758 = vadd.f32 %v5469, %v5757
        %v5759 = vpop.f32.mrb[0].mxu0
        %v5760 = vpop.f32.mrb[0].mxu0
        %v5761 = vadd.f32 %v5472, %v5760
        %v5762 = vpop.f32.mrb[0].mxu0
        %5763 = vmatprep.mubr.bf16.mxu0 %v4132
        %5764 = vmatmul.mubr.bf16.gmra.mrb[0].mxu0 %v3988
        %v5765 = vpop.f32.mrb[0].mxu0
        %v5766 = vadd.f32 %v5477, %v5765
        %v5767 = vpop.f32.mrb[0].mxu0
        %v5768 = vpop.f32.mrb[0].mxu0
        %v5769 = vadd.f32 %v5480, %v5768
        %v5770 = vpop.f32.mrb[0].mxu0
        %5771 = vmatprep.mubr.bf16.mxu0 %v4133
        %5772 = vmatmul.mubr.bf16.gmra.mrb[0].mxu0 %v3989
        %v5773 = vpop.f32.mrb[0].mxu0
        %v5774 = vadd.f32 %v5485, %v5773
        %v5775 = vpop.f32.mrb[0].mxu0
        %v5776 = vpop.f32.mrb[0].mxu0
        %v5777 = vadd.f32 %v5488, %v5776
        %v5778 = vpop.f32.mrb[0].mxu0
        %5779 = vmatprep.mubr.bf16.mxu0 %v4134
        %5780 = vmatmul.mubr.bf16.gmra.mrb[0].mxu0 %v3990
        %v5781 = vpop.f32.mrb[0].mxu0
        %v5782 = vadd.f32 %v5493, %v5781
        %v5783 = vpop.f32.mrb[0].mxu0
        %v5784 = vpop.f32.mrb[0].mxu0
        %v5785 = vadd.f32 %v5496, %v5784
        %v5786 = vpop.f32.mrb[0].mxu0
        %5787 = vmatprep.mubr.bf16.mxu0 %v4135
        %5788 = vmatmul.mubr.bf16.gmra.mrb[0].mxu0 %v3991
        %v5789 = vpop.f32.mrb[0].mxu0
        %v5790 = vadd.f32 %v5501, %v5789
        %v5791 = vpop.f32.mrb[0].mxu0
        %v5792 = vpop.f32.mrb[0].mxu0
        %v5793 = vadd.f32 %v5504, %v5792
        %v5794 = vpop.f32.mrb[0].mxu0
        %5795 = vmatprep.mubr.bf16.mxu0 %v4136
        %5796 = vmatmul.mubr.bf16.gmra.mrb[0].mxu0 %v3992
        %v5797 = vpop.f32.mrb[0].mxu0
        %v5798 = vadd.f32 %v5509, %v5797
        %v5799 = vpop.f32.mrb[0].mxu0
        %v5800 = vpop.f32.mrb[0].mxu0
        %v5801 = vadd.f32 %v5512, %v5800
        %v5802 = vpop.f32.mrb[0].mxu0
        %5803 = vmatprep.mubr.bf16.mxu0 %v4137
        %5804 = vmatmul.mubr.bf16.gmra.mrb[0].mxu0 %v3993
        %v5805 = vpop.f32.mrb[0].mxu0
        %v5806 = vadd.f32 %v5517, %v5805
        %v5807 = vpop.f32.mrb[0].mxu0
        %v5808 = vpop.f32.mrb[0].mxu0
        %v5809 = vadd.f32 %v5520, %v5808
        %v5810 = vpop.f32.mrb[0].mxu0
        %5811 = vmatprep.mubr.bf16.mxu0 %v4138
        %5812 = vmatmul.mubr.bf16.gmra.mrb[0].mxu0 %v3994
        %v5813 = vpop.f32.mrb[0].mxu0
        %v5814 = vadd.f32 %v5525, %v5813
        %v5815 = vpop.f32.mrb[0].mxu0
        %v5816 = vpop.f32.mrb[0].mxu0
        %v5817 = vadd.f32 %v5528, %v5816
        %v5818 = vpop.f32.mrb[0].mxu0
        %5819 = vmatprep.mubr.bf16.mxu0 %v4139
        %5820 = vmatmul.mubr.bf16.gmra.mrb[0].mxu0 %v3995
        %v5821 = vpop.f32.mrb[0].mxu0
        %v5822 = vadd.f32 %v5533, %v5821
        %v5823 = vpop.f32.mrb[0].mxu0
        %v5824 = vpop.f32.mrb[0].mxu0
        %v5825 = vadd.f32 %v5536, %v5824
        %v5826 = vpop.f32.mrb[0].mxu0
        %5827 = vmatprep.mubr.bf16.mxu0 %v4140
        %5828 = vmatmul.mubr.bf16.gmra.mrb[0].mxu0 %v3996
        %v5829 = vpop.f32.mrb[0].mxu0
        %v5830 = vadd.f32 %v5541, %v5829
        %v5831 = vpop.f32.mrb[0].mxu0
        %v5832 = vpop.f32.mrb[0].mxu0
        %v5833 = vadd.f32 %v5544, %v5832
        %v5834 = vpop.f32.mrb[0].mxu0
        %5835 = vmatprep.mubr.bf16.mxu0 %v4141
        %5836 = vmatmul.mubr.bf16.gmra.mrb[0].mxu0 %v3997
        %v5837 = vpop.f32.mrb[0].mxu0
        %v5838 = vadd.f32 %v5549, %v5837
        %v5839 = vpop.f32.mrb[0].mxu0
        %v5840 = vpop.f32.mrb[0].mxu0
        %v5841 = vadd.f32 %v5552, %v5840
        %v5842 = vpop.f32.mrb[0].mxu0
        %5843 = vmatprep.mubr.bf16.mxu0 %v4142
        %5844 = vmatmul.mubr.bf16.gmra.mrb[0].mxu0 %v3998
        %v5845 = vpop.f32.mrb[0].mxu0
        %v5846 = vadd.f32 %v5557, %v5845
        %v5847 = vpop.f32.mrb[0].mxu0
        %v5848 = vpop.f32.mrb[0].mxu0
        %v5849 = vadd.f32 %v5560, %v5848
        %v5850 = vpop.f32.mrb[0].mxu0
        %5851 = vmatprep.mubr.bf16.mxu0 %v4143
        %5852 = vmatmul.mubr.bf16.gmra.mrb[0].mxu0 %v3999
        %v5853 = vpop.f32.mrb[0].mxu0
        %v5854 = vadd.f32 %v5565, %v5853
        %v5855 = vpop.f32.mrb[0].mxu0
        %v5856 = vpop.f32.mrb[0].mxu0
        %v5857 = vadd.f32 %v5568, %v5856
        %v5858 = vpop.f32.mrb[0].mxu0
        %5859 = vmatprep.mubr.bf16.mxu0 %v4144
        %5860 = vmatmul.mubr.bf16.gmra.mrb[0].mxu0 %v4000
        %v5861 = vpop.f32.mrb[0].mxu0
        %v5862 = vadd.f32 %v5573, %v5861
        %v5863 = vpop.f32.mrb[0].mxu0
        %v5864 = vpop.f32.mrb[0].mxu0
        %v5865 = vadd.f32 %v5576, %v5864
        %v5866 = vpop.f32.mrb[0].mxu0
        %5867 = vmatprep.mubr.bf16.mxu0 %v4145
        %5868 = vmatmul.mubr.bf16.gmra.mrb[0].mxu0 %v4001
        %v5869 = vpop.f32.mrb[0].mxu0
        %v5870 = vadd.f32 %v5581, %v5869
        %v5871 = vpop.f32.mrb[0].mxu0
        %v5872 = vpop.f32.mrb[0].mxu0
        %v5873 = vadd.f32 %v5584, %v5872
        %v5874 = vpop.f32.mrb[0].mxu0
        %5875 = vmatprep.mubr.bf16.mxu0 %v4146
        %5876 = vmatmul.mubr.bf16.gmra.mrb[0].mxu0 %v4002
        %v5877 = vpop.f32.mrb[0].mxu0
        %v5878 = vadd.f32 %v5589, %v5877
        %v5879 = vpop.f32.mrb[0].mxu0
        %v5880 = vpop.f32.mrb[0].mxu0
        %v5881 = vadd.f32 %v5592, %v5880
        %v5882 = vpop.f32.mrb[0].mxu0
        %5883 = vmatprep.mubr.bf16.mxu0 %v4147
        %5884 = vmatmul.mubr.bf16.gmra.mrb[0].mxu0 %v4003
        %v5885 = vpop.f32.mrb[0].mxu0
        %v5886 = vadd.f32 %v5597, %v5885
        %v5887 = vpop.f32.mrb[0].mxu0
        %v5888 = vpop.f32.mrb[0].mxu0
        %v5889 = vadd.f32 %v5600, %v5888
        %v5890 = vpop.f32.mrb[0].mxu0
        %5891 = vmatprep.mubr.bf16.mxu0 %v4148
        %5892 = vmatmul.mubr.bf16.gmra.mrb[0].mxu0 %v4004
        %v5893 = vpop.f32.mrb[0].mxu0
        %v5894 = vadd.f32 %v5605, %v5893
        %v5895 = vpop.f32.mrb[0].mxu0
        %v5896 = vpop.f32.mrb[0].mxu0
        %v5897 = vadd.f32 %v5608, %v5896
        %v5898 = vpop.f32.mrb[0].mxu0
        %5899 = vmatprep.mubr.bf16.mxu0 %v4149
        %5900 = vmatmul.mubr.bf16.gmra.mrb[0].mxu0 %v4005
        %v5901 = vpop.f32.mrb[0].mxu0
        %v5902 = vadd.f32 %v5613, %v5901
        %v5903 = vpop.f32.mrb[0].mxu0
        %v5904 = vpop.f32.mrb[0].mxu0
        %v5905 = vadd.f32 %v5616, %v5904
        %v5906 = vpop.f32.mrb[0].mxu0
        %5907 = vmatprep.mubr.bf16.mxu0 %v4150
        %5908 = vmatmul.mubr.bf16.gmra.mrb[0].mxu0 %v4006
        %v5909 = vpop.f32.mrb[0].mxu0
        %v5910 = vadd.f32 %v5621, %v5909
        %v5911 = vpop.f32.mrb[0].mxu0
        %v5912 = vpop.f32.mrb[0].mxu0
        %v5913 = vadd.f32 %v5624, %v5912
        %v5914 = vpop.f32.mrb[0].mxu0
        %5915 = vmatprep.mubr.bf16.mxu0 %v4151
        %5916 = vmatmul.mubr.bf16.gmra.mrb[0].mxu0 %v4007
        %v5917 = vpop.f32.mrb[0].mxu0
        %v5918 = vadd.f32 %v5629, %v5917
        %v5919 = vpop.f32.mrb[0].mxu0
        %v5920 = vpop.f32.mrb[0].mxu0
        %v5921 = vadd.f32 %v5632, %v5920
        %v5922 = vpop.f32.mrb[0].mxu0
        %5923 = vmatprep.mubr.bf16.mxu0 %v4152
        %5924 = vmatmul.mubr.bf16.gmra.mrb[0].mxu0 %v4008
        %v5925 = vpop.f32.mrb[0].mxu0
        %v5926 = vadd.f32 %v5637, %v5925
        %v5927 = vpop.f32.mrb[0].mxu0
        %v5928 = vpop.f32.mrb[0].mxu0
        %v5929 = vadd.f32 %v5640, %v5928
        %v5930 = vpop.f32.mrb[0].mxu0
        %5931 = vmatprep.mubr.bf16.mxu0 %v4153
        %5932 = vmatmul.mubr.bf16.gmra.mrb[0].mxu0 %v4009
        %v5933 = vpop.f32.mrb[0].mxu0
        %v5934 = vadd.f32 %v5645, %v5933
        %v5935 = vpop.f32.mrb[0].mxu0
        %v5936 = vpop.f32.mrb[0].mxu0
        %v5937 = vadd.f32 %v5648, %v5936
        %v5938 = vpop.f32.mrb[0].mxu0
        %5939 = vmatprep.mubr.bf16.mxu0 %v4154
        %5940 = vmatmul.mubr.bf16.gmra.mrb[0].mxu0 %v4010
        %v5941 = vpop.f32.mrb[0].mxu0
        %v5942 = vadd.f32 %v5653, %v5941
        %v5943 = vpop.f32.mrb[0].mxu0
        %v5944 = vpop.f32.mrb[0].mxu0
        %v5945 = vadd.f32 %v5656, %v5944
        %v5946 = vpop.f32.mrb[0].mxu0
        %5947 = vmatprep.mubr.bf16.mxu0 %v4155
        %5948 = vmatmul.mubr.bf16.gmra.mrb[0].mxu0 %v4011
        %v5949 = vpop.f32.mrb[0].mxu0
        %v5950 = vadd.f32 %v5661, %v5949
        %v5951 = vpop.f32.mrb[0].mxu0
        %v5952 = vpop.f32.mrb[0].mxu0
        %v5953 = vadd.f32 %v5664, %v5952
        %v5954 = vpop.f32.mrb[0].mxu0
        %5955 = vmatprep.mubr.bf16.mxu0 %v4156
        %5956 = vmatmul.mubr.bf16.gmra.mrb[0].mxu0 %v4012
        %v5957 = vpop.f32.mrb[0].mxu0
        %v5958 = vadd.f32 %v5669, %v5957
        %v5959 = vpop.f32.mrb[0].mxu0
        %v5960 = vpop.f32.mrb[0].mxu0
        %v5961 = vadd.f32 %v5672, %v5960
        %v5962 = vpop.f32.mrb[0].mxu0
        %5963 = vmatprep.mubr.bf16.mxu0 %v4157
        %5964 = vmatmul.mubr.bf16.gmra.mrb[0].mxu0 %v4013
        %v5965 = vpop.f32.mrb[0].mxu0
        %v5966 = vadd.f32 %v5677, %v5965
        %v5967 = vpop.f32.mrb[0].mxu0
        %v5968 = vpop.f32.mrb[0].mxu0
        %v5969 = vadd.f32 %v5680, %v5968
        %v5970 = vpop.f32.mrb[0].mxu0
        %5971 = vmatprep.mubr.bf16.mxu0 %v4158
        %5972 = vmatmul.mubr.bf16.gmra.mrb[0].mxu0 %v4014
        %v5973 = vpop.f32.mrb[0].mxu0
        %v5974 = vadd.f32 %v5685, %v5973
        %v5975 = vpop.f32.mrb[0].mxu0
        %v5976 = vpop.f32.mrb[0].mxu0
        %v5977 = vadd.f32 %v5688, %v5976
        %v5978 = vpop.f32.mrb[0].mxu0
        %5979 = vmatprep.mubr.bf16.mxu0 %v4159
        %5980 = vmatmul.mubr.bf16.gmra.mrb[0].mxu0 %v4015
        %v5981 = vpop.f32.mrb[0].mxu0
        %v5982 = vadd.f32 %v5693, %v5981
        %v5983 = vpop.f32.mrb[0].mxu0
        %v5984 = vpop.f32.mrb[0].mxu0
        %v5985 = vadd.f32 %v5696, %v5984
        %v5986 = vpop.f32.mrb[0].mxu0
        %5987 = vmatprep.mubr.bf16.mxu0 %v4160
        %5988 = vmatmul.mubr.bf16.gmra.mrb[0].mxu0 %v4016
        %v5989 = vpop.f32.mrb[0].mxu0
        %v5990 = vadd.f32 %v5701, %v5989
        %v5991 = vpop.f32.mrb[0].mxu0
        %v5992 = vpop.f32.mrb[0].mxu0
        %v5993 = vadd.f32 %v5704, %v5992
        %v5994 = vpop.f32.mrb[0].mxu0
        %5995 = vmatprep.mubr.bf16.mxu0 %v4161
        %5996 = vmatmul.mubr.bf16.gmra.mrb[0].mxu0 %v4017
        %v5997 = vpop.f32.mrb[0].mxu0
        %v5998 = vadd.f32 %v5709, %v5997
        %v5999 = vpop.f32.mrb[0].mxu0
        %v6000 = vpop.f32.mrb[0].mxu0
        %v6001 = vadd.f32 %v5712, %v6000
        %v6002 = vpop.f32.mrb[0].mxu0
        %6003 = vdwg.mxu0
        %6004 = vmatprep.subr.bf16.mxu0 0
        %6005 = vmatpush1.bf16.msra.mxu0 %v5314
        %6006 = vmatprep.subr.bf16.mxu0 0
        %6007 = vmatpush1.bf16.msra.mxu0 %v5315
        %6008 = vmatprep.subr.bf16.mxu0 0
        %6009 = vmatpush1.bf16.msra.mxu0 %v5316
        %6010 = vmatprep.subr.bf16.mxu0 0
        %6011 = vmatpush1.bf16.msra.mxu0 %v5317
        %6012 = vmatprep.subr.bf16.mxu0 0
        %6013 = vmatpush1.bf16.msra.mxu0 %v5318
        %6014 = vmatprep.subr.bf16.mxu0 0
        %6015 = vmatpush1.bf16.msra.mxu0 %v5319
        %6016 = vmatprep.subr.bf16.mxu0 0
        %6017 = vmatpush1.bf16.msra.mxu0 %v5320
        %6018 = vmatprep.subr.bf16.mxu0 0
        %6019 = vmatpush1.bf16.msra.mxu0 %v5321
        %6020 = vmatprep.subr.bf16.mxu0 0
        %6021 = vmatpush1.bf16.msra.mxu0 %v5322
        %6022 = vmatprep.subr.bf16.mxu0 0
        %6023 = vmatpush1.bf16.msra.mxu0 %v5323
        %6024 = vmatprep.subr.bf16.mxu0 0
        %6025 = vmatpush1.bf16.msra.mxu0 %v5324
        %6026 = vmatprep.subr.bf16.mxu0 0
        %6027 = vmatpush1.bf16.msra.mxu0 %v5325
        %6028 = vmatprep.subr.bf16.mxu0 0
        %6029 = vmatpush1.bf16.msra.mxu0 %v5326
        %6030 = vmatprep.subr.bf16.mxu0 0
        %6031 = vmatpush1.bf16.msra.mxu0 %v5327
        %6032 = vmatprep.subr.bf16.mxu0 0
        %6033 = vmatpush1.bf16.msra.mxu0 %v5328
        %6034 = vmatprep.subr.bf16.mxu0 0
        %6035 = vmatpush1.bf16.msra.mxu0 %v5329
        %6036 = vmatprep.mubr.bf16.mxu0 %v4386
        %6037 = vmatmul.mubr.bf16.gmra.mrb[0].mxu0 %v4258
        %v6038 = vpop.f32.mrb[0].mxu0
        %v6039 = vadd.f32 %v5750, %v6038
        %v6040 = vpop.f32.mrb[0].mxu0
        %v6041 = vpop.f32.mrb[0].mxu0
        %v6042 = vadd.f32 %v5753, %v6041
        %v6043 = vpop.f32.mrb[0].mxu0
        %6044 = vmatprep.mubr.bf16.mxu0 %v4387
        %6045 = vmatmul.mubr.bf16.gmra.mrb[0].mxu0 %v4259
        %v6046 = vpop.f32.mrb[0].mxu0
        %v6047 = vadd.f32 %v5758, %v6046
        %v6048 = vpop.f32.mrb[0].mxu0
        %v6049 = vpop.f32.mrb[0].mxu0
        %v6050 = vadd.f32 %v5761, %v6049
        %v6051 = vpop.f32.mrb[0].mxu0
        %6052 = vmatprep.mubr.bf16.mxu0 %v4388
        %6053 = vmatmul.mubr.bf16.gmra.mrb[0].mxu0 %v4260
        %v6054 = vpop.f32.mrb[0].mxu0
        %v6055 = vadd.f32 %v5766, %v6054
        %v6056 = vpop.f32.mrb[0].mxu0
        %v6057 = vpop.f32.mrb[0].mxu0
        %v6058 = vadd.f32 %v5769, %v6057
        %v6059 = vpop.f32.mrb[0].mxu0
        %6060 = vmatprep.mubr.bf16.mxu0 %v4389
        %6061 = vmatmul.mubr.bf16.gmra.mrb[0].mxu0 %v4261
        %v6062 = vpop.f32.mrb[0].mxu0
        %v6063 = vadd.f32 %v5774, %v6062
        %v6064 = vpop.f32.mrb[0].mxu0
        %v6065 = vpop.f32.mrb[0].mxu0
        %v6066 = vadd.f32 %v5777, %v6065
        %v6067 = vpop.f32.mrb[0].mxu0
        %6068 = vmatprep.mubr.bf16.mxu0 %v4390
        %6069 = vmatmul.mubr.bf16.gmra.mrb[0].mxu0 %v4262
        %v6070 = vpop.f32.mrb[0].mxu0
        %v6071 = vadd.f32 %v5782, %v6070
        %v6072 = vpop.f32.mrb[0].mxu0
        %v6073 = vpop.f32.mrb[0].mxu0
        %v6074 = vadd.f32 %v5785, %v6073
        %v6075 = vpop.f32.mrb[0].mxu0
        %6076 = vmatprep.mubr.bf16.mxu0 %v4391
        %6077 = vmatmul.mubr.bf16.gmra.mrb[0].mxu0 %v4263
        %v6078 = vpop.f32.mrb[0].mxu0
        %v6079 = vadd.f32 %v5790, %v6078
        %v6080 = vpop.f32.mrb[0].mxu0
        %v6081 = vpop.f32.mrb[0].mxu0
        %v6082 = vadd.f32 %v5793, %v6081
        %v6083 = vpop.f32.mrb[0].mxu0
        %6084 = vmatprep.mubr.bf16.mxu0 %v4392
        %6085 = vmatmul.mubr.bf16.gmra.mrb[0].mxu0 %v4264
        %v6086 = vpop.f32.mrb[0].mxu0
        %v6087 = vadd.f32 %v5798, %v6086
        %v6088 = vpop.f32.mrb[0].mxu0
        %v6089 = vpop.f32.mrb[0].mxu0
        %v6090 = vadd.f32 %v5801, %v6089
        %v6091 = vpop.f32.mrb[0].mxu0
        %6092 = vmatprep.mubr.bf16.mxu0 %v4393
        %6093 = vmatmul.mubr.bf16.gmra.mrb[0].mxu0 %v4265
        %v6094 = vpop.f32.mrb[0].mxu0
        %v6095 = vadd.f32 %v5806, %v6094
        %v6096 = vpop.f32.mrb[0].mxu0
        %v6097 = vpop.f32.mrb[0].mxu0
        %v6098 = vadd.f32 %v5809, %v6097
        %v6099 = vpop.f32.mrb[0].mxu0
        %6100 = vmatprep.mubr.bf16.mxu0 %v4394
        %6101 = vmatmul.mubr.bf16.gmra.mrb[0].mxu0 %v4266
        %v6102 = vpop.f32.mrb[0].mxu0
        %v6103 = vadd.f32 %v5814, %v6102
        %v6104 = vpop.f32.mrb[0].mxu0
        %v6105 = vpop.f32.mrb[0].mxu0
        %v6106 = vadd.f32 %v5817, %v6105
        %v6107 = vpop.f32.mrb[0].mxu0
        %6108 = vmatprep.mubr.bf16.mxu0 %v4395
        %6109 = vmatmul.mubr.bf16.gmra.mrb[0].mxu0 %v4267
        %v6110 = vpop.f32.mrb[0].mxu0
        %v6111 = vadd.f32 %v5822, %v6110
        %v6112 = vpop.f32.mrb[0].mxu0
        %v6113 = vpop.f32.mrb[0].mxu0
        %v6114 = vadd.f32 %v5825, %v6113
        %v6115 = vpop.f32.mrb[0].mxu0
        %6116 = vmatprep.mubr.bf16.mxu0 %v4396
        %6117 = vmatmul.mubr.bf16.gmra.mrb[0].mxu0 %v4268
        %v6118 = vpop.f32.mrb[0].mxu0
        %v6119 = vadd.f32 %v5830, %v6118
        %v6120 = vpop.f32.mrb[0].mxu0
        %v6121 = vpop.f32.mrb[0].mxu0
        %v6122 = vadd.f32 %v5833, %v6121
        %v6123 = vpop.f32.mrb[0].mxu0
        %6124 = vmatprep.mubr.bf16.mxu0 %v4397
        %6125 = vmatmul.mubr.bf16.gmra.mrb[0].mxu0 %v4269
        %v6126 = vpop.f32.mrb[0].mxu0
        %v6127 = vadd.f32 %v5838, %v6126
        %v6128 = vpop.f32.mrb[0].mxu0
        %v6129 = vpop.f32.mrb[0].mxu0
        %v6130 = vadd.f32 %v5841, %v6129
        %v6131 = vpop.f32.mrb[0].mxu0
        %6132 = vmatprep.mubr.bf16.mxu0 %v4398
        %6133 = vmatmul.mubr.bf16.gmra.mrb[0].mxu0 %v4270
        %v6134 = vpop.f32.mrb[0].mxu0
        %v6135 = vadd.f32 %v5846, %v6134
        %v6136 = vpop.f32.mrb[0].mxu0
        %v6137 = vpop.f32.mrb[0].mxu0
        %v6138 = vadd.f32 %v5849, %v6137
        %v6139 = vpop.f32.mrb[0].mxu0
        %6140 = vmatprep.mubr.bf16.mxu0 %v4399
        %6141 = vmatmul.mubr.bf16.gmra.mrb[0].mxu0 %v4271
        %v6142 = vpop.f32.mrb[0].mxu0
        %v6143 = vadd.f32 %v5854, %v6142
        %v6144 = vpop.f32.mrb[0].mxu0
        %v6145 = vpop.f32.mrb[0].mxu0
        %v6146 = vadd.f32 %v5857, %v6145
        %v6147 = vpop.f32.mrb[0].mxu0
        %6148 = vmatprep.mubr.bf16.mxu0 %v4400
        %6149 = vmatmul.mubr.bf16.gmra.mrb[0].mxu0 %v4272
        %v6150 = vpop.f32.mrb[0].mxu0
        %v6151 = vadd.f32 %v5862, %v6150
        %v6152 = vpop.f32.mrb[0].mxu0
        %v6153 = vpop.f32.mrb[0].mxu0
        %v6154 = vadd.f32 %v5865, %v6153
        %v6155 = vpop.f32.mrb[0].mxu0
        %6156 = vmatprep.mubr.bf16.mxu0 %v4401
        %6157 = vmatmul.mubr.bf16.gmra.mrb[0].mxu0 %v4273
        %v6158 = vpop.f32.mrb[0].mxu0
        %v6159 = vadd.f32 %v5870, %v6158
        %v6160 = vpop.f32.mrb[0].mxu0
        %v6161 = vpop.f32.mrb[0].mxu0
        %v6162 = vadd.f32 %v5873, %v6161
        %v6163 = vpop.f32.mrb[0].mxu0
        %6164 = vmatprep.mubr.bf16.mxu0 %v4402
        %6165 = vmatmul.mubr.bf16.gmra.mrb[0].mxu0 %v4274
        %v6166 = vpop.f32.mrb[0].mxu0
        %v6167 = vadd.f32 %v5878, %v6166
        %v6168 = vpop.f32.mrb[0].mxu0
        %v6169 = vpop.f32.mrb[0].mxu0
        %v6170 = vadd.f32 %v5881, %v6169
        %v6171 = vpop.f32.mrb[0].mxu0
        %6172 = vmatprep.mubr.bf16.mxu0 %v4403
        %6173 = vmatmul.mubr.bf16.gmra.mrb[0].mxu0 %v4275
        %v6174 = vpop.f32.mrb[0].mxu0
        %v6175 = vadd.f32 %v5886, %v6174
        %v6176 = vpop.f32.mrb[0].mxu0
        %v6177 = vpop.f32.mrb[0].mxu0
        %v6178 = vadd.f32 %v5889, %v6177
        %v6179 = vpop.f32.mrb[0].mxu0
        %6180 = vmatprep.mubr.bf16.mxu0 %v4404
        %6181 = vmatmul.mubr.bf16.gmra.mrb[0].mxu0 %v4276
        %v6182 = vpop.f32.mrb[0].mxu0
        %v6183 = vadd.f32 %v5894, %v6182
        %v6184 = vpop.f32.mrb[0].mxu0
        %v6185 = vpop.f32.mrb[0].mxu0
        %v6186 = vadd.f32 %v5897, %v6185
        %v6187 = vpop.f32.mrb[0].mxu0
        %6188 = vmatprep.mubr.bf16.mxu0 %v4405
        %6189 = vmatmul.mubr.bf16.gmra.mrb[0].mxu0 %v4277
        %v6190 = vpop.f32.mrb[0].mxu0
        %v6191 = vadd.f32 %v5902, %v6190
        %v6192 = vpop.f32.mrb[0].mxu0
        %v6193 = vpop.f32.mrb[0].mxu0
        %v6194 = vadd.f32 %v5905, %v6193
        %v6195 = vpop.f32.mrb[0].mxu0
        %6196 = vmatprep.mubr.bf16.mxu0 %v4406
        %6197 = vmatmul.mubr.bf16.gmra.mrb[0].mxu0 %v4278
        %v6198 = vpop.f32.mrb[0].mxu0
        %v6199 = vadd.f32 %v5910, %v6198
        %v6200 = vpop.f32.mrb[0].mxu0
        %v6201 = vpop.f32.mrb[0].mxu0
        %v6202 = vadd.f32 %v5913, %v6201
        %v6203 = vpop.f32.mrb[0].mxu0
        %6204 = vmatprep.mubr.bf16.mxu0 %v4407
        %6205 = vmatmul.mubr.bf16.gmra.mrb[0].mxu0 %v4279
        %v6206 = vpop.f32.mrb[0].mxu0
        %v6207 = vadd.f32 %v5918, %v6206
        %v6208 = vpop.f32.mrb[0].mxu0
        %v6209 = vpop.f32.mrb[0].mxu0
        %v6210 = vadd.f32 %v5921, %v6209
        %v6211 = vpop.f32.mrb[0].mxu0
        %6212 = vmatprep.mubr.bf16.mxu0 %v4408
        %6213 = vmatmul.mubr.bf16.gmra.mrb[0].mxu0 %v4280
        %v6214 = vpop.f32.mrb[0].mxu0
        %v6215 = vadd.f32 %v5926, %v6214
        %v6216 = vpop.f32.mrb[0].mxu0
        %v6217 = vpop.f32.mrb[0].mxu0
        %v6218 = vadd.f32 %v5929, %v6217
        %v6219 = vpop.f32.mrb[0].mxu0
        %6220 = vmatprep.mubr.bf16.mxu0 %v4409
        %6221 = vmatmul.mubr.bf16.gmra.mrb[0].mxu0 %v4281
        %v6222 = vpop.f32.mrb[0].mxu0
        %v6223 = vadd.f32 %v5934, %v6222
        %v6224 = vpop.f32.mrb[0].mxu0
        %v6225 = vpop.f32.mrb[0].mxu0
        %v6226 = vadd.f32 %v5937, %v6225
        %v6227 = vpop.f32.mrb[0].mxu0
        %6228 = vmatprep.mubr.bf16.mxu0 %v4410
        %6229 = vmatmul.mubr.bf16.gmra.mrb[0].mxu0 %v4282
        %v6230 = vpop.f32.mrb[0].mxu0
        %v6231 = vadd.f32 %v5942, %v6230
        %v6232 = vpop.f32.mrb[0].mxu0
        %v6233 = vpop.f32.mrb[0].mxu0
        %v6234 = vadd.f32 %v5945, %v6233
        %v6235 = vpop.f32.mrb[0].mxu0
        %6236 = vmatprep.mubr.bf16.mxu0 %v4411
        %6237 = vmatmul.mubr.bf16.gmra.mrb[0].mxu0 %v4283
        %v6238 = vpop.f32.mrb[0].mxu0
        %v6239 = vadd.f32 %v5950, %v6238
        %v6240 = vpop.f32.mrb[0].mxu0
        %v6241 = vpop.f32.mrb[0].mxu0
        %v6242 = vadd.f32 %v5953, %v6241
        %v6243 = vpop.f32.mrb[0].mxu0
        %6244 = vmatprep.mubr.bf16.mxu0 %v4412
        %6245 = vmatmul.mubr.bf16.gmra.mrb[0].mxu0 %v4284
        %v6246 = vpop.f32.mrb[0].mxu0
        %v6247 = vadd.f32 %v5958, %v6246
        %v6248 = vpop.f32.mrb[0].mxu0
        %v6249 = vpop.f32.mrb[0].mxu0
        %v6250 = vadd.f32 %v5961, %v6249
        %v6251 = vpop.f32.mrb[0].mxu0
        %6252 = vmatprep.mubr.bf16.mxu0 %v4413
        %6253 = vmatmul.mubr.bf16.gmra.mrb[0].mxu0 %v4285
        %v6254 = vpop.f32.mrb[0].mxu0
        %v6255 = vadd.f32 %v5966, %v6254
        %v6256 = vpop.f32.mrb[0].mxu0
        %v6257 = vpop.f32.mrb[0].mxu0
        %v6258 = vadd.f32 %v5969, %v6257
        %v6259 = vpop.f32.mrb[0].mxu0
        %6260 = vmatprep.mubr.bf16.mxu0 %v4414
        %6261 = vmatmul.mubr.bf16.gmra.mrb[0].mxu0 %v4286
        %v6262 = vpop.f32.mrb[0].mxu0
        %v6263 = vadd.f32 %v5974, %v6262
        %v6264 = vpop.f32.mrb[0].mxu0
        %v6265 = vpop.f32.mrb[0].mxu0
        %v6266 = vadd.f32 %v5977, %v6265
        %v6267 = vpop.f32.mrb[0].mxu0
        %6268 = vmatprep.mubr.bf16.mxu0 %v4415
        %6269 = vmatmul.mubr.bf16.gmra.mrb[0].mxu0 %v4287
        %v6270 = vpop.f32.mrb[0].mxu0
        %v6271 = vadd.f32 %v5982, %v6270
        %v6272 = vpop.f32.mrb[0].mxu0
        %v6273 = vpop.f32.mrb[0].mxu0
        %v6274 = vadd.f32 %v5985, %v6273
        %v6275 = vpop.f32.mrb[0].mxu0
        %6276 = vmatprep.mubr.bf16.mxu0 %v4416
        %6277 = vmatmul.mubr.bf16.gmra.mrb[0].mxu0 %v4288
        %v6278 = vpop.f32.mrb[0].mxu0
        %v6279 = vadd.f32 %v5990, %v6278
        %v6280 = vpop.f32.mrb[0].mxu0
        %v6281 = vpop.f32.mrb[0].mxu0
        %v6282 = vadd.f32 %v5993, %v6281
        %v6283 = vpop.f32.mrb[0].mxu0
        %6284 = vmatprep.mubr.bf16.mxu0 %v4417
        %6285 = vmatmul.mubr.bf16.gmra.mrb[0].mxu0 %v4289
        %v6286 = vpop.f32.mrb[0].mxu0
        %v6287 = vadd.f32 %v5998, %v6286
        %v6288 = vpop.f32.mrb[0].mxu0
        %v6289 = vpop.f32.mrb[0].mxu0
        %v6290 = vadd.f32 %v6001, %v6289
        %v6291 = vpop.f32.mrb[0].mxu0
        %6292 = vdwg.mxu0
        %6293 = vmatprep.subr.bf16.mxu0 0
        %6294 = vmatpush1.bf16.msra.mxu0 %v5330
        %6295 = vmatprep.subr.bf16.mxu0 0
        %6296 = vmatpush1.bf16.msra.mxu0 %v5331
        %6297 = vmatprep.subr.bf16.mxu0 0
        %6298 = vmatpush1.bf16.msra.mxu0 %v5332
        %6299 = vmatprep.subr.bf16.mxu0 0
        %6300 = vmatpush1.bf16.msra.mxu0 %v5333
        %6301 = vmatprep.subr.bf16.mxu0 0
        %6302 = vmatpush1.bf16.msra.mxu0 %v5334
        %6303 = vmatprep.subr.bf16.mxu0 0
        %6304 = vmatpush1.bf16.msra.mxu0 %v5335
        %6305 = vmatprep.subr.bf16.mxu0 0
        %6306 = vmatpush1.bf16.msra.mxu0 %v5336
        %6307 = vmatprep.subr.bf16.mxu0 0
        %6308 = vmatpush1.bf16.msra.mxu0 %v5337
        %6309 = vmatprep.subr.bf16.mxu0 0
        %6310 = vmatpush1.bf16.msra.mxu0 %v5338
        %6311 = vmatprep.subr.bf16.mxu0 0
        %6312 = vmatpush1.bf16.msra.mxu0 %v5339
        %6313 = vmatprep.subr.bf16.mxu0 0
        %6314 = vmatpush1.bf16.msra.mxu0 %v5340
        %6315 = vmatprep.subr.bf16.mxu0 0
        %6316 = vmatpush1.bf16.msra.mxu0 %v5341
        %6317 = vmatprep.subr.bf16.mxu0 0
        %6318 = vmatpush1.bf16.msra.mxu0 %v5342
        %6319 = vmatprep.subr.bf16.mxu0 0
        %6320 = vmatpush1.bf16.msra.mxu0 %v5343
        %6321 = vmatprep.subr.bf16.mxu0 0
        %6322 = vmatpush1.bf16.msra.mxu0 %v5344
        %6323 = vmatprep.subr.bf16.mxu0 0
        %6324 = vmatpush1.bf16.msra.mxu0 %v5345
        %6325 = vmatprep.mubr.bf16.mxu0 %v4658
        %6326 = vmatmul.mubr.bf16.gmra.mrb[0].mxu0 %v4530
        %v6327 = vpop.f32.mrb[0].mxu0
        %v6328 = vadd.f32 %v6039, %v6327
        %v6329 = vpop.f32.mrb[0].mxu0
        %v6330 = vpop.f32.mrb[0].mxu0
        %v6331 = vadd.f32 %v6042, %v6330
        %v6332 = vpop.f32.mrb[0].mxu0
        %6333 = vmatprep.mubr.bf16.mxu0 %v4659
        %6334 = vmatmul.mubr.bf16.gmra.mrb[0].mxu0 %v4531
        %v6335 = vpop.f32.mrb[0].mxu0
        %v6336 = vadd.f32 %v6047, %v6335
        %v6337 = vpop.f32.mrb[0].mxu0
        %v6338 = vpop.f32.mrb[0].mxu0
        %v6339 = vadd.f32 %v6050, %v6338
        %v6340 = vpop.f32.mrb[0].mxu0
        %6341 = vmatprep.mubr.bf16.mxu0 %v4660
        %6342 = vmatmul.mubr.bf16.gmra.mrb[0].mxu0 %v4532
        %v6343 = vpop.f32.mrb[0].mxu0
        %v6344 = vadd.f32 %v6055, %v6343
        %v6345 = vpop.f32.mrb[0].mxu0
        %v6346 = vpop.f32.mrb[0].mxu0
        %v6347 = vadd.f32 %v6058, %v6346
        %v6348 = vpop.f32.mrb[0].mxu0
        %6349 = vmatprep.mubr.bf16.mxu0 %v4661
        %6350 = vmatmul.mubr.bf16.gmra.mrb[0].mxu0 %v4533
        %v6351 = vpop.f32.mrb[0].mxu0
        %v6352 = vadd.f32 %v6063, %v6351
        %v6353 = vpop.f32.mrb[0].mxu0
        %v6354 = vpop.f32.mrb[0].mxu0
        %v6355 = vadd.f32 %v6066, %v6354
        %v6356 = vpop.f32.mrb[0].mxu0
        %6357 = vmatprep.mubr.bf16.mxu0 %v4662
        %6358 = vmatmul.mubr.bf16.gmra.mrb[0].mxu0 %v4534
        %v6359 = vpop.f32.mrb[0].mxu0
        %v6360 = vadd.f32 %v6071, %v6359
        %v6361 = vpop.f32.mrb[0].mxu0
        %v6362 = vpop.f32.mrb[0].mxu0
        %v6363 = vadd.f32 %v6074, %v6362
        %v6364 = vpop.f32.mrb[0].mxu0
        %6365 = vmatprep.mubr.bf16.mxu0 %v4663
        %6366 = vmatmul.mubr.bf16.gmra.mrb[0].mxu0 %v4535
        %v6367 = vpop.f32.mrb[0].mxu0
        %v6368 = vadd.f32 %v6079, %v6367
        %v6369 = vpop.f32.mrb[0].mxu0
        %v6370 = vpop.f32.mrb[0].mxu0
        %v6371 = vadd.f32 %v6082, %v6370
        %v6372 = vpop.f32.mrb[0].mxu0
        %6373 = vmatprep.mubr.bf16.mxu0 %v4664
        %6374 = vmatmul.mubr.bf16.gmra.mrb[0].mxu0 %v4536
        %v6375 = vpop.f32.mrb[0].mxu0
        %v6376 = vadd.f32 %v6087, %v6375
        %v6377 = vpop.f32.mrb[0].mxu0
        %v6378 = vpop.f32.mrb[0].mxu0
        %v6379 = vadd.f32 %v6090, %v6378
        %v6380 = vpop.f32.mrb[0].mxu0
        %6381 = vmatprep.mubr.bf16.mxu0 %v4665
        %6382 = vmatmul.mubr.bf16.gmra.mrb[0].mxu0 %v4537
        %v6383 = vpop.f32.mrb[0].mxu0
        %v6384 = vadd.f32 %v6095, %v6383
        %v6385 = vpop.f32.mrb[0].mxu0
        %v6386 = vpop.f32.mrb[0].mxu0
        %v6387 = vadd.f32 %v6098, %v6386
        %v6388 = vpop.f32.mrb[0].mxu0
        %6389 = vmatprep.mubr.bf16.mxu0 %v4666
        %6390 = vmatmul.mubr.bf16.gmra.mrb[0].mxu0 %v4538
        %v6391 = vpop.f32.mrb[0].mxu0
        %v6392 = vadd.f32 %v6103, %v6391
        %v6393 = vpop.f32.mrb[0].mxu0
        %v6394 = vpop.f32.mrb[0].mxu0
        %v6395 = vadd.f32 %v6106, %v6394
        %v6396 = vpop.f32.mrb[0].mxu0
        %6397 = vmatprep.mubr.bf16.mxu0 %v4667
        %6398 = vmatmul.mubr.bf16.gmra.mrb[0].mxu0 %v4539
        %v6399 = vpop.f32.mrb[0].mxu0
        %v6400 = vadd.f32 %v6111, %v6399
        %v6401 = vpop.f32.mrb[0].mxu0
        %v6402 = vpop.f32.mrb[0].mxu0
        %v6403 = vadd.f32 %v6114, %v6402
        %v6404 = vpop.f32.mrb[0].mxu0
        %6405 = vmatprep.mubr.bf16.mxu0 %v4668
        %6406 = vmatmul.mubr.bf16.gmra.mrb[0].mxu0 %v4540
        %v6407 = vpop.f32.mrb[0].mxu0
        %v6408 = vadd.f32 %v6119, %v6407
        %v6409 = vpop.f32.mrb[0].mxu0
        %v6410 = vpop.f32.mrb[0].mxu0
        %v6411 = vadd.f32 %v6122, %v6410
        %v6412 = vpop.f32.mrb[0].mxu0
        %6413 = vmatprep.mubr.bf16.mxu0 %v4669
        %6414 = vmatmul.mubr.bf16.gmra.mrb[0].mxu0 %v4541
        %v6415 = vpop.f32.mrb[0].mxu0
        %v6416 = vadd.f32 %v6127, %v6415
        %v6417 = vpop.f32.mrb[0].mxu0
        %v6418 = vpop.f32.mrb[0].mxu0
        %v6419 = vadd.f32 %v6130, %v6418
        %v6420 = vpop.f32.mrb[0].mxu0
        %6421 = vmatprep.mubr.bf16.mxu0 %v4670
        %6422 = vmatmul.mubr.bf16.gmra.mrb[0].mxu0 %v4542
        %v6423 = vpop.f32.mrb[0].mxu0
        %v6424 = vadd.f32 %v6135, %v6423
        %v6425 = vpop.f32.mrb[0].mxu0
        %v6426 = vpop.f32.mrb[0].mxu0
        %v6427 = vadd.f32 %v6138, %v6426
        %v6428 = vpop.f32.mrb[0].mxu0
        %6429 = vmatprep.mubr.bf16.mxu0 %v4671
        %6430 = vmatmul.mubr.bf16.gmra.mrb[0].mxu0 %v4543
        %v6431 = vpop.f32.mrb[0].mxu0
        %v6432 = vadd.f32 %v6143, %v6431
        %v6433 = vpop.f32.mrb[0].mxu0
        %v6434 = vpop.f32.mrb[0].mxu0
        %v6435 = vadd.f32 %v6146, %v6434
        %v6436 = vpop.f32.mrb[0].mxu0
        %6437 = vmatprep.mubr.bf16.mxu0 %v4672
        %6438 = vmatmul.mubr.bf16.gmra.mrb[0].mxu0 %v4544
        %v6439 = vpop.f32.mrb[0].mxu0
        %v6440 = vadd.f32 %v6151, %v6439
        %v6441 = vpop.f32.mrb[0].mxu0
        %v6442 = vpop.f32.mrb[0].mxu0
        %v6443 = vadd.f32 %v6154, %v6442
        %v6444 = vpop.f32.mrb[0].mxu0
        %6445 = vmatprep.mubr.bf16.mxu0 %v4673
        %6446 = vmatmul.mubr.bf16.gmra.mrb[0].mxu0 %v4545
        %v6447 = vpop.f32.mrb[0].mxu0
        %v6448 = vadd.f32 %v6159, %v6447
        %v6449 = vpop.f32.mrb[0].mxu0
        %v6450 = vpop.f32.mrb[0].mxu0
        %v6451 = vadd.f32 %v6162, %v6450
        %v6452 = vpop.f32.mrb[0].mxu0
        %6453 = vmatprep.mubr.bf16.mxu0 %v4674
        %6454 = vmatmul.mubr.bf16.gmra.mrb[0].mxu0 %v4546
        %v6455 = vpop.f32.mrb[0].mxu0
        %v6456 = vadd.f32 %v6167, %v6455
        %v6457 = vpop.f32.mrb[0].mxu0
        %v6458 = vpop.f32.mrb[0].mxu0
        %v6459 = vadd.f32 %v6170, %v6458
        %v6460 = vpop.f32.mrb[0].mxu0
        %6461 = vmatprep.mubr.bf16.mxu0 %v4675
        %6462 = vmatmul.mubr.bf16.gmra.mrb[0].mxu0 %v4547
        %v6463 = vpop.f32.mrb[0].mxu0
        %v6464 = vadd.f32 %v6175, %v6463
        %v6465 = vpop.f32.mrb[0].mxu0
        %v6466 = vpop.f32.mrb[0].mxu0
        %v6467 = vadd.f32 %v6178, %v6466
        %v6468 = vpop.f32.mrb[0].mxu0
        %6469 = vmatprep.mubr.bf16.mxu0 %v4676
        %6470 = vmatmul.mubr.bf16.gmra.mrb[0].mxu0 %v4548
        %v6471 = vpop.f32.mrb[0].mxu0
        %v6472 = vadd.f32 %v6183, %v6471
        %v6473 = vpop.f32.mrb[0].mxu0
        %v6474 = vpop.f32.mrb[0].mxu0
        %v6475 = vadd.f32 %v6186, %v6474
        %v6476 = vpop.f32.mrb[0].mxu0
        %6477 = vmatprep.mubr.bf16.mxu0 %v4677
        %6478 = vmatmul.mubr.bf16.gmra.mrb[0].mxu0 %v4549
        %v6479 = vpop.f32.mrb[0].mxu0
        %v6480 = vadd.f32 %v6191, %v6479
        %v6481 = vpop.f32.mrb[0].mxu0
        %v6482 = vpop.f32.mrb[0].mxu0
        %v6483 = vadd.f32 %v6194, %v6482
        %v6484 = vpop.f32.mrb[0].mxu0
        %6485 = vmatprep.mubr.bf16.mxu0 %v4678
        %6486 = vmatmul.mubr.bf16.gmra.mrb[0].mxu0 %v4550
        %v6487 = vpop.f32.mrb[0].mxu0
        %v6488 = vadd.f32 %v6199, %v6487
        %v6489 = vpop.f32.mrb[0].mxu0
        %v6490 = vpop.f32.mrb[0].mxu0
        %v6491 = vadd.f32 %v6202, %v6490
        %v6492 = vpop.f32.mrb[0].mxu0
        %6493 = vmatprep.mubr.bf16.mxu0 %v4679
        %6494 = vmatmul.mubr.bf16.gmra.mrb[0].mxu0 %v4551
        %v6495 = vpop.f32.mrb[0].mxu0
        %v6496 = vadd.f32 %v6207, %v6495
        %v6497 = vpop.f32.mrb[0].mxu0
        %v6498 = vpop.f32.mrb[0].mxu0
        %v6499 = vadd.f32 %v6210, %v6498
        %v6500 = vpop.f32.mrb[0].mxu0
        %6501 = vmatprep.mubr.bf16.mxu0 %v4680
        %6502 = vmatmul.mubr.bf16.gmra.mrb[0].mxu0 %v4552
        %v6503 = vpop.f32.mrb[0].mxu0
        %v6504 = vadd.f32 %v6215, %v6503
        %v6505 = vpop.f32.mrb[0].mxu0
        %v6506 = vpop.f32.mrb[0].mxu0
        %v6507 = vadd.f32 %v6218, %v6506
        %v6508 = vpop.f32.mrb[0].mxu0
        %6509 = vmatprep.mubr.bf16.mxu0 %v4681
        %6510 = vmatmul.mubr.bf16.gmra.mrb[0].mxu0 %v4553
        %v6511 = vpop.f32.mrb[0].mxu0
        %v6512 = vadd.f32 %v6223, %v6511
        %v6513 = vpop.f32.mrb[0].mxu0
        %v6514 = vpop.f32.mrb[0].mxu0
        %v6515 = vadd.f32 %v6226, %v6514
        %v6516 = vpop.f32.mrb[0].mxu0
        %6517 = vmatprep.mubr.bf16.mxu0 %v4682
        %6518 = vmatmul.mubr.bf16.gmra.mrb[0].mxu0 %v4554
        %v6519 = vpop.f32.mrb[0].mxu0
        %v6520 = vadd.f32 %v6231, %v6519
        %v6521 = vpop.f32.mrb[0].mxu0
        %v6522 = vpop.f32.mrb[0].mxu0
        %v6523 = vadd.f32 %v6234, %v6522
        %v6524 = vpop.f32.mrb[0].mxu0
        %6525 = vmatprep.mubr.bf16.mxu0 %v4683
        %6526 = vmatmul.mubr.bf16.gmra.mrb[0].mxu0 %v4555
        %v6527 = vpop.f32.mrb[0].mxu0
        %v6528 = vadd.f32 %v6239, %v6527
        %v6529 = vpop.f32.mrb[0].mxu0
        %v6530 = vpop.f32.mrb[0].mxu0
        %v6531 = vadd.f32 %v6242, %v6530
        %v6532 = vpop.f32.mrb[0].mxu0
        %6533 = vmatprep.mubr.bf16.mxu0 %v4684
        %6534 = vmatmul.mubr.bf16.gmra.mrb[0].mxu0 %v4556
        %v6535 = vpop.f32.mrb[0].mxu0
        %v6536 = vadd.f32 %v6247, %v6535
        %v6537 = vpop.f32.mrb[0].mxu0
        %v6538 = vpop.f32.mrb[0].mxu0
        %v6539 = vadd.f32 %v6250, %v6538
        %v6540 = vpop.f32.mrb[0].mxu0
        %6541 = vmatprep.mubr.bf16.mxu0 %v4685
        %6542 = vmatmul.mubr.bf16.gmra.mrb[0].mxu0 %v4557
        %v6543 = vpop.f32.mrb[0].mxu0
        %v6544 = vadd.f32 %v6255, %v6543
        %v6545 = vpop.f32.mrb[0].mxu0
        %v6546 = vpop.f32.mrb[0].mxu0
        %v6547 = vadd.f32 %v6258, %v6546
        %v6548 = vpop.f32.mrb[0].mxu0
        %6549 = vmatprep.mubr.bf16.mxu0 %v4686
        %6550 = vmatmul.mubr.bf16.gmra.mrb[0].mxu0 %v4558
        %v6551 = vpop.f32.mrb[0].mxu0
        %v6552 = vadd.f32 %v6263, %v6551
        %v6553 = vpop.f32.mrb[0].mxu0
        %v6554 = vpop.f32.mrb[0].mxu0
        %v6555 = vadd.f32 %v6266, %v6554
        %v6556 = vpop.f32.mrb[0].mxu0
        %6557 = vmatprep.mubr.bf16.mxu0 %v4687
        %6558 = vmatmul.mubr.bf16.gmra.mrb[0].mxu0 %v4559
        %v6559 = vpop.f32.mrb[0].mxu0
        %v6560 = vadd.f32 %v6271, %v6559
        %v6561 = vpop.f32.mrb[0].mxu0
        %v6562 = vpop.f32.mrb[0].mxu0
        %v6563 = vadd.f32 %v6274, %v6562
        %v6564 = vpop.f32.mrb[0].mxu0
        %6565 = vmatprep.mubr.bf16.mxu0 %v4688
        %6566 = vmatmul.mubr.bf16.gmra.mrb[0].mxu0 %v4560
        %v6567 = vpop.f32.mrb[0].mxu0
        %v6568 = vadd.f32 %v6279, %v6567
        %v6569 = vpop.f32.mrb[0].mxu0
        %v6570 = vpop.f32.mrb[0].mxu0
        %v6571 = vadd.f32 %v6282, %v6570
        %v6572 = vpop.f32.mrb[0].mxu0
        %6573 = vmatprep.mubr.bf16.mxu0 %v4689
        %6574 = vmatmul.mubr.bf16.gmra.mrb[0].mxu0 %v4561
        %v6575 = vpop.f32.mrb[0].mxu0
        %v6576 = vadd.f32 %v6287, %v6575
        %v6577 = vpop.f32.mrb[0].mxu0
        %v6578 = vpop.f32.mrb[0].mxu0
        %v6579 = vadd.f32 %v6290, %v6578
        %v6580 = vpop.f32.mrb[0].mxu0
        %6581 = vdwg.mxu0
        %6582 = vmatprep.subr.bf16.mxu0 0
        %6583 = vmatpush1.bf16.msra.mxu0 %v5346
        %6584 = vmatprep.subr.bf16.mxu0 0
        %6585 = vmatpush1.bf16.msra.mxu0 %v5347
        %6586 = vmatprep.subr.bf16.mxu0 0
        %6587 = vmatpush1.bf16.msra.mxu0 %v5348
        %6588 = vmatprep.subr.bf16.mxu0 0
        %6589 = vmatpush1.bf16.msra.mxu0 %v5349
        %6590 = vmatprep.subr.bf16.mxu0 0
        %6591 = vmatpush1.bf16.msra.mxu0 %v5350
        %6592 = vmatprep.subr.bf16.mxu0 0
        %6593 = vmatpush1.bf16.msra.mxu0 %v5351
        %6594 = vmatprep.subr.bf16.mxu0 0
        %6595 = vmatpush1.bf16.msra.mxu0 %v5352
        %6596 = vmatprep.subr.bf16.mxu0 0
        %6597 = vmatpush1.bf16.msra.mxu0 %v5353
        %6598 = vmatprep.subr.bf16.mxu0 0
        %6599 = vmatpush1.bf16.msra.mxu0 0
        %6600 = vmatprep.subr.bf16.mxu0 0
        %6601 = vmatpush1.bf16.msra.mxu0 0
        %6602 = vmatprep.subr.bf16.mxu0 0
        %6603 = vmatpush1.bf16.msra.mxu0 0
        %6604 = vmatprep.subr.bf16.mxu0 0
        %6605 = vmatpush1.bf16.msra.mxu0 0
        %6606 = vmatprep.subr.bf16.mxu0 0
        %6607 = vmatpush1.bf16.msra.mxu0 0
        %6608 = vmatprep.subr.bf16.mxu0 0
        %6609 = vmatpush1.bf16.msra.mxu0 0
        %6610 = vmatprep.subr.bf16.mxu0 0
        %6611 = vmatpush1.bf16.msra.mxu0 0
        %6612 = vmatprep.subr.bf16.mxu0 0
        %6613 = vmatpush1.bf16.msra.mxu0 0
        %6614 = vmatprep.mubr.bf16.mxu0 0
        %6615 = vmatmul.mubr.bf16.gmra.mrb[0].mxu0 %v4786
        %v6616 = vpop.f32.mrb[0].mxu0
        %v6617 = vadd.f32 %v6328, %v6616
        %v6618 = vpop.f32.mrb[0].mxu0
        %v6619 = vpop.f32.mrb[0].mxu0
        %v6620 = vadd.f32 %v6331, %v6619
        %v6621 = vpop.f32.mrb[0].mxu0
        %6622 = vmatprep.mubr.bf16.mxu0 0
        %6623 = vmatmul.mubr.bf16.gmra.mrb[0].mxu0 %v4787
        %v6624 = vpop.f32.mrb[0].mxu0
        %v6625 = vadd.f32 %v6336, %v6624
        %v6626 = vpop.f32.mrb[0].mxu0
        %v6627 = vpop.f32.mrb[0].mxu0
        %v6628 = vadd.f32 %v6339, %v6627
        %v6629 = vpop.f32.mrb[0].mxu0
        %6630 = vmatprep.mubr.bf16.mxu0 0
        %6631 = vmatmul.mubr.bf16.gmra.mrb[0].mxu0 %v4788
        %v6632 = vpop.f32.mrb[0].mxu0
        %v6633 = vadd.f32 %v6344, %v6632
        %v6634 = vpop.f32.mrb[0].mxu0
        %v6635 = vpop.f32.mrb[0].mxu0
        %v6636 = vadd.f32 %v6347, %v6635
        %v6637 = vpop.f32.mrb[0].mxu0
        %6638 = vmatprep.mubr.bf16.mxu0 0
        %6639 = vmatmul.mubr.bf16.gmra.mrb[0].mxu0 %v4789
        %v6640 = vpop.f32.mrb[0].mxu0
        %v6641 = vadd.f32 %v6352, %v6640
        %v6642 = vpop.f32.mrb[0].mxu0
        %v6643 = vpop.f32.mrb[0].mxu0
        %v6644 = vadd.f32 %v6355, %v6643
        %v6645 = vpop.f32.mrb[0].mxu0
        %6646 = vmatprep.mubr.bf16.mxu0 0
        %6647 = vmatmul.mubr.bf16.gmra.mrb[0].mxu0 %v4790
        %v6648 = vpop.f32.mrb[0].mxu0
        %v6649 = vadd.f32 %v6360, %v6648
        %v6650 = vpop.f32.mrb[0].mxu0
        %v6651 = vpop.f32.mrb[0].mxu0
        %v6652 = vadd.f32 %v6363, %v6651
        %v6653 = vpop.f32.mrb[0].mxu0
        %6654 = vmatprep.mubr.bf16.mxu0 0
        %6655 = vmatmul.mubr.bf16.gmra.mrb[0].mxu0 %v4791
        %v6656 = vpop.f32.mrb[0].mxu0
        %v6657 = vadd.f32 %v6368, %v6656
        %v6658 = vpop.f32.mrb[0].mxu0
        %v6659 = vpop.f32.mrb[0].mxu0
        %v6660 = vadd.f32 %v6371, %v6659
        %v6661 = vpop.f32.mrb[0].mxu0
        %6662 = vmatprep.mubr.bf16.mxu0 0
        %6663 = vmatmul.mubr.bf16.gmra.mrb[0].mxu0 %v4792
        %v6664 = vpop.f32.mrb[0].mxu0
        %v6665 = vadd.f32 %v6376, %v6664
        %v6666 = vpop.f32.mrb[0].mxu0
        %v6667 = vpop.f32.mrb[0].mxu0
        %v6668 = vadd.f32 %v6379, %v6667
        %v6669 = vpop.f32.mrb[0].mxu0
        %6670 = vmatprep.mubr.bf16.mxu0 0
        %6671 = vmatmul.mubr.bf16.gmra.mrb[0].mxu0 %v4793
        %v6672 = vpop.f32.mrb[0].mxu0
        %v6673 = vadd.f32 %v6384, %v6672
        %v6674 = vpop.f32.mrb[0].mxu0
        %v6675 = vpop.f32.mrb[0].mxu0
        %v6676 = vadd.f32 %v6387, %v6675
        %v6677 = vpop.f32.mrb[0].mxu0
        %6678 = vmatprep.mubr.bf16.mxu0 0
        %6679 = vmatmul.mubr.bf16.gmra.mrb[0].mxu0 %v4794
        %v6680 = vpop.f32.mrb[0].mxu0
        %v6681 = vadd.f32 %v6392, %v6680
        %v6682 = vpop.f32.mrb[0].mxu0
        %v6683 = vpop.f32.mrb[0].mxu0
        %v6684 = vadd.f32 %v6395, %v6683
        %v6685 = vpop.f32.mrb[0].mxu0
        %6686 = vmatprep.mubr.bf16.mxu0 0
        %6687 = vmatmul.mubr.bf16.gmra.mrb[0].mxu0 %v4795
        %v6688 = vpop.f32.mrb[0].mxu0
        %v6689 = vadd.f32 %v6400, %v6688
        %v6690 = vpop.f32.mrb[0].mxu0
        %v6691 = vpop.f32.mrb[0].mxu0
        %v6692 = vadd.f32 %v6403, %v6691
        %v6693 = vpop.f32.mrb[0].mxu0
        %6694 = vmatprep.mubr.bf16.mxu0 0
        %6695 = vmatmul.mubr.bf16.gmra.mrb[0].mxu0 %v4796
        %v6696 = vpop.f32.mrb[0].mxu0
        %v6697 = vadd.f32 %v6408, %v6696
        %v6698 = vpop.f32.mrb[0].mxu0
        %v6699 = vpop.f32.mrb[0].mxu0
        %v6700 = vadd.f32 %v6411, %v6699
        %v6701 = vpop.f32.mrb[0].mxu0
        %6702 = vmatprep.mubr.bf16.mxu0 0
        %6703 = vmatmul.mubr.bf16.gmra.mrb[0].mxu0 %v4797
        %v6704 = vpop.f32.mrb[0].mxu0
        %v6705 = vadd.f32 %v6416, %v6704
        %v6706 = vpop.f32.mrb[0].mxu0
        %v6707 = vpop.f32.mrb[0].mxu0
        %v6708 = vadd.f32 %v6419, %v6707
        %v6709 = vpop.f32.mrb[0].mxu0
        %6710 = vmatprep.mubr.bf16.mxu0 0
        %6711 = vmatmul.mubr.bf16.gmra.mrb[0].mxu0 %v4798
        %v6712 = vpop.f32.mrb[0].mxu0
        %v6713 = vadd.f32 %v6424, %v6712
        %v6714 = vpop.f32.mrb[0].mxu0
        %v6715 = vpop.f32.mrb[0].mxu0
        %v6716 = vadd.f32 %v6427, %v6715
        %v6717 = vpop.f32.mrb[0].mxu0
        %6718 = vmatprep.mubr.bf16.mxu0 0
        %6719 = vmatmul.mubr.bf16.gmra.mrb[0].mxu0 %v4799
        %v6720 = vpop.f32.mrb[0].mxu0
        %v6721 = vadd.f32 %v6432, %v6720
        %v6722 = vpop.f32.mrb[0].mxu0
        %v6723 = vpop.f32.mrb[0].mxu0
        %v6724 = vadd.f32 %v6435, %v6723
        %v6725 = vpop.f32.mrb[0].mxu0
        %6726 = vmatprep.mubr.bf16.mxu0 0
        %6727 = vmatmul.mubr.bf16.gmra.mrb[0].mxu0 %v4800
        %v6728 = vpop.f32.mrb[0].mxu0
        %v6729 = vadd.f32 %v6440, %v6728
        %v6730 = vpop.f32.mrb[0].mxu0
        %v6731 = vpop.f32.mrb[0].mxu0
        %v6732 = vadd.f32 %v6443, %v6731
        %v6733 = vpop.f32.mrb[0].mxu0
        %6734 = vmatprep.mubr.bf16.mxu0 0
        %6735 = vmatmul.mubr.bf16.gmra.mrb[0].mxu0 %v4801
        %v6736 = vpop.f32.mrb[0].mxu0
        %v6737 = vadd.f32 %v6448, %v6736
        %v6738 = vpop.f32.mrb[0].mxu0
        %v6739 = vpop.f32.mrb[0].mxu0
        %v6740 = vadd.f32 %v6451, %v6739
        %v6741 = vpop.f32.mrb[0].mxu0
        %6742 = vmatprep.mubr.bf16.mxu0 0
        %6743 = vmatmul.mubr.bf16.gmra.mrb[0].mxu0 %v4802
        %v6744 = vpop.f32.mrb[0].mxu0
        %v6745 = vadd.f32 %v6456, %v6744
        %v6746 = vpop.f32.mrb[0].mxu0
        %v6747 = vpop.f32.mrb[0].mxu0
        %v6748 = vadd.f32 %v6459, %v6747
        %v6749 = vpop.f32.mrb[0].mxu0
        %6750 = vmatprep.mubr.bf16.mxu0 0
        %6751 = vmatmul.mubr.bf16.gmra.mrb[0].mxu0 %v4803
        %v6752 = vpop.f32.mrb[0].mxu0
        %v6753 = vadd.f32 %v6464, %v6752
        %v6754 = vpop.f32.mrb[0].mxu0
        %v6755 = vpop.f32.mrb[0].mxu0
        %v6756 = vadd.f32 %v6467, %v6755
        %v6757 = vpop.f32.mrb[0].mxu0
        %6758 = vmatprep.mubr.bf16.mxu0 0
        %6759 = vmatmul.mubr.bf16.gmra.mrb[0].mxu0 %v4804
        %v6760 = vpop.f32.mrb[0].mxu0
        %v6761 = vadd.f32 %v6472, %v6760
        %v6762 = vpop.f32.mrb[0].mxu0
        %v6763 = vpop.f32.mrb[0].mxu0
        %v6764 = vadd.f32 %v6475, %v6763
        %v6765 = vpop.f32.mrb[0].mxu0
        %6766 = vmatprep.mubr.bf16.mxu0 0
        %6767 = vmatmul.mubr.bf16.gmra.mrb[0].mxu0 %v4805
        %v6768 = vpop.f32.mrb[0].mxu0
        %v6769 = vadd.f32 %v6480, %v6768
        %v6770 = vpop.f32.mrb[0].mxu0
        %v6771 = vpop.f32.mrb[0].mxu0
        %v6772 = vadd.f32 %v6483, %v6771
        %v6773 = vpop.f32.mrb[0].mxu0
        %6774 = vmatprep.mubr.bf16.mxu0 0
        %6775 = vmatmul.mubr.bf16.gmra.mrb[0].mxu0 %v4806
        %v6776 = vpop.f32.mrb[0].mxu0
        %v6777 = vadd.f32 %v6488, %v6776
        %v6778 = vpop.f32.mrb[0].mxu0
        %v6779 = vpop.f32.mrb[0].mxu0
        %v6780 = vadd.f32 %v6491, %v6779
        %v6781 = vpop.f32.mrb[0].mxu0
        %6782 = vmatprep.mubr.bf16.mxu0 0
        %6783 = vmatmul.mubr.bf16.gmra.mrb[0].mxu0 %v4807
        %v6784 = vpop.f32.mrb[0].mxu0
        %v6785 = vadd.f32 %v6496, %v6784
        %v6786 = vpop.f32.mrb[0].mxu0
        %v6787 = vpop.f32.mrb[0].mxu0
        %v6788 = vadd.f32 %v6499, %v6787
        %v6789 = vpop.f32.mrb[0].mxu0
        %6790 = vmatprep.mubr.bf16.mxu0 0
        %6791 = vmatmul.mubr.bf16.gmra.mrb[0].mxu0 %v4808
        %v6792 = vpop.f32.mrb[0].mxu0
        %v6793 = vadd.f32 %v6504, %v6792
        %v6794 = vpop.f32.mrb[0].mxu0
        %v6795 = vpop.f32.mrb[0].mxu0
        %v6796 = vadd.f32 %v6507, %v6795
        %v6797 = vpop.f32.mrb[0].mxu0
        %6798 = vmatprep.mubr.bf16.mxu0 0
        %6799 = vmatmul.mubr.bf16.gmra.mrb[0].mxu0 %v4809
        %v6800 = vpop.f32.mrb[0].mxu0
        %v6801 = vadd.f32 %v6512, %v6800
        %v6802 = vpop.f32.mrb[0].mxu0
        %v6803 = vpop.f32.mrb[0].mxu0
        %v6804 = vadd.f32 %v6515, %v6803
        %v6805 = vpop.f32.mrb[0].mxu0
        %6806 = vmatprep.mubr.bf16.mxu0 0
        %6807 = vmatmul.mubr.bf16.gmra.mrb[0].mxu0 %v4810
        %v6808 = vpop.f32.mrb[0].mxu0
        %v6809 = vadd.f32 %v6520, %v6808
        %v6810 = vpop.f32.mrb[0].mxu0
        %v6811 = vpop.f32.mrb[0].mxu0
        %v6812 = vadd.f32 %v6523, %v6811
        %v6813 = vpop.f32.mrb[0].mxu0
        %6814 = vmatprep.mubr.bf16.mxu0 0
        %6815 = vmatmul.mubr.bf16.gmra.mrb[0].mxu0 %v4811
        %v6816 = vpop.f32.mrb[0].mxu0
        %v6817 = vadd.f32 %v6528, %v6816
        %v6818 = vpop.f32.mrb[0].mxu0
        %v6819 = vpop.f32.mrb[0].mxu0
        %v6820 = vadd.f32 %v6531, %v6819
        %v6821 = vpop.f32.mrb[0].mxu0
        %6822 = vmatprep.mubr.bf16.mxu0 0
        %6823 = vmatmul.mubr.bf16.gmra.mrb[0].mxu0 %v4812
        %v6824 = vpop.f32.mrb[0].mxu0
        %v6825 = vadd.f32 %v6536, %v6824
        %v6826 = vpop.f32.mrb[0].mxu0
        %v6827 = vpop.f32.mrb[0].mxu0
        %v6828 = vadd.f32 %v6539, %v6827
        %v6829 = vpop.f32.mrb[0].mxu0
        %6830 = vmatprep.mubr.bf16.mxu0 0
        %6831 = vmatmul.mubr.bf16.gmra.mrb[0].mxu0 %v4813
        %v6832 = vpop.f32.mrb[0].mxu0
        %v6833 = vadd.f32 %v6544, %v6832
        %v6834 = vpop.f32.mrb[0].mxu0
        %v6835 = vpop.f32.mrb[0].mxu0
        %v6836 = vadd.f32 %v6547, %v6835
        %v6837 = vpop.f32.mrb[0].mxu0
        %6838 = vmatprep.mubr.bf16.mxu0 0
        %6839 = vmatmul.mubr.bf16.gmra.mrb[0].mxu0 %v4814
        %v6840 = vpop.f32.mrb[0].mxu0
        %v6841 = vadd.f32 %v6552, %v6840
        %v6842 = vpop.f32.mrb[0].mxu0
        %v6843 = vpop.f32.mrb[0].mxu0
        %v6844 = vadd.f32 %v6555, %v6843
        %v6845 = vpop.f32.mrb[0].mxu0
        %6846 = vmatprep.mubr.bf16.mxu0 0
        %6847 = vmatmul.mubr.bf16.gmra.mrb[0].mxu0 %v4815
        %v6848 = vpop.f32.mrb[0].mxu0
        %v6849 = vadd.f32 %v6560, %v6848
        %v6850 = vpop.f32.mrb[0].mxu0
        %v6851 = vpop.f32.mrb[0].mxu0
        %v6852 = vadd.f32 %v6563, %v6851
        %v6853 = vpop.f32.mrb[0].mxu0
        %6854 = vmatprep.mubr.bf16.mxu0 0
        %6855 = vmatmul.mubr.bf16.gmra.mrb[0].mxu0 %v4816
        %v6856 = vpop.f32.mrb[0].mxu0
        %v6857 = vadd.f32 %v6568, %v6856
        %v6858 = vpop.f32.mrb[0].mxu0
        %v6859 = vpop.f32.mrb[0].mxu0
        %v6860 = vadd.f32 %v6571, %v6859
        %v6861 = vpop.f32.mrb[0].mxu0
        %6862 = vmatprep.mubr.bf16.mxu0 0
        %6863 = vmatmul.mubr.bf16.gmra.mrb[0].mxu0 %v4817
        %v6864 = vpop.f32.mrb[0].mxu0
        %v6865 = vadd.f32 %v6576, %v6864
        %v6866 = vpop.f32.mrb[0].mxu0
        %v6867 = vpop.f32.mrb[0].mxu0
        %v6868 = vadd.f32 %v6579, %v6867
        %v6869 = vpop.f32.mrb[0].mxu0
        %6870 = vdwg.mxu0
        %v6871 = vadd.f32 %v6617, %v6620
        %v6872 = vadd.f32 %v6871, %v6625
        %v6873 = vadd.f32 %v6872, %v6628
        %v6874 = vadd.f32 %v6873, %v6633
        %v6875 = vadd.f32 %v6874, %v6636
        %v6876 = vadd.f32 %v6875, %v6641
        %v6877 = vadd.f32 %v6876, %v6644
        %v6878 = vadd.f32 %v6877, %v6649
        %v6879 = vadd.f32 %v6878, %v6652
        %v6880 = vadd.f32 %v6879, %v6657
        %v6881 = vadd.f32 %v6880, %v6660
        %v6882 = vadd.f32 %v6881, %v6665
        %v6883 = vadd.f32 %v6882, %v6668
        %v6884 = vadd.f32 %v6883, %v6673
        %v6885 = vadd.f32 %v6884, %v6676
        %v6886 = vadd.f32 %v6885, %v6681
        %v6887 = vadd.f32 %v6886, %v6684
        %v6888 = vadd.f32 %v6887, %v6689
        %v6889 = vadd.f32 %v6888, %v6692
        %v6890 = vadd.f32 %v6889, %v6697
        %v6891 = vadd.f32 %v6890, %v6700
        %v6892 = vadd.f32 %v6891, %v6705
        %v6893 = vadd.f32 %v6892, %v6708
        %v6894 = vadd.f32 %v6893, %v6713
        %v6895 = vadd.f32 %v6894, %v6716
        %v6896 = vadd.f32 %v6895, %v6721
        %v6897 = vadd.f32 %v6896, %v6724
        %v6898 = vadd.f32 %v6897, %v6729
        %v6899 = vadd.f32 %v6898, %v6732
        %v6900 = vadd.f32 %v6899, %v6737
        %v6901 = vadd.f32 %v6900, %v6740
        %v6902 = vadd.f32 %v6901, %v6745
        %v6903 = vadd.f32 %v6902, %v6748
        %v6904 = vadd.f32 %v6903, %v6753
        %v6905 = vadd.f32 %v6904, %v6756
        %v6906 = vadd.f32 %v6905, %v6761
        %v6907 = vadd.f32 %v6906, %v6764
        %v6908 = vadd.f32 %v6907, %v6769
        %v6909 = vadd.f32 %v6908, %v6772
        %v6910 = vadd.f32 %v6909, %v6777
        %v6911 = vadd.f32 %v6910, %v6780
        %v6912 = vadd.f32 %v6911, %v6785
        %v6913 = vadd.f32 %v6912, %v6788
        %v6914 = vadd.f32 %v6913, %v6793
        %v6915 = vadd.f32 %v6914, %v6796
        %v6916 = vadd.f32 %v6915, %v6801
        %v6917 = vadd.f32 %v6916, %v6804
        %v6918 = vadd.f32 %v6917, %v6809
        %v6919 = vadd.f32 %v6918, %v6812
        %v6920 = vadd.f32 %v6919, %v6817
        %v6921 = vadd.f32 %v6920, %v6820
        %v6922 = vadd.f32 %v6921, %v6825
        %v6923 = vadd.f32 %v6922, %v6828
        %v6924 = vadd.f32 %v6923, %v6833
        %v6925 = vadd.f32 %v6924, %v6836
        %v6926 = vadd.f32 %v6925, %v6841
        %v6927 = vadd.f32 %v6926, %v6844
        %v6928 = vadd.f32 %v6927, %v6849
        %v6929 = vadd.f32 %v6928, %v6852
        %v6930 = vadd.f32 %v6929, %v6857
        %v6931 = vadd.f32 %v6930, %v6860
        %v6932 = vadd.f32 %v6931, %v6865
        %v6933 = vadd.f32 %v6932, %v6868
        %v6934 = vrot.slane %v6933, 4
        %v6935 = vadd.f32 %v6933, %v6934
        %v6936 = vrot.slane %v6935, 2
        %v6937 = vadd.f32 %v6935, %v6936
        %v6938 = vrot.slane %v6937, 1
        %v6939 = vadd.f32 %v6937, %v6938
        %6940 = vst [vmem:[%s230] sm:$0x1] %v6939
        %v6941 = vmul.f32 %v6617, %v6617
        %v6942 = vmul.f32 %v6620, %v6620
        %v6943 = vmul.f32 %v6625, %v6625
        %v6944 = vmul.f32 %v6628, %v6628
        %v6945 = vmul.f32 %v6633, %v6633
        %v6946 = vmul.f32 %v6636, %v6636
        %v6947 = vmul.f32 %v6641, %v6641
        %v6948 = vmul.f32 %v6644, %v6644
        %v6949 = vmul.f32 %v6649, %v6649
        %v6950 = vmul.f32 %v6652, %v6652
        %v6951 = vmul.f32 %v6657, %v6657
        %v6952 = vmul.f32 %v6660, %v6660
        %v6953 = vmul.f32 %v6665, %v6665
        %v6954 = vmul.f32 %v6668, %v6668
        %v6955 = vmul.f32 %v6673, %v6673
        %v6956 = vmul.f32 %v6676, %v6676
        %v6957 = vmul.f32 %v6681, %v6681
        %v6958 = vmul.f32 %v6684, %v6684
        %v6959 = vmul.f32 %v6689, %v6689
        %v6960 = vmul.f32 %v6692, %v6692
        %v6961 = vmul.f32 %v6697, %v6697
        %v6962 = vmul.f32 %v6700, %v6700
        %v6963 = vmul.f32 %v6705, %v6705
        %v6964 = vmul.f32 %v6708, %v6708
        %v6965 = vmul.f32 %v6713, %v6713
        %v6966 = vmul.f32 %v6716, %v6716
        %v6967 = vmul.f32 %v6721, %v6721
        %v6968 = vmul.f32 %v6724, %v6724
        %v6969 = vmul.f32 %v6729, %v6729
        %v6970 = vmul.f32 %v6732, %v6732
        %v6971 = vmul.f32 %v6737, %v6737
        %v6972 = vmul.f32 %v6740, %v6740
        %v6973 = vmul.f32 %v6745, %v6745
        %v6974 = vmul.f32 %v6748, %v6748
        %v6975 = vmul.f32 %v6753, %v6753
        %v6976 = vmul.f32 %v6756, %v6756
        %v6977 = vmul.f32 %v6761, %v6761
        %v6978 = vmul.f32 %v6764, %v6764
        %v6979 = vmul.f32 %v6769, %v6769
        %v6980 = vmul.f32 %v6772, %v6772
        %v6981 = vmul.f32 %v6777, %v6777
        %v6982 = vmul.f32 %v6780, %v6780
        %v6983 = vmul.f32 %v6785, %v6785
        %v6984 = vmul.f32 %v6788, %v6788
        %v6985 = vmul.f32 %v6793, %v6793
        %v6986 = vmul.f32 %v6796, %v6796
        %v6987 = vmul.f32 %v6801, %v6801
        %v6988 = vmul.f32 %v6804, %v6804
        %v6989 = vmul.f32 %v6809, %v6809
        %v6990 = vmul.f32 %v6812, %v6812
        %v6991 = vmul.f32 %v6817, %v6817
        %v6992 = vmul.f32 %v6820, %v6820
        %v6993 = vmul.f32 %v6825, %v6825
        %v6994 = vmul.f32 %v6828, %v6828
        %v6995 = vmul.f32 %v6833, %v6833
        %v6996 = vmul.f32 %v6836, %v6836
        %v6997 = vmul.f32 %v6841, %v6841
        %v6998 = vmul.f32 %v6844, %v6844
        %v6999 = vmul.f32 %v6849, %v6849
        %v7000 = vmul.f32 %v6852, %v6852
        %v7001 = vmul.f32 %v6857, %v6857
        %v7002 = vmul.f32 %v6860, %v6860
        %v7003 = vmul.f32 %v6865, %v6865
        %v7004 = vmul.f32 %v6868, %v6868
        %v7005 = vadd.f32 %v6941, %v6942
        %v7006 = vadd.f32 %v7005, %v6943
        %v7007 = vadd.f32 %v7006, %v6944
        %v7008 = vadd.f32 %v7007, %v6945
        %v7009 = vadd.f32 %v7008, %v6946
        %v7010 = vadd.f32 %v7009, %v6947
        %v7011 = vadd.f32 %v7010, %v6948
        %v7012 = vadd.f32 %v7011, %v6949
        %v7013 = vadd.f32 %v7012, %v6950
        %v7014 = vadd.f32 %v7013, %v6951
        %v7015 = vadd.f32 %v7014, %v6952
        %v7016 = vadd.f32 %v7015, %v6953
        %v7017 = vadd.f32 %v7016, %v6954
        %v7018 = vadd.f32 %v7017, %v6955
        %v7019 = vadd.f32 %v7018, %v6956
        %v7020 = vadd.f32 %v7019, %v6957
        %v7021 = vadd.f32 %v7020, %v6958
        %v7022 = vadd.f32 %v7021, %v6959
        %v7023 = vadd.f32 %v7022, %v6960
        %v7024 = vadd.f32 %v7023, %v6961
        %v7025 = vadd.f32 %v7024, %v6962
        %v7026 = vadd.f32 %v7025, %v6963
        %v7027 = vadd.f32 %v7026, %v6964
        %v7028 = vadd.f32 %v7027, %v6965
        %v7029 = vadd.f32 %v7028, %v6966
        %v7030 = vadd.f32 %v7029, %v6967
        %v7031 = vadd.f32 %v7030, %v6968
        %v7032 = vadd.f32 %v7031, %v6969
        %v7033 = vadd.f32 %v7032, %v6970
        %v7034 = vadd.f32 %v7033, %v6971
        %v7035 = vadd.f32 %v7034, %v6972
        %v7036 = vadd.f32 %v7035, %v6973
        %v7037 = vadd.f32 %v7036, %v6974
        %v7038 = vadd.f32 %v7037, %v6975
        %v7039 = vadd.f32 %v7038, %v6976
        %v7040 = vadd.f32 %v7039, %v6977
        %v7041 = vadd.f32 %v7040, %v6978
        %v7042 = vadd.f32 %v7041, %v6979
        %v7043 = vadd.f32 %v7042, %v6980
        %v7044 = vadd.f32 %v7043, %v6981
        %v7045 = vadd.f32 %v7044, %v6982
        %v7046 = vadd.f32 %v7045, %v6983
        %v7047 = vadd.f32 %v7046, %v6984
        %v7048 = vadd.f32 %v7047, %v6985
        %v7049 = vadd.f32 %v7048, %v6986
        %v7050 = vadd.f32 %v7049, %v6987
        %v7051 = vadd.f32 %v7050, %v6988
        %v7052 = vadd.f32 %v7051, %v6989
        %v7053 = vadd.f32 %v7052, %v6990
        %v7054 = vadd.f32 %v7053, %v6991
        %v7055 = vadd.f32 %v7054, %v6992
        %v7056 = vadd.f32 %v7055, %v6993
        %v7057 = vadd.f32 %v7056, %v6994
        %v7058 = vadd.f32 %v7057, %v6995
        %v7059 = vadd.f32 %v7058, %v6996
        %v7060 = vadd.f32 %v7059, %v6997
        %v7061 = vadd.f32 %v7060, %v6998
        %v7062 = vadd.f32 %v7061, %v6999
        %v7063 = vadd.f32 %v7062, %v7000
        %v7064 = vadd.f32 %v7063, %v7001
        %v7065 = vadd.f32 %v7064, %v7002
        %v7066 = vadd.f32 %v7065, %v7003
        %v7067 = vadd.f32 %v7066, %v7004
        %v7068 = vrot.slane %v7067, 4
        %v7069 = vadd.f32 %v7067, %v7068
        %v7070 = vrot.slane %v7069, 2
        %v7071 = vadd.f32 %v7069, %v7070
        %v7072 = vrot.slane %v7071, 1
        %v7073 = vadd.f32 %v7071, %v7072
        %7074 = vst [vmem:[%s230 + $0x1] sm:$0x1] %v7073
        %vm7075 = vcmask 1040384
        %vm7076 = vsmask.f32 256
        %vm7077 = vmand %vm7075, %vm7076
        %v7078 = vld [vmem:[%s223] sm:$0x1]
        %v7079 = vsel %vm7077, 0, %v7078
        %7080 = vst [vmem:[%s223] sm:$0x1] %v7079
        %v7081 = vld [vmem:[%s223 + $0x14] sm:$0x1]
        %v7082 = vsel %vm7077, 0, %v7081
        %7083 = vst [vmem:[%s223 + $0x14] sm:$0x1] %v7082
        %v7084 = vld [vmem:[%s223 + $0x28] sm:$0x1]
        %v7085 = vsel %vm7077, 0, %v7084
        %7086 = vst [vmem:[%s223 + $0x28] sm:$0x1] %v7085
        %v7087 = vld [vmem:[%s223 + $0x3c] sm:$0x1]
        %v7088 = vsel %vm7077, 0, %v7087
        %7089 = vst [vmem:[%s223 + $0x3c] sm:$0x1] %v7088
        %v7090 = vld [vmem:[%s223 + $0x50] sm:$0x1]
        %v7091 = vsel %vm7077, 0, %v7090
        %7092 = vst [vmem:[%s223 + $0x50] sm:$0x1] %v7091
        %v7093 = vld [vmem:[%s223 + $0x64] sm:$0x1]
        %v7094 = vsel %vm7077, 0, %v7093
        %7095 = vst [vmem:[%s223 + $0x64] sm:$0x1] %v7094
        %v7096 = vld [vmem:[%s223 + $0x78] sm:$0x1]
        %v7097 = vsel %vm7077, 0, %v7096
        %7098 = vst [vmem:[%s223 + $0x78] sm:$0x1] %v7097
        %v7099 = vld [vmem:[%s223 + $0x8c] sm:$0x1]
        %v7100 = vsel %vm7077, 0, %v7099
        %7101 = vst [vmem:[%s223 + $0x8c] sm:$0x1] %v7100
        %v7102 = vld [vmem:[%s223 + $0xa0] sm:$0x1]
        %v7103 = vsel %vm7077, 0, %v7102
        %7104 = vst [vmem:[%s223 + $0xa0] sm:$0x1] %v7103
        %v7105 = vld [vmem:[%s223 + $0xb4] sm:$0x1]
        %v7106 = vsel %vm7077, 0, %v7105
        %7107 = vst [vmem:[%s223 + $0xb4] sm:$0x1] %v7106
        %v7108 = vld [vmem:[%s223 + $0xc8] sm:$0x1]
        %v7109 = vsel %vm7077, 0, %v7108
        %7110 = vst [vmem:[%s223 + $0xc8] sm:$0x1] %v7109
        %v7111 = vld [vmem:[%s223 + $0xdc] sm:$0x1]
        %v7112 = vsel %vm7077, 0, %v7111
        %7113 = vst [vmem:[%s223 + $0xdc] sm:$0x1] %v7112
        %v7114 = vld [vmem:[%s223 + $0xf0] sm:$0x1]
        %v7115 = vsel %vm7077, 0, %v7114
        %7116 = vst [vmem:[%s223 + $0xf0] sm:$0x1] %v7115
        %v7117 = vld [vmem:[%s223 + $0x104] sm:$0x1]
        %v7118 = vsel %vm7077, 0, %v7117
        %7119 = vst [vmem:[%s223 + $0x104] sm:$0x1] %v7118
        %v7120 = vld [vmem:[%s223 + $0x118] sm:$0x1]
        %v7121 = vsel %vm7077, 0, %v7120
        %7122 = vst [vmem:[%s223 + $0x118] sm:$0x1] %v7121
        %v7123 = vld [vmem:[%s223 + $0x12c] sm:$0x1]
        %v7124 = vsel %vm7077, 0, %v7123
        %7125 = vst [vmem:[%s223 + $0x12c] sm:$0x1] %v7124
        %vm7126 = vcmask 1043456
        %vm7127 = vsmask.f32 7938
        %vm7128 = vmand %vm7126, %vm7127
        %v7129 = vld [vmem:[%s223 + $0x10] sm:$0xf]
        %v7130 = vsel %vm7128, 0, %v7129
        %7131 = vst [vmem:[%s223 + $0x10] sm:$0xf] %v7130
        %v7132 = vld [vmem:[%s223 + $0x24] sm:$0xf]
        %v7133 = vsel %vm7128, 0, %v7132
        %7134 = vst [vmem:[%s223 + $0x24] sm:$0xf] %v7133
        %v7135 = vld [vmem:[%s223 + $0x38] sm:$0xf]
        %v7136 = vsel %vm7128, 0, %v7135
        %7137 = vst [vmem:[%s223 + $0x38] sm:$0xf] %v7136
        %v7138 = vld [vmem:[%s223 + $0x4c] sm:$0xf]
        %v7139 = vsel %vm7128, 0, %v7138
        %7140 = vst [vmem:[%s223 + $0x4c] sm:$0xf] %v7139
        %v7141 = vld [vmem:[%s223 + $0x60] sm:$0xf]
        %v7142 = vsel %vm7128, 0, %v7141
        %7143 = vst [vmem:[%s223 + $0x60] sm:$0xf] %v7142
        %v7144 = vld [vmem:[%s223 + $0x74] sm:$0xf]
        %v7145 = vsel %vm7128, 0, %v7144
        %7146 = vst [vmem:[%s223 + $0x74] sm:$0xf] %v7145
        %v7147 = vld [vmem:[%s223 + $0x88] sm:$0xf]
        %v7148 = vsel %vm7128, 0, %v7147
        %7149 = vst [vmem:[%s223 + $0x88] sm:$0xf] %v7148
        %v7150 = vld [vmem:[%s223 + $0x9c] sm:$0xf]
        %v7151 = vsel %vm7128, 0, %v7150
        %7152 = vst [vmem:[%s223 + $0x9c] sm:$0xf] %v7151
        %v7153 = vld [vmem:[%s223 + $0xb0] sm:$0xf]
        %v7154 = vsel %vm7128, 0, %v7153
        %7155 = vst [vmem:[%s223 + $0xb0] sm:$0xf] %v7154
        %v7156 = vld [vmem:[%s223 + $0xc4] sm:$0xf]
        %v7157 = vsel %vm7128, 0, %v7156
        %7158 = vst [vmem:[%s223 + $0xc4] sm:$0xf] %v7157
        %v7159 = vld [vmem:[%s223 + $0xd8] sm:$0xf]
        %v7160 = vsel %vm7128, 0, %v7159
        %7161 = vst [vmem:[%s223 + $0xd8] sm:$0xf] %v7160
        %v7162 = vld [vmem:[%s223 + $0xec] sm:$0xf]
        %v7163 = vsel %vm7128, 0, %v7162
        %7164 = vst [vmem:[%s223 + $0xec] sm:$0xf] %v7163
        %v7165 = vld [vmem:[%s223 + $0x100] sm:$0xf]
        %v7166 = vsel %vm7128, 0, %v7165
        %7167 = vst [vmem:[%s223 + $0x100] sm:$0xf] %v7166
        %v7168 = vld [vmem:[%s223 + $0x114] sm:$0xf]
        %v7169 = vsel %vm7128, 0, %v7168
        %7170 = vst [vmem:[%s223 + $0x114] sm:$0xf] %v7169
        %v7171 = vld [vmem:[%s223 + $0x128] sm:$0xf]
        %v7172 = vsel %vm7128, 0, %v7171
        %7173 = vst [vmem:[%s223 + $0x128] sm:$0xf] %v7172
        %v7174 = vld [vmem:[%s223 + $0x13c] sm:$0xf]
        %v7175 = vsel %vm7128, 0, %v7174
        %7176 = vst [vmem:[%s223 + $0x13c] sm:$0xf] %v7175
        %v7177 = vpack.c.bf16 %v6620, %v6617
        %v7178 = vpack.c.bf16 %v6628, %v6625
        %v7179 = vpack.c.bf16 %v6636, %v6633
        %v7180 = vpack.c.bf16 %v6644, %v6641
        %v7181 = vpack.c.bf16 %v6652, %v6649
        %v7182 = vpack.c.bf16 %v6660, %v6657
        %v7183 = vpack.c.bf16 %v6668, %v6665
        %v7184 = vpack.c.bf16 %v6676, %v6673
        %v7185 = vpack.c.bf16 %v6684, %v6681
        %v7186 = vpack.c.bf16 %v6692, %v6689
        %v7187 = vpack.c.bf16 %v6700, %v6697
        %v7188 = vpack.c.bf16 %v6708, %v6705
        %v7189 = vpack.c.bf16 %v6716, %v6713
        %v7190 = vpack.c.bf16 %v6724, %v6721
        %v7191 = vpack.c.bf16 %v6732, %v6729
        %v7192 = vpack.c.bf16 %v6740, %v6737
        %v7193 = vpack.c.bf16 %v6748, %v6745
        %v7194 = vpack.c.bf16 %v6756, %v6753
        %v7195 = vpack.c.bf16 %v6764, %v6761
        %v7196 = vpack.c.bf16 %v6772, %v6769
        %v7197 = vpack.c.bf16 %v6780, %v6777
        %v7198 = vpack.c.bf16 %v6788, %v6785
        %v7199 = vpack.c.bf16 %v6796, %v6793
        %v7200 = vpack.c.bf16 %v6804, %v6801
        %v7201 = vpack.c.bf16 %v6812, %v6809
        %v7202 = vpack.c.bf16 %v6820, %v6817
        %v7203 = vpack.c.bf16 %v6828, %v6825
        %v7204 = vpack.c.bf16 %v6836, %v6833
        %v7205 = vpack.c.bf16 %v6844, %v6841
        %v7206 = vpack.c.bf16 %v6852, %v6849
        %v7207 = vpack.c.bf16 %v6860, %v6857
        %v7208 = vpack.c.bf16 %v6868, %v6865
        %v7241 = vunpack.c.l.b16 %v7177
        %v7242 = vunpack.c.h.b16 %v7177
        %v7243 = vunpack.c.l.b16 %v7178
        %v7244 = vunpack.c.h.b16 %v7178
        %v7245 = vunpack.c.l.b16 %v7179
        %v7246 = vunpack.c.h.b16 %v7179
        %v7247 = vunpack.c.l.b16 %v7180
        %v7248 = vunpack.c.h.b16 %v7180
        %v7249 = vunpack.c.l.b16 %v7181
        %v7250 = vunpack.c.h.b16 %v7181
        %v7251 = vunpack.c.l.b16 %v7182
        %v7252 = vunpack.c.h.b16 %v7182
        %v7253 = vunpack.c.l.b16 %v7183
        %v7254 = vunpack.c.h.b16 %v7183
        %v7255 = vunpack.c.l.b16 %v7184
        %v7256 = vunpack.c.h.b16 %v7184
        %v7257 = vunpack.c.l.b16 %v7185
        %v7258 = vunpack.c.h.b16 %v7185
        %v7259 = vunpack.c.l.b16 %v7186
        %v7260 = vunpack.c.h.b16 %v7186
        %v7261 = vunpack.c.l.b16 %v7187
        %v7262 = vunpack.c.h.b16 %v7187
        %v7263 = vunpack.c.l.b16 %v7188
        %v7264 = vunpack.c.h.b16 %v7188
        %v7265 = vunpack.c.l.b16 %v7189
        %v7266 = vunpack.c.h.b16 %v7189
        %v7267 = vunpack.c.l.b16 %v7190
        %v7268 = vunpack.c.h.b16 %v7190
        %v7269 = vunpack.c.l.b16 %v7191
        %v7270 = vunpack.c.h.b16 %v7191
        %v7271 = vunpack.c.l.b16 %v7192
        %v7272 = vunpack.c.h.b16 %v7192
        %v7273 = vunpack.c.l.b16 %v7193
        %v7274 = vunpack.c.h.b16 %v7193
        %v7275 = vunpack.c.l.b16 %v7194
        %v7276 = vunpack.c.h.b16 %v7194
        %v7277 = vunpack.c.l.b16 %v7195
        %v7278 = vunpack.c.h.b16 %v7195
        %v7279 = vunpack.c.l.b16 %v7196
        %v7280 = vunpack.c.h.b16 %v7196
        %v7281 = vunpack.c.l.b16 %v7197
        %v7282 = vunpack.c.h.b16 %v7197
        %v7283 = vunpack.c.l.b16 %v7198
        %v7284 = vunpack.c.h.b16 %v7198
        %v7285 = vunpack.c.l.b16 %v7199
        %v7286 = vunpack.c.h.b16 %v7199
        %v7287 = vunpack.c.l.b16 %v7200
        %v7288 = vunpack.c.h.b16 %v7200
        %v7289 = vunpack.c.l.b16 %v7201
        %v7290 = vunpack.c.h.b16 %v7201
        %v7291 = vunpack.c.l.b16 %v7202
        %v7292 = vunpack.c.h.b16 %v7202
        %v7293 = vunpack.c.l.b16 %v7203
        %v7294 = vunpack.c.h.b16 %v7203
        %v7295 = vunpack.c.l.b16 %v7204
        %v7296 = vunpack.c.h.b16 %v7204
        %v7297 = vunpack.c.l.b16 %v7205
        %v7298 = vunpack.c.h.b16 %v7205
        %v7299 = vunpack.c.l.b16 %v7206
        %v7300 = vunpack.c.h.b16 %v7206
        %v7301 = vunpack.c.l.b16 %v7207
        %v7302 = vunpack.c.h.b16 %v7207
        %v7303 = vunpack.c.l.b16 %v7208
        %v7304 = vunpack.c.h.b16 %v7208
        %v7305 = vpack.c.b16 %v7241, %v7241
        %v7306 = vpack.c.b16 %v7242, %v7242
        %v7307 = vpack.c.b16 %v7243, %v7243
        %v7308 = vpack.c.b16 %v7244, %v7244
        %v7309 = vpack.c.b16 %v7245, %v7245
        %v7310 = vpack.c.b16 %v7246, %v7246
        %v7311 = vpack.c.b16 %v7247, %v7247
        %v7312 = vpack.c.b16 %v7248, %v7248
        %v7313 = vpack.c.b16 %v7249, %v7249
        %v7314 = vpack.c.b16 %v7250, %v7250
        %v7315 = vpack.c.b16 %v7251, %v7251
        %v7316 = vpack.c.b16 %v7252, %v7252
        %v7317 = vpack.c.b16 %v7253, %v7253
        %v7318 = vpack.c.b16 %v7254, %v7254
        %v7319 = vpack.c.b16 %v7255, %v7255
        %v7320 = vpack.c.b16 %v7256, %v7256
        %v7321 = vpack.c.b16 %v7257, %v7257
        %v7322 = vpack.c.b16 %v7258, %v7258
        %v7323 = vpack.c.b16 %v7259, %v7259
        %v7324 = vpack.c.b16 %v7260, %v7260
        %v7325 = vpack.c.b16 %v7261, %v7261
        %v7326 = vpack.c.b16 %v7262, %v7262
        %v7327 = vpack.c.b16 %v7263, %v7263
        %v7328 = vpack.c.b16 %v7264, %v7264
        %v7329 = vpack.c.b16 %v7265, %v7265
        %v7330 = vpack.c.b16 %v7266, %v7266
        %v7331 = vpack.c.b16 %v7267, %v7267
        %v7332 = vpack.c.b16 %v7268, %v7268
        %v7333 = vpack.c.b16 %v7269, %v7269
        %v7334 = vpack.c.b16 %v7270, %v7270
        %v7335 = vpack.c.b16 %v7271, %v7271
        %v7336 = vpack.c.b16 %v7272, %v7272
        %v7337 = vpack.c.b16 %v7273, %v7273
        %v7338 = vpack.c.b16 %v7274, %v7274
        %v7339 = vpack.c.b16 %v7275, %v7275
        %v7340 = vpack.c.b16 %v7276, %v7276
        %v7341 = vpack.c.b16 %v7277, %v7277
        %v7342 = vpack.c.b16 %v7278, %v7278
        %v7343 = vpack.c.b16 %v7279, %v7279
        %v7344 = vpack.c.b16 %v7280, %v7280
        %v7345 = vpack.c.b16 %v7281, %v7281
        %v7346 = vpack.c.b16 %v7282, %v7282
        %v7347 = vpack.c.b16 %v7283, %v7283
        %v7348 = vpack.c.b16 %v7284, %v7284
        %v7349 = vpack.c.b16 %v7285, %v7285
        %v7350 = vpack.c.b16 %v7286, %v7286
        %v7351 = vpack.c.b16 %v7287, %v7287
        %v7352 = vpack.c.b16 %v7288, %v7288
        %v7353 = vpack.c.b16 %v7289, %v7289
        %v7354 = vpack.c.b16 %v7290, %v7290
        %v7355 = vpack.c.b16 %v7291, %v7291
        %v7356 = vpack.c.b16 %v7292, %v7292
        %v7357 = vpack.c.b16 %v7293, %v7293
        %v7358 = vpack.c.b16 %v7294, %v7294
        %v7359 = vpack.c.b16 %v7295, %v7295
        %v7360 = vpack.c.b16 %v7296, %v7296
        %v7361 = vpack.c.b16 %v7297, %v7297
        %v7362 = vpack.c.b16 %v7298, %v7298
        %v7363 = vpack.c.b16 %v7299, %v7299
        %v7364 = vpack.c.b16 %v7300, %v7300
        %v7365 = vpack.c.b16 %v7301, %v7301
        %v7366 = vpack.c.b16 %v7302, %v7302
        %v7367 = vpack.c.b16 %v7303, %v7303
        %v7368 = vpack.c.b16 %v7304, %v7304
        %vm7369 = vsmask.f32 4368
        %vm7370 = vmor %vm7076, %vm7369
        %v7372 = vshrl.u32 %v7305, 16
        %v7374 = vrot.slane %v7372, 7
        %v7375 = vshll.u32 %v7305, 16
        %v7377 = vor.u32 %v7374, %v7375
        %v7378 = vrot.slane %v7374, 4
        %v7380 = vshrl.u32 %v7306, 16
        %v7382 = vrot.slane %v7380, 7
        %v7383 = vshll.u32 %v7306, 16
        %v7385 = vor.u32 %v7382, %v7383
        %v7386 = vsel %vm7370, %v7378, %v7385
        %v7387 = vrot.slane %v7382, 4
        %v7389 = vshrl.u32 %v7307, 16
        %v7391 = vrot.slane %v7389, 7
        %v7392 = vshll.u32 %v7307, 16
        %v7394 = vor.u32 %v7391, %v7392
        %v7395 = vsel %vm7370, %v7387, %v7394
        %v7396 = vrot.slane %v7391, 4
        %v7398 = vshrl.u32 %v7308, 16
        %v7400 = vrot.slane %v7398, 7
        %v7401 = vshll.u32 %v7308, 16
        %v7403 = vor.u32 %v7400, %v7401
        %v7404 = vsel %vm7370, %v7396, %v7403
        %v7405 = vrot.slane %v7400, 4
        %v7407 = vshrl.u32 %v7309, 16
        %v7409 = vrot.slane %v7407, 7
        %v7410 = vshll.u32 %v7309, 16
        %v7412 = vor.u32 %v7409, %v7410
        %v7413 = vrot.slane %v7409, 4
        %v7415 = vshrl.u32 %v7310, 16
        %v7417 = vrot.slane %v7415, 7
        %v7418 = vshll.u32 %v7310, 16
        %v7420 = vor.u32 %v7417, %v7418
        %v7421 = vsel %vm7370, %v7413, %v7420
        %v7422 = vrot.slane %v7417, 4
        %v7424 = vshrl.u32 %v7311, 16
        %v7426 = vrot.slane %v7424, 7
        %v7427 = vshll.u32 %v7311, 16
        %v7429 = vor.u32 %v7426, %v7427
        %v7430 = vsel %vm7370, %v7422, %v7429
        %v7431 = vrot.slane %v7426, 4
        %v7433 = vshrl.u32 %v7312, 16
        %v7435 = vrot.slane %v7433, 7
        %v7436 = vshll.u32 %v7312, 16
        %v7438 = vor.u32 %v7435, %v7436
        %v7439 = vsel %vm7370, %v7431, %v7438
        %v7440 = vrot.slane %v7435, 4
        %v7442 = vshrl.u32 %v7313, 16
        %v7444 = vrot.slane %v7442, 7
        %v7445 = vshll.u32 %v7313, 16
        %v7447 = vor.u32 %v7444, %v7445
        %v7448 = vrot.slane %v7444, 4
        %v7450 = vshrl.u32 %v7314, 16
        %v7452 = vrot.slane %v7450, 7
        %v7453 = vshll.u32 %v7314, 16
        %v7455 = vor.u32 %v7452, %v7453
        %v7456 = vsel %vm7370, %v7448, %v7455
        %v7457 = vrot.slane %v7452, 4
        %v7459 = vshrl.u32 %v7315, 16
        %v7461 = vrot.slane %v7459, 7
        %v7462 = vshll.u32 %v7315, 16
        %v7464 = vor.u32 %v7461, %v7462
        %v7465 = vsel %vm7370, %v7457, %v7464
        %v7466 = vrot.slane %v7461, 4
        %v7468 = vshrl.u32 %v7316, 16
        %v7470 = vrot.slane %v7468, 7
        %v7471 = vshll.u32 %v7316, 16
        %v7473 = vor.u32 %v7470, %v7471
        %v7474 = vsel %vm7370, %v7466, %v7473
        %v7475 = vrot.slane %v7470, 4
        %v7477 = vshrl.u32 %v7317, 16
        %v7479 = vrot.slane %v7477, 7
        %v7480 = vshll.u32 %v7317, 16
        %v7482 = vor.u32 %v7479, %v7480
        %v7483 = vrot.slane %v7479, 4
        %v7485 = vshrl.u32 %v7318, 16
        %v7487 = vrot.slane %v7485, 7
        %v7488 = vshll.u32 %v7318, 16
        %v7490 = vor.u32 %v7487, %v7488
        %v7491 = vsel %vm7370, %v7483, %v7490
        %v7492 = vrot.slane %v7487, 4
        %v7494 = vshrl.u32 %v7319, 16
        %v7496 = vrot.slane %v7494, 7
        %v7497 = vshll.u32 %v7319, 16
        %v7499 = vor.u32 %v7496, %v7497
        %v7500 = vsel %vm7370, %v7492, %v7499
        %v7501 = vrot.slane %v7496, 4
        %v7503 = vshrl.u32 %v7320, 16
        %v7505 = vrot.slane %v7503, 7
        %v7506 = vshll.u32 %v7320, 16
        %v7508 = vor.u32 %v7505, %v7506
        %v7509 = vsel %vm7370, %v7501, %v7508
        %v7510 = vrot.slane %v7505, 4
        %v7512 = vshrl.u32 %v7321, 16
        %v7514 = vrot.slane %v7512, 7
        %v7515 = vshll.u32 %v7321, 16
        %v7517 = vor.u32 %v7514, %v7515
        %v7518 = vrot.slane %v7514, 4
        %v7520 = vshrl.u32 %v7322, 16
        %v7522 = vrot.slane %v7520, 7
        %v7523 = vshll.u32 %v7322, 16
        %v7525 = vor.u32 %v7522, %v7523
        %v7526 = vsel %vm7370, %v7518, %v7525
        %v7527 = vrot.slane %v7522, 4
        %v7529 = vshrl.u32 %v7323, 16
        %v7531 = vrot.slane %v7529, 7
        %v7532 = vshll.u32 %v7323, 16
        %v7534 = vor.u32 %v7531, %v7532
        %v7535 = vsel %vm7370, %v7527, %v7534
        %v7536 = vrot.slane %v7531, 4
        %v7538 = vshrl.u32 %v7324, 16
        %v7540 = vrot.slane %v7538, 7
        %v7541 = vshll.u32 %v7324, 16
        %v7543 = vor.u32 %v7540, %v7541
        %v7544 = vsel %vm7370, %v7536, %v7543
        %v7545 = vrot.slane %v7540, 4
        %v7547 = vshrl.u32 %v7325, 16
        %v7549 = vrot.slane %v7547, 7
        %v7550 = vshll.u32 %v7325, 16
        %v7552 = vor.u32 %v7549, %v7550
        %v7553 = vrot.slane %v7549, 4
        %v7555 = vshrl.u32 %v7326, 16
        %v7557 = vrot.slane %v7555, 7
        %v7558 = vshll.u32 %v7326, 16
        %v7560 = vor.u32 %v7557, %v7558
        %v7561 = vsel %vm7370, %v7553, %v7560
        %v7562 = vrot.slane %v7557, 4
        %v7564 = vshrl.u32 %v7327, 16
        %v7566 = vrot.slane %v7564, 7
        %v7567 = vshll.u32 %v7327, 16
        %v7569 = vor.u32 %v7566, %v7567
        %v7570 = vsel %vm7370, %v7562, %v7569
        %v7571 = vrot.slane %v7566, 4
        %v7573 = vshrl.u32 %v7328, 16
        %v7575 = vrot.slane %v7573, 7
        %v7576 = vshll.u32 %v7328, 16
        %v7578 = vor.u32 %v7575, %v7576
        %v7579 = vsel %vm7370, %v7571, %v7578
        %v7580 = vrot.slane %v7575, 4
        %v7582 = vshrl.u32 %v7329, 16
        %v7584 = vrot.slane %v7582, 7
        %v7585 = vshll.u32 %v7329, 16
        %v7587 = vor.u32 %v7584, %v7585
        %v7588 = vrot.slane %v7584, 4
        %v7590 = vshrl.u32 %v7330, 16
        %v7592 = vrot.slane %v7590, 7
        %v7593 = vshll.u32 %v7330, 16
        %v7595 = vor.u32 %v7592, %v7593
        %v7596 = vsel %vm7370, %v7588, %v7595
        %v7597 = vrot.slane %v7592, 4
        %v7599 = vshrl.u32 %v7331, 16
        %v7601 = vrot.slane %v7599, 7
        %v7602 = vshll.u32 %v7331, 16
        %v7604 = vor.u32 %v7601, %v7602
        %v7605 = vsel %vm7370, %v7597, %v7604
        %v7606 = vrot.slane %v7601, 4
        %v7608 = vshrl.u32 %v7332, 16
        %v7610 = vrot.slane %v7608, 7
        %v7611 = vshll.u32 %v7332, 16
        %v7613 = vor.u32 %v7610, %v7611
        %v7614 = vsel %vm7370, %v7606, %v7613
        %v7615 = vrot.slane %v7610, 4
        %v7617 = vshrl.u32 %v7333, 16
        %v7619 = vrot.slane %v7617, 7
        %v7620 = vshll.u32 %v7333, 16
        %v7622 = vor.u32 %v7619, %v7620
        %v7623 = vrot.slane %v7619, 4
        %v7625 = vshrl.u32 %v7334, 16
        %v7627 = vrot.slane %v7625, 7
        %v7628 = vshll.u32 %v7334, 16
        %v7630 = vor.u32 %v7627, %v7628
        %v7631 = vsel %vm7370, %v7623, %v7630
        %v7632 = vrot.slane %v7627, 4
        %v7634 = vshrl.u32 %v7335, 16
        %v7636 = vrot.slane %v7634, 7
        %v7637 = vshll.u32 %v7335, 16
        %v7639 = vor.u32 %v7636, %v7637
        %v7640 = vsel %vm7370, %v7632, %v7639
        %v7641 = vrot.slane %v7636, 4
        %v7643 = vshrl.u32 %v7336, 16
        %v7645 = vrot.slane %v7643, 7
        %v7646 = vshll.u32 %v7336, 16
        %v7648 = vor.u32 %v7645, %v7646
        %v7649 = vsel %vm7370, %v7641, %v7648
        %v7650 = vrot.slane %v7645, 4
        %v7652 = vshrl.u32 %v7337, 16
        %v7654 = vrot.slane %v7652, 7
        %v7655 = vshll.u32 %v7337, 16
        %v7657 = vor.u32 %v7654, %v7655
        %v7658 = vrot.slane %v7654, 4
        %v7660 = vshrl.u32 %v7338, 16
        %v7662 = vrot.slane %v7660, 7
        %v7663 = vshll.u32 %v7338, 16
        %v7665 = vor.u32 %v7662, %v7663
        %v7666 = vsel %vm7370, %v7658, %v7665
        %v7667 = vrot.slane %v7662, 4
        %v7669 = vshrl.u32 %v7339, 16
        %v7671 = vrot.slane %v7669, 7
        %v7672 = vshll.u32 %v7339, 16
        %v7674 = vor.u32 %v7671, %v7672
        %v7675 = vsel %vm7370, %v7667, %v7674
        %v7676 = vrot.slane %v7671, 4
        %v7678 = vshrl.u32 %v7340, 16
        %v7680 = vrot.slane %v7678, 7
        %v7681 = vshll.u32 %v7340, 16
        %v7683 = vor.u32 %v7680, %v7681
        %v7684 = vsel %vm7370, %v7676, %v7683
        %v7685 = vrot.slane %v7680, 4
        %v7687 = vshrl.u32 %v7341, 16
        %v7689 = vrot.slane %v7687, 7
        %v7690 = vshll.u32 %v7341, 16
        %v7692 = vor.u32 %v7689, %v7690
        %v7693 = vrot.slane %v7689, 4
        %v7695 = vshrl.u32 %v7342, 16
        %v7697 = vrot.slane %v7695, 7
        %v7698 = vshll.u32 %v7342, 16
        %v7700 = vor.u32 %v7697, %v7698
        %v7701 = vsel %vm7370, %v7693, %v7700
        %v7702 = vrot.slane %v7697, 4
        %v7704 = vshrl.u32 %v7343, 16
        %v7706 = vrot.slane %v7704, 7
        %v7707 = vshll.u32 %v7343, 16
        %v7709 = vor.u32 %v7706, %v7707
        %v7710 = vsel %vm7370, %v7702, %v7709
        %v7711 = vrot.slane %v7706, 4
        %v7713 = vshrl.u32 %v7344, 16
        %v7715 = vrot.slane %v7713, 7
        %v7716 = vshll.u32 %v7344, 16
        %v7718 = vor.u32 %v7715, %v7716
        %v7719 = vsel %vm7370, %v7711, %v7718
        %v7720 = vrot.slane %v7715, 4
        %v7722 = vshrl.u32 %v7345, 16
        %v7724 = vrot.slane %v7722, 7
        %v7725 = vshll.u32 %v7345, 16
        %v7727 = vor.u32 %v7724, %v7725
        %v7728 = vrot.slane %v7724, 4
        %v7730 = vshrl.u32 %v7346, 16
        %v7732 = vrot.slane %v7730, 7
        %v7733 = vshll.u32 %v7346, 16
        %v7735 = vor.u32 %v7732, %v7733
        %v7736 = vsel %vm7370, %v7728, %v7735
        %v7737 = vrot.slane %v7732, 4
        %v7739 = vshrl.u32 %v7347, 16
        %v7741 = vrot.slane %v7739, 7
        %v7742 = vshll.u32 %v7347, 16
        %v7744 = vor.u32 %v7741, %v7742
        %v7745 = vsel %vm7370, %v7737, %v7744
        %v7746 = vrot.slane %v7741, 4
        %v7748 = vshrl.u32 %v7348, 16
        %v7750 = vrot.slane %v7748, 7
        %v7751 = vshll.u32 %v7348, 16
        %v7753 = vor.u32 %v7750, %v7751
        %v7754 = vsel %vm7370, %v7746, %v7753
        %v7755 = vrot.slane %v7750, 4
        %v7757 = vshrl.u32 %v7349, 16
        %v7759 = vrot.slane %v7757, 7
        %v7760 = vshll.u32 %v7349, 16
        %v7762 = vor.u32 %v7759, %v7760
        %v7763 = vrot.slane %v7759, 4
        %v7765 = vshrl.u32 %v7350, 16
        %v7767 = vrot.slane %v7765, 7
        %v7768 = vshll.u32 %v7350, 16
        %v7770 = vor.u32 %v7767, %v7768
        %v7771 = vsel %vm7370, %v7763, %v7770
        %v7772 = vrot.slane %v7767, 4
        %v7774 = vshrl.u32 %v7351, 16
        %v7776 = vrot.slane %v7774, 7
        %v7777 = vshll.u32 %v7351, 16
        %v7779 = vor.u32 %v7776, %v7777
        %v7780 = vsel %vm7370, %v7772, %v7779
        %v7781 = vrot.slane %v7776, 4
        %v7783 = vshrl.u32 %v7352, 16
        %v7785 = vrot.slane %v7783, 7
        %v7786 = vshll.u32 %v7352, 16
        %v7788 = vor.u32 %v7785, %v7786
        %v7789 = vsel %vm7370, %v7781, %v7788
        %v7790 = vrot.slane %v7785, 4
        %v7792 = vshrl.u32 %v7353, 16
        %v7794 = vrot.slane %v7792, 7
        %v7795 = vshll.u32 %v7353, 16
        %v7797 = vor.u32 %v7794, %v7795
        %v7798 = vrot.slane %v7794, 4
        %v7800 = vshrl.u32 %v7354, 16
        %v7802 = vrot.slane %v7800, 7
        %v7803 = vshll.u32 %v7354, 16
        %v7805 = vor.u32 %v7802, %v7803
        %v7806 = vsel %vm7370, %v7798, %v7805
        %v7807 = vrot.slane %v7802, 4
        %v7809 = vshrl.u32 %v7355, 16
        %v7811 = vrot.slane %v7809, 7
        %v7812 = vshll.u32 %v7355, 16
        %v7814 = vor.u32 %v7811, %v7812
        %v7815 = vsel %vm7370, %v7807, %v7814
        %v7816 = vrot.slane %v7811, 4
        %v7818 = vshrl.u32 %v7356, 16
        %v7820 = vrot.slane %v7818, 7
        %v7821 = vshll.u32 %v7356, 16
        %v7823 = vor.u32 %v7820, %v7821
        %v7824 = vsel %vm7370, %v7816, %v7823
        %v7825 = vrot.slane %v7820, 4
        %v7827 = vshrl.u32 %v7357, 16
        %v7829 = vrot.slane %v7827, 7
        %v7830 = vshll.u32 %v7357, 16
        %v7832 = vor.u32 %v7829, %v7830
        %v7833 = vrot.slane %v7829, 4
        %v7835 = vshrl.u32 %v7358, 16
        %v7837 = vrot.slane %v7835, 7
        %v7838 = vshll.u32 %v7358, 16
        %v7840 = vor.u32 %v7837, %v7838
        %v7841 = vsel %vm7370, %v7833, %v7840
        %v7842 = vrot.slane %v7837, 4
        %v7844 = vshrl.u32 %v7359, 16
        %v7846 = vrot.slane %v7844, 7
        %v7847 = vshll.u32 %v7359, 16
        %v7849 = vor.u32 %v7846, %v7847
        %v7850 = vsel %vm7370, %v7842, %v7849
        %v7851 = vrot.slane %v7846, 4
        %v7853 = vshrl.u32 %v7360, 16
        %v7855 = vrot.slane %v7853, 7
        %v7856 = vshll.u32 %v7360, 16
        %v7858 = vor.u32 %v7855, %v7856
        %v7859 = vsel %vm7370, %v7851, %v7858
        %v7860 = vrot.slane %v7855, 4
        %v7862 = vshrl.u32 %v7361, 16
        %v7864 = vrot.slane %v7862, 7
        %v7865 = vshll.u32 %v7361, 16
        %v7867 = vor.u32 %v7864, %v7865
        %v7868 = vrot.slane %v7864, 4
        %v7870 = vshrl.u32 %v7362, 16
        %v7872 = vrot.slane %v7870, 7
        %v7873 = vshll.u32 %v7362, 16
        %v7875 = vor.u32 %v7872, %v7873
        %v7876 = vsel %vm7370, %v7868, %v7875
        %v7877 = vrot.slane %v7872, 4
        %v7879 = vshrl.u32 %v7363, 16
        %v7881 = vrot.slane %v7879, 7
        %v7882 = vshll.u32 %v7363, 16
        %v7884 = vor.u32 %v7881, %v7882
        %v7885 = vsel %vm7370, %v7877, %v7884
        %v7886 = vrot.slane %v7881, 4
        %v7888 = vshrl.u32 %v7364, 16
        %v7890 = vrot.slane %v7888, 7
        %v7891 = vshll.u32 %v7364, 16
        %v7893 = vor.u32 %v7890, %v7891
        %v7894 = vsel %vm7370, %v7886, %v7893
        %v7895 = vrot.slane %v7890, 4
        %v7897 = vshrl.u32 %v7365, 16
        %v7899 = vrot.slane %v7897, 7
        %v7900 = vshll.u32 %v7365, 16
        %v7902 = vor.u32 %v7899, %v7900
        %v7903 = vrot.slane %v7899, 4
        %v7905 = vshrl.u32 %v7366, 16
        %v7907 = vrot.slane %v7905, 7
        %v7908 = vshll.u32 %v7366, 16
        %v7910 = vor.u32 %v7907, %v7908
        %v7911 = vsel %vm7370, %v7903, %v7910
        %v7912 = vrot.slane %v7907, 4
        %v7914 = vshrl.u32 %v7367, 16
        %v7916 = vrot.slane %v7914, 7
        %v7917 = vshll.u32 %v7367, 16
        %v7919 = vor.u32 %v7916, %v7917
        %v7920 = vsel %vm7370, %v7912, %v7919
        %v7921 = vrot.slane %v7916, 4
        %v7923 = vshrl.u32 %v7368, 16
        %v7925 = vrot.slane %v7923, 7
        %v7926 = vshll.u32 %v7368, 16
        %v7928 = vor.u32 %v7925, %v7926
        %v7929 = vsel %vm7370, %v7921, %v7928
        %v7930 = vrot.slane %v7925, 4
        %v8011 = vld [vmem:[%s223] sm:$0xf]
        %v8012 = vsel %vm7128, %v7377, %v8011
        %8013 = vst [vmem:[%s223] sm:$0xf] %v8012
        %8014 = vst [vmem:[%s223 + $0x4] sm:$0xf] %v7386
        %8015 = vst [vmem:[%s223 + $0x8] sm:$0xf] %v7395
        %8016 = vst [vmem:[%s223 + $0xc] sm:$0xf] %v7404
        %v8017 = vld [vmem:[%s223 + $0x10] sm:$0x1]
        %v8018 = vsel %vm7077, %v7405, %v8017
        %8019 = vst [vmem:[%s223 + $0x10] sm:$0x1] %v8018
        %v8020 = vld [vmem:[%s223 + $0x14] sm:$0xf]
        %v8021 = vsel %vm7128, %v7412, %v8020
        %8022 = vst [vmem:[%s223 + $0x14] sm:$0xf] %v8021
        %8023 = vst [vmem:[%s223 + $0x18] sm:$0xf] %v7421
        %8024 = vst [vmem:[%s223 + $0x1c] sm:$0xf] %v7430
        %8025 = vst [vmem:[%s223 + $0x20] sm:$0xf] %v7439
        %v8026 = vld [vmem:[%s223 + $0x24] sm:$0x1]
        %v8027 = vsel %vm7077, %v7440, %v8026
        %8028 = vst [vmem:[%s223 + $0x24] sm:$0x1] %v8027
        %v8029 = vld [vmem:[%s223 + $0x28] sm:$0xf]
        %v8030 = vsel %vm7128, %v7447, %v8029
        %8031 = vst [vmem:[%s223 + $0x28] sm:$0xf] %v8030
        %8032 = vst [vmem:[%s223 + $0x2c] sm:$0xf] %v7456
        %8033 = vst [vmem:[%s223 + $0x30] sm:$0xf] %v7465
        %8034 = vst [vmem:[%s223 + $0x34] sm:$0xf] %v7474
        %v8035 = vld [vmem:[%s223 + $0x38] sm:$0x1]
        %v8036 = vsel %vm7077, %v7475, %v8035
        %8037 = vst [vmem:[%s223 + $0x38] sm:$0x1] %v8036
        %v8038 = vld [vmem:[%s223 + $0x3c] sm:$0xf]
        %v8039 = vsel %vm7128, %v7482, %v8038
        %8040 = vst [vmem:[%s223 + $0x3c] sm:$0xf] %v8039
        %8041 = vst [vmem:[%s223 + $0x40] sm:$0xf] %v7491
        %8042 = vst [vmem:[%s223 + $0x44] sm:$0xf] %v7500
        %8043 = vst [vmem:[%s223 + $0x48] sm:$0xf] %v7509
        %v8044 = vld [vmem:[%s223 + $0x4c] sm:$0x1]
        %v8045 = vsel %vm7077, %v7510, %v8044
        %8046 = vst [vmem:[%s223 + $0x4c] sm:$0x1] %v8045
        %v8047 = vld [vmem:[%s223 + $0x50] sm:$0xf]
        %v8048 = vsel %vm7128, %v7517, %v8047
        %8049 = vst [vmem:[%s223 + $0x50] sm:$0xf] %v8048
        %8050 = vst [vmem:[%s223 + $0x54] sm:$0xf] %v7526
        %8051 = vst [vmem:[%s223 + $0x58] sm:$0xf] %v7535
        %8052 = vst [vmem:[%s223 + $0x5c] sm:$0xf] %v7544
        %v8053 = vld [vmem:[%s223 + $0x60] sm:$0x1]
        %v8054 = vsel %vm7077, %v7545, %v8053
        %8055 = vst [vmem:[%s223 + $0x60] sm:$0x1] %v8054
        %v8056 = vld [vmem:[%s223 + $0x64] sm:$0xf]
        %v8057 = vsel %vm7128, %v7552, %v8056
        %8058 = vst [vmem:[%s223 + $0x64] sm:$0xf] %v8057
        %8059 = vst [vmem:[%s223 + $0x68] sm:$0xf] %v7561
        %8060 = vst [vmem:[%s223 + $0x6c] sm:$0xf] %v7570
        %8061 = vst [vmem:[%s223 + $0x70] sm:$0xf] %v7579
        %v8062 = vld [vmem:[%s223 + $0x74] sm:$0x1]
        %v8063 = vsel %vm7077, %v7580, %v8062
        %8064 = vst [vmem:[%s223 + $0x74] sm:$0x1] %v8063
        %v8065 = vld [vmem:[%s223 + $0x78] sm:$0xf]
        %v8066 = vsel %vm7128, %v7587, %v8065
        %8067 = vst [vmem:[%s223 + $0x78] sm:$0xf] %v8066
        %8068 = vst [vmem:[%s223 + $0x7c] sm:$0xf] %v7596
        %8069 = vst [vmem:[%s223 + $0x80] sm:$0xf] %v7605
        %8070 = vst [vmem:[%s223 + $0x84] sm:$0xf] %v7614
        %v8071 = vld [vmem:[%s223 + $0x88] sm:$0x1]
        %v8072 = vsel %vm7077, %v7615, %v8071
        %8073 = vst [vmem:[%s223 + $0x88] sm:$0x1] %v8072
        %v8074 = vld [vmem:[%s223 + $0x8c] sm:$0xf]
        %v8075 = vsel %vm7128, %v7622, %v8074
        %8076 = vst [vmem:[%s223 + $0x8c] sm:$0xf] %v8075
        %8077 = vst [vmem:[%s223 + $0x90] sm:$0xf] %v7631
        %8078 = vst [vmem:[%s223 + $0x94] sm:$0xf] %v7640
        %8079 = vst [vmem:[%s223 + $0x98] sm:$0xf] %v7649
        %v8080 = vld [vmem:[%s223 + $0x9c] sm:$0x1]
        %v8081 = vsel %vm7077, %v7650, %v8080
        %8082 = vst [vmem:[%s223 + $0x9c] sm:$0x1] %v8081
        %v8083 = vld [vmem:[%s223 + $0xa0] sm:$0xf]
        %v8084 = vsel %vm7128, %v7657, %v8083
        %8085 = vst [vmem:[%s223 + $0xa0] sm:$0xf] %v8084
        %8086 = vst [vmem:[%s223 + $0xa4] sm:$0xf] %v7666
        %8087 = vst [vmem:[%s223 + $0xa8] sm:$0xf] %v7675
        %8088 = vst [vmem:[%s223 + $0xac] sm:$0xf] %v7684
        %v8089 = vld [vmem:[%s223 + $0xb0] sm:$0x1]
        %v8090 = vsel %vm7077, %v7685, %v8089
        %8091 = vst [vmem:[%s223 + $0xb0] sm:$0x1] %v8090
        %v8092 = vld [vmem:[%s223 + $0xb4] sm:$0xf]
        %v8093 = vsel %vm7128, %v7692, %v8092
        %8094 = vst [vmem:[%s223 + $0xb4] sm:$0xf] %v8093
        %8095 = vst [vmem:[%s223 + $0xb8] sm:$0xf] %v7701
        %8096 = vst [vmem:[%s223 + $0xbc] sm:$0xf] %v7710
        %8097 = vst [vmem:[%s223 + $0xc0] sm:$0xf] %v7719
        %v8098 = vld [vmem:[%s223 + $0xc4] sm:$0x1]
        %v8099 = vsel %vm7077, %v7720, %v8098
        %8100 = vst [vmem:[%s223 + $0xc4] sm:$0x1] %v8099
        %v8101 = vld [vmem:[%s223 + $0xc8] sm:$0xf]
        %v8102 = vsel %vm7128, %v7727, %v8101
        %8103 = vst [vmem:[%s223 + $0xc8] sm:$0xf] %v8102
        %8104 = vst [vmem:[%s223 + $0xcc] sm:$0xf] %v7736
        %8105 = vst [vmem:[%s223 + $0xd0] sm:$0xf] %v7745
        %8106 = vst [vmem:[%s223 + $0xd4] sm:$0xf] %v7754
        %v8107 = vld [vmem:[%s223 + $0xd8] sm:$0x1]
        %v8108 = vsel %vm7077, %v7755, %v8107
        %8109 = vst [vmem:[%s223 + $0xd8] sm:$0x1] %v8108
        %v8110 = vld [vmem:[%s223 + $0xdc] sm:$0xf]
        %v8111 = vsel %vm7128, %v7762, %v8110
        %8112 = vst [vmem:[%s223 + $0xdc] sm:$0xf] %v8111
        %8113 = vst [vmem:[%s223 + $0xe0] sm:$0xf] %v7771
        %8114 = vst [vmem:[%s223 + $0xe4] sm:$0xf] %v7780
        %8115 = vst [vmem:[%s223 + $0xe8] sm:$0xf] %v7789
        %v8116 = vld [vmem:[%s223 + $0xec] sm:$0x1]
        %v8117 = vsel %vm7077, %v7790, %v8116
        %8118 = vst [vmem:[%s223 + $0xec] sm:$0x1] %v8117
        %v8119 = vld [vmem:[%s223 + $0xf0] sm:$0xf]
        %v8120 = vsel %vm7128, %v7797, %v8119
        %8121 = vst [vmem:[%s223 + $0xf0] sm:$0xf] %v8120
        %8122 = vst [vmem:[%s223 + $0xf4] sm:$0xf] %v7806
        %8123 = vst [vmem:[%s223 + $0xf8] sm:$0xf] %v7815
        %8124 = vst [vmem:[%s223 + $0xfc] sm:$0xf] %v7824
        %v8125 = vld [vmem:[%s223 + $0x100] sm:$0x1]
        %v8126 = vsel %vm7077, %v7825, %v8125
        %8127 = vst [vmem:[%s223 + $0x100] sm:$0x1] %v8126
        %v8128 = vld [vmem:[%s223 + $0x104] sm:$0xf]
        %v8129 = vsel %vm7128, %v7832, %v8128
        %8130 = vst [vmem:[%s223 + $0x104] sm:$0xf] %v8129
        %8131 = vst [vmem:[%s223 + $0x108] sm:$0xf] %v7841
        %8132 = vst [vmem:[%s223 + $0x10c] sm:$0xf] %v7850
        %8133 = vst [vmem:[%s223 + $0x110] sm:$0xf] %v7859
        %v8134 = vld [vmem:[%s223 + $0x114] sm:$0x1]
        %v8135 = vsel %vm7077, %v7860, %v8134
        %8136 = vst [vmem:[%s223 + $0x114] sm:$0x1] %v8135
        %v8137 = vld [vmem:[%s223 + $0x118] sm:$0xf]
        %v8138 = vsel %vm7128, %v7867, %v8137
        %8139 = vst [vmem:[%s223 + $0x118] sm:$0xf] %v8138
        %8140 = vst [vmem:[%s223 + $0x11c] sm:$0xf] %v7876
        %8141 = vst [vmem:[%s223 + $0x120] sm:$0xf] %v7885
        %8142 = vst [vmem:[%s223 + $0x124] sm:$0xf] %v7894
        %v8143 = vld [vmem:[%s223 + $0x128] sm:$0x1]
        %v8144 = vsel %vm7077, %v7895, %v8143
        %8145 = vst [vmem:[%s223 + $0x128] sm:$0x1] %v8144
        %v8146 = vld [vmem:[%s223 + $0x12c] sm:$0xf]
        %v8147 = vsel %vm7128, %v7902, %v8146
        %8148 = vst [vmem:[%s223 + $0x12c] sm:$0xf] %v8147
        %8149 = vst [vmem:[%s223 + $0x130] sm:$0xf] %v7911
        %8150 = vst [vmem:[%s223 + $0x134] sm:$0xf] %v7920
        %8151 = vst [vmem:[%s223 + $0x138] sm:$0xf] %v7929
        %v8152 = vld [vmem:[%s223 + $0x13c] sm:$0x1]
        %v8153 = vsel %vm7077, %v7930, %v8152
        %8154 = vst [vmem:[%s223 + $0x13c] sm:$0x1] %v8153
        %s8155 = sand.u32 %s94, 1
        %s8156 = scalar_lea.sflag [#allocation5], %s8155
        %s8157 = sand.u32 %s94, 1
        %s8158 = smul.addr %s8157, 320
        %s8159 = scalar_lea.vmem [#allocation8], %s8158
        %s8160 = sand.u32 %s122, 1
        %s8161 = scalar_lea.sflag [#allocation10], %s8160
        %s8162 = sand.u32 %s122, 1
        %s8163 = smul.addr %s8162, 2
        %s8164 = scalar_lea.vmem [#allocation9], %s8163
        // Predicated region
        $region37: #{tpu_custom_call.1} parent=27 // pred_check
          %p8165 = pneg %p104
        $region38: #{tpu_custom_call.1} parent=27 // pred_check_branch
          %8167 = sbr.rel (%p8165) target = $region40
        $region39: #{tpu_custom_call.1} parent=27 // pred_region
          %s8168 = smul.u32 16, %s30
          %s8170 = ssub.s32 5120, 5120
          %8171 = vsyncadd %s8156, %s8170
          %s8172 = smul.addr %s8168, 5
          %s8173 = smul.addr %s29, 160
          %s8174 = sadd.s32 %s8172, %s8173
          %s8175 = smul.addr %s8174, 64
          %s8176 = scalar_lea.hbm %s2, %s8175
          %s8177 = sshll.u32 %s8159, 4
          %s8178 = int_to_ptr.vmem [resolvable:$true] %s8177
          %8183 = dma.vmem_to_hbm [thread:$0]  %s8178, 5120, %s8176, %s8156, 64, 64, 4
        $region40: #{tpu_custom_call.1} parent=27 // pred_fallthru
          _
        // Predicated region
        $region41: #{tpu_custom_call.1} parent=27 // pred_check
          %p8184 = pneg %p132
        $region42: #{tpu_custom_call.1} parent=27 // pred_check_branch
          %8186 = sbr.rel (%p8184) target = $region44
        $region43: #{tpu_custom_call.1} parent=27 // pred_region
          %s8188 = ssub.s32 32, 32
          %8189 = vsyncadd %s8161, %s8188
          %s8190 = smul.addr %s29, 2
          %s8191 = sadd.s32 %s30, %s8190
          %s8192 = smul.addr %s8191, 32
          %s8193 = scalar_lea.hbm %s3, %s8192
          %s8195 = sshll.u32 %s8164, 4
          %s8196 = int_to_ptr.vmem [resolvable:$true] %s8195
          %8198 = dma.vmem_to_hbm [thread:$0]  %s8196, 32, %s8193, %s8161
        $region44: #{tpu_custom_call.1} parent=27 // pred_fallthru
          _
      $region28: #{tpu_custom_call.1} parent=5 // pred_fallthru
        _
      %p8199 = scmp.le.s32.totalorder 2, %s20
      // Predicated region
      $region45: #{tpu_custom_call.1} parent=5 // pred_check
        %p8200 = pneg %p8199
      $region46: #{tpu_custom_call.1} parent=5 // pred_check_branch
        %8202 = sbr.rel (%p8200) target = $region48
      $region47: #{tpu_custom_call.1} parent=5 // pred_region
        %s8203 = ssub.s32 %s20, 2
        // Predicated region
        $region49: #{tpu_custom_call.1} parent=47 // pred_check
          %p8204 = pneg %p110
        $region50: #{tpu_custom_call.1} parent=47 // pred_check_branch
          %8206 = sbr.rel (%p8204) target = $region52
        $region51: #{tpu_custom_call.1} parent=47 // pred_region
          %s8207 = sand.u32 %s95, 1
          %s8208 = scalar_lea.sflag [#allocation5], %s8207
          %s8209 = sand.u32 %s95, 1
          %s8210 = smul.addr %s8209, 320
          %s8211 = scalar_lea.vmem [#allocation8], %s8210
          %8212 = dma.done %s8208, 5120
        $region52: #{tpu_custom_call.1} parent=47 // pred_fallthru
          _
        // Predicated region
        $region53: #{tpu_custom_call.1} parent=47 // pred_check
          %p8213 = pneg %p138
        $region54: #{tpu_custom_call.1} parent=47 // pred_check_branch
          %8215 = sbr.rel (%p8213) target = $region56
        $region55: #{tpu_custom_call.1} parent=47 // pred_region
          %s8216 = sand.u32 %s123, 1
          %s8217 = scalar_lea.sflag [#allocation10], %s8216
          %s8218 = sand.u32 %s123, 1
          %s8219 = smul.addr %s8218, 2
          %s8220 = scalar_lea.vmem [#allocation9], %s8219
          %8221 = dma.done %s8217, 32
        $region56: #{tpu_custom_call.1} parent=47 // pred_fallthru
          _
      $region48: #{tpu_custom_call.1} parent=5 // pred_fallthru
        _
    $region6: #{tpu_custom_call.1} parent=1 // loop_footer
      %s24 = sadd.s32 1, %s20
    $region7: #{tpu_custom_call.1} parent=1 // loop_footer_branch
      %19 = sbr.rel target = $region3
    $region8: #{tpu_custom_call.1} parent=1 // loop_exit
      _
    %8222 = vsyncpa [#allocation4], 1
    %s8223 = scalar_lea.sflag [#allocation4], 1
    %8224 = vsyncpa %s8223, 1
    %8225 = vsyncpa [#allocation7], 1
    %8226 = vsyncpa [#allocation5], 1
    %s8227 = scalar_lea.sflag [#allocation5], 1
    %8228 = vsyncpa %s8227, 1
    %8229 = vsyncpa [#allocation10], 1
    %s8230 = scalar_lea.sflag [#allocation10], 1
    %8231 = vsyncpa %s8230, 1

</llo_original>
